<compile_context>
chip_gen: v6e
topology: v6e:2x2x1
jax: 0.10.0
libtpu: 0.0.40
codegen_flags: <defaults>
</compile_context>

<pallas_src>
import functools
import math

import jax
import jax.numpy as jnp
from jax.experimental import pallas as pl
from jax.experimental.pallas import tpu as pltpu


# ----------------------------- helpers -------------------------------------

def _get_pn(num_param):
    """Base sampling grid of the arbitrary-shaped kernel (LDConv._get_p_n)."""
    base = int(round(math.sqrt(num_param)))
    rows = num_param // base
    mod = num_param % base
    pn_x, pn_y = [], []
    for i in range(rows):
        for j in range(base):
            pn_x.append(float(i))
            pn_y.append(float(j))
    for j in range(mod):
        pn_x.append(float(rows))
        pn_y.append(float(j))
    return pn_x, pn_y


def _pick_hw_tile(hwp):
    for t in (1024, 512, 256, 128):
        if hwp % t == 0:
            return t
    return 128  # unreachable: hwp is always a multiple of 128


# ----------------------------- Pallas kernels -------------------------------

def _pool_kernel(x_ref, o_ref):
    # x_ref: (1, C, P) ; o_ref: (1, 2, P)  -> [mean over C ; max over C]
    x = x_ref[...]
    mean = jnp.mean(x, axis=1, keepdims=True)          # (1, 1, P)
    mx = jnp.max(x, axis=1, keepdims=True)             # (1, 1, P)
    # Single lane-dense store (select-by-sublane instead of two partial writes).
    sel = jax.lax.broadcasted_iota(jnp.int32, o_ref.shape, 1) == 0
    o_ref[...] = jnp.where(sel, mean, mx)


def _offset_kernel(pool_fp_ref, cr_ref, wp_ref, bp_ref, off_ref, *, W):
    # pool_fp_ref: (1, 2, HWp + 2*(W+1))  zero-padded flat pooled plane
    # cr_ref:      (2, HWp) int32         row 0 = h, row 1 = w  (only w used here)
    # wp_ref:      (2N, 18) f32           tap index = ci*9 + (dh+1)*3 + (dw+1)
    # bp_ref:      (2N, 1)  f32
    # off_ref:     (1, 2N, HWp)
    two_n, hwp = off_ref.shape[1], off_ref.shape[2]
    pad = W + 1
    wcol = cr_ref[1:2, :]                                       # (1, HWp)
    mask_m1 = (wcol >= 1).astype(jnp.float32)                   # valid iff w-1 >= 0
    mask_p1 = (wcol <= W - 2).astype(jnp.float32)               # valid iff w+1 <= W-1
    acc = jnp.zeros((two_n, hwp), jnp.float32)
    # 3x3 conv (padding=1) as 9 shifted reads of the resident flat plane + VPU FMAs.
    for dh in (-1, 0, 1):
        for dw in (-1, 0, 1):
            start = pad + dh * W + dw                           # static, >= 0
            tap = pool_fp_ref[0, :, start:start + hwp]          # (2, HWp)
            if dw == -1:
                tap = tap * mask_m1
            elif dw == 1:
                tap = tap * mask_p1
            k = (dh + 1) * 3 + (dw + 1)
            acc = acc + (wp_ref[:, k:k + 1] * tap[0:1, :]
                         + wp_ref[:, 9 + k:9 + k + 1] * tap[1:2, :])
    off_ref[0] = acc + bp_ref[...]


def _head_kernel(pool_t_ref, off_ref, x_ref, cr_ref, cw_ref, scale_ref, shift_ref,
                 o_ref, *, H, W, N, pn_x, pn_y):
    # pool_t_ref: (1, 2, W, H)   transposed pooled planes (VMEM resident, tiny)
    # off_ref:    (1, 2N, P)     per-pixel offsets for this tile
    # x_ref:      (1, C, P)      input pixels (residual / gate target)
    # cr_ref:     (2, P) int32   row 0 = h, row 1 = w of each pixel
    # cw_ref:     (C, 2N)        conv[(N,1)] weights, column = ci*N + n
    # scale_ref / shift_ref: (C, 1)  folded eval-mode BatchNorm
    # o_ref:      (1, C, P)      lane-dense output block
    P = off_ref.shape[2]
    C = o_ref.shape[1]
    h_f = cr_ref[0:1, :].astype(jnp.float32)                    # (1, P)
    w_f = cr_ref[1:2, :].astype(jnp.float32)
    off = off_ref[0]                                            # (2N, P)
    x_tile = x_ref[0].astype(jnp.float32)                       # (C, P)
    plane0 = pool_t_ref[0, 0]                                   # (W, H)
    plane1 = pool_t_ref[0, 1]
    iota_h = jax.lax.broadcasted_iota(jnp.int32, (H, P), 0)
    iota_w = jax.lax.broadcasted_iota(jnp.int32, (W, P), 0)

    y = jnp.zeros((C, P), jnp.float32)
    # TODO(synk): replace the dense two-hot row/column interpolation below with a
    # native in-kernel per-lane dynamic gather over the pooled plane once Mosaic
    # exposes one; the two-hot form is gather-free but costs O(H*W) work per sample.
    for n in range(N):
        px = h_f + pn_x[n] + off[n:n + 1, :]                    # (1, P)
        py = w_f + pn_y[n] + off[N + n:N + n + 1, :]
        fx = jnp.floor(px)
        fy = jnp.floor(py)
        qlx = jnp.clip(fx, 0.0, H - 1.0)
        qrx = jnp.clip(fx + 1.0, 0.0, H - 1.0)
        qly = jnp.clip(fy, 0.0, W - 1.0)
        qry = jnp.clip(fy + 1.0, 0.0, W - 1.0)
        pcx = jnp.clip(px, 0.0, H - 1.0)
        pcy = jnp.clip(py, 0.0, W - 1.0)
        wxl = 1.0 + qlx - pcx
        wxr = 1.0 - qrx + pcx
        wyl = 1.0 + qly - pcy
        wyr = 1.0 - qry + pcy
        # weighted two-hot interpolation matrices (exactly reproduces the 4-corner
        # bilinear sum, including the clamped-border double-weighting of AKConv)
        rx = (jnp.where(iota_h == qlx.astype(jnp.int32), wxl, 0.0)
              + jnp.where(iota_h == qrx.astype(jnp.int32), wxr, 0.0))     # (H, P)
        cy = (jnp.where(iota_w == qly.astype(jnp.int32), wyl, 0.0)
              + jnp.where(iota_w == qry.astype(jnp.int32), wyr, 0.0))     # (W, P)
        for ci, plane in ((0, plane0), (1, plane1)):
            # tmp[w, p] = sum_h pooled[ci, h, w] * rx[h, p]
            # (K = H is tiny -> VPU broadcast-FMA, keeps everything exact f32)
            tmp = jnp.zeros((W, P), jnp.float32)
            for hh in range(H):
                tmp = tmp + plane[:, hh:hh + 1] * rx[hh:hh + 1, :]
            s = jnp.sum(cy * tmp, axis=0, keepdims=True)                  # (1, P)
            # (N,1)-conv contraction (K = 2N) as VPU accumulation.
            y = y + cw_ref[:, ci * N + n:ci * N + n + 1] * s              # (C, P)

    y = y * scale_ref[...] + shift_ref[...]        # BatchNorm2d (eval, folded)
    y = y * jax.nn.sigmoid(y)                      # SiLU
    g = jax.nn.sigmoid(y)                          # attention gate
    o_ref[0] = (g * x_tile + x_tile).astype(o_ref.dtype)


# ----------------------------- wrapper --------------------------------------

def lcam_forward(x, params, num_param=5):
    B, C, H, W = x.shape
    N = num_param
    HW = H * W
    HWp = ((HW + 127) // 128) * 128
    P = _pick_hw_tile(HWp)
    n_t = HWp // P

    x_flat = x.reshape(B, C, HW)
    if HWp != HW:
        x_flat = jnp.pad(x_flat, ((0, 0), (0, 0), (0, HWp - HW)))

    # (h, w) of every (padded) flat pixel, precomputed once (keeps int div/mod out
    # of the kernels); tiny (2 * HWp * 4 bytes).
    hw_idx = jnp.arange(HWp, dtype=jnp.int32)
    colrow = jnp.stack([hw_idx // W, hw_idx % W], axis=0)            # (2, HWp)

    cparams = lambda sem: pltpu.CompilerParams(                      # noqa: E731
        dimension_semantics=sem, vmem_limit_bytes=32 * 1024 * 1024)

    # ---- kernel 1: channel pooling [GAP ; GMP] -> (B, 2, HWp), HW on lanes ----
    pooled = pl.pallas_call(
        _pool_kernel,
        out_shape=jax.ShapeDtypeStruct((B, 2, HWp), jnp.float32),
        grid=(B, n_t),
        in_specs=[pl.BlockSpec((1, C, P), lambda b, t: (b, 0, t))],
        out_specs=pl.BlockSpec((1, 2, P), lambda b, t: (b, 0, t)),
        compiler_params=cparams(("parallel", "parallel")),
    )(x_flat)

    pooled_v = pooled[:, :, :HW]                                     # valid pixels
    # transposed 2-D pooled planes for the in-kernel bilinear interpolation
    pooled_t = pooled_v.reshape(B, 2, H, W).transpose(0, 1, 3, 2)    # (B, 2, W, H)
    # zero-padded flat pooled plane for the 3x3 p_conv taps (flat padding handles
    # the dh = +-1 row boundaries; the in-kernel mask handles dw = +-1 columns)
    pad = W + 1
    pool_fp = jnp.pad(pooled_v, ((0, 0), (0, 0), (pad, HWp - HW + pad)))
    L = HWp + 2 * pad

    wp_mat = params["p_conv_w"].reshape(2 * N, 18)
    bp_col = params["p_conv_b"].reshape(2 * N, 1)

    # ---- kernel 2: 3x3 p_conv -> per-pixel offsets (B, 2N, HWp) ----
    offsets = pl.pallas_call(
        functools.partial(_offset_kernel, W=W),
        out_shape=jax.ShapeDtypeStruct((B, 2 * N, HWp), jnp.float32),
        grid=(B,),
        in_specs=[pl.BlockSpec((1, 2, L), lambda b: (b, 0, 0)),
                  pl.BlockSpec((2, HWp), lambda b: (0, 0)),
                  pl.BlockSpec((2 * N, 18), lambda b: (0, 0)),
                  pl.BlockSpec((2 * N, 1), lambda b: (0, 0))],
        out_specs=pl.BlockSpec((1, 2 * N, HWp), lambda b: (b, 0, 0)),
        compiler_params=cparams(("parallel",)),
    )(pool_fp, colrow, wp_mat, bp_col)

    # ---- kernel 3: fused deformable sample + (N,1) conv + BN + SiLU + gate ----
    cw_mat = params["conv_w"][:, :, :, 0].reshape(C, 2 * N)
    eps = 1e-5
    scale = (params["bn_gamma"] / jnp.sqrt(params["bn_var"] + eps)).reshape(C, 1)
    shift = params["bn_beta"].reshape(C, 1) - params["bn_mean"].reshape(C, 1) * scale
    pn_x, pn_y = _get_pn(N)

    out_flat = pl.pallas_call(
        functools.partial(_head_kernel, H=H, W=W, N=N,
                          pn_x=tuple(pn_x), pn_y=tuple(pn_y)),
        out_shape=jax.ShapeDtypeStruct((B, C, HWp), x.dtype),
        grid=(B, n_t),
        in_specs=[pl.BlockSpec((1, 2, W, H), lambda b, t: (b, 0, 0, 0)),
                  pl.BlockSpec((1, 2 * N, P), lambda b, t: (b, 0, t)),
                  pl.BlockSpec((1, C, P), lambda b, t: (b, 0, t)),
                  pl.BlockSpec((2, P), lambda b, t: (0, t)),
                  pl.BlockSpec((C, 2 * N), lambda b, t: (0, 0)),
                  pl.BlockSpec((C, 1), lambda b, t: (0, 0)),
                  pl.BlockSpec((C, 1), lambda b, t: (0, 0))],
        out_specs=pl.BlockSpec((1, C, P), lambda b, t: (b, 0, t)),
        compiler_params=cparams(("parallel", "parallel")),
    )(pooled_t, offsets, x_flat, colrow, cw_mat, scale, shift)

    return out_flat[:, :, :HW].reshape(B, C, H, W)


# ----------------------------- pure-JAX reference ----------------------------

def _ref_ldconv_sample(pooled, offset, N):
    # pooled (B,2,H,W), offset (B,2N,H,W) -> x_off (B,2,H,W,N)  (gather-based path,
    # independent of the kernel's two-hot formulation)
    B, Cp, H, W = pooled.shape
    pn_x, pn_y = _get_pn(N)
    pn_x = jnp.asarray(pn_x, jnp.float32)
    pn_y = jnp.asarray(pn_y, jnp.float32)
    off = offset.transpose(0, 2, 3, 1)                               # (B,H,W,2N)
    h_grid = jnp.arange(H, dtype=jnp.float32)[None, :, None, None]
    w_grid = jnp.arange(W, dtype=jnp.float32)[None, None, :, None]
    px = h_grid + pn_x[None, None, None, :] + off[..., :N]
    py = w_grid + pn_y[None, None, None, :] + off[..., N:]
    q_lt_x = jnp.clip(jnp.floor(px), 0, H - 1)
    q_lt_y = jnp.clip(jnp.floor(py), 0, W - 1)
    q_rb_x = jnp.clip(jnp.floor(px) + 1, 0, H - 1)
    q_rb_y = jnp.clip(jnp.floor(py) + 1, 0, W - 1)
    pcx = jnp.clip(px, 0, H - 1)
    pcy = jnp.clip(py, 0, W - 1)
    g_lt = (1 + (q_lt_x - pcx)) * (1 + (q_lt_y - pcy))
    g_rb = (1 - (q_rb_x - pcx)) * (1 - (q_rb_y - pcy))
    g_lb = (1 + (q_lt_x - pcx)) * (1 - (q_rb_y - pcy))
    g_rt = (1 - (q_rb_x - pcx)) * (1 + (q_lt_y - pcy))
    pooled_flat = pooled.reshape(B, Cp, H * W)

    def gather(qx, qy):
        idx = (qx.astype(jnp.int32) * W + qy.astype(jnp.int32)).reshape(B, 1, -1)
        idx = jnp.broadcast_to(idx, (B, Cp, idx.shape[-1]))
        g = jnp.take_along_axis(pooled_flat, idx, axis=-1)
        return g.reshape(B, Cp, H, W, N)

    x_lt = gather(q_lt_x, q_lt_y)
    x_rb = gather(q_rb_x, q_rb_y)
    x_lb = gather(q_lt_x, q_rb_y)
    x_rt = gather(q_rb_x, q_lt_y)
    return (g_lt[:, None] * x_lt + g_rb[:, None] * x_rb +
            g_lb[:, None] * x_lb + g_rt[:, None] * x_rt)


def lcam_ref(x, params, num_param=5):
    B, C, H, W = x.shape
    N = num_param
    pooled = jnp.concatenate([jnp.mean(x, axis=1, keepdims=True),
                              jnp.max(x, axis=1, keepdims=True)], axis=1)
    # 3x3 p_conv with padding=1 as explicit taps (exact f32 elementwise math).
    wp = params["p_conv_w"]
    bp = params["p_conv_b"]
    pp = jnp.pad(pooled, ((0, 0), (0, 0), (1, 1), (1, 1)))
    offset = jnp.zeros((B, 2 * N, H, W), jnp.float32) + bp[None, :, None, None]
    for kh in range(3):
        for kw in range(3):
            patch = pp[:, :, kh:kh + H, kw:kw + W]
            offset = offset + (wp[:, 0, kh, kw][None, :, None, None] * patch[:, 0:1]
                               + wp[:, 1, kh, kw][None, :, None, None] * patch[:, 1:2])
    x_off = _ref_ldconv_sample(pooled, offset, N)                    # (B,2,H,W,N)
    cw = params["conv_w"][:, :, :, 0]                                # (C,2,N)
    y = jnp.zeros((B, C, H, W), jnp.float32)
    for ci in range(2):
        for n in range(N):
            y = y + cw[:, ci, n][None, :, None, None] * x_off[:, ci, :, :, n][:, None]
    eps = 1e-5
    scale = params["bn_gamma"] / jnp.sqrt(params["bn_var"] + eps)
    shift = params["bn_beta"] - params["bn_mean"] * scale
    y = y * scale[None, :, None, None] + shift[None, :, None, None]
    y = y * jax.nn.sigmoid(y)
    return jax.nn.sigmoid(y) * x + x


# ----------------------------- main ------------------------------------------

if __name__ == "__main__":
    B, C, H, W = 2, 4, 16, 16
    NUM_PARAM = 5

    key = jax.random.PRNGKey(0)
    kx, kb, kw, kpw = jax.random.split(key, 4)
    x = jax.random.normal(kx, (B, C, H, W), jnp.float32)

    fan_in_p = 2 * 3 * 3
    bound = 1.0 / math.sqrt(fan_in_p)
    params = {
        # LDConv.p_conv = Conv2d(2, 2*num_param, 3, padding=1).  The module zero-
        # initializes this weight; a small random weight is used here so the
        # deformable-sampling path is genuinely exercised by the check.
        "p_conv_w": 0.3 * jax.random.normal(kpw, (2 * NUM_PARAM, 2, 3, 3), jnp.float32),
        "p_conv_b": jax.random.uniform(kb, (2 * NUM_PARAM,), jnp.float32, -bound, bound),
        # LDConv.conv[0] = Conv2d(2, dim, (num_param, 1), stride=(num_param, 1), bias=False)
        "conv_w": jax.random.normal(kw, (C, 2, NUM_PARAM, 1), jnp.float32)
                  * math.sqrt(2.0 / (2 * NUM_PARAM)),
        # BatchNorm2d(dim), eval-mode running stats at init values.
        "bn_gamma": jnp.ones((C,), jnp.float32),
        "bn_beta": jnp.zeros((C,), jnp.float32),
        "bn_mean": jnp.zeros((C,), jnp.float32),
        "bn_var": jnp.ones((C,), jnp.float32),
    }

    out = jax.jit(lambda a: lcam_forward(a, params, NUM_PARAM))(x)
    out = jax.block_until_ready(out)

    ref = lcam_ref(x, params, NUM_PARAM)
    assert out.shape == x.shape
    err = float(jnp.max(jnp.abs(out - ref)))
    assert err < 5e-4, err
    print("KERNEL_OK")
</pallas_src>

<mosaic_0001>
module attributes {stable_mosaic.version = 11 : i64} {
  func.func @_pool_kernel(%arg0: i32, %arg1: i32, %arg2: memref<1x4x256xf32, #tpu.memory_space<vmem>>, %arg3: memref<1x2x256xf32, #tpu.memory_space<vmem>>) attributes {dimension_semantics = [#tpu.dimension_semantics<parallel>, #tpu.dimension_semantics<parallel>], iteration_bounds = array<i64: 2, 1>, scalar_prefetch = 0 : i64, scratch_operands = 0 : i64, tpu.core_type = #tpu.core_type<tc>, window_params = [{transform_indices = @transform_0, window_bounds = array<i64: 1, 4, 256>}, {transform_indices = @transform_1, window_bounds = array<i64: 1, 2, 256>}]} {
    %c0 = arith.constant 0 : index
    %c0_0 = arith.constant 0 : index
    %c0_1 = arith.constant 0 : index
    %0 = vector.load %arg2[%c0, %c0_0, %c0_1] : memref<1x4x256xf32, #tpu.memory_space<vmem>>, vector<1x4x256xf32>
    %cst = arith.constant dense<0.000000e+00> : vector<1x256xf32>
    %1 = vector.multi_reduction <add>, %0, %cst [1] : vector<1x4x256xf32> to vector<1x256xf32>
    %2 = vector.shape_cast %1 : vector<1x256xf32> to vector<1x1x256xf32>
    %cst_2 = arith.constant 4.000000e+00 : f32
    %3 = vector.broadcast %cst_2 : f32 to vector<1x1x256xf32>
    %4 = arith.divf %2, %3 : vector<1x1x256xf32>
    %cst_3 = arith.constant dense<0xFF800000> : vector<1x256xf32>
    %5 = vector.multi_reduction <maximumf>, %0, %cst_3 [1] : vector<1x4x256xf32> to vector<1x256xf32>
    %6 = vector.shape_cast %5 : vector<1x256xf32> to vector<1x1x256xf32>
    %7 = tpu.iota {dimensions = array<i32: 1>} : vector<1x2x256xi32>
    %c0_i32 = arith.constant 0 : i32
    %8 = vector.broadcast %c0_i32 : i32 to vector<1x2x256xi32>
    %9 = arith.cmpi eq, %7, %8 : vector<1x2x256xi32>
    %10 = vector.shape_cast %4 : vector<1x1x256xf32> to vector<1x1x256xf32>
    %11 = vector.broadcast %10 : vector<1x1x256xf32> to vector<1x2x256xf32>
    %12 = vector.shape_cast %6 : vector<1x1x256xf32> to vector<1x1x256xf32>
    %13 = vector.broadcast %12 : vector<1x1x256xf32> to vector<1x2x256xf32>
    %14 = arith.select %9, %11, %13 : vector<1x2x256xi1>, vector<1x2x256xf32>
    %c0_4 = arith.constant 0 : index
    %c0_5 = arith.constant 0 : index
    %c0_6 = arith.constant 0 : index
    %15 = vector.load %arg3[%c0_4, %c0_5, %c0_6] : memref<1x2x256xf32, #tpu.memory_space<vmem>>, vector<1x2x256xf32>
    tpu.vector_store %arg3[%c0_4, %c0_5, %c0_6], %14 {strides = array<i32>} : memref<1x2x256xf32, #tpu.memory_space<vmem>>, vector<1x2x256xf32>,
    return
  }
  func.func @transform_0(%arg0: i32, %arg1: i32) -> (i32, i32, i32) {
    %c0_i32 = arith.constant 0 : i32
    %c0_i32_0 = arith.constant 0 : i32
    return %arg0, %c0_i32, %arg1 : i32, i32, i32
  }
  func.func @transform_1(%arg0: i32, %arg1: i32) -> (i32, i32, i32) {
    %c0_i32 = arith.constant 0 : i32
    %c0_i32_0 = arith.constant 0 : i32
    return %arg0, %c0_i32, %arg1 : i32, i32, i32
  }
}

module attributes {stable_mosaic.version = 11 : i64} {
  func.func @_offset_kernel(%arg0: i32, %arg1: memref<1x2x290xf32, #tpu.memory_space<vmem>>, %arg2: memref<2x256xi32, #tpu.memory_space<vmem>>, %arg3: memref<10x18xf32, #tpu.memory_space<vmem>>, %arg4: memref<10x1xf32, #tpu.memory_space<vmem>>, %arg5: memref<1x10x256xf32, #tpu.memory_space<vmem>>) attributes {dimension_semantics = [#tpu.dimension_semantics<parallel>], iteration_bounds = array<i64: 2>, scalar_prefetch = 0 : i64, scratch_operands = 0 : i64, tpu.core_type = #tpu.core_type<tc>, window_params = [{transform_indices = @transform_0, window_bounds = array<i64: 1, 2, 290>}, {pipeline_mode = #tpu.pipeline_mode<synchronous>, transform_indices = @transform_1, window_bounds = array<i64: 2, 256>}, {pipeline_mode = #tpu.pipeline_mode<synchronous>, transform_indices = @transform_2, window_bounds = array<i64: 10, 18>}, {pipeline_mode = #tpu.pipeline_mode<synchronous>, transform_indices = @transform_3, window_bounds = array<i64: 10, 1>}, {transform_indices = @transform_4, window_bounds = array<i64: 1, 10, 256>}]} {
    %c1 = arith.constant 1 : index
    %c0 = arith.constant 0 : index
    %0 = vector.load %arg2[%c1, %c0] : memref<2x256xi32, #tpu.memory_space<vmem>>, vector<1x256xi32>
    %c1_i32 = arith.constant 1 : i32
    %1 = vector.broadcast %c1_i32 : i32 to vector<1x256xi32>
    %2 = arith.cmpi sge, %0, %1 : vector<1x256xi32>
    %3 = arith.extui %2 : vector<1x256xi1> to vector<1x256xi32>
    %4 = arith.sitofp %3 : vector<1x256xi32> to vector<1x256xf32>
    %c14_i32 = arith.constant 14 : i32
    %5 = vector.broadcast %c14_i32 : i32 to vector<1x256xi32>
    %6 = arith.cmpi sle, %0, %5 : vector<1x256xi32>
    %7 = arith.extui %6 : vector<1x256xi1> to vector<1x256xi32>
    %8 = arith.sitofp %7 : vector<1x256xi32> to vector<1x256xf32>
    %cst = arith.constant 0.000000e+00 : f32
    %9 = vector.broadcast %cst : f32 to vector<10x256xf32>
    %c0_0 = arith.constant 0 : index
    %c0_1 = arith.constant 0 : index
    %c0_2 = arith.constant 0 : index
    %10 = vector.load %arg1[%c0_0, %c0_1, %c0_2] : memref<1x2x290xf32, #tpu.memory_space<vmem>>, vector<1x2x256xf32>
    %11 = vector.shape_cast %10 : vector<1x2x256xf32> to vector<2x256xf32>
    %12 = vector.broadcast %4 : vector<1x256xf32> to vector<2x256xf32>
    %13 = arith.mulf %11, %12 : vector<2x256xf32>
    %c0_3 = arith.constant 0 : index
    %c0_4 = arith.constant 0 : index
    %14 = vector.load %arg3[%c0_3, %c0_4] : memref<10x18xf32, #tpu.memory_space<vmem>>, vector<10x1xf32>
    %15 = vector.extract_strided_slice %13 {offsets = [0, 0], sizes = [1, 256], strides = [1, 1]} : vector<2x256xf32> to vector<1x256xf32>
    %16 = vector.broadcast %14 : vector<10x1xf32> to vector<10x256xf32>
    %17 = vector.broadcast %15 : vector<1x256xf32> to vector<10x256xf32>
    %18 = arith.mulf %16, %17 : vector<10x256xf32>
    %c0_5 = arith.constant 0 : index
    %c9 = arith.constant 9 : index
    %19 = vector.load %arg3[%c0_5, %c9] : memref<10x18xf32, #tpu.memory_space<vmem>>, vector<10x1xf32>
    %20 = vector.extract_strided_slice %13 {offsets = [1, 0], sizes = [1, 256], strides = [1, 1]} : vector<2x256xf32> to vector<1x256xf32>
    %21 = vector.broadcast %19 : vector<10x1xf32> to vector<10x256xf32>
    %22 = vector.broadcast %20 : vector<1x256xf32> to vector<10x256xf32>
    %23 = arith.mulf %21, %22 : vector<10x256xf32>
    %24 = arith.addf %18, %23 : vector<10x256xf32>
    %25 = arith.addf %9, %24 : vector<10x256xf32>
    %c0_6 = arith.constant 0 : index
    %c0_7 = arith.constant 0 : index
    %c1_8 = arith.constant 1 : index
    %26 = vector.load %arg1[%c0_6, %c0_7, %c1_8] : memref<1x2x290xf32, #tpu.memory_space<vmem>>, vector<1x2x256xf32>
    %27 = vector.shape_cast %26 : vector<1x2x256xf32> to vector<2x256xf32>
    %c0_9 = arith.constant 0 : index
    %c1_10 = arith.constant 1 : index
    %28 = vector.load %arg3[%c0_9, %c1_10] : memref<10x18xf32, #tpu.memory_space<vmem>>, vector<10x1xf32>
    %29 = vector.extract_strided_slice %27 {offsets = [0, 0], sizes = [1, 256], strides = [1, 1]} : vector<2x256xf32> to vector<1x256xf32>
    %30 = vector.broadcast %28 : vector<10x1xf32> to vector<10x256xf32>
    %31 = vector.broadcast %29 : vector<1x256xf32> to vector<10x256xf32>
    %32 = arith.mulf %30, %31 : vector<10x256xf32>
    %c0_11 = arith.constant 0 : index
    %c10 = arith.constant 10 : index
    %33 = vector.load %arg3[%c0_11, %c10] : memref<10x18xf32, #tpu.memory_space<vmem>>, vector<10x1xf32>
    %34 = vector.extract_strided_slice %27 {offsets = [1, 0], sizes = [1, 256], strides = [1, 1]} : vector<2x256xf32> to vector<1x256xf32>
    %35 = vector.broadcast %33 : vector<10x1xf32> to vector<10x256xf32>
    %36 = vector.broadcast %34 : vector<1x256xf32> to vector<10x256xf32>
    %37 = arith.mulf %35, %36 : vector<10x256xf32>
    %38 = arith.addf %32, %37 : vector<10x256xf32>
    %39 = arith.addf %25, %38 : vector<10x256xf32>
    %c0_12 = arith.constant 0 : index
    %c0_13 = arith.constant 0 : index
    %c2 = arith.constant 2 : index
    %40 = vector.load %arg1[%c0_12, %c0_13, %c2] : memref<1x2x290xf32, #tpu.memory_space<vmem>>, vector<1x2x256xf32>
    %41 = vector.shape_cast %40 : vector<1x2x256xf32> to vector<2x256xf32>
    %42 = vector.broadcast %8 : vector<1x256xf32> to vector<2x256xf32>
    %43 = arith.mulf %41, %42 : vector<2x256xf32>
    %c0_14 = arith.constant 0 : index
    %c2_15 = arith.constant 2 : index
    %44 = vector.load %arg3[%c0_14, %c2_15] : memref<10x18xf32, #tpu.memory_space<vmem>>, vector<10x1xf32>
    %45 = vector.extract_strided_slice %43 {offsets = [0, 0], sizes = [1, 256], strides = [1, 1]} : vector<2x256xf32> to vector<1x256xf32>
    %46 = vector.broadcast %44 : vector<10x1xf32> to vector<10x256xf32>
    %47 = vector.broadcast %45 : vector<1x256xf32> to vector<10x256xf32>
    %48 = arith.mulf %46, %47 : vector<10x256xf32>
    %c0_16 = arith.constant 0 : index
    %c11 = arith.constant 11 : index
    %49 = vector.load %arg3[%c0_16, %c11] : memref<10x18xf32, #tpu.memory_space<vmem>>, vector<10x1xf32>
    %50 = vector.extract_strided_slice %43 {offsets = [1, 0], sizes = [1, 256], strides = [1, 1]} : vector<2x256xf32> to vector<1x256xf32>
    %51 = vector.broadcast %49 : vector<10x1xf32> to vector<10x256xf32>
    %52 = vector.broadcast %50 : vector<1x256xf32> to vector<10x256xf32>
    %53 = arith.mulf %51, %52 : vector<10x256xf32>
    %54 = arith.addf %48, %53 : vector<10x256xf32>
    %55 = arith.addf %39, %54 : vector<10x256xf32>
    %c0_17 = arith.constant 0 : index
    %c0_18 = arith.constant 0 : index
    %c16 = arith.constant 16 : index
    %56 = vector.load %arg1[%c0_17, %c0_18, %c16] : memref<1x2x290xf32, #tpu.memory_space<vmem>>, vector<1x2x256xf32>
    %57 = vector.shape_cast %56 : vector<1x2x256xf32> to vector<2x256xf32>
    %58 = vector.broadcast %4 : vector<1x256xf32> to vector<2x256xf32>
    %59 = arith.mulf %57, %58 : vector<2x256xf32>
    %c0_19 = arith.constant 0 : index
    %c3 = arith.constant 3 : index
    %60 = vector.load %arg3[%c0_19, %c3] : memref<10x18xf32, #tpu.memory_space<vmem>>, vector<10x1xf32>
    %61 = vector.extract_strided_slice %59 {offsets = [0, 0], sizes = [1, 256], strides = [1, 1]} : vector<2x256xf32> to vector<1x256xf32>
    %62 = vector.broadcast %60 : vector<10x1xf32> to vector<10x256xf32>
    %63 = vector.broadcast %61 : vector<1x256xf32> to vector<10x256xf32>
    %64 = arith.mulf %62, %63 : vector<10x256xf32>
    %c0_20 = arith.constant 0 : index
    %c12 = arith.constant 12 : index
    %65 = vector.load %arg3[%c0_20, %c12] : memref<10x18xf32, #tpu.memory_space<vmem>>, vector<10x1xf32>
    %66 = vector.extract_strided_slice %59 {offsets = [1, 0], sizes = [1, 256], strides = [1, 1]} : vector<2x256xf32> to vector<1x256xf32>
    %67 = vector.broadcast %65 : vector<10x1xf32> to vector<10x256xf32>
    %68 = vector.broadcast %66 : vector<1x256xf32> to vector<10x256xf32>
    %69 = arith.mulf %67, %68 : vector<10x256xf32>
    %70 = arith.addf %64, %69 : vector<10x256xf32>
    %71 = arith.addf %55, %70 : vector<10x256xf32>
    %c0_21 = arith.constant 0 : index
    %c0_22 = arith.constant 0 : index
    %c17 = arith.constant 17 : index
    %72 = vector.load %arg1[%c0_21, %c0_22, %c17] : memref<1x2x290xf32, #tpu.memory_space<vmem>>, vector<1x2x256xf32>
    %73 = vector.shape_cast %72 : vector<1x2x256xf32> to vector<2x256xf32>
    %c0_23 = arith.constant 0 : index
    %c4 = arith.constant 4 : index
    %74 = vector.load %arg3[%c0_23, %c4] : memref<10x18xf32, #tpu.memory_space<vmem>>, vector<10x1xf32>
    %75 = vector.extract_strided_slice %73 {offsets = [0, 0], sizes = [1, 256], strides = [1, 1]} : vector<2x256xf32> to vector<1x256xf32>
    %76 = vector.broadcast %74 : vector<10x1xf32> to vector<10x256xf32>
    %77 = vector.broadcast %75 : vector<1x256xf32> to vector<10x256xf32>
    %78 = arith.mulf %76, %77 : vector<10x256xf32>
    %c0_24 = arith.constant 0 : index
    %c13 = arith.constant 13 : index
    %79 = vector.load %arg3[%c0_24, %c13] : memref<10x18xf32, #tpu.memory_space<vmem>>, vector<10x1xf32>
    %80 = vector.extract_strided_slice %73 {offsets = [1, 0], sizes = [1, 256], strides = [1, 1]} : vector<2x256xf32> to vector<1x256xf32>
    %81 = vector.broadcast %79 : vector<10x1xf32> to vector<10x256xf32>
    %82 = vector.broadcast %80 : vector<1x256xf32> to vector<10x256xf32>
    %83 = arith.mulf %81, %82 : vector<10x256xf32>
    %84 = arith.addf %78, %83 : vector<10x256xf32>
    %85 = arith.addf %71, %84 : vector<10x256xf32>
    %c0_25 = arith.constant 0 : index
    %c0_26 = arith.constant 0 : index
    %c18 = arith.constant 18 : index
    %86 = vector.load %arg1[%c0_25, %c0_26, %c18] : memref<1x2x290xf32, #tpu.memory_space<vmem>>, vector<1x2x256xf32>
    %87 = vector.shape_cast %86 : vector<1x2x256xf32> to vector<2x256xf32>
    %88 = vector.broadcast %8 : vector<1x256xf32> to vector<2x256xf32>
    %89 = arith.mulf %87, %88 : vector<2x256xf32>
    %c0_27 = arith.constant 0 : index
    %c5 = arith.constant 5 : index
    %90 = vector.load %arg3[%c0_27, %c5] : memref<10x18xf32, #tpu.memory_space<vmem>>, vector<10x1xf32>
    %91 = vector.extract_strided_slice %89 {offsets = [0, 0], sizes = [1, 256], strides = [1, 1]} : vector<2x256xf32> to vector<1x256xf32>
    %92 = vector.broadcast %90 : vector<10x1xf32> to vector<10x256xf32>
    %93 = vector.broadcast %91 : vector<1x256xf32> to vector<10x256xf32>
    %94 = arith.mulf %92, %93 : vector<10x256xf32>
    %c0_28 = arith.constant 0 : index
    %c14 = arith.constant 14 : index
    %95 = vector.load %arg3[%c0_28, %c14] : memref<10x18xf32, #tpu.memory_space<vmem>>, vector<10x1xf32>
    %96 = vector.extract_strided_slice %89 {offsets = [1, 0], sizes = [1, 256], strides = [1, 1]} : vector<2x256xf32> to vector<1x256xf32>
    %97 = vector.broadcast %95 : vector<10x1xf32> to vector<10x256xf32>
    %98 = vector.broadcast %96 : vector<1x256xf32> to vector<10x256xf32>
    %99 = arith.mulf %97, %98 : vector<10x256xf32>
    %100 = arith.addf %94, %99 : vector<10x256xf32>
    %101 = arith.addf %85, %100 : vector<10x256xf32>
    %c0_29 = arith.constant 0 : index
    %c0_30 = arith.constant 0 : index
    %c32 = arith.constant 32 : index
    %102 = vector.load %arg1[%c0_29, %c0_30, %c32] : memref<1x2x290xf32, #tpu.memory_space<vmem>>, vector<1x2x256xf32>
    %103 = vector.shape_cast %102 : vector<1x2x256xf32> to vector<2x256xf32>
    %104 = vector.broadcast %4 : vector<1x256xf32> to vector<2x256xf32>
    %105 = arith.mulf %103, %104 : vector<2x256xf32>
    %c0_31 = arith.constant 0 : index
    %c6 = arith.constant 6 : index
    %106 = vector.load %arg3[%c0_31, %c6] : memref<10x18xf32, #tpu.memory_space<vmem>>, vector<10x1xf32>
    %107 = vector.extract_strided_slice %105 {offsets = [0, 0], sizes = [1, 256], strides = [1, 1]} : vector<2x256xf32> to vector<1x256xf32>
    %108 = vector.broadcast %106 : vector<10x1xf32> to vector<10x256xf32>
    %109 = vector.broadcast %107 : vector<1x256xf32> to vector<10x256xf32>
    %110 = arith.mulf %108, %109 : vector<10x256xf32>
    %c0_32 = arith.constant 0 : index
    %c15 = arith.constant 15 : index
    %111 = vector.load %arg3[%c0_32, %c15] : memref<10x18xf32, #tpu.memory_space<vmem>>, vector<10x1xf32>
    %112 = vector.extract_strided_slice %105 {offsets = [1, 0], sizes = [1, 256], strides = [1, 1]} : vector<2x256xf32> to vector<1x256xf32>
    %113 = vector.broadcast %111 : vector<10x1xf32> to vector<10x256xf32>
    %114 = vector.broadcast %112 : vector<1x256xf32> to vector<10x256xf32>
    %115 = arith.mulf %113, %114 : vector<10x256xf32>
    %116 = arith.addf %110, %115 : vector<10x256xf32>
    %117 = arith.addf %101, %116 : vector<10x256xf32>
    %c0_33 = arith.constant 0 : index
    %c0_34 = arith.constant 0 : index
    %c33 = arith.constant 33 : index
    %118 = vector.load %arg1[%c0_33, %c0_34, %c33] : memref<1x2x290xf32, #tpu.memory_space<vmem>>, vector<1x2x256xf32>
    %119 = vector.shape_cast %118 : vector<1x2x256xf32> to vector<2x256xf32>
    %c0_35 = arith.constant 0 : index
    %c7 = arith.constant 7 : index
    %120 = vector.load %arg3[%c0_35, %c7] : memref<10x18xf32, #tpu.memory_space<vmem>>, vector<10x1xf32>
    %121 = vector.extract_strided_slice %119 {offsets = [0, 0], sizes = [1, 256], strides = [1, 1]} : vector<2x256xf32> to vector<1x256xf32>
    %122 = vector.broadcast %120 : vector<10x1xf32> to vector<10x256xf32>
    %123 = vector.broadcast %121 : vector<1x256xf32> to vector<10x256xf32>
    %124 = arith.mulf %122, %123 : vector<10x256xf32>
    %c0_36 = arith.constant 0 : index
    %c16_37 = arith.constant 16 : index
    %125 = vector.load %arg3[%c0_36, %c16_37] : memref<10x18xf32, #tpu.memory_space<vmem>>, vector<10x1xf32>
    %126 = vector.extract_strided_slice %119 {offsets = [1, 0], sizes = [1, 256], strides = [1, 1]} : vector<2x256xf32> to vector<1x256xf32>
    %127 = vector.broadcast %125 : vector<10x1xf32> to vector<10x256xf32>
    %128 = vector.broadcast %126 : vector<1x256xf32> to vector<10x256xf32>
    %129 = arith.mulf %127, %128 : vector<10x256xf32>
    %130 = arith.addf %124, %129 : vector<10x256xf32>
    %131 = arith.addf %117, %130 : vector<10x256xf32>
    %c0_38 = arith.constant 0 : index
    %c0_39 = arith.constant 0 : index
    %c34 = arith.constant 34 : index
    %132 = vector.load %arg1[%c0_38, %c0_39, %c34] : memref<1x2x290xf32, #tpu.memory_space<vmem>>, vector<1x2x256xf32>
    %133 = vector.shape_cast %132 : vector<1x2x256xf32> to vector<2x256xf32>
    %134 = vector.broadcast %8 : vector<1x256xf32> to vector<2x256xf32>
    %135 = arith.mulf %133, %134 : vector<2x256xf32>
    %c0_40 = arith.constant 0 : index
    %c8 = arith.constant 8 : index
    %136 = vector.load %arg3[%c0_40, %c8] : memref<10x18xf32, #tpu.memory_space<vmem>>, vector<10x1xf32>
    %137 = vector.extract_strided_slice %135 {offsets = [0, 0], sizes = [1, 256], strides = [1, 1]} : vector<2x256xf32> to vector<1x256xf32>
    %138 = vector.broadcast %136 : vector<10x1xf32> to vector<10x256xf32>
    %139 = vector.broadcast %137 : vector<1x256xf32> to vector<10x256xf32>
    %140 = arith.mulf %138, %139 : vector<10x256xf32>
    %c0_41 = arith.constant 0 : index
    %c17_42 = arith.constant 17 : index
    %141 = vector.load %arg3[%c0_41, %c17_42] : memref<10x18xf32, #tpu.memory_space<vmem>>, vector<10x1xf32>
    %142 = vector.extract_strided_slice %135 {offsets = [1, 0], sizes = [1, 256], strides = [1, 1]} : vector<2x256xf32> to vector<1x256xf32>
    %143 = vector.broadcast %141 : vector<10x1xf32> to vector<10x256xf32>
    %144 = vector.broadcast %142 : vector<1x256xf32> to vector<10x256xf32>
    %145 = arith.mulf %143, %144 : vector<10x256xf32>
    %146 = arith.addf %140, %145 : vector<10x256xf32>
    %147 = arith.addf %131, %146 : vector<10x256xf32>
    %c0_43 = arith.constant 0 : index
    %c0_44 = arith.constant 0 : index
    %148 = vector.load %arg4[%c0_43, %c0_44] : memref<10x1xf32, #tpu.memory_space<vmem>>, vector<10x1xf32>
    %149 = vector.broadcast %148 : vector<10x1xf32> to vector<10x256xf32>
    %150 = arith.addf %147, %149 : vector<10x256xf32>
    %c0_45 = arith.constant 0 : index
    %c0_46 = arith.constant 0 : index
    %c0_47 = arith.constant 0 : index
    %151 = vector.load %arg5[%c0_45, %c0_46, %c0_47] : memref<1x10x256xf32, #tpu.memory_space<vmem>>, vector<1x10x256xf32>
    %152 = vector.shape_cast %151 : vector<1x10x256xf32> to vector<10x256xf32>
    %153 = vector.shape_cast %150 : vector<10x256xf32> to vector<1x10x256xf32>
    tpu.vector_store %arg5[%c0_45, %c0_46, %c0_47], %153 {strides = array<i32>} : memref<1x10x256xf32, #tpu.memory_space<vmem>>, vector<1x10x256xf32>,
    return
  }
  func.func @transform_0(%arg0: i32) -> (i32, i32, i32) {
    %c0_i32 = arith.constant 0 : i32
    %c0_i32_0 = arith.constant 0 : i32
    %c0_i32_1 = arith.constant 0 : i32
    return %arg0, %c0_i32, %c0_i32_0 : i32, i32, i32
  }
  func.func @transform_1(%arg0: i32) -> (i32, i32) {
    %c0_i32 = arith.constant 0 : i32
    %c0_i32_0 = arith.constant 0 : i32
    %c0_i32_1 = arith.constant 0 : i32
    return %c0_i32, %c0_i32_0 : i32, i32
  }
  func.func @transform_2(%arg0: i32) -> (i32, i32) {
    %c0_i32 = arith.constant 0 : i32
    %c0_i32_0 = arith.constant 0 : i32
    %c0_i32_1 = arith.constant 0 : i32
    return %c0_i32, %c0_i32_0 : i32, i32
  }
  func.func @transform_3(%arg0: i32) -> (i32, i32) {
    %c0_i32 = arith.constant 0 : i32
    %c0_i32_0 = arith.constant 0 : i32
    %c0_i32_1 = arith.constant 0 : i32
    return %c0_i32, %c0_i32_0 : i32, i32
  }
  func.func @transform_4(%arg0: i32) -> (i32, i32, i32) {
    %c0_i32 = arith.constant 0 : i32
    %c0_i32_0 = arith.constant 0 : i32
    %c0_i32_1 = arith.constant 0 : i32
    return %arg0, %c0_i32, %c0_i32_0 : i32, i32, i32
  }
}

module attributes {stable_mosaic.version = 11 : i64} {
  func.func @_head_kernel(%arg0: i32, %arg1: i32, %arg2: memref<1x2x16x16xf32, #tpu.memory_space<vmem>>, %arg3: memref<1x10x256xf32, #tpu.memory_space<vmem>>, %arg4: memref<1x4x256xf32, #tpu.memory_space<vmem>>, %arg5: memref<2x256xi32, #tpu.memory_space<vmem>>, %arg6: memref<4x10xf32, #tpu.memory_space<vmem>>, %arg7: memref<4x1xf32, #tpu.memory_space<vmem>>, %arg8: memref<4x1xf32, #tpu.memory_space<vmem>>, %arg9: memref<1x4x256xf32, #tpu.memory_space<vmem>>) attributes {dimension_semantics = [#tpu.dimension_semantics<parallel>, #tpu.dimension_semantics<parallel>], iteration_bounds = array<i64: 2, 1>, scalar_prefetch = 0 : i64, scratch_operands = 0 : i64, tpu.core_type = #tpu.core_type<tc>, window_params = [{transform_indices = @transform_0, window_bounds = array<i64: 1, 2, 16, 16>}, {transform_indices = @transform_1, window_bounds = array<i64: 1, 10, 256>}, {transform_indices = @transform_2, window_bounds = array<i64: 1, 4, 256>}, {transform_indices = @transform_3, window_bounds = array<i64: 2, 256>}, {pipeline_mode = #tpu.pipeline_mode<synchronous>, transform_indices = @transform_4, window_bounds = array<i64: 4, 10>}, {pipeline_mode = #tpu.pipeline_mode<synchronous>, transform_indices = @transform_5, window_bounds = array<i64: 4, 1>}, {pipeline_mode = #tpu.pipeline_mode<synchronous>, transform_indices = @transform_6, window_bounds = array<i64: 4, 1>}, {transform_indices = @transform_7, window_bounds = array<i64: 1, 4, 256>}]} {
    %c0 = arith.constant 0 : index
    %c0_0 = arith.constant 0 : index
    %0 = vector.load %arg5[%c0, %c0_0] : memref<2x256xi32, #tpu.memory_space<vmem>>, vector<1x256xi32>
    %1 = arith.sitofp %0 : vector<1x256xi32> to vector<1x256xf32>
    %c1 = arith.constant 1 : index
    %c0_1 = arith.constant 0 : index
    %2 = vector.load %arg5[%c1, %c0_1] : memref<2x256xi32, #tpu.memory_space<vmem>>, vector<1x256xi32>
    %3 = arith.sitofp %2 : vector<1x256xi32> to vector<1x256xf32>
    %c0_2 = arith.constant 0 : index
    %c0_3 = arith.constant 0 : index
    %c0_4 = arith.constant 0 : index
    %4 = vector.load %arg3[%c0_2, %c0_3, %c0_4] : memref<1x10x256xf32, #tpu.memory_space<vmem>>, vector<1x10x256xf32>
    %5 = vector.shape_cast %4 : vector<1x10x256xf32> to vector<10x256xf32>
    %c0_5 = arith.constant 0 : index
    %c0_6 = arith.constant 0 : index
    %c0_7 = arith.constant 0 : index
    %6 = vector.load %arg4[%c0_5, %c0_6, %c0_7] : memref<1x4x256xf32, #tpu.memory_space<vmem>>, vector<1x4x256xf32>
    %7 = vector.shape_cast %6 : vector<1x4x256xf32> to vector<4x256xf32>
    %c0_8 = arith.constant 0 : index
    %c0_9 = arith.constant 0 : index
    %c0_10 = arith.constant 0 : index
    %c0_11 = arith.constant 0 : index
    %8 = vector.load %arg2[%c0_8, %c0_9, %c0_10, %c0_11] : memref<1x2x16x16xf32, #tpu.memory_space<vmem>>, vector<1x1x16x16xf32>
    %9 = vector.shape_cast %8 : vector<1x1x16x16xf32> to vector<16x16xf32>
    %c0_12 = arith.constant 0 : index
    %c1_13 = arith.constant 1 : index
    %c0_14 = arith.constant 0 : index
    %c0_15 = arith.constant 0 : index
    %10 = vector.load %arg2[%c0_12, %c1_13, %c0_14, %c0_15] : memref<1x2x16x16xf32, #tpu.memory_space<vmem>>, vector<1x1x16x16xf32>
    %11 = vector.shape_cast %10 : vector<1x1x16x16xf32> to vector<16x16xf32>
    %12 = tpu.iota {dimensions = array<i32: 0>} : vector<16x256xi32>
    %13 = tpu.iota {dimensions = array<i32: 0>} : vector<16x256xi32>
    %cst = arith.constant 0.000000e+00 : f32
    %14 = vector.broadcast %cst : f32 to vector<4x256xf32>
    %cst_16 = arith.constant 0.000000e+00 : f32
    %15 = vector.broadcast %cst_16 : f32 to vector<1x256xf32>
    %16 = arith.addf %1, %15 : vector<1x256xf32>
    %17 = vector.extract_strided_slice %5 {offsets = [0, 0], sizes = [1, 256], strides = [1, 1]} : vector<10x256xf32> to vector<1x256xf32>
    %18 = arith.addf %16, %17 : vector<1x256xf32>
    %cst_17 = arith.constant 0.000000e+00 : f32
    %19 = vector.broadcast %cst_17 : f32 to vector<1x256xf32>
    %20 = arith.addf %3, %19 : vector<1x256xf32>
    %21 = vector.extract_strided_slice %5 {offsets = [5, 0], sizes = [1, 256], strides = [1, 1]} : vector<10x256xf32> to vector<1x256xf32>
    %22 = arith.addf %20, %21 : vector<1x256xf32>
    %23 = math.floor %18 : vector<1x256xf32>
    %24 = math.floor %22 : vector<1x256xf32>
    %cst_18 = arith.constant 0.000000e+00 : f32
    %cst_19 = arith.constant 1.500000e+01 : f32
    %25 = vector.broadcast %cst_18 : f32 to vector<1x256xf32>
    %26 = arith.maximumf %25, %23 : vector<1x256xf32>
    %27 = vector.broadcast %cst_19 : f32 to vector<1x256xf32>
    %28 = arith.minimumf %27, %26 : vector<1x256xf32>
    %cst_20 = arith.constant 1.000000e+00 : f32
    %29 = vector.broadcast %cst_20 : f32 to vector<1x256xf32>
    %30 = arith.addf %23, %29 : vector<1x256xf32>
    %cst_21 = arith.constant 0.000000e+00 : f32
    %cst_22 = arith.constant 1.500000e+01 : f32
    %31 = vector.broadcast %cst_21 : f32 to vector<1x256xf32>
    %32 = arith.maximumf %31, %30 : vector<1x256xf32>
    %33 = vector.broadcast %cst_22 : f32 to vector<1x256xf32>
    %34 = arith.minimumf %33, %32 : vector<1x256xf32>
    %cst_23 = arith.constant 0.000000e+00 : f32
    %cst_24 = arith.constant 1.500000e+01 : f32
    %35 = vector.broadcast %cst_23 : f32 to vector<1x256xf32>
    %36 = arith.maximumf %35, %24 : vector<1x256xf32>
    %37 = vector.broadcast %cst_24 : f32 to vector<1x256xf32>
    %38 = arith.minimumf %37, %36 : vector<1x256xf32>
    %cst_25 = arith.constant 1.000000e+00 : f32
    %39 = vector.broadcast %cst_25 : f32 to vector<1x256xf32>
    %40 = arith.addf %24, %39 : vector<1x256xf32>
    %cst_26 = arith.constant 0.000000e+00 : f32
    %cst_27 = arith.constant 1.500000e+01 : f32
    %41 = vector.broadcast %cst_26 : f32 to vector<1x256xf32>
    %42 = arith.maximumf %41, %40 : vector<1x256xf32>
    %43 = vector.broadcast %cst_27 : f32 to vector<1x256xf32>
    %44 = arith.minimumf %43, %42 : vector<1x256xf32>
    %cst_28 = arith.constant 0.000000e+00 : f32
    %cst_29 = arith.constant 1.500000e+01 : f32
    %45 = vector.broadcast %cst_28 : f32 to vector<1x256xf32>
    %46 = arith.maximumf %45, %18 : vector<1x256xf32>
    %47 = vector.broadcast %cst_29 : f32 to vector<1x256xf32>
    %48 = arith.minimumf %47, %46 : vector<1x256xf32>
    %cst_30 = arith.constant 0.000000e+00 : f32
    %cst_31 = arith.constant 1.500000e+01 : f32
    %49 = vector.broadcast %cst_30 : f32 to vector<1x256xf32>
    %50 = arith.maximumf %49, %22 : vector<1x256xf32>
    %51 = vector.broadcast %cst_31 : f32 to vector<1x256xf32>
    %52 = arith.minimumf %51, %50 : vector<1x256xf32>
    %cst_32 = arith.constant 1.000000e+00 : f32
    %53 = vector.broadcast %cst_32 : f32 to vector<1x256xf32>
    %54 = arith.addf %53, %28 : vector<1x256xf32>
    %55 = arith.subf %54, %48 : vector<1x256xf32>
    %cst_33 = arith.constant 1.000000e+00 : f32
    %56 = vector.broadcast %cst_33 : f32 to vector<1x256xf32>
    %57 = arith.subf %56, %34 : vector<1x256xf32>
    %58 = arith.addf %57, %48 : vector<1x256xf32>
    %cst_34 = arith.constant 1.000000e+00 : f32
    %59 = vector.broadcast %cst_34 : f32 to vector<1x256xf32>
    %60 = arith.addf %59, %38 : vector<1x256xf32>
    %61 = arith.subf %60, %52 : vector<1x256xf32>
    %cst_35 = arith.constant 1.000000e+00 : f32
    %62 = vector.broadcast %cst_35 : f32 to vector<1x256xf32>
    %63 = arith.subf %62, %44 : vector<1x256xf32>
    %64 = arith.addf %63, %52 : vector<1x256xf32>
    %65 = arith.fptosi %28 : vector<1x256xf32> to vector<1x256xi32>
    %66 = vector.broadcast %65 : vector<1x256xi32> to vector<16x256xi32>
    %67 = arith.cmpi eq, %12, %66 : vector<16x256xi32>
    %cst_36 = arith.constant 0.000000e+00 : f32
    %68 = vector.shape_cast %55 : vector<1x256xf32> to vector<1x256xf32>
    %69 = vector.broadcast %68 : vector<1x256xf32> to vector<16x256xf32>
    %70 = vector.broadcast %cst_36 : f32 to vector<16x256xf32>
    %71 = arith.select %67, %69, %70 : vector<16x256xi1>, vector<16x256xf32>
    %72 = arith.fptosi %34 : vector<1x256xf32> to vector<1x256xi32>
    %73 = vector.broadcast %72 : vector<1x256xi32> to vector<16x256xi32>
    %74 = arith.cmpi eq, %12, %73 : vector<16x256xi32>
    %cst_37 = arith.constant 0.000000e+00 : f32
    %75 = vector.shape_cast %58 : vector<1x256xf32> to vector<1x256xf32>
    %76 = vector.broadcast %75 : vector<1x256xf32> to vector<16x256xf32>
    %77 = vector.broadcast %cst_37 : f32 to vector<16x256xf32>
    %78 = arith.select %74, %76, %77 : vector<16x256xi1>, vector<16x256xf32>
    %79 = arith.addf %71, %78 : vector<16x256xf32>
    %80 = arith.fptosi %38 : vector<1x256xf32> to vector<1x256xi32>
    %81 = vector.broadcast %80 : vector<1x256xi32> to vector<16x256xi32>
    %82 = arith.cmpi eq, %13, %81 : vector<16x256xi32>
    %cst_38 = arith.constant 0.000000e+00 : f32
    %83 = vector.shape_cast %61 : vector<1x256xf32> to vector<1x256xf32>
    %84 = vector.broadcast %83 : vector<1x256xf32> to vector<16x256xf32>
    %85 = vector.broadcast %cst_38 : f32 to vector<16x256xf32>
    %86 = arith.select %82, %84, %85 : vector<16x256xi1>, vector<16x256xf32>
    %87 = arith.fptosi %44 : vector<1x256xf32> to vector<1x256xi32>
    %88 = vector.broadcast %87 : vector<1x256xi32> to vector<16x256xi32>
    %89 = arith.cmpi eq, %13, %88 : vector<16x256xi32>
    %cst_39 = arith.constant 0.000000e+00 : f32
    %90 = vector.shape_cast %64 : vector<1x256xf32> to vector<1x256xf32>
    %91 = vector.broadcast %90 : vector<1x256xf32> to vector<16x256xf32>
    %92 = vector.broadcast %cst_39 : f32 to vector<16x256xf32>
    %93 = arith.select %89, %91, %92 : vector<16x256xi1>, vector<16x256xf32>
    %94 = arith.addf %86, %93 : vector<16x256xf32>
    %cst_40 = arith.constant 0.000000e+00 : f32
    %95 = vector.broadcast %cst_40 : f32 to vector<16x256xf32>
    %96 = vector.extract_strided_slice %9 {offsets = [0, 0], sizes = [16, 1], strides = [1, 1]} : vector<16x16xf32> to vector<16x1xf32>
    %97 = vector.extract_strided_slice %79 {offsets = [0, 0], sizes = [1, 256], strides = [1, 1]} : vector<16x256xf32> to vector<1x256xf32>
    %98 = vector.broadcast %96 : vector<16x1xf32> to vector<16x256xf32>
    %99 = vector.broadcast %97 : vector<1x256xf32> to vector<16x256xf32>
    %100 = arith.mulf %98, %99 : vector<16x256xf32>
    %101 = arith.addf %95, %100 : vector<16x256xf32>
    %102 = vector.extract_strided_slice %9 {offsets = [0, 1], sizes = [16, 1], strides = [1, 1]} : vector<16x16xf32> to vector<16x1xf32>
    %103 = vector.extract_strided_slice %79 {offsets = [1, 0], sizes = [1, 256], strides = [1, 1]} : vector<16x256xf32> to vector<1x256xf32>
    %104 = vector.broadcast %102 : vector<16x1xf32> to vector<16x256xf32>
    %105 = vector.broadcast %103 : vector<1x256xf32> to vector<16x256xf32>
    %106 = arith.mulf %104, %105 : vector<16x256xf32>
    %107 = arith.addf %101, %106 : vector<16x256xf32>
    %108 = vector.extract_strided_slice %9 {offsets = [0, 2], sizes = [16, 1], strides = [1, 1]} : vector<16x16xf32> to vector<16x1xf32>
    %109 = vector.extract_strided_slice %79 {offsets = [2, 0], sizes = [1, 256], strides = [1, 1]} : vector<16x256xf32> to vector<1x256xf32>
    %110 = vector.broadcast %108 : vector<16x1xf32> to vector<16x256xf32>
    %111 = vector.broadcast %109 : vector<1x256xf32> to vector<16x256xf32>
    %112 = arith.mulf %110, %111 : vector<16x256xf32>
    %113 = arith.addf %107, %112 : vector<16x256xf32>
    %114 = vector.extract_strided_slice %9 {offsets = [0, 3], sizes = [16, 1], strides = [1, 1]} : vector<16x16xf32> to vector<16x1xf32>
    %115 = vector.extract_strided_slice %79 {offsets = [3, 0], sizes = [1, 256], strides = [1, 1]} : vector<16x256xf32> to vector<1x256xf32>
    %116 = vector.broadcast %114 : vector<16x1xf32> to vector<16x256xf32>
    %117 = vector.broadcast %115 : vector<1x256xf32> to vector<16x256xf32>
    %118 = arith.mulf %116, %117 : vector<16x256xf32>
    %119 = arith.addf %113, %118 : vector<16x256xf32>
    %120 = vector.extract_strided_slice %9 {offsets = [0, 4], sizes = [16, 1], strides = [1, 1]} : vector<16x16xf32> to vector<16x1xf32>
    %121 = vector.extract_strided_slice %79 {offsets = [4, 0], sizes = [1, 256], strides = [1, 1]} : vector<16x256xf32> to vector<1x256xf32>
    %122 = vector.broadcast %120 : vector<16x1xf32> to vector<16x256xf32>
    %123 = vector.broadcast %121 : vector<1x256xf32> to vector<16x256xf32>
    %124 = arith.mulf %122, %123 : vector<16x256xf32>
    %125 = arith.addf %119, %124 : vector<16x256xf32>
    %126 = vector.extract_strided_slice %9 {offsets = [0, 5], sizes = [16, 1], strides = [1, 1]} : vector<16x16xf32> to vector<16x1xf32>
    %127 = vector.extract_strided_slice %79 {offsets = [5, 0], sizes = [1, 256], strides = [1, 1]} : vector<16x256xf32> to vector<1x256xf32>
    %128 = vector.broadcast %126 : vector<16x1xf32> to vector<16x256xf32>
    %129 = vector.broadcast %127 : vector<1x256xf32> to vector<16x256xf32>
    %130 = arith.mulf %128, %129 : vector<16x256xf32>
    %131 = arith.addf %125, %130 : vector<16x256xf32>
    %132 = vector.extract_strided_slice %9 {offsets = [0, 6], sizes = [16, 1], strides = [1, 1]} : vector<16x16xf32> to vector<16x1xf32>
    %133 = vector.extract_strided_slice %79 {offsets = [6, 0], sizes = [1, 256], strides = [1, 1]} : vector<16x256xf32> to vector<1x256xf32>
    %134 = vector.broadcast %132 : vector<16x1xf32> to vector<16x256xf32>
    %135 = vector.broadcast %133 : vector<1x256xf32> to vector<16x256xf32>
    %136 = arith.mulf %134, %135 : vector<16x256xf32>
    %137 = arith.addf %131, %136 : vector<16x256xf32>
    %138 = vector.extract_strided_slice %9 {offsets = [0, 7], sizes = [16, 1], strides = [1, 1]} : vector<16x16xf32> to vector<16x1xf32>
    %139 = vector.extract_strided_slice %79 {offsets = [7, 0], sizes = [1, 256], strides = [1, 1]} : vector<16x256xf32> to vector<1x256xf32>
    %140 = vector.broadcast %138 : vector<16x1xf32> to vector<16x256xf32>
    %141 = vector.broadcast %139 : vector<1x256xf32> to vector<16x256xf32>
    %142 = arith.mulf %140, %141 : vector<16x256xf32>
    %143 = arith.addf %137, %142 : vector<16x256xf32>
    %144 = vector.extract_strided_slice %9 {offsets = [0, 8], sizes = [16, 1], strides = [1, 1]} : vector<16x16xf32> to vector<16x1xf32>
    %145 = vector.extract_strided_slice %79 {offsets = [8, 0], sizes = [1, 256], strides = [1, 1]} : vector<16x256xf32> to vector<1x256xf32>
    %146 = vector.broadcast %144 : vector<16x1xf32> to vector<16x256xf32>
    %147 = vector.broadcast %145 : vector<1x256xf32> to vector<16x256xf32>
    %148 = arith.mulf %146, %147 : vector<16x256xf32>
    %149 = arith.addf %143, %148 : vector<16x256xf32>
    %150 = vector.extract_strided_slice %9 {offsets = [0, 9], sizes = [16, 1], strides = [1, 1]} : vector<16x16xf32> to vector<16x1xf32>
    %151 = vector.extract_strided_slice %79 {offsets = [9, 0], sizes = [1, 256], strides = [1, 1]} : vector<16x256xf32> to vector<1x256xf32>
    %152 = vector.broadcast %150 : vector<16x1xf32> to vector<16x256xf32>
    %153 = vector.broadcast %151 : vector<1x256xf32> to vector<16x256xf32>
    %154 = arith.mulf %152, %153 : vector<16x256xf32>
    %155 = arith.addf %149, %154 : vector<16x256xf32>
    %156 = vector.extract_strided_slice %9 {offsets = [0, 10], sizes = [16, 1], strides = [1, 1]} : vector<16x16xf32> to vector<16x1xf32>
    %157 = vector.extract_strided_slice %79 {offsets = [10, 0], sizes = [1, 256], strides = [1, 1]} : vector<16x256xf32> to vector<1x256xf32>
    %158 = vector.broadcast %156 : vector<16x1xf32> to vector<16x256xf32>
    %159 = vector.broadcast %157 : vector<1x256xf32> to vector<16x256xf32>
    %160 = arith.mulf %158, %159 : vector<16x256xf32>
    %161 = arith.addf %155, %160 : vector<16x256xf32>
    %162 = vector.extract_strided_slice %9 {offsets = [0, 11], sizes = [16, 1], strides = [1, 1]} : vector<16x16xf32> to vector<16x1xf32>
    %163 = vector.extract_strided_slice %79 {offsets = [11, 0], sizes = [1, 256], strides = [1, 1]} : vector<16x256xf32> to vector<1x256xf32>
    %164 = vector.broadcast %162 : vector<16x1xf32> to vector<16x256xf32>
    %165 = vector.broadcast %163 : vector<1x256xf32> to vector<16x256xf32>
    %166 = arith.mulf %164, %165 : vector<16x256xf32>
    %167 = arith.addf %161, %166 : vector<16x256xf32>
    %168 = vector.extract_strided_slice %9 {offsets = [0, 12], sizes = [16, 1], strides = [1, 1]} : vector<16x16xf32> to vector<16x1xf32>
    %169 = vector.extract_strided_slice %79 {offsets = [12, 0], sizes = [1, 256], strides = [1, 1]} : vector<16x256xf32> to vector<1x256xf32>
    %170 = vector.broadcast %168 : vector<16x1xf32> to vector<16x256xf32>
    %171 = vector.broadcast %169 : vector<1x256xf32> to vector<16x256xf32>
    %172 = arith.mulf %170, %171 : vector<16x256xf32>
    %173 = arith.addf %167, %172 : vector<16x256xf32>
    %174 = vector.extract_strided_slice %9 {offsets = [0, 13], sizes = [16, 1], strides = [1, 1]} : vector<16x16xf32> to vector<16x1xf32>
    %175 = vector.extract_strided_slice %79 {offsets = [13, 0], sizes = [1, 256], strides = [1, 1]} : vector<16x256xf32> to vector<1x256xf32>
    %176 = vector.broadcast %174 : vector<16x1xf32> to vector<16x256xf32>
    %177 = vector.broadcast %175 : vector<1x256xf32> to vector<16x256xf32>
    %178 = arith.mulf %176, %177 : vector<16x256xf32>
    %179 = arith.addf %173, %178 : vector<16x256xf32>
    %180 = vector.extract_strided_slice %9 {offsets = [0, 14], sizes = [16, 1], strides = [1, 1]} : vector<16x16xf32> to vector<16x1xf32>
    %181 = vector.extract_strided_slice %79 {offsets = [14, 0], sizes = [1, 256], strides = [1, 1]} : vector<16x256xf32> to vector<1x256xf32>
    %182 = vector.broadcast %180 : vector<16x1xf32> to vector<16x256xf32>
    %183 = vector.broadcast %181 : vector<1x256xf32> to vector<16x256xf32>
    %184 = arith.mulf %182, %183 : vector<16x256xf32>
    %185 = arith.addf %179, %184 : vector<16x256xf32>
    %186 = vector.extract_strided_slice %9 {offsets = [0, 15], sizes = [16, 1], strides = [1, 1]} : vector<16x16xf32> to vector<16x1xf32>
    %187 = vector.extract_strided_slice %79 {offsets = [15, 0], sizes = [1, 256], strides = [1, 1]} : vector<16x256xf32> to vector<1x256xf32>
    %188 = vector.broadcast %186 : vector<16x1xf32> to vector<16x256xf32>
    %189 = vector.broadcast %187 : vector<1x256xf32> to vector<16x256xf32>
    %190 = arith.mulf %188, %189 : vector<16x256xf32>
    %191 = arith.addf %185, %190 : vector<16x256xf32>
    %192 = arith.mulf %94, %191 : vector<16x256xf32>
    %cst_41 = arith.constant dense<0.000000e+00> : vector<256xf32>
    %193 = vector.multi_reduction <add>, %192, %cst_41 [0] : vector<16x256xf32> to vector<256xf32>
    %194 = vector.shape_cast %193 : vector<256xf32> to vector<1x256xf32>
    %c0_42 = arith.constant 0 : index
    %c0_43 = arith.constant 0 : index
    %195 = vector.load %arg6[%c0_42, %c0_43] : memref<4x10xf32, #tpu.memory_space<vmem>>, vector<4x1xf32>
    %196 = vector.broadcast %195 : vector<4x1xf32> to vector<4x256xf32>
    %197 = vector.broadcast %194 : vector<1x256xf32> to vector<4x256xf32>
    %198 = arith.mulf %196, %197 : vector<4x256xf32>
    %199 = arith.addf %14, %198 : vector<4x256xf32>
    %cst_44 = arith.constant 0.000000e+00 : f32
    %200 = vector.broadcast %cst_44 : f32 to vector<16x256xf32>
    %201 = vector.extract_strided_slice %11 {offsets = [0, 0], sizes = [16, 1], strides = [1, 1]} : vector<16x16xf32> to vector<16x1xf32>
    %202 = vector.extract_strided_slice %79 {offsets = [0, 0], sizes = [1, 256], strides = [1, 1]} : vector<16x256xf32> to vector<1x256xf32>
    %203 = vector.broadcast %201 : vector<16x1xf32> to vector<16x256xf32>
    %204 = vector.broadcast %202 : vector<1x256xf32> to vector<16x256xf32>
    %205 = arith.mulf %203, %204 : vector<16x256xf32>
    %206 = arith.addf %200, %205 : vector<16x256xf32>
    %207 = vector.extract_strided_slice %11 {offsets = [0, 1], sizes = [16, 1], strides = [1, 1]} : vector<16x16xf32> to vector<16x1xf32>
    %208 = vector.extract_strided_slice %79 {offsets = [1, 0], sizes = [1, 256], strides = [1, 1]} : vector<16x256xf32> to vector<1x256xf32>
    %209 = vector.broadcast %207 : vector<16x1xf32> to vector<16x256xf32>
    %210 = vector.broadcast %208 : vector<1x256xf32> to vector<16x256xf32>
    %211 = arith.mulf %209, %210 : vector<16x256xf32>
    %212 = arith.addf %206, %211 : vector<16x256xf32>
    %213 = vector.extract_strided_slice %11 {offsets = [0, 2], sizes = [16, 1], strides = [1, 1]} : vector<16x16xf32> to vector<16x1xf32>
    %214 = vector.extract_strided_slice %79 {offsets = [2, 0], sizes = [1, 256], strides = [1, 1]} : vector<16x256xf32> to vector<1x256xf32>
    %215 = vector.broadcast %213 : vector<16x1xf32> to vector<16x256xf32>
    %216 = vector.broadcast %214 : vector<1x256xf32> to vector<16x256xf32>
    %217 = arith.mulf %215, %216 : vector<16x256xf32>
    %218 = arith.addf %212, %217 : vector<16x256xf32>
    %219 = vector.extract_strided_slice %11 {offsets = [0, 3], sizes = [16, 1], strides = [1, 1]} : vector<16x16xf32> to vector<16x1xf32>
    %220 = vector.extract_strided_slice %79 {offsets = [3, 0], sizes = [1, 256], strides = [1, 1]} : vector<16x256xf32> to vector<1x256xf32>
    %221 = vector.broadcast %219 : vector<16x1xf32> to vector<16x256xf32>
    %222 = vector.broadcast %220 : vector<1x256xf32> to vector<16x256xf32>
    %223 = arith.mulf %221, %222 : vector<16x256xf32>
    %224 = arith.addf %218, %223 : vector<16x256xf32>
    %225 = vector.extract_strided_slice %11 {offsets = [0, 4], sizes = [16, 1], strides = [1, 1]} : vector<16x16xf32> to vector<16x1xf32>
    %226 = vector.extract_strided_slice %79 {offsets = [4, 0], sizes = [1, 256], strides = [1, 1]} : vector<16x256xf32> to vector<1x256xf32>
    %227 = vector.broadcast %225 : vector<16x1xf32> to vector<16x256xf32>
    %228 = vector.broadcast %226 : vector<1x256xf32> to vector<16x256xf32>
    %229 = arith.mulf %227, %228 : vector<16x256xf32>
    %230 = arith.addf %224, %229 : vector<16x256xf32>
    %231 = vector.extract_strided_slice %11 {offsets = [0, 5], sizes = [16, 1], strides = [1, 1]} : vector<16x16xf32> to vector<16x1xf32>
    %232 = vector.extract_strided_slice %79 {offsets = [5, 0], sizes = [1, 256], strides = [1, 1]} : vector<16x256xf32> to vector<1x256xf32>
    %233 = vector.broadcast %231 : vector<16x1xf32> to vector<16x256xf32>
    %234 = vector.broadcast %232 : vector<1x256xf32> to vector<16x256xf32>
    %235 = arith.mulf %233, %234 : vector<16x256xf32>
    %236 = arith.addf %230, %235 : vector<16x256xf32>
    %237 = vector.extract_strided_slice %11 {offsets = [0, 6], sizes = [16, 1], strides = [1, 1]} : vector<16x16xf32> to vector<16x1xf32>
    %238 = vector.extract_strided_slice %79 {offsets = [6, 0], sizes = [1, 256], strides = [1, 1]} : vector<16x256xf32> to vector<1x256xf32>
    %239 = vector.broadcast %237 : vector<16x1xf32> to vector<16x256xf32>
    %240 = vector.broadcast %238 : vector<1x256xf32> to vector<16x256xf32>
    %241 = arith.mulf %239, %240 : vector<16x256xf32>
    %242 = arith.addf %236, %241 : vector<16x256xf32>
    %243 = vector.extract_strided_slice %11 {offsets = [0, 7], sizes = [16, 1], strides = [1, 1]} : vector<16x16xf32> to vector<16x1xf32>
    %244 = vector.extract_strided_slice %79 {offsets = [7, 0], sizes = [1, 256], strides = [1, 1]} : vector<16x256xf32> to vector<1x256xf32>
    %245 = vector.broadcast %243 : vector<16x1xf32> to vector<16x256xf32>
    %246 = vector.broadcast %244 : vector<1x256xf32> to vector<16x256xf32>
    %247 = arith.mulf %245, %246 : vector<16x256xf32>
    %248 = arith.addf %242, %247 : vector<16x256xf32>
    %249 = vector.extract_strided_slice %11 {offsets = [0, 8], sizes = [16, 1], strides = [1, 1]} : vector<16x16xf32> to vector<16x1xf32>
    %250 = vector.extract_strided_slice %79 {offsets = [8, 0], sizes = [1, 256], strides = [1, 1]} : vector<16x256xf32> to vector<1x256xf32>
    %251 = vector.broadcast %249 : vector<16x1xf32> to vector<16x256xf32>
    %252 = vector.broadcast %250 : vector<1x256xf32> to vector<16x256xf32>
    %253 = arith.mulf %251, %252 : vector<16x256xf32>
    %254 = arith.addf %248, %253 : vector<16x256xf32>
    %255 = vector.extract_strided_slice %11 {offsets = [0, 9], sizes = [16, 1], strides = [1, 1]} : vector<16x16xf32> to vector<16x1xf32>
    %256 = vector.extract_strided_slice %79 {offsets = [9, 0], sizes = [1, 256], strides = [1, 1]} : vector<16x256xf32> to vector<1x256xf32>
    %257 = vector.broadcast %255 : vector<16x1xf32> to vector<16x256xf32>
    %258 = vector.broadcast %256 : vector<1x256xf32> to vector<16x256xf32>
    %259 = arith.mulf %257, %258 : vector<16x256xf32>
    %260 = arith.addf %254, %259 : vector<16x256xf32>
    %261 = vector.extract_strided_slice %11 {offsets = [0, 10], sizes = [16, 1], strides = [1, 1]} : vector<16x16xf32> to vector<16x1xf32>
    %262 = vector.extract_strided_slice %79 {offsets = [10, 0], sizes = [1, 256], strides = [1, 1]} : vector<16x256xf32> to vector<1x256xf32>
    %263 = vector.broadcast %261 : vector<16x1xf32> to vector<16x256xf32>
    %264 = vector.broadcast %262 : vector<1x256xf32> to vector<16x256xf32>
    %265 = arith.mulf %263, %264 : vector<16x256xf32>
    %266 = arith.addf %260, %265 : vector<16x256xf32>
    %267 = vector.extract_strided_slice %11 {offsets = [0, 11], sizes = [16, 1], strides = [1, 1]} : vector<16x16xf32> to vector<16x1xf32>
    %268 = vector.extract_strided_slice %79 {offsets = [11, 0], sizes = [1, 256], strides = [1, 1]} : vector<16x256xf32> to vector<1x256xf32>
    %269 = vector.broadcast %267 : vector<16x1xf32> to vector<16x256xf32>
    %270 = vector.broadcast %268 : vector<1x256xf32> to vector<16x256xf32>
    %271 = arith.mulf %269, %270 : vector<16x256xf32>
    %272 = arith.addf %266, %271 : vector<16x256xf32>
    %273 = vector.extract_strided_slice %11 {offsets = [0, 12], sizes = [16, 1], strides = [1, 1]} : vector<16x16xf32> to vector<16x1xf32>
    %274 = vector.extract_strided_slice %79 {offsets = [12, 0], sizes = [1, 256], strides = [1, 1]} : vector<16x256xf32> to vector<1x256xf32>
    %275 = vector.broadcast %273 : vector<16x1xf32> to vector<16x256xf32>
    %276 = vector.broadcast %274 : vector<1x256xf32> to vector<16x256xf32>
    %277 = arith.mulf %275, %276 : vector<16x256xf32>
    %278 = arith.addf %272, %277 : vector<16x256xf32>
    %279 = vector.extract_strided_slice %11 {offsets = [0, 13], sizes = [16, 1], strides = [1, 1]} : vector<16x16xf32> to vector<16x1xf32>
    %280 = vector.extract_strided_slice %79 {offsets = [13, 0], sizes = [1, 256], strides = [1, 1]} : vector<16x256xf32> to vector<1x256xf32>
    %281 = vector.broadcast %279 : vector<16x1xf32> to vector<16x256xf32>
    %282 = vector.broadcast %280 : vector<1x256xf32> to vector<16x256xf32>
    %283 = arith.mulf %281, %282 : vector<16x256xf32>
    %284 = arith.addf %278, %283 : vector<16x256xf32>
    %285 = vector.extract_strided_slice %11 {offsets = [0, 14], sizes = [16, 1], strides = [1, 1]} : vector<16x16xf32> to vector<16x1xf32>
    %286 = vector.extract_strided_slice %79 {offsets = [14, 0], sizes = [1, 256], strides = [1, 1]} : vector<16x256xf32> to vector<1x256xf32>
    %287 = vector.broadcast %285 : vector<16x1xf32> to vector<16x256xf32>
    %288 = vector.broadcast %286 : vector<1x256xf32> to vector<16x256xf32>
    %289 = arith.mulf %287, %288 : vector<16x256xf32>
    %290 = arith.addf %284, %289 : vector<16x256xf32>
    %291 = vector.extract_strided_slice %11 {offsets = [0, 15], sizes = [16, 1], strides = [1, 1]} : vector<16x16xf32> to vector<16x1xf32>
    %292 = vector.extract_strided_slice %79 {offsets = [15, 0], sizes = [1, 256], strides = [1, 1]} : vector<16x256xf32> to vector<1x256xf32>
    %293 = vector.broadcast %291 : vector<16x1xf32> to vector<16x256xf32>
    %294 = vector.broadcast %292 : vector<1x256xf32> to vector<16x256xf32>
    %295 = arith.mulf %293, %294 : vector<16x256xf32>
    %296 = arith.addf %290, %295 : vector<16x256xf32>
    %297 = arith.mulf %94, %296 : vector<16x256xf32>
    %cst_45 = arith.constant dense<0.000000e+00> : vector<256xf32>
    %298 = vector.multi_reduction <add>, %297, %cst_45 [0] : vector<16x256xf32> to vector<256xf32>
    %299 = vector.shape_cast %298 : vector<256xf32> to vector<1x256xf32>
    %c0_46 = arith.constant 0 : index
    %c5 = arith.constant 5 : index
    %300 = vector.load %arg6[%c0_46, %c5] : memref<4x10xf32, #tpu.memory_space<vmem>>, vector<4x1xf32>
    %301 = vector.broadcast %300 : vector<4x1xf32> to vector<4x256xf32>
    %302 = vector.broadcast %299 : vector<1x256xf32> to vector<4x256xf32>
    %303 = arith.mulf %301, %302 : vector<4x256xf32>
    %304 = arith.addf %199, %303 : vector<4x256xf32>
    %cst_47 = arith.constant 0.000000e+00 : f32
    %305 = vector.broadcast %cst_47 : f32 to vector<1x256xf32>
    %306 = arith.addf %1, %305 : vector<1x256xf32>
    %307 = vector.extract_strided_slice %5 {offsets = [1, 0], sizes = [1, 256], strides = [1, 1]} : vector<10x256xf32> to vector<1x256xf32>
    %308 = arith.addf %306, %307 : vector<1x256xf32>
    %cst_48 = arith.constant 1.000000e+00 : f32
    %309 = vector.broadcast %cst_48 : f32 to vector<1x256xf32>
    %310 = arith.addf %3, %309 : vector<1x256xf32>
    %311 = vector.extract_strided_slice %5 {offsets = [6, 0], sizes = [1, 256], strides = [1, 1]} : vector<10x256xf32> to vector<1x256xf32>
    %312 = arith.addf %310, %311 : vector<1x256xf32>
    %313 = math.floor %308 : vector<1x256xf32>
    %314 = math.floor %312 : vector<1x256xf32>
    %cst_49 = arith.constant 0.000000e+00 : f32
    %cst_50 = arith.constant 1.500000e+01 : f32
    %315 = vector.broadcast %cst_49 : f32 to vector<1x256xf32>
    %316 = arith.maximumf %315, %313 : vector<1x256xf32>
    %317 = vector.broadcast %cst_50 : f32 to vector<1x256xf32>
    %318 = arith.minimumf %317, %316 : vector<1x256xf32>
    %cst_51 = arith.constant 1.000000e+00 : f32
    %319 = vector.broadcast %cst_51 : f32 to vector<1x256xf32>
    %320 = arith.addf %313, %319 : vector<1x256xf32>
    %cst_52 = arith.constant 0.000000e+00 : f32
    %cst_53 = arith.constant 1.500000e+01 : f32
    %321 = vector.broadcast %cst_52 : f32 to vector<1x256xf32>
    %322 = arith.maximumf %321, %320 : vector<1x256xf32>
    %323 = vector.broadcast %cst_53 : f32 to vector<1x256xf32>
    %324 = arith.minimumf %323, %322 : vector<1x256xf32>
    %cst_54 = arith.constant 0.000000e+00 : f32
    %cst_55 = arith.constant 1.500000e+01 : f32
    %325 = vector.broadcast %cst_54 : f32 to vector<1x256xf32>
    %326 = arith.maximumf %325, %314 : vector<1x256xf32>
    %327 = vector.broadcast %cst_55 : f32 to vector<1x256xf32>
    %328 = arith.minimumf %327, %326 : vector<1x256xf32>
    %cst_56 = arith.constant 1.000000e+00 : f32
    %329 = vector.broadcast %cst_56 : f32 to vector<1x256xf32>
    %330 = arith.addf %314, %329 : vector<1x256xf32>
    %cst_57 = arith.constant 0.000000e+00 : f32
    %cst_58 = arith.constant 1.500000e+01 : f32
    %331 = vector.broadcast %cst_57 : f32 to vector<1x256xf32>
    %332 = arith.maximumf %331, %330 : vector<1x256xf32>
    %333 = vector.broadcast %cst_58 : f32 to vector<1x256xf32>
    %334 = arith.minimumf %333, %332 : vector<1x256xf32>
    %cst_59 = arith.constant 0.000000e+00 : f32
    %cst_60 = arith.constant 1.500000e+01 : f32
    %335 = vector.broadcast %cst_59 : f32 to vector<1x256xf32>
    %336 = arith.maximumf %335, %308 : vector<1x256xf32>
    %337 = vector.broadcast %cst_60 : f32 to vector<1x256xf32>
    %338 = arith.minimumf %337, %336 : vector<1x256xf32>
    %cst_61 = arith.constant 0.000000e+00 : f32
    %cst_62 = arith.constant 1.500000e+01 : f32
    %339 = vector.broadcast %cst_61 : f32 to vector<1x256xf32>
    %340 = arith.maximumf %339, %312 : vector<1x256xf32>
    %341 = vector.broadcast %cst_62 : f32 to vector<1x256xf32>
    %342 = arith.minimumf %341, %340 : vector<1x256xf32>
    %cst_63 = arith.constant 1.000000e+00 : f32
    %343 = vector.broadcast %cst_63 : f32 to vector<1x256xf32>
    %344 = arith.addf %343, %318 : vector<1x256xf32>
    %345 = arith.subf %344, %338 : vector<1x256xf32>
    %cst_64 = arith.constant 1.000000e+00 : f32
    %346 = vector.broadcast %cst_64 : f32 to vector<1x256xf32>
    %347 = arith.subf %346, %324 : vector<1x256xf32>
    %348 = arith.addf %347, %338 : vector<1x256xf32>
    %cst_65 = arith.constant 1.000000e+00 : f32
    %349 = vector.broadcast %cst_65 : f32 to vector<1x256xf32>
    %350 = arith.addf %349, %328 : vector<1x256xf32>
    %351 = arith.subf %350, %342 : vector<1x256xf32>
    %cst_66 = arith.constant 1.000000e+00 : f32
    %352 = vector.broadcast %cst_66 : f32 to vector<1x256xf32>
    %353 = arith.subf %352, %334 : vector<1x256xf32>
    %354 = arith.addf %353, %342 : vector<1x256xf32>
    %355 = arith.fptosi %318 : vector<1x256xf32> to vector<1x256xi32>
    %356 = vector.broadcast %355 : vector<1x256xi32> to vector<16x256xi32>
    %357 = arith.cmpi eq, %12, %356 : vector<16x256xi32>
    %cst_67 = arith.constant 0.000000e+00 : f32
    %358 = vector.shape_cast %345 : vector<1x256xf32> to vector<1x256xf32>
    %359 = vector.broadcast %358 : vector<1x256xf32> to vector<16x256xf32>
    %360 = vector.broadcast %cst_67 : f32 to vector<16x256xf32>
    %361 = arith.select %357, %359, %360 : vector<16x256xi1>, vector<16x256xf32>
    %362 = arith.fptosi %324 : vector<1x256xf32> to vector<1x256xi32>
    %363 = vector.broadcast %362 : vector<1x256xi32> to vector<16x256xi32>
    %364 = arith.cmpi eq, %12, %363 : vector<16x256xi32>
    %cst_68 = arith.constant 0.000000e+00 : f32
    %365 = vector.shape_cast %348 : vector<1x256xf32> to vector<1x256xf32>
    %366 = vector.broadcast %365 : vector<1x256xf32> to vector<16x256xf32>
    %367 = vector.broadcast %cst_68 : f32 to vector<16x256xf32>
    %368 = arith.select %364, %366, %367 : vector<16x256xi1>, vector<16x256xf32>
    %369 = arith.addf %361, %368 : vector<16x256xf32>
    %370 = arith.fptosi %328 : vector<1x256xf32> to vector<1x256xi32>
    %371 = vector.broadcast %370 : vector<1x256xi32> to vector<16x256xi32>
    %372 = arith.cmpi eq, %13, %371 : vector<16x256xi32>
    %cst_69 = arith.constant 0.000000e+00 : f32
    %373 = vector.shape_cast %351 : vector<1x256xf32> to vector<1x256xf32>
    %374 = vector.broadcast %373 : vector<1x256xf32> to vector<16x256xf32>
    %375 = vector.broadcast %cst_69 : f32 to vector<16x256xf32>
    %376 = arith.select %372, %374, %375 : vector<16x256xi1>, vector<16x256xf32>
    %377 = arith.fptosi %334 : vector<1x256xf32> to vector<1x256xi32>
    %378 = vector.broadcast %377 : vector<1x256xi32> to vector<16x256xi32>
    %379 = arith.cmpi eq, %13, %378 : vector<16x256xi32>
    %cst_70 = arith.constant 0.000000e+00 : f32
    %380 = vector.shape_cast %354 : vector<1x256xf32> to vector<1x256xf32>
    %381 = vector.broadcast %380 : vector<1x256xf32> to vector<16x256xf32>
    %382 = vector.broadcast %cst_70 : f32 to vector<16x256xf32>
    %383 = arith.select %379, %381, %382 : vector<16x256xi1>, vector<16x256xf32>
    %384 = arith.addf %376, %383 : vector<16x256xf32>
    %cst_71 = arith.constant 0.000000e+00 : f32
    %385 = vector.broadcast %cst_71 : f32 to vector<16x256xf32>
    %386 = vector.extract_strided_slice %9 {offsets = [0, 0], sizes = [16, 1], strides = [1, 1]} : vector<16x16xf32> to vector<16x1xf32>
    %387 = vector.extract_strided_slice %369 {offsets = [0, 0], sizes = [1, 256], strides = [1, 1]} : vector<16x256xf32> to vector<1x256xf32>
    %388 = vector.broadcast %386 : vector<16x1xf32> to vector<16x256xf32>
    %389 = vector.broadcast %387 : vector<1x256xf32> to vector<16x256xf32>
    %390 = arith.mulf %388, %389 : vector<16x256xf32>
    %391 = arith.addf %385, %390 : vector<16x256xf32>
    %392 = vector.extract_strided_slice %9 {offsets = [0, 1], sizes = [16, 1], strides = [1, 1]} : vector<16x16xf32> to vector<16x1xf32>
    %393 = vector.extract_strided_slice %369 {offsets = [1, 0], sizes = [1, 256], strides = [1, 1]} : vector<16x256xf32> to vector<1x256xf32>
    %394 = vector.broadcast %392 : vector<16x1xf32> to vector<16x256xf32>
    %395 = vector.broadcast %393 : vector<1x256xf32> to vector<16x256xf32>
    %396 = arith.mulf %394, %395 : vector<16x256xf32>
    %397 = arith.addf %391, %396 : vector<16x256xf32>
    %398 = vector.extract_strided_slice %9 {offsets = [0, 2], sizes = [16, 1], strides = [1, 1]} : vector<16x16xf32> to vector<16x1xf32>
    %399 = vector.extract_strided_slice %369 {offsets = [2, 0], sizes = [1, 256], strides = [1, 1]} : vector<16x256xf32> to vector<1x256xf32>
    %400 = vector.broadcast %398 : vector<16x1xf32> to vector<16x256xf32>
    %401 = vector.broadcast %399 : vector<1x256xf32> to vector<16x256xf32>
    %402 = arith.mulf %400, %401 : vector<16x256xf32>
    %403 = arith.addf %397, %402 : vector<16x256xf32>
    %404 = vector.extract_strided_slice %9 {offsets = [0, 3], sizes = [16, 1], strides = [1, 1]} : vector<16x16xf32> to vector<16x1xf32>
    %405 = vector.extract_strided_slice %369 {offsets = [3, 0], sizes = [1, 256], strides = [1, 1]} : vector<16x256xf32> to vector<1x256xf32>
    %406 = vector.broadcast %404 : vector<16x1xf32> to vector<16x256xf32>
    %407 = vector.broadcast %405 : vector<1x256xf32> to vector<16x256xf32>
    %408 = arith.mulf %406, %407 : vector<16x256xf32>
    %409 = arith.addf %403, %408 : vector<16x256xf32>
    %410 = vector.extract_strided_slice %9 {offsets = [0, 4], sizes = [16, 1], strides = [1, 1]} : vector<16x16xf32> to vector<16x1xf32>
    %411 = vector.extract_strided_slice %369 {offsets = [4, 0], sizes = [1, 256], strides = [1, 1]} : vector<16x256xf32> to vector<1x256xf32>
    %412 = vector.broadcast %410 : vector<16x1xf32> to vector<16x256xf32>
    %413 = vector.broadcast %411 : vector<1x256xf32> to vector<16x256xf32>
    %414 = arith.mulf %412, %413 : vector<16x256xf32>
    %415 = arith.addf %409, %414 : vector<16x256xf32>
    %416 = vector.extract_strided_slice %9 {offsets = [0, 5], sizes = [16, 1], strides = [1, 1]} : vector<16x16xf32> to vector<16x1xf32>
    %417 = vector.extract_strided_slice %369 {offsets = [5, 0], sizes = [1, 256], strides = [1, 1]} : vector<16x256xf32> to vector<1x256xf32>
    %418 = vector.broadcast %416 : vector<16x1xf32> to vector<16x256xf32>
    %419 = vector.broadcast %417 : vector<1x256xf32> to vector<16x256xf32>
    %420 = arith.mulf %418, %419 : vector<16x256xf32>
    %421 = arith.addf %415, %420 : vector<16x256xf32>
    %422 = vector.extract_strided_slice %9 {offsets = [0, 6], sizes = [16, 1], strides = [1, 1]} : vector<16x16xf32> to vector<16x1xf32>
    %423 = vector.extract_strided_slice %369 {offsets = [6, 0], sizes = [1, 256], strides = [1, 1]} : vector<16x256xf32> to vector<1x256xf32>
    %424 = vector.broadcast %422 : vector<16x1xf32> to vector<16x256xf32>
    %425 = vector.broadcast %423 : vector<1x256xf32> to vector<16x256xf32>
    %426 = arith.mulf %424, %425 : vector<16x256xf32>
    %427 = arith.addf %421, %426 : vector<16x256xf32>
    %428 = vector.extract_strided_slice %9 {offsets = [0, 7], sizes = [16, 1], strides = [1, 1]} : vector<16x16xf32> to vector<16x1xf32>
    %429 = vector.extract_strided_slice %369 {offsets = [7, 0], sizes = [1, 256], strides = [1, 1]} : vector<16x256xf32> to vector<1x256xf32>
    %430 = vector.broadcast %428 : vector<16x1xf32> to vector<16x256xf32>
    %431 = vector.broadcast %429 : vector<1x256xf32> to vector<16x256xf32>
    %432 = arith.mulf %430, %431 : vector<16x256xf32>
    %433 = arith.addf %427, %432 : vector<16x256xf32>
    %434 = vector.extract_strided_slice %9 {offsets = [0, 8], sizes = [16, 1], strides = [1, 1]} : vector<16x16xf32> to vector<16x1xf32>
    %435 = vector.extract_strided_slice %369 {offsets = [8, 0], sizes = [1, 256], strides = [1, 1]} : vector<16x256xf32> to vector<1x256xf32>
    %436 = vector.broadcast %434 : vector<16x1xf32> to vector<16x256xf32>
    %437 = vector.broadcast %435 : vector<1x256xf32> to vector<16x256xf32>
    %438 = arith.mulf %436, %437 : vector<16x256xf32>
    %439 = arith.addf %433, %438 : vector<16x256xf32>
    %440 = vector.extract_strided_slice %9 {offsets = [0, 9], sizes = [16, 1], strides = [1, 1]} : vector<16x16xf32> to vector<16x1xf32>
    %441 = vector.extract_strided_slice %369 {offsets = [9, 0], sizes = [1, 256], strides = [1, 1]} : vector<16x256xf32> to vector<1x256xf32>
    %442 = vector.broadcast %440 : vector<16x1xf32> to vector<16x256xf32>
    %443 = vector.broadcast %441 : vector<1x256xf32> to vector<16x256xf32>
    %444 = arith.mulf %442, %443 : vector<16x256xf32>
    %445 = arith.addf %439, %444 : vector<16x256xf32>
    %446 = vector.extract_strided_slice %9 {offsets = [0, 10], sizes = [16, 1], strides = [1, 1]} : vector<16x16xf32> to vector<16x1xf32>
    %447 = vector.extract_strided_slice %369 {offsets = [10, 0], sizes = [1, 256], strides = [1, 1]} : vector<16x256xf32> to vector<1x256xf32>
    %448 = vector.broadcast %446 : vector<16x1xf32> to vector<16x256xf32>
    %449 = vector.broadcast %447 : vector<1x256xf32> to vector<16x256xf32>
    %450 = arith.mulf %448, %449 : vector<16x256xf32>
    %451 = arith.addf %445, %450 : vector<16x256xf32>
    %452 = vector.extract_strided_slice %9 {offsets = [0, 11], sizes = [16, 1], strides = [1, 1]} : vector<16x16xf32> to vector<16x1xf32>
    %453 = vector.extract_strided_slice %369 {offsets = [11, 0], sizes = [1, 256], strides = [1, 1]} : vector<16x256xf32> to vector<1x256xf32>
    %454 = vector.broadcast %452 : vector<16x1xf32> to vector<16x256xf32>
    %455 = vector.broadcast %453 : vector<1x256xf32> to vector<16x256xf32>
    %456 = arith.mulf %454, %455 : vector<16x256xf32>
    %457 = arith.addf %451, %456 : vector<16x256xf32>
    %458 = vector.extract_strided_slice %9 {offsets = [0, 12], sizes = [16, 1], strides = [1, 1]} : vector<16x16xf32> to vector<16x1xf32>
    %459 = vector.extract_strided_slice %369 {offsets = [12, 0], sizes = [1, 256], strides = [1, 1]} : vector<16x256xf32> to vector<1x256xf32>
    %460 = vector.broadcast %458 : vector<16x1xf32> to vector<16x256xf32>
    %461 = vector.broadcast %459 : vector<1x256xf32> to vector<16x256xf32>
    %462 = arith.mulf %460, %461 : vector<16x256xf32>
    %463 = arith.addf %457, %462 : vector<16x256xf32>
    %464 = vector.extract_strided_slice %9 {offsets = [0, 13], sizes = [16, 1], strides = [1, 1]} : vector<16x16xf32> to vector<16x1xf32>
    %465 = vector.extract_strided_slice %369 {offsets = [13, 0], sizes = [1, 256], strides = [1, 1]} : vector<16x256xf32> to vector<1x256xf32>
    %466 = vector.broadcast %464 : vector<16x1xf32> to vector<16x256xf32>
    %467 = vector.broadcast %465 : vector<1x256xf32> to vector<16x256xf32>
    %468 = arith.mulf %466, %467 : vector<16x256xf32>
    %469 = arith.addf %463, %468 : vector<16x256xf32>
    %470 = vector.extract_strided_slice %9 {offsets = [0, 14], sizes = [16, 1], strides = [1, 1]} : vector<16x16xf32> to vector<16x1xf32>
    %471 = vector.extract_strided_slice %369 {offsets = [14, 0], sizes = [1, 256], strides = [1, 1]} : vector<16x256xf32> to vector<1x256xf32>
    %472 = vector.broadcast %470 : vector<16x1xf32> to vector<16x256xf32>
    %473 = vector.broadcast %471 : vector<1x256xf32> to vector<16x256xf32>
    %474 = arith.mulf %472, %473 : vector<16x256xf32>
    %475 = arith.addf %469, %474 : vector<16x256xf32>
    %476 = vector.extract_strided_slice %9 {offsets = [0, 15], sizes = [16, 1], strides = [1, 1]} : vector<16x16xf32> to vector<16x1xf32>
    %477 = vector.extract_strided_slice %369 {offsets = [15, 0], sizes = [1, 256], strides = [1, 1]} : vector<16x256xf32> to vector<1x256xf32>
    %478 = vector.broadcast %476 : vector<16x1xf32> to vector<16x256xf32>
    %479 = vector.broadcast %477 : vector<1x256xf32> to vector<16x256xf32>
    %480 = arith.mulf %478, %479 : vector<16x256xf32>
    %481 = arith.addf %475, %480 : vector<16x256xf32>
    %482 = arith.mulf %384, %481 : vector<16x256xf32>
    %cst_72 = arith.constant dense<0.000000e+00> : vector<256xf32>
    %483 = vector.multi_reduction <add>, %482, %cst_72 [0] : vector<16x256xf32> to vector<256xf32>
    %484 = vector.shape_cast %483 : vector<256xf32> to vector<1x256xf32>
    %c0_73 = arith.constant 0 : index
    %c1_74 = arith.constant 1 : index
    %485 = vector.load %arg6[%c0_73, %c1_74] : memref<4x10xf32, #tpu.memory_space<vmem>>, vector<4x1xf32>
    %486 = vector.broadcast %485 : vector<4x1xf32> to vector<4x256xf32>
    %487 = vector.broadcast %484 : vector<1x256xf32> to vector<4x256xf32>
    %488 = arith.mulf %486, %487 : vector<4x256xf32>
    %489 = arith.addf %304, %488 : vector<4x256xf32>
    %cst_75 = arith.constant 0.000000e+00 : f32
    %490 = vector.broadcast %cst_75 : f32 to vector<16x256xf32>
    %491 = vector.extract_strided_slice %11 {offsets = [0, 0], sizes = [16, 1], strides = [1, 1]} : vector<16x16xf32> to vector<16x1xf32>
    %492 = vector.extract_strided_slice %369 {offsets = [0, 0], sizes = [1, 256], strides = [1, 1]} : vector<16x256xf32> to vector<1x256xf32>
    %493 = vector.broadcast %491 : vector<16x1xf32> to vector<16x256xf32>
    %494 = vector.broadcast %492 : vector<1x256xf32> to vector<16x256xf32>
    %495 = arith.mulf %493, %494 : vector<16x256xf32>
    %496 = arith.addf %490, %495 : vector<16x256xf32>
    %497 = vector.extract_strided_slice %11 {offsets = [0, 1], sizes = [16, 1], strides = [1, 1]} : vector<16x16xf32> to vector<16x1xf32>
    %498 = vector.extract_strided_slice %369 {offsets = [1, 0], sizes = [1, 256], strides = [1, 1]} : vector<16x256xf32> to vector<1x256xf32>
    %499 = vector.broadcast %497 : vector<16x1xf32> to vector<16x256xf32>
    %500 = vector.broadcast %498 : vector<1x256xf32> to vector<16x256xf32>
    %501 = arith.mulf %499, %500 : vector<16x256xf32>
    %502 = arith.addf %496, %501 : vector<16x256xf32>
    %503 = vector.extract_strided_slice %11 {offsets = [0, 2], sizes = [16, 1], strides = [1, 1]} : vector<16x16xf32> to vector<16x1xf32>
    %504 = vector.extract_strided_slice %369 {offsets = [2, 0], sizes = [1, 256], strides = [1, 1]} : vector<16x256xf32> to vector<1x256xf32>
    %505 = vector.broadcast %503 : vector<16x1xf32> to vector<16x256xf32>
    %506 = vector.broadcast %504 : vector<1x256xf32> to vector<16x256xf32>
    %507 = arith.mulf %505, %506 : vector<16x256xf32>
    %508 = arith.addf %502, %507 : vector<16x256xf32>
    %509 = vector.extract_strided_slice %11 {offsets = [0, 3], sizes = [16, 1], strides = [1, 1]} : vector<16x16xf32> to vector<16x1xf32>
    %510 = vector.extract_strided_slice %369 {offsets = [3, 0], sizes = [1, 256], strides = [1, 1]} : vector<16x256xf32> to vector<1x256xf32>
    %511 = vector.broadcast %509 : vector<16x1xf32> to vector<16x256xf32>
    %512 = vector.broadcast %510 : vector<1x256xf32> to vector<16x256xf32>
    %513 = arith.mulf %511, %512 : vector<16x256xf32>
    %514 = arith.addf %508, %513 : vector<16x256xf32>
    %515 = vector.extract_strided_slice %11 {offsets = [0, 4], sizes = [16, 1], strides = [1, 1]} : vector<16x16xf32> to vector<16x1xf32>
    %516 = vector.extract_strided_slice %369 {offsets = [4, 0], sizes = [1, 256], strides = [1, 1]} : vector<16x256xf32> to vector<1x256xf32>
    %517 = vector.broadcast %515 : vector<16x1xf32> to vector<16x256xf32>
    %518 = vector.broadcast %516 : vector<1x256xf32> to vector<16x256xf32>
    %519 = arith.mulf %517, %518 : vector<16x256xf32>
    %520 = arith.addf %514, %519 : vector<16x256xf32>
    %521 = vector.extract_strided_slice %11 {offsets = [0, 5], sizes = [16, 1], strides = [1, 1]} : vector<16x16xf32> to vector<16x1xf32>
    %522 = vector.extract_strided_slice %369 {offsets = [5, 0], sizes = [1, 256], strides = [1, 1]} : vector<16x256xf32> to vector<1x256xf32>
    %523 = vector.broadcast %521 : vector<16x1xf32> to vector<16x256xf32>
    %524 = vector.broadcast %522 : vector<1x256xf32> to vector<16x256xf32>
    %525 = arith.mulf %523, %524 : vector<16x256xf32>
    %526 = arith.addf %520, %525 : vector<16x256xf32>
    %527 = vector.extract_strided_slice %11 {offsets = [0, 6], sizes = [16, 1], strides = [1, 1]} : vector<16x16xf32> to vector<16x1xf32>
    %528 = vector.extract_strided_slice %369 {offsets = [6, 0], sizes = [1, 256], strides = [1, 1]} : vector<16x256xf32> to vector<1x256xf32>
    %529 = vector.broadcast %527 : vector<16x1xf32> to vector<16x256xf32>
    %530 = vector.broadcast %528 : vector<1x256xf32> to vector<16x256xf32>
    %531 = arith.mulf %529, %530 : vector<16x256xf32>
    %532 = arith.addf %526, %531 : vector<16x256xf32>
    %533 = vector.extract_strided_slice %11 {offsets = [0, 7], sizes = [16, 1], strides = [1, 1]} : vector<16x16xf32> to vector<16x1xf32>
    %534 = vector.extract_strided_slice %369 {offsets = [7, 0], sizes = [1, 256], strides = [1, 1]} : vector<16x256xf32> to vector<1x256xf32>
    %535 = vector.broadcast %533 : vector<16x1xf32> to vector<16x256xf32>
    %536 = vector.broadcast %534 : vector<1x256xf32> to vector<16x256xf32>
    %537 = arith.mulf %535, %536 : vector<16x256xf32>
    %538 = arith.addf %532, %537 : vector<16x256xf32>
    %539 = vector.extract_strided_slice %11 {offsets = [0, 8], sizes = [16, 1], strides = [1, 1]} : vector<16x16xf32> to vector<16x1xf32>
    %540 = vector.extract_strided_slice %369 {offsets = [8, 0], sizes = [1, 256], strides = [1, 1]} : vector<16x256xf32> to vector<1x256xf32>
    %541 = vector.broadcast %539 : vector<16x1xf32> to vector<16x256xf32>
    %542 = vector.broadcast %540 : vector<1x256xf32> to vector<16x256xf32>
    %543 = arith.mulf %541, %542 : vector<16x256xf32>
    %544 = arith.addf %538, %543 : vector<16x256xf32>
    %545 = vector.extract_strided_slice %11 {offsets = [0, 9], sizes = [16, 1], strides = [1, 1]} : vector<16x16xf32> to vector<16x1xf32>
    %546 = vector.extract_strided_slice %369 {offsets = [9, 0], sizes = [1, 256], strides = [1, 1]} : vector<16x256xf32> to vector<1x256xf32>
    %547 = vector.broadcast %545 : vector<16x1xf32> to vector<16x256xf32>
    %548 = vector.broadcast %546 : vector<1x256xf32> to vector<16x256xf32>
    %549 = arith.mulf %547, %548 : vector<16x256xf32>
    %550 = arith.addf %544, %549 : vector<16x256xf32>
    %551 = vector.extract_strided_slice %11 {offsets = [0, 10], sizes = [16, 1], strides = [1, 1]} : vector<16x16xf32> to vector<16x1xf32>
    %552 = vector.extract_strided_slice %369 {offsets = [10, 0], sizes = [1, 256], strides = [1, 1]} : vector<16x256xf32> to vector<1x256xf32>
    %553 = vector.broadcast %551 : vector<16x1xf32> to vector<16x256xf32>
    %554 = vector.broadcast %552 : vector<1x256xf32> to vector<16x256xf32>
    %555 = arith.mulf %553, %554 : vector<16x256xf32>
    %556 = arith.addf %550, %555 : vector<16x256xf32>
    %557 = vector.extract_strided_slice %11 {offsets = [0, 11], sizes = [16, 1], strides = [1, 1]} : vector<16x16xf32> to vector<16x1xf32>
    %558 = vector.extract_strided_slice %369 {offsets = [11, 0], sizes = [1, 256], strides = [1, 1]} : vector<16x256xf32> to vector<1x256xf32>
    %559 = vector.broadcast %557 : vector<16x1xf32> to vector<16x256xf32>
    %560 = vector.broadcast %558 : vector<1x256xf32> to vector<16x256xf32>
    %561 = arith.mulf %559, %560 : vector<16x256xf32>
    %562 = arith.addf %556, %561 : vector<16x256xf32>
    %563 = vector.extract_strided_slice %11 {offsets = [0, 12], sizes = [16, 1], strides = [1, 1]} : vector<16x16xf32> to vector<16x1xf32>
    %564 = vector.extract_strided_slice %369 {offsets = [12, 0], sizes = [1, 256], strides = [1, 1]} : vector<16x256xf32> to vector<1x256xf32>
    %565 = vector.broadcast %563 : vector<16x1xf32> to vector<16x256xf32>
    %566 = vector.broadcast %564 : vector<1x256xf32> to vector<16x256xf32>
    %567 = arith.mulf %565, %566 : vector<16x256xf32>
    %568 = arith.addf %562, %567 : vector<16x256xf32>
    %569 = vector.extract_strided_slice %11 {offsets = [0, 13], sizes = [16, 1], strides = [1, 1]} : vector<16x16xf32> to vector<16x1xf32>
    %570 = vector.extract_strided_slice %369 {offsets = [13, 0], sizes = [1, 256], strides = [1, 1]} : vector<16x256xf32> to vector<1x256xf32>
    %571 = vector.broadcast %569 : vector<16x1xf32> to vector<16x256xf32>
    %572 = vector.broadcast %570 : vector<1x256xf32> to vector<16x256xf32>
    %573 = arith.mulf %571, %572 : vector<16x256xf32>
    %574 = arith.addf %568, %573 : vector<16x256xf32>
    %575 = vector.extract_strided_slice %11 {offsets = [0, 14], sizes = [16, 1], strides = [1, 1]} : vector<16x16xf32> to vector<16x1xf32>
    %576 = vector.extract_strided_slice %369 {offsets = [14, 0], sizes = [1, 256], strides = [1, 1]} : vector<16x256xf32> to vector<1x256xf32>
    %577 = vector.broadcast %575 : vector<16x1xf32> to vector<16x256xf32>
    %578 = vector.broadcast %576 : vector<1x256xf32> to vector<16x256xf32>
    %579 = arith.mulf %577, %578 : vector<16x256xf32>
    %580 = arith.addf %574, %579 : vector<16x256xf32>
    %581 = vector.extract_strided_slice %11 {offsets = [0, 15], sizes = [16, 1], strides = [1, 1]} : vector<16x16xf32> to vector<16x1xf32>
    %582 = vector.extract_strided_slice %369 {offsets = [15, 0], sizes = [1, 256], strides = [1, 1]} : vector<16x256xf32> to vector<1x256xf32>
    %583 = vector.broadcast %581 : vector<16x1xf32> to vector<16x256xf32>
    %584 = vector.broadcast %582 : vector<1x256xf32> to vector<16x256xf32>
    %585 = arith.mulf %583, %584 : vector<16x256xf32>
    %586 = arith.addf %580, %585 : vector<16x256xf32>
    %587 = arith.mulf %384, %586 : vector<16x256xf32>
    %cst_76 = arith.constant dense<0.000000e+00> : vector<256xf32>
    %588 = vector.multi_reduction <add>, %587, %cst_76 [0] : vector<16x256xf32> to vector<256xf32>
    %589 = vector.shape_cast %588 : vector<256xf32> to vector<1x256xf32>
    %c0_77 = arith.constant 0 : index
    %c6 = arith.constant 6 : index
    %590 = vector.load %arg6[%c0_77, %c6] : memref<4x10xf32, #tpu.memory_space<vmem>>, vector<4x1xf32>
    %591 = vector.broadcast %590 : vector<4x1xf32> to vector<4x256xf32>
    %592 = vector.broadcast %589 : vector<1x256xf32> to vector<4x256xf32>
    %593 = arith.mulf %591, %592 : vector<4x256xf32>
    %594 = arith.addf %489, %593 : vector<4x256xf32>
    %cst_78 = arith.constant 1.000000e+00 : f32
    %595 = vector.broadcast %cst_78 : f32 to vector<1x256xf32>
    %596 = arith.addf %1, %595 : vector<1x256xf32>
    %597 = vector.extract_strided_slice %5 {offsets = [2, 0], sizes = [1, 256], strides = [1, 1]} : vector<10x256xf32> to vector<1x256xf32>
    %598 = arith.addf %596, %597 : vector<1x256xf32>
    %cst_79 = arith.constant 0.000000e+00 : f32
    %599 = vector.broadcast %cst_79 : f32 to vector<1x256xf32>
    %600 = arith.addf %3, %599 : vector<1x256xf32>
    %601 = vector.extract_strided_slice %5 {offsets = [7, 0], sizes = [1, 256], strides = [1, 1]} : vector<10x256xf32> to vector<1x256xf32>
    %602 = arith.addf %600, %601 : vector<1x256xf32>
    %603 = math.floor %598 : vector<1x256xf32>
    %604 = math.floor %602 : vector<1x256xf32>
    %cst_80 = arith.constant 0.000000e+00 : f32
    %cst_81 = arith.constant 1.500000e+01 : f32
    %605 = vector.broadcast %cst_80 : f32 to vector<1x256xf32>
    %606 = arith.maximumf %605, %603 : vector<1x256xf32>
    %607 = vector.broadcast %cst_81 : f32 to vector<1x256xf32>
    %608 = arith.minimumf %607, %606 : vector<1x256xf32>
    %cst_82 = arith.constant 1.000000e+00 : f32
    %609 = vector.broadcast %cst_82 : f32 to vector<1x256xf32>
    %610 = arith.addf %603, %609 : vector<1x256xf32>
    %cst_83 = arith.constant 0.000000e+00 : f32
    %cst_84 = arith.constant 1.500000e+01 : f32
    %611 = vector.broadcast %cst_83 : f32 to vector<1x256xf32>
    %612 = arith.maximumf %611, %610 : vector<1x256xf32>
    %613 = vector.broadcast %cst_84 : f32 to vector<1x256xf32>
    %614 = arith.minimumf %613, %612 : vector<1x256xf32>
    %cst_85 = arith.constant 0.000000e+00 : f32
    %cst_86 = arith.constant 1.500000e+01 : f32
    %615 = vector.broadcast %cst_85 : f32 to vector<1x256xf32>
    %616 = arith.maximumf %615, %604 : vector<1x256xf32>
    %617 = vector.broadcast %cst_86 : f32 to vector<1x256xf32>
    %618 = arith.minimumf %617, %616 : vector<1x256xf32>
    %cst_87 = arith.constant 1.000000e+00 : f32
    %619 = vector.broadcast %cst_87 : f32 to vector<1x256xf32>
    %620 = arith.addf %604, %619 : vector<1x256xf32>
    %cst_88 = arith.constant 0.000000e+00 : f32
    %cst_89 = arith.constant 1.500000e+01 : f32
    %621 = vector.broadcast %cst_88 : f32 to vector<1x256xf32>
    %622 = arith.maximumf %621, %620 : vector<1x256xf32>
    %623 = vector.broadcast %cst_89 : f32 to vector<1x256xf32>
    %624 = arith.minimumf %623, %622 : vector<1x256xf32>
    %cst_90 = arith.constant 0.000000e+00 : f32
    %cst_91 = arith.constant 1.500000e+01 : f32
    %625 = vector.broadcast %cst_90 : f32 to vector<1x256xf32>
    %626 = arith.maximumf %625, %598 : vector<1x256xf32>
    %627 = vector.broadcast %cst_91 : f32 to vector<1x256xf32>
    %628 = arith.minimumf %627, %626 : vector<1x256xf32>
    %cst_92 = arith.constant 0.000000e+00 : f32
    %cst_93 = arith.constant 1.500000e+01 : f32
    %629 = vector.broadcast %cst_92 : f32 to vector<1x256xf32>
    %630 = arith.maximumf %629, %602 : vector<1x256xf32>
    %631 = vector.broadcast %cst_93 : f32 to vector<1x256xf32>
    %632 = arith.minimumf %631, %630 : vector<1x256xf32>
    %cst_94 = arith.constant 1.000000e+00 : f32
    %633 = vector.broadcast %cst_94 : f32 to vector<1x256xf32>
    %634 = arith.addf %633, %608 : vector<1x256xf32>
    %635 = arith.subf %634, %628 : vector<1x256xf32>
    %cst_95 = arith.constant 1.000000e+00 : f32
    %636 = vector.broadcast %cst_95 : f32 to vector<1x256xf32>
    %637 = arith.subf %636, %614 : vector<1x256xf32>
    %638 = arith.addf %637, %628 : vector<1x256xf32>
    %cst_96 = arith.constant 1.000000e+00 : f32
    %639 = vector.broadcast %cst_96 : f32 to vector<1x256xf32>
    %640 = arith.addf %639, %618 : vector<1x256xf32>
    %641 = arith.subf %640, %632 : vector<1x256xf32>
    %cst_97 = arith.constant 1.000000e+00 : f32
    %642 = vector.broadcast %cst_97 : f32 to vector<1x256xf32>
    %643 = arith.subf %642, %624 : vector<1x256xf32>
    %644 = arith.addf %643, %632 : vector<1x256xf32>
    %645 = arith.fptosi %608 : vector<1x256xf32> to vector<1x256xi32>
    %646 = vector.broadcast %645 : vector<1x256xi32> to vector<16x256xi32>
    %647 = arith.cmpi eq, %12, %646 : vector<16x256xi32>
    %cst_98 = arith.constant 0.000000e+00 : f32
    %648 = vector.shape_cast %635 : vector<1x256xf32> to vector<1x256xf32>
    %649 = vector.broadcast %648 : vector<1x256xf32> to vector<16x256xf32>
    %650 = vector.broadcast %cst_98 : f32 to vector<16x256xf32>
    %651 = arith.select %647, %649, %650 : vector<16x256xi1>, vector<16x256xf32>
    %652 = arith.fptosi %614 : vector<1x256xf32> to vector<1x256xi32>
    %653 = vector.broadcast %652 : vector<1x256xi32> to vector<16x256xi32>
    %654 = arith.cmpi eq, %12, %653 : vector<16x256xi32>
    %cst_99 = arith.constant 0.000000e+00 : f32
    %655 = vector.shape_cast %638 : vector<1x256xf32> to vector<1x256xf32>
    %656 = vector.broadcast %655 : vector<1x256xf32> to vector<16x256xf32>
    %657 = vector.broadcast %cst_99 : f32 to vector<16x256xf32>
    %658 = arith.select %654, %656, %657 : vector<16x256xi1>, vector<16x256xf32>
    %659 = arith.addf %651, %658 : vector<16x256xf32>
    %660 = arith.fptosi %618 : vector<1x256xf32> to vector<1x256xi32>
    %661 = vector.broadcast %660 : vector<1x256xi32> to vector<16x256xi32>
    %662 = arith.cmpi eq, %13, %661 : vector<16x256xi32>
    %cst_100 = arith.constant 0.000000e+00 : f32
    %663 = vector.shape_cast %641 : vector<1x256xf32> to vector<1x256xf32>
    %664 = vector.broadcast %663 : vector<1x256xf32> to vector<16x256xf32>
    %665 = vector.broadcast %cst_100 : f32 to vector<16x256xf32>
    %666 = arith.select %662, %664, %665 : vector<16x256xi1>, vector<16x256xf32>
    %667 = arith.fptosi %624 : vector<1x256xf32> to vector<1x256xi32>
    %668 = vector.broadcast %667 : vector<1x256xi32> to vector<16x256xi32>
    %669 = arith.cmpi eq, %13, %668 : vector<16x256xi32>
    %cst_101 = arith.constant 0.000000e+00 : f32
    %670 = vector.shape_cast %644 : vector<1x256xf32> to vector<1x256xf32>
    %671 = vector.broadcast %670 : vector<1x256xf32> to vector<16x256xf32>
    %672 = vector.broadcast %cst_101 : f32 to vector<16x256xf32>
    %673 = arith.select %669, %671, %672 : vector<16x256xi1>, vector<16x256xf32>
    %674 = arith.addf %666, %673 : vector<16x256xf32>
    %cst_102 = arith.constant 0.000000e+00 : f32
    %675 = vector.broadcast %cst_102 : f32 to vector<16x256xf32>
    %676 = vector.extract_strided_slice %9 {offsets = [0, 0], sizes = [16, 1], strides = [1, 1]} : vector<16x16xf32> to vector<16x1xf32>
    %677 = vector.extract_strided_slice %659 {offsets = [0, 0], sizes = [1, 256], strides = [1, 1]} : vector<16x256xf32> to vector<1x256xf32>
    %678 = vector.broadcast %676 : vector<16x1xf32> to vector<16x256xf32>
    %679 = vector.broadcast %677 : vector<1x256xf32> to vector<16x256xf32>
    %680 = arith.mulf %678, %679 : vector<16x256xf32>
    %681 = arith.addf %675, %680 : vector<16x256xf32>
    %682 = vector.extract_strided_slice %9 {offsets = [0, 1], sizes = [16, 1], strides = [1, 1]} : vector<16x16xf32> to vector<16x1xf32>
    %683 = vector.extract_strided_slice %659 {offsets = [1, 0], sizes = [1, 256], strides = [1, 1]} : vector<16x256xf32> to vector<1x256xf32>
    %684 = vector.broadcast %682 : vector<16x1xf32> to vector<16x256xf32>
    %685 = vector.broadcast %683 : vector<1x256xf32> to vector<16x256xf32>
    %686 = arith.mulf %684, %685 : vector<16x256xf32>
    %687 = arith.addf %681, %686 : vector<16x256xf32>
    %688 = vector.extract_strided_slice %9 {offsets = [0, 2], sizes = [16, 1], strides = [1, 1]} : vector<16x16xf32> to vector<16x1xf32>
    %689 = vector.extract_strided_slice %659 {offsets = [2, 0], sizes = [1, 256], strides = [1, 1]} : vector<16x256xf32> to vector<1x256xf32>
    %690 = vector.broadcast %688 : vector<16x1xf32> to vector<16x256xf32>
    %691 = vector.broadcast %689 : vector<1x256xf32> to vector<16x256xf32>
    %692 = arith.mulf %690, %691 : vector<16x256xf32>
    %693 = arith.addf %687, %692 : vector<16x256xf32>
    %694 = vector.extract_strided_slice %9 {offsets = [0, 3], sizes = [16, 1], strides = [1, 1]} : vector<16x16xf32> to vector<16x1xf32>
    %695 = vector.extract_strided_slice %659 {offsets = [3, 0], sizes = [1, 256], strides = [1, 1]} : vector<16x256xf32> to vector<1x256xf32>
    %696 = vector.broadcast %694 : vector<16x1xf32> to vector<16x256xf32>
    %697 = vector.broadcast %695 : vector<1x256xf32> to vector<16x256xf32>
    %698 = arith.mulf %696, %697 : vector<16x256xf32>
    %699 = arith.addf %693, %698 : vector<16x256xf32>
    %700 = vector.extract_strided_slice %9 {offsets = [0, 4], sizes = [16, 1], strides = [1, 1]} : vector<16x16xf32> to vector<16x1xf32>
    %701 = vector.extract_strided_slice %659 {offsets = [4, 0], sizes = [1, 256], strides = [1, 1]} : vector<16x256xf32> to vector<1x256xf32>
    %702 = vector.broadcast %700 : vector<16x1xf32> to vector<16x256xf32>
    %703 = vector.broadcast %701 : vector<1x256xf32> to vector<16x256xf32>
    %704 = arith.mulf %702, %703 : vector<16x256xf32>
    %705 = arith.addf %699, %704 : vector<16x256xf32>
    %706 = vector.extract_strided_slice %9 {offsets = [0, 5], sizes = [16, 1], strides = [1, 1]} : vector<16x16xf32> to vector<16x1xf32>
    %707 = vector.extract_strided_slice %659 {offsets = [5, 0], sizes = [1, 256], strides = [1, 1]} : vector<16x256xf32> to vector<1x256xf32>
    %708 = vector.broadcast %706 : vector<16x1xf32> to vector<16x256xf32>
    %709 = vector.broadcast %707 : vector<1x256xf32> to vector<16x256xf32>
    %710 = arith.mulf %708, %709 : vector<16x256xf32>
    %711 = arith.addf %705, %710 : vector<16x256xf32>
    %712 = vector.extract_strided_slice %9 {offsets = [0, 6], sizes = [16, 1], strides = [1, 1]} : vector<16x16xf32> to vector<16x1xf32>
    %713 = vector.extract_strided_slice %659 {offsets = [6, 0], sizes = [1, 256], strides = [1, 1]} : vector<16x256xf32> to vector<1x256xf32>
    %714 = vector.broadcast %712 : vector<16x1xf32> to vector<16x256xf32>
    %715 = vector.broadcast %713 : vector<1x256xf32> to vector<16x256xf32>
    %716 = arith.mulf %714, %715 : vector<16x256xf32>
    %717 = arith.addf %711, %716 : vector<16x256xf32>
    %718 = vector.extract_strided_slice %9 {offsets = [0, 7], sizes = [16, 1], strides = [1, 1]} : vector<16x16xf32> to vector<16x1xf32>
    %719 = vector.extract_strided_slice %659 {offsets = [7, 0], sizes = [1, 256], strides = [1, 1]} : vector<16x256xf32> to vector<1x256xf32>
    %720 = vector.broadcast %718 : vector<16x1xf32> to vector<16x256xf32>
    %721 = vector.broadcast %719 : vector<1x256xf32> to vector<16x256xf32>
    %722 = arith.mulf %720, %721 : vector<16x256xf32>
    %723 = arith.addf %717, %722 : vector<16x256xf32>
    %724 = vector.extract_strided_slice %9 {offsets = [0, 8], sizes = [16, 1], strides = [1, 1]} : vector<16x16xf32> to vector<16x1xf32>
    %725 = vector.extract_strided_slice %659 {offsets = [8, 0], sizes = [1, 256], strides = [1, 1]} : vector<16x256xf32> to vector<1x256xf32>
    %726 = vector.broadcast %724 : vector<16x1xf32> to vector<16x256xf32>
    %727 = vector.broadcast %725 : vector<1x256xf32> to vector<16x256xf32>
    %728 = arith.mulf %726, %727 : vector<16x256xf32>
    %729 = arith.addf %723, %728 : vector<16x256xf32>
    %730 = vector.extract_strided_slice %9 {offsets = [0, 9], sizes = [16, 1], strides = [1, 1]} : vector<16x16xf32> to vector<16x1xf32>
    %731 = vector.extract_strided_slice %659 {offsets = [9, 0], sizes = [1, 256], strides = [1, 1]} : vector<16x256xf32> to vector<1x256xf32>
    %732 = vector.broadcast %730 : vector<16x1xf32> to vector<16x256xf32>
    %733 = vector.broadcast %731 : vector<1x256xf32> to vector<16x256xf32>
    %734 = arith.mulf %732, %733 : vector<16x256xf32>
    %735 = arith.addf %729, %734 : vector<16x256xf32>
    %736 = vector.extract_strided_slice %9 {offsets = [0, 10], sizes = [16, 1], strides = [1, 1]} : vector<16x16xf32> to vector<16x1xf32>
    %737 = vector.extract_strided_slice %659 {offsets = [10, 0], sizes = [1, 256], strides = [1, 1]} : vector<16x256xf32> to vector<1x256xf32>
    %738 = vector.broadcast %736 : vector<16x1xf32> to vector<16x256xf32>
    %739 = vector.broadcast %737 : vector<1x256xf32> to vector<16x256xf32>
    %740 = arith.mulf %738, %739 : vector<16x256xf32>
    %741 = arith.addf %735, %740 : vector<16x256xf32>
    %742 = vector.extract_strided_slice %9 {offsets = [0, 11], sizes = [16, 1], strides = [1, 1]} : vector<16x16xf32> to vector<16x1xf32>
    %743 = vector.extract_strided_slice %659 {offsets = [11, 0], sizes = [1, 256], strides = [1, 1]} : vector<16x256xf32> to vector<1x256xf32>
    %744 = vector.broadcast %742 : vector<16x1xf32> to vector<16x256xf32>
    %745 = vector.broadcast %743 : vector<1x256xf32> to vector<16x256xf32>
    %746 = arith.mulf %744, %745 : vector<16x256xf32>
    %747 = arith.addf %741, %746 : vector<16x256xf32>
    %748 = vector.extract_strided_slice %9 {offsets = [0, 12], sizes = [16, 1], strides = [1, 1]} : vector<16x16xf32> to vector<16x1xf32>
    %749 = vector.extract_strided_slice %659 {offsets = [12, 0], sizes = [1, 256], strides = [1, 1]} : vector<16x256xf32> to vector<1x256xf32>
    %750 = vector.broadcast %748 : vector<16x1xf32> to vector<16x256xf32>
    %751 = vector.broadcast %749 : vector<1x256xf32> to vector<16x256xf32>
    %752 = arith.mulf %750, %751 : vector<16x256xf32>
    %753 = arith.addf %747, %752 : vector<16x256xf32>
    %754 = vector.extract_strided_slice %9 {offsets = [0, 13], sizes = [16, 1], strides = [1, 1]} : vector<16x16xf32> to vector<16x1xf32>
    %755 = vector.extract_strided_slice %659 {offsets = [13, 0], sizes = [1, 256], strides = [1, 1]} : vector<16x256xf32> to vector<1x256xf32>
    %756 = vector.broadcast %754 : vector<16x1xf32> to vector<16x256xf32>
    %757 = vector.broadcast %755 : vector<1x256xf32> to vector<16x256xf32>
    %758 = arith.mulf %756, %757 : vector<16x256xf32>
    %759 = arith.addf %753, %758 : vector<16x256xf32>
    %760 = vector.extract_strided_slice %9 {offsets = [0, 14], sizes = [16, 1], strides = [1, 1]} : vector<16x16xf32> to vector<16x1xf32>
    %761 = vector.extract_strided_slice %659 {offsets = [14, 0], sizes = [1, 256], strides = [1, 1]} : vector<16x256xf32> to vector<1x256xf32>
    %762 = vector.broadcast %760 : vector<16x1xf32> to vector<16x256xf32>
    %763 = vector.broadcast %761 : vector<1x256xf32> to vector<16x256xf32>
    %764 = arith.mulf %762, %763 : vector<16x256xf32>
    %765 = arith.addf %759, %764 : vector<16x256xf32>
    %766 = vector.extract_strided_slice %9 {offsets = [0, 15], sizes = [16, 1], strides = [1, 1]} : vector<16x16xf32> to vector<16x1xf32>
    %767 = vector.extract_strided_slice %659 {offsets = [15, 0], sizes = [1, 256], strides = [1, 1]} : vector<16x256xf32> to vector<1x256xf32>
    %768 = vector.broadcast %766 : vector<16x1xf32> to vector<16x256xf32>
    %769 = vector.broadcast %767 : vector<1x256xf32> to vector<16x256xf32>
    %770 = arith.mulf %768, %769 : vector<16x256xf32>
    %771 = arith.addf %765, %770 : vector<16x256xf32>
    %772 = arith.mulf %674, %771 : vector<16x256xf32>
    %cst_103 = arith.constant dense<0.000000e+00> : vector<256xf32>
    %773 = vector.multi_reduction <add>, %772, %cst_103 [0] : vector<16x256xf32> to vector<256xf32>
    %774 = vector.shape_cast %773 : vector<256xf32> to vector<1x256xf32>
    %c0_104 = arith.constant 0 : index
    %c2 = arith.constant 2 : index
    %775 = vector.load %arg6[%c0_104, %c2] : memref<4x10xf32, #tpu.memory_space<vmem>>, vector<4x1xf32>
    %776 = vector.broadcast %775 : vector<4x1xf32> to vector<4x256xf32>
    %777 = vector.broadcast %774 : vector<1x256xf32> to vector<4x256xf32>
    %778 = arith.mulf %776, %777 : vector<4x256xf32>
    %779 = arith.addf %594, %778 : vector<4x256xf32>
    %cst_105 = arith.constant 0.000000e+00 : f32
    %780 = vector.broadcast %cst_105 : f32 to vector<16x256xf32>
    %781 = vector.extract_strided_slice %11 {offsets = [0, 0], sizes = [16, 1], strides = [1, 1]} : vector<16x16xf32> to vector<16x1xf32>
    %782 = vector.extract_strided_slice %659 {offsets = [0, 0], sizes = [1, 256], strides = [1, 1]} : vector<16x256xf32> to vector<1x256xf32>
    %783 = vector.broadcast %781 : vector<16x1xf32> to vector<16x256xf32>
    %784 = vector.broadcast %782 : vector<1x256xf32> to vector<16x256xf32>
    %785 = arith.mulf %783, %784 : vector<16x256xf32>
    %786 = arith.addf %780, %785 : vector<16x256xf32>
    %787 = vector.extract_strided_slice %11 {offsets = [0, 1], sizes = [16, 1], strides = [1, 1]} : vector<16x16xf32> to vector<16x1xf32>
    %788 = vector.extract_strided_slice %659 {offsets = [1, 0], sizes = [1, 256], strides = [1, 1]} : vector<16x256xf32> to vector<1x256xf32>
    %789 = vector.broadcast %787 : vector<16x1xf32> to vector<16x256xf32>
    %790 = vector.broadcast %788 : vector<1x256xf32> to vector<16x256xf32>
    %791 = arith.mulf %789, %790 : vector<16x256xf32>
    %792 = arith.addf %786, %791 : vector<16x256xf32>
    %793 = vector.extract_strided_slice %11 {offsets = [0, 2], sizes = [16, 1], strides = [1, 1]} : vector<16x16xf32> to vector<16x1xf32>
    %794 = vector.extract_strided_slice %659 {offsets = [2, 0], sizes = [1, 256], strides = [1, 1]} : vector<16x256xf32> to vector<1x256xf32>
    %795 = vector.broadcast %793 : vector<16x1xf32> to vector<16x256xf32>
    %796 = vector.broadcast %794 : vector<1x256xf32> to vector<16x256xf32>
    %797 = arith.mulf %795, %796 : vector<16x256xf32>
    %798 = arith.addf %792, %797 : vector<16x256xf32>
    %799 = vector.extract_strided_slice %11 {offsets = [0, 3], sizes = [16, 1], strides = [1, 1]} : vector<16x16xf32> to vector<16x1xf32>
    %800 = vector.extract_strided_slice %659 {offsets = [3, 0], sizes = [1, 256], strides = [1, 1]} : vector<16x256xf32> to vector<1x256xf32>
    %801 = vector.broadcast %799 : vector<16x1xf32> to vector<16x256xf32>
    %802 = vector.broadcast %800 : vector<1x256xf32> to vector<16x256xf32>
    %803 = arith.mulf %801, %802 : vector<16x256xf32>
    %804 = arith.addf %798, %803 : vector<16x256xf32>
    %805 = vector.extract_strided_slice %11 {offsets = [0, 4], sizes = [16, 1], strides = [1, 1]} : vector<16x16xf32> to vector<16x1xf32>
    %806 = vector.extract_strided_slice %659 {offsets = [4, 0], sizes = [1, 256], strides = [1, 1]} : vector<16x256xf32> to vector<1x256xf32>
    %807 = vector.broadcast %805 : vector<16x1xf32> to vector<16x256xf32>
    %808 = vector.broadcast %806 : vector<1x256xf32> to vector<16x256xf32>
    %809 = arith.mulf %807, %808 : vector<16x256xf32>
    %810 = arith.addf %804, %809 : vector<16x256xf32>
    %811 = vector.extract_strided_slice %11 {offsets = [0, 5], sizes = [16, 1], strides = [1, 1]} : vector<16x16xf32> to vector<16x1xf32>
    %812 = vector.extract_strided_slice %659 {offsets = [5, 0], sizes = [1, 256], strides = [1, 1]} : vector<16x256xf32> to vector<1x256xf32>
    %813 = vector.broadcast %811 : vector<16x1xf32> to vector<16x256xf32>
    %814 = vector.broadcast %812 : vector<1x256xf32> to vector<16x256xf32>
    %815 = arith.mulf %813, %814 : vector<16x256xf32>
    %816 = arith.addf %810, %815 : vector<16x256xf32>
    %817 = vector.extract_strided_slice %11 {offsets = [0, 6], sizes = [16, 1], strides = [1, 1]} : vector<16x16xf32> to vector<16x1xf32>
    %818 = vector.extract_strided_slice %659 {offsets = [6, 0], sizes = [1, 256], strides = [1, 1]} : vector<16x256xf32> to vector<1x256xf32>
    %819 = vector.broadcast %817 : vector<16x1xf32> to vector<16x256xf32>
    %820 = vector.broadcast %818 : vector<1x256xf32> to vector<16x256xf32>
    %821 = arith.mulf %819, %820 : vector<16x256xf32>
    %822 = arith.addf %816, %821 : vector<16x256xf32>
    %823 = vector.extract_strided_slice %11 {offsets = [0, 7], sizes = [16, 1], strides = [1, 1]} : vector<16x16xf32> to vector<16x1xf32>
    %824 = vector.extract_strided_slice %659 {offsets = [7, 0], sizes = [1, 256], strides = [1, 1]} : vector<16x256xf32> to vector<1x256xf32>
    %825 = vector.broadcast %823 : vector<16x1xf32> to vector<16x256xf32>
    %826 = vector.broadcast %824 : vector<1x256xf32> to vector<16x256xf32>
    %827 = arith.mulf %825, %826 : vector<16x256xf32>
    %828 = arith.addf %822, %827 : vector<16x256xf32>
    %829 = vector.extract_strided_slice %11 {offsets = [0, 8], sizes = [16, 1], strides = [1, 1]} : vector<16x16xf32> to vector<16x1xf32>
    %830 = vector.extract_strided_slice %659 {offsets = [8, 0], sizes = [1, 256], strides = [1, 1]} : vector<16x256xf32> to vector<1x256xf32>
    %831 = vector.broadcast %829 : vector<16x1xf32> to vector<16x256xf32>
    %832 = vector.broadcast %830 : vector<1x256xf32> to vector<16x256xf32>
    %833 = arith.mulf %831, %832 : vector<16x256xf32>
    %834 = arith.addf %828, %833 : vector<16x256xf32>
    %835 = vector.extract_strided_slice %11 {offsets = [0, 9], sizes = [16, 1], strides = [1, 1]} : vector<16x16xf32> to vector<16x1xf32>
    %836 = vector.extract_strided_slice %659 {offsets = [9, 0], sizes = [1, 256], strides = [1, 1]} : vector<16x256xf32> to vector<1x256xf32>
    %837 = vector.broadcast %835 : vector<16x1xf32> to vector<16x256xf32>
    %838 = vector.broadcast %836 : vector<1x256xf32> to vector<16x256xf32>
    %839 = arith.mulf %837, %838 : vector<16x256xf32>
    %840 = arith.addf %834, %839 : vector<16x256xf32>
    %841 = vector.extract_strided_slice %11 {offsets = [0, 10], sizes = [16, 1], strides = [1, 1]} : vector<16x16xf32> to vector<16x1xf32>
    %842 = vector.extract_strided_slice %659 {offsets = [10, 0], sizes = [1, 256], strides = [1, 1]} : vector<16x256xf32> to vector<1x256xf32>
    %843 = vector.broadcast %841 : vector<16x1xf32> to vector<16x256xf32>
    %844 = vector.broadcast %842 : vector<1x256xf32> to vector<16x256xf32>
    %845 = arith.mulf %843, %844 : vector<16x256xf32>
    %846 = arith.addf %840, %845 : vector<16x256xf32>
    %847 = vector.extract_strided_slice %11 {offsets = [0, 11], sizes = [16, 1], strides = [1, 1]} : vector<16x16xf32> to vector<16x1xf32>
    %848 = vector.extract_strided_slice %659 {offsets = [11, 0], sizes = [1, 256], strides = [1, 1]} : vector<16x256xf32> to vector<1x256xf32>
    %849 = vector.broadcast %847 : vector<16x1xf32> to vector<16x256xf32>
    %850 = vector.broadcast %848 : vector<1x256xf32> to vector<16x256xf32>
    %851 = arith.mulf %849, %850 : vector<16x256xf32>
    %852 = arith.addf %846, %851 : vector<16x256xf32>
    %853 = vector.extract_strided_slice %11 {offsets = [0, 12], sizes = [16, 1], strides = [1, 1]} : vector<16x16xf32> to vector<16x1xf32>
    %854 = vector.extract_strided_slice %659 {offsets = [12, 0], sizes = [1, 256], strides = [1, 1]} : vector<16x256xf32> to vector<1x256xf32>
    %855 = vector.broadcast %853 : vector<16x1xf32> to vector<16x256xf32>
    %856 = vector.broadcast %854 : vector<1x256xf32> to vector<16x256xf32>
    %857 = arith.mulf %855, %856 : vector<16x256xf32>
    %858 = arith.addf %852, %857 : vector<16x256xf32>
    %859 = vector.extract_strided_slice %11 {offsets = [0, 13], sizes = [16, 1], strides = [1, 1]} : vector<16x16xf32> to vector<16x1xf32>
    %860 = vector.extract_strided_slice %659 {offsets = [13, 0], sizes = [1, 256], strides = [1, 1]} : vector<16x256xf32> to vector<1x256xf32>
    %861 = vector.broadcast %859 : vector<16x1xf32> to vector<16x256xf32>
    %862 = vector.broadcast %860 : vector<1x256xf32> to vector<16x256xf32>
    %863 = arith.mulf %861, %862 : vector<16x256xf32>
    %864 = arith.addf %858, %863 : vector<16x256xf32>
    %865 = vector.extract_strided_slice %11 {offsets = [0, 14], sizes = [16, 1], strides = [1, 1]} : vector<16x16xf32> to vector<16x1xf32>
    %866 = vector.extract_strided_slice %659 {offsets = [14, 0], sizes = [1, 256], strides = [1, 1]} : vector<16x256xf32> to vector<1x256xf32>
    %867 = vector.broadcast %865 : vector<16x1xf32> to vector<16x256xf32>
    %868 = vector.broadcast %866 : vector<1x256xf32> to vector<16x256xf32>
    %869 = arith.mulf %867, %868 : vector<16x256xf32>
    %870 = arith.addf %864, %869 : vector<16x256xf32>
    %871 = vector.extract_strided_slice %11 {offsets = [0, 15], sizes = [16, 1], strides = [1, 1]} : vector<16x16xf32> to vector<16x1xf32>
    %872 = vector.extract_strided_slice %659 {offsets = [15, 0], sizes = [1, 256], strides = [1, 1]} : vector<16x256xf32> to vector<1x256xf32>
    %873 = vector.broadcast %871 : vector<16x1xf32> to vector<16x256xf32>
    %874 = vector.broadcast %872 : vector<1x256xf32> to vector<16x256xf32>
    %875 = arith.mulf %873, %874 : vector<16x256xf32>
    %876 = arith.addf %870, %875 : vector<16x256xf32>
    %877 = arith.mulf %674, %876 : vector<16x256xf32>
    %cst_106 = arith.constant dense<0.000000e+00> : vector<256xf32>
    %878 = vector.multi_reduction <add>, %877, %cst_106 [0] : vector<16x256xf32> to vector<256xf32>
    %879 = vector.shape_cast %878 : vector<256xf32> to vector<1x256xf32>
    %c0_107 = arith.constant 0 : index
    %c7 = arith.constant 7 : index
    %880 = vector.load %arg6[%c0_107, %c7] : memref<4x10xf32, #tpu.memory_space<vmem>>, vector<4x1xf32>
    %881 = vector.broadcast %880 : vector<4x1xf32> to vector<4x256xf32>
    %882 = vector.broadcast %879 : vector<1x256xf32> to vector<4x256xf32>
    %883 = arith.mulf %881, %882 : vector<4x256xf32>
    %884 = arith.addf %779, %883 : vector<4x256xf32>
    %cst_108 = arith.constant 1.000000e+00 : f32
    %885 = vector.broadcast %cst_108 : f32 to vector<1x256xf32>
    %886 = arith.addf %1, %885 : vector<1x256xf32>
    %887 = vector.extract_strided_slice %5 {offsets = [3, 0], sizes = [1, 256], strides = [1, 1]} : vector<10x256xf32> to vector<1x256xf32>
    %888 = arith.addf %886, %887 : vector<1x256xf32>
    %cst_109 = arith.constant 1.000000e+00 : f32
    %889 = vector.broadcast %cst_109 : f32 to vector<1x256xf32>
    %890 = arith.addf %3, %889 : vector<1x256xf32>
    %891 = vector.extract_strided_slice %5 {offsets = [8, 0], sizes = [1, 256], strides = [1, 1]} : vector<10x256xf32> to vector<1x256xf32>
    %892 = arith.addf %890, %891 : vector<1x256xf32>
    %893 = math.floor %888 : vector<1x256xf32>
    %894 = math.floor %892 : vector<1x256xf32>
    %cst_110 = arith.constant 0.000000e+00 : f32
    %cst_111 = arith.constant 1.500000e+01 : f32
    %895 = vector.broadcast %cst_110 : f32 to vector<1x256xf32>
    %896 = arith.maximumf %895, %893 : vector<1x256xf32>
    %897 = vector.broadcast %cst_111 : f32 to vector<1x256xf32>
    %898 = arith.minimumf %897, %896 : vector<1x256xf32>
    %cst_112 = arith.constant 1.000000e+00 : f32
    %899 = vector.broadcast %cst_112 : f32 to vector<1x256xf32>
    %900 = arith.addf %893, %899 : vector<1x256xf32>
    %cst_113 = arith.constant 0.000000e+00 : f32
    %cst_114 = arith.constant 1.500000e+01 : f32
    %901 = vector.broadcast %cst_113 : f32 to vector<1x256xf32>
    %902 = arith.maximumf %901, %900 : vector<1x256xf32>
    %903 = vector.broadcast %cst_114 : f32 to vector<1x256xf32>
    %904 = arith.minimumf %903, %902 : vector<1x256xf32>
    %cst_115 = arith.constant 0.000000e+00 : f32
    %cst_116 = arith.constant 1.500000e+01 : f32
    %905 = vector.broadcast %cst_115 : f32 to vector<1x256xf32>
    %906 = arith.maximumf %905, %894 : vector<1x256xf32>
    %907 = vector.broadcast %cst_116 : f32 to vector<1x256xf32>
    %908 = arith.minimumf %907, %906 : vector<1x256xf32>
    %cst_117 = arith.constant 1.000000e+00 : f32
    %909 = vector.broadcast %cst_117 : f32 to vector<1x256xf32>
    %910 = arith.addf %894, %909 : vector<1x256xf32>
    %cst_118 = arith.constant 0.000000e+00 : f32
    %cst_119 = arith.constant 1.500000e+01 : f32
    %911 = vector.broadcast %cst_118 : f32 to vector<1x256xf32>
    %912 = arith.maximumf %911, %910 : vector<1x256xf32>
    %913 = vector.broadcast %cst_119 : f32 to vector<1x256xf32>
    %914 = arith.minimumf %913, %912 : vector<1x256xf32>
    %cst_120 = arith.constant 0.000000e+00 : f32
    %cst_121 = arith.constant 1.500000e+01 : f32
    %915 = vector.broadcast %cst_120 : f32 to vector<1x256xf32>
    %916 = arith.maximumf %915, %888 : vector<1x256xf32>
    %917 = vector.broadcast %cst_121 : f32 to vector<1x256xf32>
    %918 = arith.minimumf %917, %916 : vector<1x256xf32>
    %cst_122 = arith.constant 0.000000e+00 : f32
    %cst_123 = arith.constant 1.500000e+01 : f32
    %919 = vector.broadcast %cst_122 : f32 to vector<1x256xf32>
    %920 = arith.maximumf %919, %892 : vector<1x256xf32>
    %921 = vector.broadcast %cst_123 : f32 to vector<1x256xf32>
    %922 = arith.minimumf %921, %920 : vector<1x256xf32>
    %cst_124 = arith.constant 1.000000e+00 : f32
    %923 = vector.broadcast %cst_124 : f32 to vector<1x256xf32>
    %924 = arith.addf %923, %898 : vector<1x256xf32>
    %925 = arith.subf %924, %918 : vector<1x256xf32>
    %cst_125 = arith.constant 1.000000e+00 : f32
    %926 = vector.broadcast %cst_125 : f32 to vector<1x256xf32>
    %927 = arith.subf %926, %904 : vector<1x256xf32>
    %928 = arith.addf %927, %918 : vector<1x256xf32>
    %cst_126 = arith.constant 1.000000e+00 : f32
    %929 = vector.broadcast %cst_126 : f32 to vector<1x256xf32>
    %930 = arith.addf %929, %908 : vector<1x256xf32>
    %931 = arith.subf %930, %922 : vector<1x256xf32>
    %cst_127 = arith.constant 1.000000e+00 : f32
    %932 = vector.broadcast %cst_127 : f32 to vector<1x256xf32>
    %933 = arith.subf %932, %914 : vector<1x256xf32>
    %934 = arith.addf %933, %922 : vector<1x256xf32>
    %935 = arith.fptosi %898 : vector<1x256xf32> to vector<1x256xi32>
    %936 = vector.broadcast %935 : vector<1x256xi32> to vector<16x256xi32>
    %937 = arith.cmpi eq, %12, %936 : vector<16x256xi32>
    %cst_128 = arith.constant 0.000000e+00 : f32
    %938 = vector.shape_cast %925 : vector<1x256xf32> to vector<1x256xf32>
    %939 = vector.broadcast %938 : vector<1x256xf32> to vector<16x256xf32>
    %940 = vector.broadcast %cst_128 : f32 to vector<16x256xf32>
    %941 = arith.select %937, %939, %940 : vector<16x256xi1>, vector<16x256xf32>
    %942 = arith.fptosi %904 : vector<1x256xf32> to vector<1x256xi32>
    %943 = vector.broadcast %942 : vector<1x256xi32> to vector<16x256xi32>
    %944 = arith.cmpi eq, %12, %943 : vector<16x256xi32>
    %cst_129 = arith.constant 0.000000e+00 : f32
    %945 = vector.shape_cast %928 : vector<1x256xf32> to vector<1x256xf32>
    %946 = vector.broadcast %945 : vector<1x256xf32> to vector<16x256xf32>
    %947 = vector.broadcast %cst_129 : f32 to vector<16x256xf32>
    %948 = arith.select %944, %946, %947 : vector<16x256xi1>, vector<16x256xf32>
    %949 = arith.addf %941, %948 : vector<16x256xf32>
    %950 = arith.fptosi %908 : vector<1x256xf32> to vector<1x256xi32>
    %951 = vector.broadcast %950 : vector<1x256xi32> to vector<16x256xi32>
    %952 = arith.cmpi eq, %13, %951 : vector<16x256xi32>
    %cst_130 = arith.constant 0.000000e+00 : f32
    %953 = vector.shape_cast %931 : vector<1x256xf32> to vector<1x256xf32>
    %954 = vector.broadcast %953 : vector<1x256xf32> to vector<16x256xf32>
    %955 = vector.broadcast %cst_130 : f32 to vector<16x256xf32>
    %956 = arith.select %952, %954, %955 : vector<16x256xi1>, vector<16x256xf32>
    %957 = arith.fptosi %914 : vector<1x256xf32> to vector<1x256xi32>
    %958 = vector.broadcast %957 : vector<1x256xi32> to vector<16x256xi32>
    %959 = arith.cmpi eq, %13, %958 : vector<16x256xi32>
    %cst_131 = arith.constant 0.000000e+00 : f32
    %960 = vector.shape_cast %934 : vector<1x256xf32> to vector<1x256xf32>
    %961 = vector.broadcast %960 : vector<1x256xf32> to vector<16x256xf32>
    %962 = vector.broadcast %cst_131 : f32 to vector<16x256xf32>
    %963 = arith.select %959, %961, %962 : vector<16x256xi1>, vector<16x256xf32>
    %964 = arith.addf %956, %963 : vector<16x256xf32>
    %cst_132 = arith.constant 0.000000e+00 : f32
    %965 = vector.broadcast %cst_132 : f32 to vector<16x256xf32>
    %966 = vector.extract_strided_slice %9 {offsets = [0, 0], sizes = [16, 1], strides = [1, 1]} : vector<16x16xf32> to vector<16x1xf32>
    %967 = vector.extract_strided_slice %949 {offsets = [0, 0], sizes = [1, 256], strides = [1, 1]} : vector<16x256xf32> to vector<1x256xf32>
    %968 = vector.broadcast %966 : vector<16x1xf32> to vector<16x256xf32>
    %969 = vector.broadcast %967 : vector<1x256xf32> to vector<16x256xf32>
    %970 = arith.mulf %968, %969 : vector<16x256xf32>
    %971 = arith.addf %965, %970 : vector<16x256xf32>
    %972 = vector.extract_strided_slice %9 {offsets = [0, 1], sizes = [16, 1], strides = [1, 1]} : vector<16x16xf32> to vector<16x1xf32>
    %973 = vector.extract_strided_slice %949 {offsets = [1, 0], sizes = [1, 256], strides = [1, 1]} : vector<16x256xf32> to vector<1x256xf32>
    %974 = vector.broadcast %972 : vector<16x1xf32> to vector<16x256xf32>
    %975 = vector.broadcast %973 : vector<1x256xf32> to vector<16x256xf32>
    %976 = arith.mulf %974, %975 : vector<16x256xf32>
    %977 = arith.addf %971, %976 : vector<16x256xf32>
    %978 = vector.extract_strided_slice %9 {offsets = [0, 2], sizes = [16, 1], strides = [1, 1]} : vector<16x16xf32> to vector<16x1xf32>
    %979 = vector.extract_strided_slice %949 {offsets = [2, 0], sizes = [1, 256], strides = [1, 1]} : vector<16x256xf32> to vector<1x256xf32>
    %980 = vector.broadcast %978 : vector<16x1xf32> to vector<16x256xf32>
    %981 = vector.broadcast %979 : vector<1x256xf32> to vector<16x256xf32>
    %982 = arith.mulf %980, %981 : vector<16x256xf32>
    %983 = arith.addf %977, %982 : vector<16x256xf32>
    %984 = vector.extract_strided_slice %9 {offsets = [0, 3], sizes = [16, 1], strides = [1, 1]} : vector<16x16xf32> to vector<16x1xf32>
    %985 = vector.extract_strided_slice %949 {offsets = [3, 0], sizes = [1, 256], strides = [1, 1]} : vector<16x256xf32> to vector<1x256xf32>
    %986 = vector.broadcast %984 : vector<16x1xf32> to vector<16x256xf32>
    %987 = vector.broadcast %985 : vector<1x256xf32> to vector<16x256xf32>
    %988 = arith.mulf %986, %987 : vector<16x256xf32>
    %989 = arith.addf %983, %988 : vector<16x256xf32>
    %990 = vector.extract_strided_slice %9 {offsets = [0, 4], sizes = [16, 1], strides = [1, 1]} : vector<16x16xf32> to vector<16x1xf32>
    %991 = vector.extract_strided_slice %949 {offsets = [4, 0], sizes = [1, 256], strides = [1, 1]} : vector<16x256xf32> to vector<1x256xf32>
    %992 = vector.broadcast %990 : vector<16x1xf32> to vector<16x256xf32>
    %993 = vector.broadcast %991 : vector<1x256xf32> to vector<16x256xf32>
    %994 = arith.mulf %992, %993 : vector<16x256xf32>
    %995 = arith.addf %989, %994 : vector<16x256xf32>
    %996 = vector.extract_strided_slice %9 {offsets = [0, 5], sizes = [16, 1], strides = [1, 1]} : vector<16x16xf32> to vector<16x1xf32>
    %997 = vector.extract_strided_slice %949 {offsets = [5, 0], sizes = [1, 256], strides = [1, 1]} : vector<16x256xf32> to vector<1x256xf32>
    %998 = vector.broadcast %996 : vector<16x1xf32> to vector<16x256xf32>
    %999 = vector.broadcast %997 : vector<1x256xf32> to vector<16x256xf32>
    %1000 = arith.mulf %998, %999 : vector<16x256xf32>
    %1001 = arith.addf %995, %1000 : vector<16x256xf32>
    %1002 = vector.extract_strided_slice %9 {offsets = [0, 6], sizes = [16, 1], strides = [1, 1]} : vector<16x16xf32> to vector<16x1xf32>
    %1003 = vector.extract_strided_slice %949 {offsets = [6, 0], sizes = [1, 256], strides = [1, 1]} : vector<16x256xf32> to vector<1x256xf32>
    %1004 = vector.broadcast %1002 : vector<16x1xf32> to vector<16x256xf32>
    %1005 = vector.broadcast %1003 : vector<1x256xf32> to vector<16x256xf32>
    %1006 = arith.mulf %1004, %1005 : vector<16x256xf32>
    %1007 = arith.addf %1001, %1006 : vector<16x256xf32>
    %1008 = vector.extract_strided_slice %9 {offsets = [0, 7], sizes = [16, 1], strides = [1, 1]} : vector<16x16xf32> to vector<16x1xf32>
    %1009 = vector.extract_strided_slice %949 {offsets = [7, 0], sizes = [1, 256], strides = [1, 1]} : vector<16x256xf32> to vector<1x256xf32>
    %1010 = vector.broadcast %1008 : vector<16x1xf32> to vector<16x256xf32>
    %1011 = vector.broadcast %1009 : vector<1x256xf32> to vector<16x256xf32>
    %1012 = arith.mulf %1010, %1011 : vector<16x256xf32>
    %1013 = arith.addf %1007, %1012 : vector<16x256xf32>
    %1014 = vector.extract_strided_slice %9 {offsets = [0, 8], sizes = [16, 1], strides = [1, 1]} : vector<16x16xf32> to vector<16x1xf32>
    %1015 = vector.extract_strided_slice %949 {offsets = [8, 0], sizes = [1, 256], strides = [1, 1]} : vector<16x256xf32> to vector<1x256xf32>
    %1016 = vector.broadcast %1014 : vector<16x1xf32> to vector<16x256xf32>
    %1017 = vector.broadcast %1015 : vector<1x256xf32> to vector<16x256xf32>
    %1018 = arith.mulf %1016, %1017 : vector<16x256xf32>
    %1019 = arith.addf %1013, %1018 : vector<16x256xf32>
    %1020 = vector.extract_strided_slice %9 {offsets = [0, 9], sizes = [16, 1], strides = [1, 1]} : vector<16x16xf32> to vector<16x1xf32>
    %1021 = vector.extract_strided_slice %949 {offsets = [9, 0], sizes = [1, 256], strides = [1, 1]} : vector<16x256xf32> to vector<1x256xf32>
    %1022 = vector.broadcast %1020 : vector<16x1xf32> to vector<16x256xf32>
    %1023 = vector.broadcast %1021 : vector<1x256xf32> to vector<16x256xf32>
    %1024 = arith.mulf %1022, %1023 : vector<16x256xf32>
    %1025 = arith.addf %1019, %1024 : vector<16x256xf32>
    %1026 = vector.extract_strided_slice %9 {offsets = [0, 10], sizes = [16, 1], strides = [1, 1]} : vector<16x16xf32> to vector<16x1xf32>
    %1027 = vector.extract_strided_slice %949 {offsets = [10, 0], sizes = [1, 256], strides = [1, 1]} : vector<16x256xf32> to vector<1x256xf32>
    %1028 = vector.broadcast %1026 : vector<16x1xf32> to vector<16x256xf32>
    %1029 = vector.broadcast %1027 : vector<1x256xf32> to vector<16x256xf32>
    %1030 = arith.mulf %1028, %1029 : vector<16x256xf32>
    %1031 = arith.addf %1025, %1030 : vector<16x256xf32>
    %1032 = vector.extract_strided_slice %9 {offsets = [0, 11], sizes = [16, 1], strides = [1, 1]} : vector<16x16xf32> to vector<16x1xf32>
    %1033 = vector.extract_strided_slice %949 {offsets = [11, 0], sizes = [1, 256], strides = [1, 1]} : vector<16x256xf32> to vector<1x256xf32>
    %1034 = vector.broadcast %1032 : vector<16x1xf32> to vector<16x256xf32>
    %1035 = vector.broadcast %1033 : vector<1x256xf32> to vector<16x256xf32>
    %1036 = arith.mulf %1034, %1035 : vector<16x256xf32>
    %1037 = arith.addf %1031, %1036 : vector<16x256xf32>
    %1038 = vector.extract_strided_slice %9 {offsets = [0, 12], sizes = [16, 1], strides = [1, 1]} : vector<16x16xf32> to vector<16x1xf32>
    %1039 = vector.extract_strided_slice %949 {offsets = [12, 0], sizes = [1, 256], strides = [1, 1]} : vector<16x256xf32> to vector<1x256xf32>
    %1040 = vector.broadcast %1038 : vector<16x1xf32> to vector<16x256xf32>
    %1041 = vector.broadcast %1039 : vector<1x256xf32> to vector<16x256xf32>
    %1042 = arith.mulf %1040, %1041 : vector<16x256xf32>
    %1043 = arith.addf %1037, %1042 : vector<16x256xf32>
    %1044 = vector.extract_strided_slice %9 {offsets = [0, 13], sizes = [16, 1], strides = [1, 1]} : vector<16x16xf32> to vector<16x1xf32>
    %1045 = vector.extract_strided_slice %949 {offsets = [13, 0], sizes = [1, 256], strides = [1, 1]} : vector<16x256xf32> to vector<1x256xf32>
    %1046 = vector.broadcast %1044 : vector<16x1xf32> to vector<16x256xf32>
    %1047 = vector.broadcast %1045 : vector<1x256xf32> to vector<16x256xf32>
    %1048 = arith.mulf %1046, %1047 : vector<16x256xf32>
    %1049 = arith.addf %1043, %1048 : vector<16x256xf32>
    %1050 = vector.extract_strided_slice %9 {offsets = [0, 14], sizes = [16, 1], strides = [1, 1]} : vector<16x16xf32> to vector<16x1xf32>
    %1051 = vector.extract_strided_slice %949 {offsets = [14, 0], sizes = [1, 256], strides = [1, 1]} : vector<16x256xf32> to vector<1x256xf32>
    %1052 = vector.broadcast %1050 : vector<16x1xf32> to vector<16x256xf32>
    %1053 = vector.broadcast %1051 : vector<1x256xf32> to vector<16x256xf32>
    %1054 = arith.mulf %1052, %1053 : vector<16x256xf32>
    %1055 = arith.addf %1049, %1054 : vector<16x256xf32>
    %1056 = vector.extract_strided_slice %9 {offsets = [0, 15], sizes = [16, 1], strides = [1, 1]} : vector<16x16xf32> to vector<16x1xf32>
    %1057 = vector.extract_strided_slice %949 {offsets = [15, 0], sizes = [1, 256], strides = [1, 1]} : vector<16x256xf32> to vector<1x256xf32>
    %1058 = vector.broadcast %1056 : vector<16x1xf32> to vector<16x256xf32>
    %1059 = vector.broadcast %1057 : vector<1x256xf32> to vector<16x256xf32>
    %1060 = arith.mulf %1058, %1059 : vector<16x256xf32>
    %1061 = arith.addf %1055, %1060 : vector<16x256xf32>
    %1062 = arith.mulf %964, %1061 : vector<16x256xf32>
    %cst_133 = arith.constant dense<0.000000e+00> : vector<256xf32>
    %1063 = vector.multi_reduction <add>, %1062, %cst_133 [0] : vector<16x256xf32> to vector<256xf32>
    %1064 = vector.shape_cast %1063 : vector<256xf32> to vector<1x256xf32>
    %c0_134 = arith.constant 0 : index
    %c3 = arith.constant 3 : index
    %1065 = vector.load %arg6[%c0_134, %c3] : memref<4x10xf32, #tpu.memory_space<vmem>>, vector<4x1xf32>
    %1066 = vector.broadcast %1065 : vector<4x1xf32> to vector<4x256xf32>
    %1067 = vector.broadcast %1064 : vector<1x256xf32> to vector<4x256xf32>
    %1068 = arith.mulf %1066, %1067 : vector<4x256xf32>
    %1069 = arith.addf %884, %1068 : vector<4x256xf32>
    %cst_135 = arith.constant 0.000000e+00 : f32
    %1070 = vector.broadcast %cst_135 : f32 to vector<16x256xf32>
    %1071 = vector.extract_strided_slice %11 {offsets = [0, 0], sizes = [16, 1], strides = [1, 1]} : vector<16x16xf32> to vector<16x1xf32>
    %1072 = vector.extract_strided_slice %949 {offsets = [0, 0], sizes = [1, 256], strides = [1, 1]} : vector<16x256xf32> to vector<1x256xf32>
    %1073 = vector.broadcast %1071 : vector<16x1xf32> to vector<16x256xf32>
    %1074 = vector.broadcast %1072 : vector<1x256xf32> to vector<16x256xf32>
    %1075 = arith.mulf %1073, %1074 : vector<16x256xf32>
    %1076 = arith.addf %1070, %1075 : vector<16x256xf32>
    %1077 = vector.extract_strided_slice %11 {offsets = [0, 1], sizes = [16, 1], strides = [1, 1]} : vector<16x16xf32> to vector<16x1xf32>
    %1078 = vector.extract_strided_slice %949 {offsets = [1, 0], sizes = [1, 256], strides = [1, 1]} : vector<16x256xf32> to vector<1x256xf32>
    %1079 = vector.broadcast %1077 : vector<16x1xf32> to vector<16x256xf32>
    %1080 = vector.broadcast %1078 : vector<1x256xf32> to vector<16x256xf32>
    %1081 = arith.mulf %1079, %1080 : vector<16x256xf32>
    %1082 = arith.addf %1076, %1081 : vector<16x256xf32>
    %1083 = vector.extract_strided_slice %11 {offsets = [0, 2], sizes = [16, 1], strides = [1, 1]} : vector<16x16xf32> to vector<16x1xf32>
    %1084 = vector.extract_strided_slice %949 {offsets = [2, 0], sizes = [1, 256], strides = [1, 1]} : vector<16x256xf32> to vector<1x256xf32>
    %1085 = vector.broadcast %1083 : vector<16x1xf32> to vector<16x256xf32>
    %1086 = vector.broadcast %1084 : vector<1x256xf32> to vector<16x256xf32>
    %1087 = arith.mulf %1085, %1086 : vector<16x256xf32>
    %1088 = arith.addf %1082, %1087 : vector<16x256xf32>
    %1089 = vector.extract_strided_slice %11 {offsets = [0, 3], sizes = [16, 1], strides = [1, 1]} : vector<16x16xf32> to vector<16x1xf32>
    %1090 = vector.extract_strided_slice %949 {offsets = [3, 0], sizes = [1, 256], strides = [1, 1]} : vector<16x256xf32> to vector<1x256xf32>
    %1091 = vector.broadcast %1089 : vector<16x1xf32> to vector<16x256xf32>
    %1092 = vector.broadcast %1090 : vector<1x256xf32> to vector<16x256xf32>
    %1093 = arith.mulf %1091, %1092 : vector<16x256xf32>
    %1094 = arith.addf %1088, %1093 : vector<16x256xf32>
    %1095 = vector.extract_strided_slice %11 {offsets = [0, 4], sizes = [16, 1], strides = [1, 1]} : vector<16x16xf32> to vector<16x1xf32>
    %1096 = vector.extract_strided_slice %949 {offsets = [4, 0], sizes = [1, 256], strides = [1, 1]} : vector<16x256xf32> to vector<1x256xf32>
    %1097 = vector.broadcast %1095 : vector<16x1xf32> to vector<16x256xf32>
    %1098 = vector.broadcast %1096 : vector<1x256xf32> to vector<16x256xf32>
    %1099 = arith.mulf %1097, %1098 : vector<16x256xf32>
    %1100 = arith.addf %1094, %1099 : vector<16x256xf32>
    %1101 = vector.extract_strided_slice %11 {offsets = [0, 5], sizes = [16, 1], strides = [1, 1]} : vector<16x16xf32> to vector<16x1xf32>
    %1102 = vector.extract_strided_slice %949 {offsets = [5, 0], sizes = [1, 256], strides = [1, 1]} : vector<16x256xf32> to vector<1x256xf32>
    %1103 = vector.broadcast %1101 : vector<16x1xf32> to vector<16x256xf32>
    %1104 = vector.broadcast %1102 : vector<1x256xf32> to vector<16x256xf32>
    %1105 = arith.mulf %1103, %1104 : vector<16x256xf32>
    %1106 = arith.addf %1100, %1105 : vector<16x256xf32>
    %1107 = vector.extract_strided_slice %11 {offsets = [0, 6], sizes = [16, 1], strides = [1, 1]} : vector<16x16xf32> to vector<16x1xf32>
    %1108 = vector.extract_strided_slice %949 {offsets = [6, 0], sizes = [1, 256], strides = [1, 1]} : vector<16x256xf32> to vector<1x256xf32>
    %1109 = vector.broadcast %1107 : vector<16x1xf32> to vector<16x256xf32>
    %1110 = vector.broadcast %1108 : vector<1x256xf32> to vector<16x256xf32>
    %1111 = arith.mulf %1109, %1110 : vector<16x256xf32>
    %1112 = arith.addf %1106, %1111 : vector<16x256xf32>
    %1113 = vector.extract_strided_slice %11 {offsets = [0, 7], sizes = [16, 1], strides = [1, 1]} : vector<16x16xf32> to vector<16x1xf32>
    %1114 = vector.extract_strided_slice %949 {offsets = [7, 0], sizes = [1, 256], strides = [1, 1]} : vector<16x256xf32> to vector<1x256xf32>
    %1115 = vector.broadcast %1113 : vector<16x1xf32> to vector<16x256xf32>
    %1116 = vector.broadcast %1114 : vector<1x256xf32> to vector<16x256xf32>
    %1117 = arith.mulf %1115, %1116 : vector<16x256xf32>
    %1118 = arith.addf %1112, %1117 : vector<16x256xf32>
    %1119 = vector.extract_strided_slice %11 {offsets = [0, 8], sizes = [16, 1], strides = [1, 1]} : vector<16x16xf32> to vector<16x1xf32>
    %1120 = vector.extract_strided_slice %949 {offsets = [8, 0], sizes = [1, 256], strides = [1, 1]} : vector<16x256xf32> to vector<1x256xf32>
    %1121 = vector.broadcast %1119 : vector<16x1xf32> to vector<16x256xf32>
    %1122 = vector.broadcast %1120 : vector<1x256xf32> to vector<16x256xf32>
    %1123 = arith.mulf %1121, %1122 : vector<16x256xf32>
    %1124 = arith.addf %1118, %1123 : vector<16x256xf32>
    %1125 = vector.extract_strided_slice %11 {offsets = [0, 9], sizes = [16, 1], strides = [1, 1]} : vector<16x16xf32> to vector<16x1xf32>
    %1126 = vector.extract_strided_slice %949 {offsets = [9, 0], sizes = [1, 256], strides = [1, 1]} : vector<16x256xf32> to vector<1x256xf32>
    %1127 = vector.broadcast %1125 : vector<16x1xf32> to vector<16x256xf32>
    %1128 = vector.broadcast %1126 : vector<1x256xf32> to vector<16x256xf32>
    %1129 = arith.mulf %1127, %1128 : vector<16x256xf32>
    %1130 = arith.addf %1124, %1129 : vector<16x256xf32>
    %1131 = vector.extract_strided_slice %11 {offsets = [0, 10], sizes = [16, 1], strides = [1, 1]} : vector<16x16xf32> to vector<16x1xf32>
    %1132 = vector.extract_strided_slice %949 {offsets = [10, 0], sizes = [1, 256], strides = [1, 1]} : vector<16x256xf32> to vector<1x256xf32>
    %1133 = vector.broadcast %1131 : vector<16x1xf32> to vector<16x256xf32>
    %1134 = vector.broadcast %1132 : vector<1x256xf32> to vector<16x256xf32>
    %1135 = arith.mulf %1133, %1134 : vector<16x256xf32>
    %1136 = arith.addf %1130, %1135 : vector<16x256xf32>
    %1137 = vector.extract_strided_slice %11 {offsets = [0, 11], sizes = [16, 1], strides = [1, 1]} : vector<16x16xf32> to vector<16x1xf32>
    %1138 = vector.extract_strided_slice %949 {offsets = [11, 0], sizes = [1, 256], strides = [1, 1]} : vector<16x256xf32> to vector<1x256xf32>
    %1139 = vector.broadcast %1137 : vector<16x1xf32> to vector<16x256xf32>
    %1140 = vector.broadcast %1138 : vector<1x256xf32> to vector<16x256xf32>
    %1141 = arith.mulf %1139, %1140 : vector<16x256xf32>
    %1142 = arith.addf %1136, %1141 : vector<16x256xf32>
    %1143 = vector.extract_strided_slice %11 {offsets = [0, 12], sizes = [16, 1], strides = [1, 1]} : vector<16x16xf32> to vector<16x1xf32>
    %1144 = vector.extract_strided_slice %949 {offsets = [12, 0], sizes = [1, 256], strides = [1, 1]} : vector<16x256xf32> to vector<1x256xf32>
    %1145 = vector.broadcast %1143 : vector<16x1xf32> to vector<16x256xf32>
    %1146 = vector.broadcast %1144 : vector<1x256xf32> to vector<16x256xf32>
    %1147 = arith.mulf %1145, %1146 : vector<16x256xf32>
    %1148 = arith.addf %1142, %1147 : vector<16x256xf32>
    %1149 = vector.extract_strided_slice %11 {offsets = [0, 13], sizes = [16, 1], strides = [1, 1]} : vector<16x16xf32> to vector<16x1xf32>
    %1150 = vector.extract_strided_slice %949 {offsets = [13, 0], sizes = [1, 256], strides = [1, 1]} : vector<16x256xf32> to vector<1x256xf32>
    %1151 = vector.broadcast %1149 : vector<16x1xf32> to vector<16x256xf32>
    %1152 = vector.broadcast %1150 : vector<1x256xf32> to vector<16x256xf32>
    %1153 = arith.mulf %1151, %1152 : vector<16x256xf32>
    %1154 = arith.addf %1148, %1153 : vector<16x256xf32>
    %1155 = vector.extract_strided_slice %11 {offsets = [0, 14], sizes = [16, 1], strides = [1, 1]} : vector<16x16xf32> to vector<16x1xf32>
    %1156 = vector.extract_strided_slice %949 {offsets = [14, 0], sizes = [1, 256], strides = [1, 1]} : vector<16x256xf32> to vector<1x256xf32>
    %1157 = vector.broadcast %1155 : vector<16x1xf32> to vector<16x256xf32>
    %1158 = vector.broadcast %1156 : vector<1x256xf32> to vector<16x256xf32>
    %1159 = arith.mulf %1157, %1158 : vector<16x256xf32>
    %1160 = arith.addf %1154, %1159 : vector<16x256xf32>
    %1161 = vector.extract_strided_slice %11 {offsets = [0, 15], sizes = [16, 1], strides = [1, 1]} : vector<16x16xf32> to vector<16x1xf32>
    %1162 = vector.extract_strided_slice %949 {offsets = [15, 0], sizes = [1, 256], strides = [1, 1]} : vector<16x256xf32> to vector<1x256xf32>
    %1163 = vector.broadcast %1161 : vector<16x1xf32> to vector<16x256xf32>
    %1164 = vector.broadcast %1162 : vector<1x256xf32> to vector<16x256xf32>
    %1165 = arith.mulf %1163, %1164 : vector<16x256xf32>
    %1166 = arith.addf %1160, %1165 : vector<16x256xf32>
    %1167 = arith.mulf %964, %1166 : vector<16x256xf32>
    %cst_136 = arith.constant dense<0.000000e+00> : vector<256xf32>
    %1168 = vector.multi_reduction <add>, %1167, %cst_136 [0] : vector<16x256xf32> to vector<256xf32>
    %1169 = vector.shape_cast %1168 : vector<256xf32> to vector<1x256xf32>
    %c0_137 = arith.constant 0 : index
    %c8 = arith.constant 8 : index
    %1170 = vector.load %arg6[%c0_137, %c8] : memref<4x10xf32, #tpu.memory_space<vmem>>, vector<4x1xf32>
    %1171 = vector.broadcast %1170 : vector<4x1xf32> to vector<4x256xf32>
    %1172 = vector.broadcast %1169 : vector<1x256xf32> to vector<4x256xf32>
    %1173 = arith.mulf %1171, %1172 : vector<4x256xf32>
    %1174 = arith.addf %1069, %1173 : vector<4x256xf32>
    %cst_138 = arith.constant 2.000000e+00 : f32
    %1175 = vector.broadcast %cst_138 : f32 to vector<1x256xf32>
    %1176 = arith.addf %1, %1175 : vector<1x256xf32>
    %1177 = vector.extract_strided_slice %5 {offsets = [4, 0], sizes = [1, 256], strides = [1, 1]} : vector<10x256xf32> to vector<1x256xf32>
    %1178 = arith.addf %1176, %1177 : vector<1x256xf32>
    %cst_139 = arith.constant 0.000000e+00 : f32
    %1179 = vector.broadcast %cst_139 : f32 to vector<1x256xf32>
    %1180 = arith.addf %3, %1179 : vector<1x256xf32>
    %1181 = vector.extract_strided_slice %5 {offsets = [9, 0], sizes = [1, 256], strides = [1, 1]} : vector<10x256xf32> to vector<1x256xf32>
    %1182 = arith.addf %1180, %1181 : vector<1x256xf32>
    %1183 = math.floor %1178 : vector<1x256xf32>
    %1184 = math.floor %1182 : vector<1x256xf32>
    %cst_140 = arith.constant 0.000000e+00 : f32
    %cst_141 = arith.constant 1.500000e+01 : f32
    %1185 = vector.broadcast %cst_140 : f32 to vector<1x256xf32>
    %1186 = arith.maximumf %1185, %1183 : vector<1x256xf32>
    %1187 = vector.broadcast %cst_141 : f32 to vector<1x256xf32>
    %1188 = arith.minimumf %1187, %1186 : vector<1x256xf32>
    %cst_142 = arith.constant 1.000000e+00 : f32
    %1189 = vector.broadcast %cst_142 : f32 to vector<1x256xf32>
    %1190 = arith.addf %1183, %1189 : vector<1x256xf32>
    %cst_143 = arith.constant 0.000000e+00 : f32
    %cst_144 = arith.constant 1.500000e+01 : f32
    %1191 = vector.broadcast %cst_143 : f32 to vector<1x256xf32>
    %1192 = arith.maximumf %1191, %1190 : vector<1x256xf32>
    %1193 = vector.broadcast %cst_144 : f32 to vector<1x256xf32>
    %1194 = arith.minimumf %1193, %1192 : vector<1x256xf32>
    %cst_145 = arith.constant 0.000000e+00 : f32
    %cst_146 = arith.constant 1.500000e+01 : f32
    %1195 = vector.broadcast %cst_145 : f32 to vector<1x256xf32>
    %1196 = arith.maximumf %1195, %1184 : vector<1x256xf32>
    %1197 = vector.broadcast %cst_146 : f32 to vector<1x256xf32>
    %1198 = arith.minimumf %1197, %1196 : vector<1x256xf32>
    %cst_147 = arith.constant 1.000000e+00 : f32
    %1199 = vector.broadcast %cst_147 : f32 to vector<1x256xf32>
    %1200 = arith.addf %1184, %1199 : vector<1x256xf32>
    %cst_148 = arith.constant 0.000000e+00 : f32
    %cst_149 = arith.constant 1.500000e+01 : f32
    %1201 = vector.broadcast %cst_148 : f32 to vector<1x256xf32>
    %1202 = arith.maximumf %1201, %1200 : vector<1x256xf32>
    %1203 = vector.broadcast %cst_149 : f32 to vector<1x256xf32>
    %1204 = arith.minimumf %1203, %1202 : vector<1x256xf32>
    %cst_150 = arith.constant 0.000000e+00 : f32
    %cst_151 = arith.constant 1.500000e+01 : f32
    %1205 = vector.broadcast %cst_150 : f32 to vector<1x256xf32>
    %1206 = arith.maximumf %1205, %1178 : vector<1x256xf32>
    %1207 = vector.broadcast %cst_151 : f32 to vector<1x256xf32>
    %1208 = arith.minimumf %1207, %1206 : vector<1x256xf32>
    %cst_152 = arith.constant 0.000000e+00 : f32
    %cst_153 = arith.constant 1.500000e+01 : f32
    %1209 = vector.broadcast %cst_152 : f32 to vector<1x256xf32>
    %1210 = arith.maximumf %1209, %1182 : vector<1x256xf32>
    %1211 = vector.broadcast %cst_153 : f32 to vector<1x256xf32>
    %1212 = arith.minimumf %1211, %1210 : vector<1x256xf32>
    %cst_154 = arith.constant 1.000000e+00 : f32
    %1213 = vector.broadcast %cst_154 : f32 to vector<1x256xf32>
    %1214 = arith.addf %1213, %1188 : vector<1x256xf32>
    %1215 = arith.subf %1214, %1208 : vector<1x256xf32>
    %cst_155 = arith.constant 1.000000e+00 : f32
    %1216 = vector.broadcast %cst_155 : f32 to vector<1x256xf32>
    %1217 = arith.subf %1216, %1194 : vector<1x256xf32>
    %1218 = arith.addf %1217, %1208 : vector<1x256xf32>
    %cst_156 = arith.constant 1.000000e+00 : f32
    %1219 = vector.broadcast %cst_156 : f32 to vector<1x256xf32>
    %1220 = arith.addf %1219, %1198 : vector<1x256xf32>
    %1221 = arith.subf %1220, %1212 : vector<1x256xf32>
    %cst_157 = arith.constant 1.000000e+00 : f32
    %1222 = vector.broadcast %cst_157 : f32 to vector<1x256xf32>
    %1223 = arith.subf %1222, %1204 : vector<1x256xf32>
    %1224 = arith.addf %1223, %1212 : vector<1x256xf32>
    %1225 = arith.fptosi %1188 : vector<1x256xf32> to vector<1x256xi32>
    %1226 = vector.broadcast %1225 : vector<1x256xi32> to vector<16x256xi32>
    %1227 = arith.cmpi eq, %12, %1226 : vector<16x256xi32>
    %cst_158 = arith.constant 0.000000e+00 : f32
    %1228 = vector.shape_cast %1215 : vector<1x256xf32> to vector<1x256xf32>
    %1229 = vector.broadcast %1228 : vector<1x256xf32> to vector<16x256xf32>
    %1230 = vector.broadcast %cst_158 : f32 to vector<16x256xf32>
    %1231 = arith.select %1227, %1229, %1230 : vector<16x256xi1>, vector<16x256xf32>
    %1232 = arith.fptosi %1194 : vector<1x256xf32> to vector<1x256xi32>
    %1233 = vector.broadcast %1232 : vector<1x256xi32> to vector<16x256xi32>
    %1234 = arith.cmpi eq, %12, %1233 : vector<16x256xi32>
    %cst_159 = arith.constant 0.000000e+00 : f32
    %1235 = vector.shape_cast %1218 : vector<1x256xf32> to vector<1x256xf32>
    %1236 = vector.broadcast %1235 : vector<1x256xf32> to vector<16x256xf32>
    %1237 = vector.broadcast %cst_159 : f32 to vector<16x256xf32>
    %1238 = arith.select %1234, %1236, %1237 : vector<16x256xi1>, vector<16x256xf32>
    %1239 = arith.addf %1231, %1238 : vector<16x256xf32>
    %1240 = arith.fptosi %1198 : vector<1x256xf32> to vector<1x256xi32>
    %1241 = vector.broadcast %1240 : vector<1x256xi32> to vector<16x256xi32>
    %1242 = arith.cmpi eq, %13, %1241 : vector<16x256xi32>
    %cst_160 = arith.constant 0.000000e+00 : f32
    %1243 = vector.shape_cast %1221 : vector<1x256xf32> to vector<1x256xf32>
    %1244 = vector.broadcast %1243 : vector<1x256xf32> to vector<16x256xf32>
    %1245 = vector.broadcast %cst_160 : f32 to vector<16x256xf32>
    %1246 = arith.select %1242, %1244, %1245 : vector<16x256xi1>, vector<16x256xf32>
    %1247 = arith.fptosi %1204 : vector<1x256xf32> to vector<1x256xi32>
    %1248 = vector.broadcast %1247 : vector<1x256xi32> to vector<16x256xi32>
    %1249 = arith.cmpi eq, %13, %1248 : vector<16x256xi32>
    %cst_161 = arith.constant 0.000000e+00 : f32
    %1250 = vector.shape_cast %1224 : vector<1x256xf32> to vector<1x256xf32>
    %1251 = vector.broadcast %1250 : vector<1x256xf32> to vector<16x256xf32>
    %1252 = vector.broadcast %cst_161 : f32 to vector<16x256xf32>
    %1253 = arith.select %1249, %1251, %1252 : vector<16x256xi1>, vector<16x256xf32>
    %1254 = arith.addf %1246, %1253 : vector<16x256xf32>
    %cst_162 = arith.constant 0.000000e+00 : f32
    %1255 = vector.broadcast %cst_162 : f32 to vector<16x256xf32>
    %1256 = vector.extract_strided_slice %9 {offsets = [0, 0], sizes = [16, 1], strides = [1, 1]} : vector<16x16xf32> to vector<16x1xf32>
    %1257 = vector.extract_strided_slice %1239 {offsets = [0, 0], sizes = [1, 256], strides = [1, 1]} : vector<16x256xf32> to vector<1x256xf32>
    %1258 = vector.broadcast %1256 : vector<16x1xf32> to vector<16x256xf32>
    %1259 = vector.broadcast %1257 : vector<1x256xf32> to vector<16x256xf32>
    %1260 = arith.mulf %1258, %1259 : vector<16x256xf32>
    %1261 = arith.addf %1255, %1260 : vector<16x256xf32>
    %1262 = vector.extract_strided_slice %9 {offsets = [0, 1], sizes = [16, 1], strides = [1, 1]} : vector<16x16xf32> to vector<16x1xf32>
    %1263 = vector.extract_strided_slice %1239 {offsets = [1, 0], sizes = [1, 256], strides = [1, 1]} : vector<16x256xf32> to vector<1x256xf32>
    %1264 = vector.broadcast %1262 : vector<16x1xf32> to vector<16x256xf32>
    %1265 = vector.broadcast %1263 : vector<1x256xf32> to vector<16x256xf32>
    %1266 = arith.mulf %1264, %1265 : vector<16x256xf32>
    %1267 = arith.addf %1261, %1266 : vector<16x256xf32>
    %1268 = vector.extract_strided_slice %9 {offsets = [0, 2], sizes = [16, 1], strides = [1, 1]} : vector<16x16xf32> to vector<16x1xf32>
    %1269 = vector.extract_strided_slice %1239 {offsets = [2, 0], sizes = [1, 256], strides = [1, 1]} : vector<16x256xf32> to vector<1x256xf32>
    %1270 = vector.broadcast %1268 : vector<16x1xf32> to vector<16x256xf32>
    %1271 = vector.broadcast %1269 : vector<1x256xf32> to vector<16x256xf32>
    %1272 = arith.mulf %1270, %1271 : vector<16x256xf32>
    %1273 = arith.addf %1267, %1272 : vector<16x256xf32>
    %1274 = vector.extract_strided_slice %9 {offsets = [0, 3], sizes = [16, 1], strides = [1, 1]} : vector<16x16xf32> to vector<16x1xf32>
    %1275 = vector.extract_strided_slice %1239 {offsets = [3, 0], sizes = [1, 256], strides = [1, 1]} : vector<16x256xf32> to vector<1x256xf32>
    %1276 = vector.broadcast %1274 : vector<16x1xf32> to vector<16x256xf32>
    %1277 = vector.broadcast %1275 : vector<1x256xf32> to vector<16x256xf32>
    %1278 = arith.mulf %1276, %1277 : vector<16x256xf32>
    %1279 = arith.addf %1273, %1278 : vector<16x256xf32>
    %1280 = vector.extract_strided_slice %9 {offsets = [0, 4], sizes = [16, 1], strides = [1, 1]} : vector<16x16xf32> to vector<16x1xf32>
    %1281 = vector.extract_strided_slice %1239 {offsets = [4, 0], sizes = [1, 256], strides = [1, 1]} : vector<16x256xf32> to vector<1x256xf32>
    %1282 = vector.broadcast %1280 : vector<16x1xf32> to vector<16x256xf32>
    %1283 = vector.broadcast %1281 : vector<1x256xf32> to vector<16x256xf32>
    %1284 = arith.mulf %1282, %1283 : vector<16x256xf32>
    %1285 = arith.addf %1279, %1284 : vector<16x256xf32>
    %1286 = vector.extract_strided_slice %9 {offsets = [0, 5], sizes = [16, 1], strides = [1, 1]} : vector<16x16xf32> to vector<16x1xf32>
    %1287 = vector.extract_strided_slice %1239 {offsets = [5, 0], sizes = [1, 256], strides = [1, 1]} : vector<16x256xf32> to vector<1x256xf32>
    %1288 = vector.broadcast %1286 : vector<16x1xf32> to vector<16x256xf32>
    %1289 = vector.broadcast %1287 : vector<1x256xf32> to vector<16x256xf32>
    %1290 = arith.mulf %1288, %1289 : vector<16x256xf32>
    %1291 = arith.addf %1285, %1290 : vector<16x256xf32>
    %1292 = vector.extract_strided_slice %9 {offsets = [0, 6], sizes = [16, 1], strides = [1, 1]} : vector<16x16xf32> to vector<16x1xf32>
    %1293 = vector.extract_strided_slice %1239 {offsets = [6, 0], sizes = [1, 256], strides = [1, 1]} : vector<16x256xf32> to vector<1x256xf32>
    %1294 = vector.broadcast %1292 : vector<16x1xf32> to vector<16x256xf32>
    %1295 = vector.broadcast %1293 : vector<1x256xf32> to vector<16x256xf32>
    %1296 = arith.mulf %1294, %1295 : vector<16x256xf32>
    %1297 = arith.addf %1291, %1296 : vector<16x256xf32>
    %1298 = vector.extract_strided_slice %9 {offsets = [0, 7], sizes = [16, 1], strides = [1, 1]} : vector<16x16xf32> to vector<16x1xf32>
    %1299 = vector.extract_strided_slice %1239 {offsets = [7, 0], sizes = [1, 256], strides = [1, 1]} : vector<16x256xf32> to vector<1x256xf32>
    %1300 = vector.broadcast %1298 : vector<16x1xf32> to vector<16x256xf32>
    %1301 = vector.broadcast %1299 : vector<1x256xf32> to vector<16x256xf32>
    %1302 = arith.mulf %1300, %1301 : vector<16x256xf32>
    %1303 = arith.addf %1297, %1302 : vector<16x256xf32>
    %1304 = vector.extract_strided_slice %9 {offsets = [0, 8], sizes = [16, 1], strides = [1, 1]} : vector<16x16xf32> to vector<16x1xf32>
    %1305 = vector.extract_strided_slice %1239 {offsets = [8, 0], sizes = [1, 256], strides = [1, 1]} : vector<16x256xf32> to vector<1x256xf32>
    %1306 = vector.broadcast %1304 : vector<16x1xf32> to vector<16x256xf32>
    %1307 = vector.broadcast %1305 : vector<1x256xf32> to vector<16x256xf32>
    %1308 = arith.mulf %1306, %1307 : vector<16x256xf32>
    %1309 = arith.addf %1303, %1308 : vector<16x256xf32>
    %1310 = vector.extract_strided_slice %9 {offsets = [0, 9], sizes = [16, 1], strides = [1, 1]} : vector<16x16xf32> to vector<16x1xf32>
    %1311 = vector.extract_strided_slice %1239 {offsets = [9, 0], sizes = [1, 256], strides = [1, 1]} : vector<16x256xf32> to vector<1x256xf32>
    %1312 = vector.broadcast %1310 : vector<16x1xf32> to vector<16x256xf32>
    %1313 = vector.broadcast %1311 : vector<1x256xf32> to vector<16x256xf32>
    %1314 = arith.mulf %1312, %1313 : vector<16x256xf32>
    %1315 = arith.addf %1309, %1314 : vector<16x256xf32>
    %1316 = vector.extract_strided_slice %9 {offsets = [0, 10], sizes = [16, 1], strides = [1, 1]} : vector<16x16xf32> to vector<16x1xf32>
    %1317 = vector.extract_strided_slice %1239 {offsets = [10, 0], sizes = [1, 256], strides = [1, 1]} : vector<16x256xf32> to vector<1x256xf32>
    %1318 = vector.broadcast %1316 : vector<16x1xf32> to vector<16x256xf32>
    %1319 = vector.broadcast %1317 : vector<1x256xf32> to vector<16x256xf32>
    %1320 = arith.mulf %1318, %1319 : vector<16x256xf32>
    %1321 = arith.addf %1315, %1320 : vector<16x256xf32>
    %1322 = vector.extract_strided_slice %9 {offsets = [0, 11], sizes = [16, 1], strides = [1, 1]} : vector<16x16xf32> to vector<16x1xf32>
    %1323 = vector.extract_strided_slice %1239 {offsets = [11, 0], sizes = [1, 256], strides = [1, 1]} : vector<16x256xf32> to vector<1x256xf32>
    %1324 = vector.broadcast %1322 : vector<16x1xf32> to vector<16x256xf32>
    %1325 = vector.broadcast %1323 : vector<1x256xf32> to vector<16x256xf32>
    %1326 = arith.mulf %1324, %1325 : vector<16x256xf32>
    %1327 = arith.addf %1321, %1326 : vector<16x256xf32>
    %1328 = vector.extract_strided_slice %9 {offsets = [0, 12], sizes = [16, 1], strides = [1, 1]} : vector<16x16xf32> to vector<16x1xf32>
    %1329 = vector.extract_strided_slice %1239 {offsets = [12, 0], sizes = [1, 256], strides = [1, 1]} : vector<16x256xf32> to vector<1x256xf32>
    %1330 = vector.broadcast %1328 : vector<16x1xf32> to vector<16x256xf32>
    %1331 = vector.broadcast %1329 : vector<1x256xf32> to vector<16x256xf32>
    %1332 = arith.mulf %1330, %1331 : vector<16x256xf32>
    %1333 = arith.addf %1327, %1332 : vector<16x256xf32>
    %1334 = vector.extract_strided_slice %9 {offsets = [0, 13], sizes = [16, 1], strides = [1, 1]} : vector<16x16xf32> to vector<16x1xf32>
    %1335 = vector.extract_strided_slice %1239 {offsets = [13, 0], sizes = [1, 256], strides = [1, 1]} : vector<16x256xf32> to vector<1x256xf32>
    %1336 = vector.broadcast %1334 : vector<16x1xf32> to vector<16x256xf32>
    %1337 = vector.broadcast %1335 : vector<1x256xf32> to vector<16x256xf32>
    %1338 = arith.mulf %1336, %1337 : vector<16x256xf32>
    %1339 = arith.addf %1333, %1338 : vector<16x256xf32>
    %1340 = vector.extract_strided_slice %9 {offsets = [0, 14], sizes = [16, 1], strides = [1, 1]} : vector<16x16xf32> to vector<16x1xf32>
    %1341 = vector.extract_strided_slice %1239 {offsets = [14, 0], sizes = [1, 256], strides = [1, 1]} : vector<16x256xf32> to vector<1x256xf32>
    %1342 = vector.broadcast %1340 : vector<16x1xf32> to vector<16x256xf32>
    %1343 = vector.broadcast %1341 : vector<1x256xf32> to vector<16x256xf32>
    %1344 = arith.mulf %1342, %1343 : vector<16x256xf32>
    %1345 = arith.addf %1339, %1344 : vector<16x256xf32>
    %1346 = vector.extract_strided_slice %9 {offsets = [0, 15], sizes = [16, 1], strides = [1, 1]} : vector<16x16xf32> to vector<16x1xf32>
    %1347 = vector.extract_strided_slice %1239 {offsets = [15, 0], sizes = [1, 256], strides = [1, 1]} : vector<16x256xf32> to vector<1x256xf32>
    %1348 = vector.broadcast %1346 : vector<16x1xf32> to vector<16x256xf32>
    %1349 = vector.broadcast %1347 : vector<1x256xf32> to vector<16x256xf32>
    %1350 = arith.mulf %1348, %1349 : vector<16x256xf32>
    %1351 = arith.addf %1345, %1350 : vector<16x256xf32>
    %1352 = arith.mulf %1254, %1351 : vector<16x256xf32>
    %cst_163 = arith.constant dense<0.000000e+00> : vector<256xf32>
    %1353 = vector.multi_reduction <add>, %1352, %cst_163 [0] : vector<16x256xf32> to vector<256xf32>
    %1354 = vector.shape_cast %1353 : vector<256xf32> to vector<1x256xf32>
    %c0_164 = arith.constant 0 : index
    %c4 = arith.constant 4 : index
    %1355 = vector.load %arg6[%c0_164, %c4] : memref<4x10xf32, #tpu.memory_space<vmem>>, vector<4x1xf32>
    %1356 = vector.broadcast %1355 : vector<4x1xf32> to vector<4x256xf32>
    %1357 = vector.broadcast %1354 : vector<1x256xf32> to vector<4x256xf32>
    %1358 = arith.mulf %1356, %1357 : vector<4x256xf32>
    %1359 = arith.addf %1174, %1358 : vector<4x256xf32>
    %cst_165 = arith.constant 0.000000e+00 : f32
    %1360 = vector.broadcast %cst_165 : f32 to vector<16x256xf32>
    %1361 = vector.extract_strided_slice %11 {offsets = [0, 0], sizes = [16, 1], strides = [1, 1]} : vector<16x16xf32> to vector<16x1xf32>
    %1362 = vector.extract_strided_slice %1239 {offsets = [0, 0], sizes = [1, 256], strides = [1, 1]} : vector<16x256xf32> to vector<1x256xf32>
    %1363 = vector.broadcast %1361 : vector<16x1xf32> to vector<16x256xf32>
    %1364 = vector.broadcast %1362 : vector<1x256xf32> to vector<16x256xf32>
    %1365 = arith.mulf %1363, %1364 : vector<16x256xf32>
    %1366 = arith.addf %1360, %1365 : vector<16x256xf32>
    %1367 = vector.extract_strided_slice %11 {offsets = [0, 1], sizes = [16, 1], strides = [1, 1]} : vector<16x16xf32> to vector<16x1xf32>
    %1368 = vector.extract_strided_slice %1239 {offsets = [1, 0], sizes = [1, 256], strides = [1, 1]} : vector<16x256xf32> to vector<1x256xf32>
    %1369 = vector.broadcast %1367 : vector<16x1xf32> to vector<16x256xf32>
    %1370 = vector.broadcast %1368 : vector<1x256xf32> to vector<16x256xf32>
    %1371 = arith.mulf %1369, %1370 : vector<16x256xf32>
    %1372 = arith.addf %1366, %1371 : vector<16x256xf32>
    %1373 = vector.extract_strided_slice %11 {offsets = [0, 2], sizes = [16, 1], strides = [1, 1]} : vector<16x16xf32> to vector<16x1xf32>
    %1374 = vector.extract_strided_slice %1239 {offsets = [2, 0], sizes = [1, 256], strides = [1, 1]} : vector<16x256xf32> to vector<1x256xf32>
    %1375 = vector.broadcast %1373 : vector<16x1xf32> to vector<16x256xf32>
    %1376 = vector.broadcast %1374 : vector<1x256xf32> to vector<16x256xf32>
    %1377 = arith.mulf %1375, %1376 : vector<16x256xf32>
    %1378 = arith.addf %1372, %1377 : vector<16x256xf32>
    %1379 = vector.extract_strided_slice %11 {offsets = [0, 3], sizes = [16, 1], strides = [1, 1]} : vector<16x16xf32> to vector<16x1xf32>
    %1380 = vector.extract_strided_slice %1239 {offsets = [3, 0], sizes = [1, 256], strides = [1, 1]} : vector<16x256xf32> to vector<1x256xf32>
    %1381 = vector.broadcast %1379 : vector<16x1xf32> to vector<16x256xf32>
    %1382 = vector.broadcast %1380 : vector<1x256xf32> to vector<16x256xf32>
    %1383 = arith.mulf %1381, %1382 : vector<16x256xf32>
    %1384 = arith.addf %1378, %1383 : vector<16x256xf32>
    %1385 = vector.extract_strided_slice %11 {offsets = [0, 4], sizes = [16, 1], strides = [1, 1]} : vector<16x16xf32> to vector<16x1xf32>
    %1386 = vector.extract_strided_slice %1239 {offsets = [4, 0], sizes = [1, 256], strides = [1, 1]} : vector<16x256xf32> to vector<1x256xf32>
    %1387 = vector.broadcast %1385 : vector<16x1xf32> to vector<16x256xf32>
    %1388 = vector.broadcast %1386 : vector<1x256xf32> to vector<16x256xf32>
    %1389 = arith.mulf %1387, %1388 : vector<16x256xf32>
    %1390 = arith.addf %1384, %1389 : vector<16x256xf32>
    %1391 = vector.extract_strided_slice %11 {offsets = [0, 5], sizes = [16, 1], strides = [1, 1]} : vector<16x16xf32> to vector<16x1xf32>
    %1392 = vector.extract_strided_slice %1239 {offsets = [5, 0], sizes = [1, 256], strides = [1, 1]} : vector<16x256xf32> to vector<1x256xf32>
    %1393 = vector.broadcast %1391 : vector<16x1xf32> to vector<16x256xf32>
    %1394 = vector.broadcast %1392 : vector<1x256xf32> to vector<16x256xf32>
    %1395 = arith.mulf %1393, %1394 : vector<16x256xf32>
    %1396 = arith.addf %1390, %1395 : vector<16x256xf32>
    %1397 = vector.extract_strided_slice %11 {offsets = [0, 6], sizes = [16, 1], strides = [1, 1]} : vector<16x16xf32> to vector<16x1xf32>
    %1398 = vector.extract_strided_slice %1239 {offsets = [6, 0], sizes = [1, 256], strides = [1, 1]} : vector<16x256xf32> to vector<1x256xf32>
    %1399 = vector.broadcast %1397 : vector<16x1xf32> to vector<16x256xf32>
    %1400 = vector.broadcast %1398 : vector<1x256xf32> to vector<16x256xf32>
    %1401 = arith.mulf %1399, %1400 : vector<16x256xf32>
    %1402 = arith.addf %1396, %1401 : vector<16x256xf32>
    %1403 = vector.extract_strided_slice %11 {offsets = [0, 7], sizes = [16, 1], strides = [1, 1]} : vector<16x16xf32> to vector<16x1xf32>
    %1404 = vector.extract_strided_slice %1239 {offsets = [7, 0], sizes = [1, 256], strides = [1, 1]} : vector<16x256xf32> to vector<1x256xf32>
    %1405 = vector.broadcast %1403 : vector<16x1xf32> to vector<16x256xf32>
    %1406 = vector.broadcast %1404 : vector<1x256xf32> to vector<16x256xf32>
    %1407 = arith.mulf %1405, %1406 : vector<16x256xf32>
    %1408 = arith.addf %1402, %1407 : vector<16x256xf32>
    %1409 = vector.extract_strided_slice %11 {offsets = [0, 8], sizes = [16, 1], strides = [1, 1]} : vector<16x16xf32> to vector<16x1xf32>
    %1410 = vector.extract_strided_slice %1239 {offsets = [8, 0], sizes = [1, 256], strides = [1, 1]} : vector<16x256xf32> to vector<1x256xf32>
    %1411 = vector.broadcast %1409 : vector<16x1xf32> to vector<16x256xf32>
    %1412 = vector.broadcast %1410 : vector<1x256xf32> to vector<16x256xf32>
    %1413 = arith.mulf %1411, %1412 : vector<16x256xf32>
    %1414 = arith.addf %1408, %1413 : vector<16x256xf32>
    %1415 = vector.extract_strided_slice %11 {offsets = [0, 9], sizes = [16, 1], strides = [1, 1]} : vector<16x16xf32> to vector<16x1xf32>
    %1416 = vector.extract_strided_slice %1239 {offsets = [9, 0], sizes = [1, 256], strides = [1, 1]} : vector<16x256xf32> to vector<1x256xf32>
    %1417 = vector.broadcast %1415 : vector<16x1xf32> to vector<16x256xf32>
    %1418 = vector.broadcast %1416 : vector<1x256xf32> to vector<16x256xf32>
    %1419 = arith.mulf %1417, %1418 : vector<16x256xf32>
    %1420 = arith.addf %1414, %1419 : vector<16x256xf32>
    %1421 = vector.extract_strided_slice %11 {offsets = [0, 10], sizes = [16, 1], strides = [1, 1]} : vector<16x16xf32> to vector<16x1xf32>
    %1422 = vector.extract_strided_slice %1239 {offsets = [10, 0], sizes = [1, 256], strides = [1, 1]} : vector<16x256xf32> to vector<1x256xf32>
    %1423 = vector.broadcast %1421 : vector<16x1xf32> to vector<16x256xf32>
    %1424 = vector.broadcast %1422 : vector<1x256xf32> to vector<16x256xf32>
    %1425 = arith.mulf %1423, %1424 : vector<16x256xf32>
    %1426 = arith.addf %1420, %1425 : vector<16x256xf32>
    %1427 = vector.extract_strided_slice %11 {offsets = [0, 11], sizes = [16, 1], strides = [1, 1]} : vector<16x16xf32> to vector<16x1xf32>
    %1428 = vector.extract_strided_slice %1239 {offsets = [11, 0], sizes = [1, 256], strides = [1, 1]} : vector<16x256xf32> to vector<1x256xf32>
    %1429 = vector.broadcast %1427 : vector<16x1xf32> to vector<16x256xf32>
    %1430 = vector.broadcast %1428 : vector<1x256xf32> to vector<16x256xf32>
    %1431 = arith.mulf %1429, %1430 : vector<16x256xf32>
    %1432 = arith.addf %1426, %1431 : vector<16x256xf32>
    %1433 = vector.extract_strided_slice %11 {offsets = [0, 12], sizes = [16, 1], strides = [1, 1]} : vector<16x16xf32> to vector<16x1xf32>
    %1434 = vector.extract_strided_slice %1239 {offsets = [12, 0], sizes = [1, 256], strides = [1, 1]} : vector<16x256xf32> to vector<1x256xf32>
    %1435 = vector.broadcast %1433 : vector<16x1xf32> to vector<16x256xf32>
    %1436 = vector.broadcast %1434 : vector<1x256xf32> to vector<16x256xf32>
    %1437 = arith.mulf %1435, %1436 : vector<16x256xf32>
    %1438 = arith.addf %1432, %1437 : vector<16x256xf32>
    %1439 = vector.extract_strided_slice %11 {offsets = [0, 13], sizes = [16, 1], strides = [1, 1]} : vector<16x16xf32> to vector<16x1xf32>
    %1440 = vector.extract_strided_slice %1239 {offsets = [13, 0], sizes = [1, 256], strides = [1, 1]} : vector<16x256xf32> to vector<1x256xf32>
    %1441 = vector.broadcast %1439 : vector<16x1xf32> to vector<16x256xf32>
    %1442 = vector.broadcast %1440 : vector<1x256xf32> to vector<16x256xf32>
    %1443 = arith.mulf %1441, %1442 : vector<16x256xf32>
    %1444 = arith.addf %1438, %1443 : vector<16x256xf32>
    %1445 = vector.extract_strided_slice %11 {offsets = [0, 14], sizes = [16, 1], strides = [1, 1]} : vector<16x16xf32> to vector<16x1xf32>
    %1446 = vector.extract_strided_slice %1239 {offsets = [14, 0], sizes = [1, 256], strides = [1, 1]} : vector<16x256xf32> to vector<1x256xf32>
    %1447 = vector.broadcast %1445 : vector<16x1xf32> to vector<16x256xf32>
    %1448 = vector.broadcast %1446 : vector<1x256xf32> to vector<16x256xf32>
    %1449 = arith.mulf %1447, %1448 : vector<16x256xf32>
    %1450 = arith.addf %1444, %1449 : vector<16x256xf32>
    %1451 = vector.extract_strided_slice %11 {offsets = [0, 15], sizes = [16, 1], strides = [1, 1]} : vector<16x16xf32> to vector<16x1xf32>
    %1452 = vector.extract_strided_slice %1239 {offsets = [15, 0], sizes = [1, 256], strides = [1, 1]} : vector<16x256xf32> to vector<1x256xf32>
    %1453 = vector.broadcast %1451 : vector<16x1xf32> to vector<16x256xf32>
    %1454 = vector.broadcast %1452 : vector<1x256xf32> to vector<16x256xf32>
    %1455 = arith.mulf %1453, %1454 : vector<16x256xf32>
    %1456 = arith.addf %1450, %1455 : vector<16x256xf32>
    %1457 = arith.mulf %1254, %1456 : vector<16x256xf32>
    %cst_166 = arith.constant dense<0.000000e+00> : vector<256xf32>
    %1458 = vector.multi_reduction <add>, %1457, %cst_166 [0] : vector<16x256xf32> to vector<256xf32>
    %1459 = vector.shape_cast %1458 : vector<256xf32> to vector<1x256xf32>
    %c0_167 = arith.constant 0 : index
    %c9 = arith.constant 9 : index
    %1460 = vector.load %arg6[%c0_167, %c9] : memref<4x10xf32, #tpu.memory_space<vmem>>, vector<4x1xf32>
    %1461 = vector.broadcast %1460 : vector<4x1xf32> to vector<4x256xf32>
    %1462 = vector.broadcast %1459 : vector<1x256xf32> to vector<4x256xf32>
    %1463 = arith.mulf %1461, %1462 : vector<4x256xf32>
    %1464 = arith.addf %1359, %1463 : vector<4x256xf32>
    %c0_168 = arith.constant 0 : index
    %c0_169 = arith.constant 0 : index
    %1465 = vector.load %arg7[%c0_168, %c0_169] : memref<4x1xf32, #tpu.memory_space<vmem>>, vector<4x1xf32>
    %1466 = vector.broadcast %1465 : vector<4x1xf32> to vector<4x256xf32>
    %1467 = arith.mulf %1464, %1466 : vector<4x256xf32>
    %c0_170 = arith.constant 0 : index
    %c0_171 = arith.constant 0 : index
    %1468 = vector.load %arg8[%c0_170, %c0_171] : memref<4x1xf32, #tpu.memory_space<vmem>>, vector<4x1xf32>
    %1469 = vector.broadcast %1468 : vector<4x1xf32> to vector<4x256xf32>
    %1470 = arith.addf %1467, %1469 : vector<4x256xf32>
    %1471 = arith.negf %1470 : vector<4x256xf32>
    %1472 = math.exp %1471 : vector<4x256xf32>
    %cst_172 = arith.constant 1.000000e+00 : f32
    %1473 = vector.broadcast %cst_172 : f32 to vector<4x256xf32>
    %1474 = arith.addf %1473, %1472 : vector<4x256xf32>
    %1475 = arith.divf %1473, %1474 : vector<4x256xf32>
    %1476 = arith.mulf %1470, %1475 : vector<4x256xf32>
    %1477 = arith.negf %1476 : vector<4x256xf32>
    %1478 = math.exp %1477 : vector<4x256xf32>
    %cst_173 = arith.constant 1.000000e+00 : f32
    %1479 = vector.broadcast %cst_173 : f32 to vector<4x256xf32>
    %1480 = arith.addf %1479, %1478 : vector<4x256xf32>
    %1481 = arith.divf %1479, %1480 : vector<4x256xf32>
    %1482 = arith.mulf %1481, %7 : vector<4x256xf32>
    %1483 = arith.addf %1482, %7 : vector<4x256xf32>
    %c0_174 = arith.constant 0 : index
    %c0_175 = arith.constant 0 : index
    %c0_176 = arith.constant 0 : index
    %1484 = vector.load %arg9[%c0_174, %c0_175, %c0_176] : memref<1x4x256xf32, #tpu.memory_space<vmem>>, vector<1x4x256xf32>
    %1485 = vector.shape_cast %1484 : vector<1x4x256xf32> to vector<4x256xf32>
    %1486 = vector.shape_cast %1483 : vector<4x256xf32> to vector<1x4x256xf32>
    tpu.vector_store %arg9[%c0_174, %c0_175, %c0_176], %1486 {strides = array<i32>} : memref<1x4x256xf32, #tpu.memory_space<vmem>>, vector<1x4x256xf32>,
    return
  }
  func.func @transform_0(%arg0: i32, %arg1: i32) -> (i32, i32, i32, i32) {
    %c0_i32 = arith.constant 0 : i32
    %c0_i32_0 = arith.constant 0 : i32
    %c0_i32_1 = arith.constant 0 : i32
    %c0_i32_2 = arith.constant 0 : i32
    return %arg0, %c0_i32, %c0_i32_0, %c0_i32_1 : i32, i32, i32, i32
  }
  func.func @transform_1(%arg0: i32, %arg1: i32) -> (i32, i32, i32) {
    %c0_i32 = arith.constant 0 : i32
    %c0_i32_0 = arith.constant 0 : i32
    return %arg0, %c0_i32, %arg1 : i32, i32, i32
  }
  func.func @transform_2(%arg0: i32, %arg1: i32) -> (i32, i32, i32) {
    %c0_i32 = arith.constant 0 : i32
    %c0_i32_0 = arith.constant 0 : i32
    return %arg0, %c0_i32, %arg1 : i32, i32, i32
  }
  func.func @transform_3(%arg0: i32, %arg1: i32) -> (i32, i32) {
    %c0_i32 = arith.constant 0 : i32
    %c0_i32_0 = arith.constant 0 : i32
    return %c0_i32, %arg1 : i32, i32
  }
  func.func @transform_4(%arg0: i32, %arg1: i32) -> (i32, i32) {
    %c0_i32 = arith.constant 0 : i32
    %c0_i32_0 = arith.constant 0 : i32
    %c0_i32_1 = arith.constant 0 : i32
    return %c0_i32, %c0_i32_0 : i32, i32
  }
  func.func @transform_5(%arg0: i32, %arg1: i32) -> (i32, i32) {
    %c0_i32 = arith.constant 0 : i32
    %c0_i32_0 = arith.constant 0 : i32
    %c0_i32_1 = arith.constant 0 : i32
    return %c0_i32, %c0_i32_0 : i32, i32
  }
  func.func @transform_6(%arg0: i32, %arg1: i32) -> (i32, i32) {
    %c0_i32 = arith.constant 0 : i32
    %c0_i32_0 = arith.constant 0 : i32
    %c0_i32_1 = arith.constant 0 : i32
    return %c0_i32, %c0_i32_0 : i32, i32
  }
  func.func @transform_7(%arg0: i32, %arg1: i32) -> (i32, i32, i32) {
    %c0_i32 = arith.constant 0 : i32
    %c0_i32_0 = arith.constant 0 : i32
    return %arg0, %c0_i32, %arg1 : i32, i32, i32
  }
}

</mosaic_0001>

<llo_original>
// kernel: _lambda_.3
$region0: #{_lambda_.3}
  #allocation0 [shape = 'u32[]', space=smem, size = 0x4, offset = 0x4, fixed_abs, tag = 'smem constant byte address 0x4 - core index']
  #allocation1 [shape = 'u32[144,128]{1,0:T(1,128)}', space=vmem, size = 0x12000, scoped, tag = 'internal scratch']
  %s0 = inlined_call_operand.vmem [shape: f32[2,4,256], index: 0, kind: input, shape index: {}]
  %s1 = inlined_call_operand.vmem [shape: f32[2,2,256], index: 1, kind: output, shape index: {}]
  %s2 = sld [smem:[#allocation0]]
  $region37: #{_lambda_.3} parent=0
    _
  %s4 = ssub.s32 1, %s2
  %s5 = scalar_select 0, %s4, %s2
  loop: start=0, step=1, limit=4
  $region2: #{_lambda_.3} parent=0 // loop_pre_header
    _
  $region3: #{_lambda_.3} parent=0 // loop_header
    %s7 = sphi 0, %s11
    %p8 = scmp.ge.s32.totalorder %s7, 4
    %s14 = sphi 0, %s26
    %s15 = sphi 0, %s22
    %s16 = sphi 0, %s14
    %s17 = sphi 0, %s15
    %s18 = sphi 0, %s16
    %s19 = sphi 0, %s17
    %s31 = sphi 0, %s33
    %s34 = sphi 0, %s31
    %s35 = sphi 0, %s34
    %s51 = sphi 0, %s35
    %s59 = sphi 0, %s61
    %s62 = sphi 0, %s59
    %s63 = sphi 0, %s62
    %s79 = sphi 0, %s63
  $region4: #{_lambda_.3} parent=0 // loop_header_branch
    %10 = sbr.rel (%p8) target = $region8
  $region5: #{_lambda_.3} parent=0 // loop_body
    %s12 = ssub.s32 %s7, 1
    %s13 = ssub.s32 %s7, 2
    %s20 = sadd.s32 1, %s15
    %p21 = scmp.ge.s32.totalorder %s20, 1
    %s22 = scalar_select %p21, 0, %s20
    %s23 = sadd.s32 1, %s14
    %s24 = scalar_select %p21, %s23, %s14
    %p25 = scmp.ge.s32.totalorder %s24, 2
    %s26 = scalar_select %p25, 0, %s24
    %s27 = ssub.s32 %s14, %s26
    %s28 = ssub.s32 %s15, %s22
    %s29 = sor.u32 %s27, %s28
    %p30 = scmp.eq.s32.totalorder %s29, 0
    %s32 = sadd.s32 %s31, 1
    %s33 = scalar_select %p30, %s31, %s32
    %p36 = pneg %p30
    %p37 = scmp.eq.s32.totalorder %s7, 1
    %p38 = por %p36, %p37
    %p39 = scmp.ne.s32.totalorder %s31, %s34
    %p40 = scmp.eq.s32.totalorder %s7, 0
    %p41 = por %p39, %p40
    %p42 = scmp.ne.s32.totalorder %s31, %s34
    %p43 = scmp.eq.s32.totalorder %s12, 1
    %p44 = por %p42, %p43
    %p45 = scmp.ne.s32.totalorder %s34, %s35
    %p46 = scmp.eq.s32.totalorder %s12, 0
    %p47 = por %p45, %p46
    %p48 = scmp.ne.s32.totalorder %s34, %s35
    %p49 = scmp.eq.s32.totalorder %s13, 1
    %p50 = por %p48, %p49
    %p52 = scmp.ne.s32.totalorder %s35, %s51
    %p53 = scmp.eq.s32.totalorder %s13, 0
    %p54 = por %p52, %p53
    %s55 = ssub.s32 %s14, %s26
    %s56 = ssub.s32 %s15, %s22
    %s57 = sor.u32 %s55, %s56
    %p58 = scmp.eq.s32.totalorder %s57, 0
    %s60 = sadd.s32 %s59, 1
    %s61 = scalar_select %p58, %s59, %s60
    %p64 = pneg %p58
    %p65 = scmp.eq.s32.totalorder %s7, 1
    %p66 = por %p64, %p65
    %p67 = scmp.ne.s32.totalorder %s59, %s62
    %p68 = scmp.eq.s32.totalorder %s7, 0
    %p69 = por %p67, %p68
    %p70 = scmp.ne.s32.totalorder %s59, %s62
    %p71 = scmp.eq.s32.totalorder %s12, 1
    %p72 = por %p70, %p71
    %p73 = scmp.ne.s32.totalorder %s62, %s63
    %p74 = scmp.eq.s32.totalorder %s12, 0
    %p75 = por %p73, %p74
    %p76 = scmp.ne.s32.totalorder %s62, %s63
    %p77 = scmp.eq.s32.totalorder %s13, 1
    %p78 = por %p76, %p77
    %p80 = scmp.ne.s32.totalorder %s63, %s79
    %p81 = scmp.eq.s32.totalorder %s13, 0
    %p82 = por %p80, %p81
    %p83 = scmp.le.s32.totalorder 1, %s7
    %p84 = scmp.lt.s32.totalorder %s7, 3
    %p85 = pnand %p83, %p84
    %p86 = pneg %p85
    // Predicated region
    $region9: #{_lambda_.3} parent=5 // pred_check
      _
    $region10: #{_lambda_.3} parent=5 // pred_check_branch
      %88 = sbr.rel (%p85) target = $region12
    $region11: #{_lambda_.3} parent=5 // pred_region
      %s89 = ssub.s32 %s7, 1
    $region12: #{_lambda_.3} parent=5 // pred_fallthru
      _
    %p90 = scmp.lt.s32.totalorder %s7, 2
    // Predicated region
    $region13: #{_lambda_.3} parent=5 // pred_check
      %p91 = pneg %p90
    $region14: #{_lambda_.3} parent=5 // pred_check_branch
      %93 = sbr.rel (%p91) target = $region16
    $region15: #{_lambda_.3} parent=5 // pred_region
      // Predicated region
      $region17: #{_lambda_.3} parent=15 // pred_check
        %p94 = pneg %p41
      $region18: #{_lambda_.3} parent=15 // pred_check_branch
        %96 = sbr.rel (%p94) target = $region20
      $region19: #{_lambda_.3} parent=15 // pred_region
        %s97 = smul.u32 2, %s15
        %p98 = scmp.lt.s32.totalorder %s14, 1
        %s99 = scalar_select %p98, %s14, 1
        %p100 = scmp.lt.s32.totalorder %s97, 1
        %s101 = scalar_select %p100, %s97, 1
        %s102 = smul.addr %s99, 2
        %s103 = sadd.s32 %s101, %s102
        %s104 = smul.addr %s103, 4
        %s105 = scalar_lea.vmem %s0, %s104
        %s106 = smul.u32 2, %s15
      $region20: #{_lambda_.3} parent=15 // pred_fallthru
        _
    $region16: #{_lambda_.3} parent=5 // pred_fallthru
      _
    %p107 = scmp.le.s32.totalorder 1, %s7
    %p108 = scmp.lt.s32.totalorder %s7, 3
    %p109 = pnand %p107, %p108
    %p110 = pneg %p109
    // Predicated region
    $region21: #{_lambda_.3} parent=5 // pred_check
      _
    $region22: #{_lambda_.3} parent=5 // pred_check_branch
      %112 = sbr.rel (%p109) target = $region24
    $region23: #{_lambda_.3} parent=5 // pred_region
      %s113 = ssub.s32 %s7, 1
      %s114 = smul.u32 2, %s17
      %p115 = scmp.lt.s32.totalorder %s16, 1
      %s116 = scalar_select %p115, %s16, 1
      %p117 = scmp.lt.s32.totalorder %s114, 1
      %s118 = scalar_select %p117, %s114, 1
      %s119 = smul.addr %s116, 2
      %s120 = sadd.s32 %s118, %s119
      %s121 = smul.addr %s120, 4
      %s122 = scalar_lea.vmem %s0, %s121
      %p123 = pneg %p47
      %p124 = pneg %p44
      %p125 = pneg %p75
      %p126 = pneg %p72
      %s127 = smul.u32 2, %s17
      %p128 = scmp.lt.s32.totalorder %s16, 1
      %s129 = scalar_select %p128, %s16, 1
      %p130 = scmp.lt.s32.totalorder %s127, 1
      %s131 = scalar_select %p130, %s127, 1
      %s132 = smul.addr %s129, 2
      %s133 = sadd.s32 %s131, %s132
      %s134 = smul.addr %s133, 2
      %s135 = scalar_lea.vmem %s1, %s134
      %s136 = smul.u32 2, %s17
      %p137 = scmp.lt.s32.totalorder %s16, 1
      %s138 = scalar_select %p137, %s16, 1
      %p139 = scmp.lt.s32.totalorder %s136, 1
      %s140 = scalar_select %p139, %s136, 1
      %s141 = smul.addr %s138, 2
      %s142 = sadd.s32 %s140, %s141
      %s143 = smul.addr %s142, 4
      %s144 = scalar_lea.vmem %s0, %s143
      %s145 = smul.u32 2, %s17
      %s146 = smul.u32 2, %s17
      %p147 = scmp.lt.s32.totalorder %s16, 1
      %s148 = scalar_select %p147, %s16, 1
      %p149 = scmp.lt.s32.totalorder %s146, 1
      %s150 = scalar_select %p149, %s146, 1
      %s151 = smul.addr %s148, 2
      %s152 = sadd.s32 %s150, %s151
      %s153 = smul.addr %s152, 2
      %s154 = scalar_lea.vmem %s1, %s153
      %s155 = smul.u32 2, %s17
      %v156 = vld [vmem:[%s144] sm:$0xff]
      %v158 = vcombine.high %v156, %v156
      %vm160 = vcmask 1043456
      %v161 = vsel %vm160, %v156, 0.0
      %v162 = vrot.slane %v161, 4
      %v163 = vadd.f32 %v161, %v162
      %v164 = vrot.slane %v163, 2
      %v165 = vadd.f32 %v163, %v164
      %v166 = vrot.slane %v165, 1
      %v167 = vadd.f32 %v165, %v166
      %v168 = vsel %vm160, %v158, 0.0
      %v169 = vrot.slane %v168, 4
      %v170 = vadd.f32 %v168, %v169
      %v171 = vrot.slane %v170, 2
      %v172 = vadd.f32 %v170, %v171
      %v173 = vrot.slane %v172, 1
      %v174 = vadd.f32 %v172, %v173
      %v175 = vrcp.pop 4.0
      %v176 = vmul.f32 %v167, %v175
      %v177 = vmul.f32 %v174, %v175
      %v178 = vsel %vm160, %v156, -inf
      %v179 = vrot.slane %v178, 4
      %v180 = vmax.f32 %v178, %v179
      %v181 = vrot.slane %v180, 2
      %v182 = vmax.f32 %v180, %v181
      %v183 = vrot.slane %v182, 1
      %v184 = vmax.f32 %v182, %v183
      %v185 = vsel %vm160, %v158, -inf
      %v186 = vrot.slane %v185, 4
      %v187 = vmax.f32 %v185, %v186
      %v188 = vrot.slane %v187, 2
      %v189 = vmax.f32 %v187, %v188
      %v190 = vrot.slane %v189, 1
      %v191 = vmax.f32 %v189, %v190
      %v192 = vlaneseq
      %v193 = vshrl.u32 %v192, 7
      %vm194 = vcmp.eq.s32.totalorder %v193, 0
      %v195 = vsel %vm194, %v176, %v184
      %v196 = vsel %vm194, %v177, %v191
      %v199 = vcombine.low %v195, %v196
      %v201 = vunpack.c.l.s4 1983009808
      %v202 = vunpack.c.0.s8 %v201
      %v203 = vlaneseq
      %v204 = vshrl.u32 %v203, 7
      %v205 = vsub.s32 %v202, %v204
      %v206 = vrot.slane %v199, %v205
      %208 = vst [vmem:[%s154] sm:$0xf] %v206
      %s209 = smul.u32 2, %s17
      %p210 = scmp.lt.s32.totalorder %s16, 1
      %s211 = scalar_select %p210, %s16, 1
      %p212 = scmp.lt.s32.totalorder %s209, 1
      %s213 = scalar_select %p212, %s209, 1
      %s214 = smul.addr %s211, 2
      %s215 = sadd.s32 %s213, %s214
      %s216 = smul.addr %s215, 2
      %s217 = scalar_lea.vmem %s1, %s216
      // Predicated region
      $region25: #{_lambda_.3} parent=23 // pred_check
        %p218 = pneg %p72
      $region26: #{_lambda_.3} parent=23 // pred_check_branch
        %220 = sbr.rel (%p218) target = $region28
      $region27: #{_lambda_.3} parent=23 // pred_region
        %s221 = smul.u32 2, %s17
      $region28: #{_lambda_.3} parent=23 // pred_fallthru
        _
    $region24: #{_lambda_.3} parent=5 // pred_fallthru
      _
    %p222 = scmp.le.s32.totalorder 2, %s7
    // Predicated region
    $region29: #{_lambda_.3} parent=5 // pred_check
      %p223 = pneg %p222
    $region30: #{_lambda_.3} parent=5 // pred_check_branch
      %225 = sbr.rel (%p223) target = $region32
    $region31: #{_lambda_.3} parent=5 // pred_region
      %s226 = ssub.s32 %s7, 2
      // Predicated region
      $region33: #{_lambda_.3} parent=31 // pred_check
        %p227 = pneg %p78
      $region34: #{_lambda_.3} parent=31 // pred_check_branch
        %229 = sbr.rel (%p227) target = $region36
      $region35: #{_lambda_.3} parent=31 // pred_region
        %s230 = smul.u32 2, %s19
        %p231 = scmp.lt.s32.totalorder %s18, 1
        %s232 = scalar_select %p231, %s18, 1
        %p233 = scmp.lt.s32.totalorder %s230, 1
        %s234 = scalar_select %p233, %s230, 1
        %s235 = smul.addr %s232, 2
        %s236 = sadd.s32 %s234, %s235
        %s237 = smul.addr %s236, 2
        %s238 = scalar_lea.vmem %s1, %s237
      $region36: #{_lambda_.3} parent=31 // pred_fallthru
        _
    $region32: #{_lambda_.3} parent=5 // pred_fallthru
      _
  $region6: #{_lambda_.3} parent=0 // loop_footer
    %s11 = sadd.s32 1, %s7
  $region7: #{_lambda_.3} parent=0 // loop_footer_branch
    %6 = sbr.rel target = $region3
  $region8: #{_lambda_.3} parent=0 // loop_exit
    _

// kernel: _lambda_.4
$region0: #{_lambda_.4}
  #allocation0 [shape = 'u32[]', space=smem, size = 0x4, offset = 0x4, fixed_abs, tag = 'smem constant byte address 0x4 - core index']
  #allocation1 [shape = 'u32[144,128]{1,0:T(1,128)}', space=vmem, size = 0x12000, scoped, tag = 'internal scratch']
  %s0 = inlined_call_operand.vmem [shape: f32[2,2,290], index: 0, kind: input, shape index: {}]
  %s1 = inlined_call_operand.vmem [shape: s32[2,256], index: 1, kind: input, shape index: {}]
  %s2 = inlined_call_operand.vmem [shape: f32[10,18], index: 2, kind: input, shape index: {}]
  %s3 = inlined_call_operand.vmem [shape: f32[10,1], index: 3, kind: input, shape index: {}]
  %s4 = inlined_call_operand.vmem [shape: f32[2,10,256], index: 4, kind: output, shape index: {}]
  %s5 = sld [smem:[#allocation0]]
  $region49: #{_lambda_.4} parent=0
    _
  %s7 = ssub.s32 1, %s5
  %s8 = scalar_select 0, %s7, %s5
  loop: start=0, step=1, limit=4
  $region2: #{_lambda_.4} parent=0 // loop_pre_header
    _
  $region3: #{_lambda_.4} parent=0 // loop_header
    %s10 = sphi 0, %s14
    %p11 = scmp.ge.s32.totalorder %s10, 4
    %s20 = sphi 0, %s22
    %s23 = sphi 0, %s20
    %s24 = sphi 0, %s23
    %s40 = sphi 0, %s24
    %s44 = sphi 0, %s44
    %s46 = sphi 0, %s44
    %s47 = sphi 0, %s46
    %s61 = sphi 0, %s47
    %s65 = sphi 0, %s65
    %s67 = sphi 0, %s65
    %s68 = sphi 0, %s67
    %s82 = sphi 0, %s68
    %s86 = sphi 0, %s86
    %s88 = sphi 0, %s86
    %s89 = sphi 0, %s88
    %s103 = sphi 0, %s89
    %s109 = sphi 0, %s111
    %s112 = sphi 0, %s109
    %s113 = sphi 0, %s112
    %s129 = sphi 0, %s113
  $region4: #{_lambda_.4} parent=0 // loop_header_branch
    %13 = sbr.rel (%p11) target = $region8
  $region5: #{_lambda_.4} parent=0 // loop_body
    %s15 = ssub.s32 %s10, 1
    %s16 = ssub.s32 %s10, 2
    %s17 = sadd.s32 %s10, 1
    %s18 = ssub.s32 %s10, %s17
    %p19 = scmp.eq.s32.totalorder %s18, 0
    %s21 = sadd.s32 %s20, 1
    %s22 = scalar_select %p19, %s20, %s21
    %p25 = pneg %p19
    %p26 = scmp.eq.s32.totalorder %s10, 1
    %p27 = por %p25, %p26
    %p28 = scmp.ne.s32.totalorder %s20, %s23
    %p29 = scmp.eq.s32.totalorder %s10, 0
    %p30 = por %p28, %p29
    %p31 = scmp.ne.s32.totalorder %s20, %s23
    %p32 = scmp.eq.s32.totalorder %s15, 1
    %p33 = por %p31, %p32
    %p34 = scmp.ne.s32.totalorder %s23, %s24
    %p35 = scmp.eq.s32.totalorder %s15, 0
    %p36 = por %p34, %p35
    %p37 = scmp.ne.s32.totalorder %s23, %s24
    %p38 = scmp.eq.s32.totalorder %s16, 1
    %p39 = por %p37, %p38
    %p41 = scmp.ne.s32.totalorder %s24, %s40
    %p42 = scmp.eq.s32.totalorder %s16, 0
    %p43 = por %p41, %p42
    %s45 = sadd.s32 %s44, 1
    %p48 = scmp.eq.s32.totalorder %s10, 1
    %p49 = scmp.ne.s32.totalorder %s44, %s46
    %p50 = scmp.eq.s32.totalorder %s10, 0
    %p51 = por %p49, %p50
    %p52 = scmp.ne.s32.totalorder %s44, %s46
    %p53 = scmp.eq.s32.totalorder %s15, 1
    %p54 = por %p52, %p53
    %p55 = scmp.ne.s32.totalorder %s46, %s47
    %p56 = scmp.eq.s32.totalorder %s15, 0
    %p57 = por %p55, %p56
    %p58 = scmp.ne.s32.totalorder %s46, %s47
    %p59 = scmp.eq.s32.totalorder %s16, 1
    %p60 = por %p58, %p59
    %p62 = scmp.ne.s32.totalorder %s47, %s61
    %p63 = scmp.eq.s32.totalorder %s16, 0
    %p64 = por %p62, %p63
    %s66 = sadd.s32 %s65, 1
    %p69 = scmp.eq.s32.totalorder %s10, 1
    %p70 = scmp.ne.s32.totalorder %s65, %s67
    %p71 = scmp.eq.s32.totalorder %s10, 0
    %p72 = por %p70, %p71
    %p73 = scmp.ne.s32.totalorder %s65, %s67
    %p74 = scmp.eq.s32.totalorder %s15, 1
    %p75 = por %p73, %p74
    %p76 = scmp.ne.s32.totalorder %s67, %s68
    %p77 = scmp.eq.s32.totalorder %s15, 0
    %p78 = por %p76, %p77
    %p79 = scmp.ne.s32.totalorder %s67, %s68
    %p80 = scmp.eq.s32.totalorder %s16, 1
    %p81 = por %p79, %p80
    %p83 = scmp.ne.s32.totalorder %s68, %s82
    %p84 = scmp.eq.s32.totalorder %s16, 0
    %p85 = por %p83, %p84
    %s87 = sadd.s32 %s86, 1
    %p90 = scmp.eq.s32.totalorder %s10, 1
    %p91 = scmp.ne.s32.totalorder %s86, %s88
    %p92 = scmp.eq.s32.totalorder %s10, 0
    %p93 = por %p91, %p92
    %p94 = scmp.ne.s32.totalorder %s86, %s88
    %p95 = scmp.eq.s32.totalorder %s15, 1
    %p96 = por %p94, %p95
    %p97 = scmp.ne.s32.totalorder %s88, %s89
    %p98 = scmp.eq.s32.totalorder %s15, 0
    %p99 = por %p97, %p98
    %p100 = scmp.ne.s32.totalorder %s88, %s89
    %p101 = scmp.eq.s32.totalorder %s16, 1
    %p102 = por %p100, %p101
    %p104 = scmp.ne.s32.totalorder %s89, %s103
    %p105 = scmp.eq.s32.totalorder %s16, 0
    %p106 = por %p104, %p105
    %s107 = ssub.s32 %s10, %s17
    %p108 = scmp.eq.s32.totalorder %s107, 0
    %s110 = sadd.s32 %s109, 1
    %s111 = scalar_select %p108, %s109, %s110
    %p114 = pneg %p108
    %p115 = scmp.eq.s32.totalorder %s10, 1
    %p116 = por %p114, %p115
    %p117 = scmp.ne.s32.totalorder %s109, %s112
    %p118 = scmp.eq.s32.totalorder %s10, 0
    %p119 = por %p117, %p118
    %p120 = scmp.ne.s32.totalorder %s109, %s112
    %p121 = scmp.eq.s32.totalorder %s15, 1
    %p122 = por %p120, %p121
    %p123 = scmp.ne.s32.totalorder %s112, %s113
    %p124 = scmp.eq.s32.totalorder %s15, 0
    %p125 = por %p123, %p124
    %p126 = scmp.ne.s32.totalorder %s112, %s113
    %p127 = scmp.eq.s32.totalorder %s16, 1
    %p128 = por %p126, %p127
    %p130 = scmp.ne.s32.totalorder %s113, %s129
    %p131 = scmp.eq.s32.totalorder %s16, 0
    %p132 = por %p130, %p131
    %p133 = scmp.le.s32.totalorder 1, %s10
    %p134 = scmp.lt.s32.totalorder %s10, 3
    %p135 = pnand %p133, %p134
    %p136 = pneg %p135
    // Predicated region
    $region9: #{_lambda_.4} parent=5 // pred_check
      _
    $region10: #{_lambda_.4} parent=5 // pred_check_branch
      %138 = sbr.rel (%p135) target = $region12
    $region11: #{_lambda_.4} parent=5 // pred_region
      %s139 = ssub.s32 %s10, 1
      // Predicated region
      $region13: #{_lambda_.4} parent=11 // pred_check
        %p140 = pneg %p57
      $region14: #{_lambda_.4} parent=11 // pred_check_branch
        %142 = sbr.rel (%p140) target = $region16
      $region15: #{_lambda_.4} parent=11 // pred_region
        _
      $region16: #{_lambda_.4} parent=11 // pred_fallthru
        _
      // Predicated region
      $region17: #{_lambda_.4} parent=11 // pred_check
        %p143 = pneg %p78
      $region18: #{_lambda_.4} parent=11 // pred_check_branch
        %145 = sbr.rel (%p143) target = $region20
      $region19: #{_lambda_.4} parent=11 // pred_region
        _
      $region20: #{_lambda_.4} parent=11 // pred_fallthru
        _
      // Predicated region
      $region21: #{_lambda_.4} parent=11 // pred_check
        %p146 = pneg %p99
      $region22: #{_lambda_.4} parent=11 // pred_check_branch
        %148 = sbr.rel (%p146) target = $region24
      $region23: #{_lambda_.4} parent=11 // pred_region
        _
      $region24: #{_lambda_.4} parent=11 // pred_fallthru
        _
    $region12: #{_lambda_.4} parent=5 // pred_fallthru
      _
    %p149 = scmp.lt.s32.totalorder %s10, 2
    // Predicated region
    $region25: #{_lambda_.4} parent=5 // pred_check
      %p150 = pneg %p149
    $region26: #{_lambda_.4} parent=5 // pred_check_branch
      %152 = sbr.rel (%p150) target = $region28
    $region27: #{_lambda_.4} parent=5 // pred_region
      // Predicated region
      $region29: #{_lambda_.4} parent=27 // pred_check
        %p153 = pneg %p30
      $region30: #{_lambda_.4} parent=27 // pred_check_branch
        %155 = sbr.rel (%p153) target = $region32
      $region31: #{_lambda_.4} parent=27 // pred_region
        %p156 = scmp.lt.s32.totalorder %s10, 1
        %s157 = scalar_select %p156, %s10, 1
        %s158 = smul.addr %s157, 3
        %s159 = smul.addr %s158, 2
        %s160 = scalar_lea.vmem %s0, %s159
      $region32: #{_lambda_.4} parent=27 // pred_fallthru
        _
    $region28: #{_lambda_.4} parent=5 // pred_fallthru
      _
    %p161 = scmp.le.s32.totalorder 1, %s10
    %p162 = scmp.lt.s32.totalorder %s10, 3
    %p163 = pnand %p161, %p162
    %p164 = pneg %p163
    // Predicated region
    $region33: #{_lambda_.4} parent=5 // pred_check
      _
    $region34: #{_lambda_.4} parent=5 // pred_check_branch
      %166 = sbr.rel (%p163) target = $region36
    $region35: #{_lambda_.4} parent=5 // pred_region
      %s167 = ssub.s32 %s10, 1
      %p168 = scmp.lt.s32.totalorder %s15, 1
      %s169 = scalar_select %p168, %s15, 1
      %s170 = smul.addr %s169, 3
      %s171 = smul.addr %s170, 2
      %s172 = scalar_lea.vmem %s0, %s171
      %p173 = pneg %p36
      %p174 = pneg %p33
      %p175 = pneg %p57
      %p176 = pneg %p54
      %p177 = pneg %p78
      %p178 = pneg %p75
      %p179 = pneg %p99
      %p180 = pneg %p96
      %p181 = pneg %p125
      %p182 = pneg %p122
      %p183 = scmp.lt.s32.totalorder %s15, 1
      %s184 = scalar_select %p183, %s15, 1
      %s185 = smul.addr %s184, 4
      %s186 = smul.addr %s185, 8
      %s187 = scalar_lea.vmem %s4, %s186
      %p188 = scmp.lt.s32.totalorder %s15, 1
      %s189 = scalar_select %p188, %s15, 1
      %s190 = smul.addr %s189, 3
      %s191 = smul.addr %s190, 2
      %s192 = scalar_lea.vmem %s0, %s191
      %p193 = scmp.lt.s32.totalorder %s15, 1
      %s194 = scalar_select %p193, %s15, 1
      %s195 = smul.addr %s194, 4
      %s196 = smul.addr %s195, 8
      %s197 = scalar_lea.vmem %s4, %s196
      %s198 = scalar_lea.vmem %s1, 1
      %v199 = vld [vmem:[%s198] ss:$2 sm:$0x3]
      %vm200 = vcmp.ge.s32.totalorder %v199, 1
      %v201 = vsel %vm200, 1, 0
      %v202 = vcvt.s32.f32 %v201
      %vm203 = vcmp.le.s32.totalorder %v199, 14
      %v204 = vsel %vm203, 1, 0
      %v205 = vcvt.s32.f32 %v204
      %v206 = vld [vmem:[%s192] sm:$0xf]
      %v208 = vlaneseq
      %v209 = vshrl.u32 %v208, 7
      %v210 = vsub.s32 0, %v209
      %v211 = vrot.slane %v202, %v210
      %v212 = vlaneseq
      %v213 = vshrl.u32 %v212, 7
      %v214 = vsub.s32 1, %v213
      %v215 = vrot.slane %v202, %v214
      %v216 = vcombine.low %v211, %v215
      %v218 = vunpack.c.l.s4 1983009808
      %v219 = vunpack.c.0.s8 %v218
      %v220 = vlaneseq
      %v221 = vshrl.u32 %v220, 7
      %v222 = vsub.s32 %v219, %v221
      %v223 = vrot.slane %v216, %v222
      %v225 = vmul.f32 %v206, %v223
      %v226 = vld [vmem:[%s2] sm:$0xff]
      %v227 = vld [vmem:[%s2 + $0x8] sm:$0x3]
      %229 = vset.pattern.permute.xlu0 0
      %230 = vperm.xlu0 %229, %v226
      %v231 = vpop.permute.xlu0 %230
      %234 = vset.pattern.permute.xlu0 0
      %235 = vperm.xlu0 %234, %v227
      %v236 = vpop.permute.xlu0 %235
      %v239 = vlaneseq
      %v240 = vshrl.u32 %v239, 7
      %v241 = vsub.s32 0, %v240
      %v242 = vrot.slane %v225, %v241
      %v243 = vlaneseq
      %v244 = vshrl.u32 %v243, 7
      %v245 = vsub.s32 2, %v244
      %v246 = vrot.slane %v225, %v245
      %v249 = vlaneseq
      %v250 = vshrl.u32 %v249, 7
      %v251 = vsub.s32 0, %v250
      %v252 = vrot.slane %v242, %v251
      %v253 = vlaneseq
      %v254 = vshrl.u32 %v253, 7
      %v255 = vsub.s32 0, %v254
      %v256 = vrot.slane %v246, %v255
      %v257 = vmul.f32 %v231, %v252
      %v258 = vmul.f32 %v231, %v256
      %v259 = vmul.f32 %v236, %v252
      %v260 = vmul.f32 %v236, %v256
      %261 = vset.pattern.permute.xlu0 9
      %262 = vperm.xlu0 %261, %v226
      %v263 = vpop.permute.xlu0 %262
      %265 = vset.pattern.permute.xlu0 9
      %266 = vperm.xlu0 %265, %v227
      %v267 = vpop.permute.xlu0 %266
      %v269 = vlaneseq
      %v270 = vshrl.u32 %v269, 7
      %v271 = vsub.s32 1, %v270
      %v272 = vrot.slane %v225, %v271
      %v273 = vlaneseq
      %v274 = vshrl.u32 %v273, 7
      %v275 = vsub.s32 3, %v274
      %v276 = vrot.slane %v225, %v275
      %v279 = vlaneseq
      %v280 = vshrl.u32 %v279, 7
      %v281 = vsub.s32 1, %v280
      %v282 = vrot.slane %v272, %v281
      %v283 = vlaneseq
      %v284 = vshrl.u32 %v283, 7
      %v285 = vsub.s32 1, %v284
      %v286 = vrot.slane %v276, %v285
      %v287 = vmul.f32 %v263, %v282
      %v288 = vmul.f32 %v263, %v286
      %v289 = vmul.f32 %v267, %v282
      %v290 = vmul.f32 %v267, %v286
      %v291 = vadd.f32 %v257, %v287
      %v292 = vadd.f32 %v258, %v288
      %v293 = vadd.f32 %v259, %v289
      %v294 = vadd.f32 %v260, %v290
      %v295 = vadd.f32 %v291, 0.0
      %v296 = vadd.f32 %v292, 0.0
      %v297 = vadd.f32 %v293, 0.0
      %v298 = vadd.f32 %v294, 0.0
      %v299 = vld [vmem:[%s192] sm:$0x3f]
      %300 = vset.pattern.permute.xlu0 1
      %301 = vperm.xlu0 %300, %v226
      %v302 = vpop.permute.xlu0 %301
      %304 = vset.pattern.permute.xlu0 1
      %305 = vperm.xlu0 %304, %v227
      %v306 = vpop.permute.xlu0 %305
      %v309 = vlaneseq
      %v310 = vshrl.u32 %v309, 7
      %v311 = vsub.s32 0, %v310
      %v312 = vrot.slane %v299, %v311
      %v313 = vlaneseq
      %v314 = vshrl.u32 %v313, 7
      %v315 = vsub.s32 2, %v314
      %v316 = vrot.slane %v299, %v315
      %v317 = vlaneseq
      %v318 = vshrl.u32 %v317, 7
      %v319 = vsub.s32 4, %v318
      %v320 = vrot.slane %v299, %v319
      %v324 = vlaneseq
      %v325 = vshrl.u32 %v324, 7
      %v326 = vsub.s32 0, %v325
      %v327 = vrot.slane %v312, %v326
      %v328 = vlaneseq
      %v329 = vshrl.u32 %v328, 7
      %v330 = vsub.s32 0, %v329
      %v331 = vrot.slane %v316, %v330
      %v332 = vlaneseq
      %v333 = vshrl.u32 %v332, 7
      %v334 = vsub.s32 0, %v333
      %v335 = vrot.slane %v320, %v334
      %v336 = vmul.f32 %v302, %v327
      %v337 = vmul.f32 %v302, %v331
      %v338 = vmul.f32 %v302, %v335
      %v339 = vmul.f32 %v306, %v327
      %v340 = vmul.f32 %v306, %v331
      %v341 = vmul.f32 %v306, %v335
      %342 = vset.pattern.permute.xlu0 10
      %343 = vperm.xlu0 %342, %v226
      %v344 = vpop.permute.xlu0 %343
      %346 = vset.pattern.permute.xlu0 10
      %347 = vperm.xlu0 %346, %v227
      %v348 = vpop.permute.xlu0 %347
      %v350 = vlaneseq
      %v351 = vshrl.u32 %v350, 7
      %v352 = vsub.s32 1, %v351
      %v353 = vrot.slane %v299, %v352
      %v354 = vlaneseq
      %v355 = vshrl.u32 %v354, 7
      %v356 = vsub.s32 3, %v355
      %v357 = vrot.slane %v299, %v356
      %v358 = vlaneseq
      %v359 = vshrl.u32 %v358, 7
      %v360 = vsub.s32 5, %v359
      %v361 = vrot.slane %v299, %v360
      %v365 = vlaneseq
      %v366 = vshrl.u32 %v365, 7
      %v367 = vsub.s32 1, %v366
      %v368 = vrot.slane %v353, %v367
      %v369 = vlaneseq
      %v370 = vshrl.u32 %v369, 7
      %v371 = vsub.s32 1, %v370
      %v372 = vrot.slane %v357, %v371
      %v373 = vlaneseq
      %v374 = vshrl.u32 %v373, 7
      %v375 = vsub.s32 1, %v374
      %v376 = vrot.slane %v361, %v375
      %v377 = vmul.f32 %v344, %v368
      %v378 = vmul.f32 %v344, %v372
      %v379 = vmul.f32 %v344, %v376
      %v380 = vmul.f32 %v348, %v368
      %v381 = vmul.f32 %v348, %v372
      %v382 = vmul.f32 %v348, %v376
      %v383 = vadd.f32 %v336, %v377
      %v384 = vadd.f32 %v337, %v378
      %v385 = vadd.f32 %v338, %v379
      %v386 = vadd.f32 %v339, %v380
      %v387 = vadd.f32 %v340, %v381
      %v388 = vadd.f32 %v341, %v382
      %395 = vrot.lane.b32.xlu0 %v383, 127
      %v396 = vpop.permute.xlu0 %395
      %397 = vrot.lane.b32.xlu0 %v384, 127
      %v398 = vpop.permute.xlu0 %397
      %399 = vrot.lane.b32.xlu0 %v385, 127
      %v400 = vpop.permute.xlu0 %399
      %401 = vrot.lane.b32.xlu0 %v386, 127
      %v402 = vpop.permute.xlu0 %401
      %403 = vrot.lane.b32.xlu0 %v387, 127
      %v404 = vpop.permute.xlu0 %403
      %405 = vrot.lane.b32.xlu0 %v388, 127
      %v406 = vpop.permute.xlu0 %405
      %vm407 = vcmask 1039360
      %v408 = vsel %vm407, %v396, %v398
      %v409 = vsel %vm407, %v398, %v400
      %v410 = vsel %vm407, %v402, %v404
      %v411 = vsel %vm407, %v404, %v406
      %v416 = vadd.f32 %v295, %v408
      %v417 = vadd.f32 %v296, %v409
      %v418 = vadd.f32 %v297, %v410
      %v419 = vadd.f32 %v298, %v411
      %v421 = vlaneseq
      %v422 = vshrl.u32 %v421, 7
      %v423 = vsub.s32 0, %v422
      %v424 = vrot.slane %v205, %v423
      %v425 = vlaneseq
      %v426 = vshrl.u32 %v425, 7
      %v427 = vsub.s32 1, %v426
      %v428 = vrot.slane %v205, %v427
      %v429 = vcombine.low %v424, %v428
      %v431 = vunpack.c.l.s4 1983009808
      %v432 = vunpack.c.0.s8 %v431
      %v433 = vlaneseq
      %v434 = vshrl.u32 %v433, 7
      %v435 = vsub.s32 %v432, %v434
      %v436 = vrot.slane %v429, %v435
      %437 = vrot.lane.b32.xlu0 %v436, 2
      %v438 = vpop.permute.xlu0 %437
      %v439 = vrot.slane %v438, 6
      %vm440 = vcmask 15360
      %v441 = vsel %vm440, %v439, %v438
      %v443 = vmul.f32 %v299, %v441
      %v444 = vld [vmem:[%s2] sm:$0xff]
      %v445 = vld [vmem:[%s2 + $0x8] sm:$0x3]
      %447 = vset.pattern.permute.xlu0 2
      %448 = vperm.xlu0 %447, %v444
      %v449 = vpop.permute.xlu0 %448
      %452 = vset.pattern.permute.xlu0 2
      %453 = vperm.xlu0 %452, %v445
      %v454 = vpop.permute.xlu0 %453
      %v457 = vlaneseq
      %v458 = vshrl.u32 %v457, 7
      %v459 = vsub.s32 0, %v458
      %v460 = vrot.slane %v443, %v459
      %v461 = vlaneseq
      %v462 = vshrl.u32 %v461, 7
      %v463 = vsub.s32 2, %v462
      %v464 = vrot.slane %v443, %v463
      %v465 = vlaneseq
      %v466 = vshrl.u32 %v465, 7
      %v467 = vsub.s32 4, %v466
      %v468 = vrot.slane %v443, %v467
      %v472 = vlaneseq
      %v473 = vshrl.u32 %v472, 7
      %v474 = vsub.s32 0, %v473
      %v475 = vrot.slane %v460, %v474
      %v476 = vlaneseq
      %v477 = vshrl.u32 %v476, 7
      %v478 = vsub.s32 0, %v477
      %v479 = vrot.slane %v464, %v478
      %v480 = vlaneseq
      %v481 = vshrl.u32 %v480, 7
      %v482 = vsub.s32 0, %v481
      %v483 = vrot.slane %v468, %v482
      %v484 = vmul.f32 %v449, %v475
      %v485 = vmul.f32 %v449, %v479
      %v486 = vmul.f32 %v449, %v483
      %v487 = vmul.f32 %v454, %v475
      %v488 = vmul.f32 %v454, %v479
      %v489 = vmul.f32 %v454, %v483
      %490 = vset.pattern.permute.xlu0 11
      %491 = vperm.xlu0 %490, %v444
      %v492 = vpop.permute.xlu0 %491
      %494 = vset.pattern.permute.xlu0 11
      %495 = vperm.xlu0 %494, %v445
      %v496 = vpop.permute.xlu0 %495
      %v498 = vlaneseq
      %v499 = vshrl.u32 %v498, 7
      %v500 = vsub.s32 1, %v499
      %v501 = vrot.slane %v443, %v500
      %v502 = vlaneseq
      %v503 = vshrl.u32 %v502, 7
      %v504 = vsub.s32 3, %v503
      %v505 = vrot.slane %v443, %v504
      %v506 = vlaneseq
      %v507 = vshrl.u32 %v506, 7
      %v508 = vsub.s32 5, %v507
      %v509 = vrot.slane %v443, %v508
      %v513 = vlaneseq
      %v514 = vshrl.u32 %v513, 7
      %v515 = vsub.s32 1, %v514
      %v516 = vrot.slane %v501, %v515
      %v517 = vlaneseq
      %v518 = vshrl.u32 %v517, 7
      %v519 = vsub.s32 1, %v518
      %v520 = vrot.slane %v505, %v519
      %v521 = vlaneseq
      %v522 = vshrl.u32 %v521, 7
      %v523 = vsub.s32 1, %v522
      %v524 = vrot.slane %v509, %v523
      %v525 = vmul.f32 %v492, %v516
      %v526 = vmul.f32 %v492, %v520
      %v527 = vmul.f32 %v492, %v524
      %v528 = vmul.f32 %v496, %v516
      %v529 = vmul.f32 %v496, %v520
      %v530 = vmul.f32 %v496, %v524
      %v531 = vadd.f32 %v484, %v525
      %v532 = vadd.f32 %v485, %v526
      %v533 = vadd.f32 %v486, %v527
      %v534 = vadd.f32 %v487, %v528
      %v535 = vadd.f32 %v488, %v529
      %v536 = vadd.f32 %v489, %v530
      %543 = vrot.lane.b32.xlu0 %v531, 126
      %v544 = vpop.permute.xlu0 %543
      %545 = vrot.lane.b32.xlu0 %v532, 126
      %v546 = vpop.permute.xlu0 %545
      %547 = vrot.lane.b32.xlu0 %v533, 126
      %v548 = vpop.permute.xlu0 %547
      %549 = vrot.lane.b32.xlu0 %v534, 126
      %v550 = vpop.permute.xlu0 %549
      %551 = vrot.lane.b32.xlu0 %v535, 126
      %v552 = vpop.permute.xlu0 %551
      %553 = vrot.lane.b32.xlu0 %v536, 126
      %v554 = vpop.permute.xlu0 %553
      %vm555 = vcmask 1031168
      %v556 = vsel %vm555, %v544, %v546
      %v557 = vsel %vm555, %v546, %v548
      %v558 = vsel %vm555, %v550, %v552
      %v559 = vsel %vm555, %v552, %v554
      %v564 = vadd.f32 %v416, %v556
      %v565 = vadd.f32 %v417, %v557
      %v566 = vadd.f32 %v418, %v558
      %v567 = vadd.f32 %v419, %v559
      %v568 = vld [vmem:[%s192] sm:$0x3f]
      %569 = vrot.lane.b32.xlu0 %v223, 16
      %v570 = vpop.permute.xlu0 %569
      %v571 = vrot.slane %v570, 6
      %vm572 = vcmask 130048
      %v573 = vsel %vm572, %v571, %v570
      %v575 = vmul.f32 %v568, %v573
      %v576 = vld [vmem:[%s2] sm:$0xff]
      %v577 = vld [vmem:[%s2 + $0x8] sm:$0x3]
      %579 = vset.pattern.permute.xlu0 3
      %580 = vperm.xlu0 %579, %v576
      %v581 = vpop.permute.xlu0 %580
      %584 = vset.pattern.permute.xlu0 3
      %585 = vperm.xlu0 %584, %v577
      %v586 = vpop.permute.xlu0 %585
      %v589 = vlaneseq
      %v590 = vshrl.u32 %v589, 7
      %v591 = vsub.s32 0, %v590
      %v592 = vrot.slane %v575, %v591
      %v593 = vlaneseq
      %v594 = vshrl.u32 %v593, 7
      %v595 = vsub.s32 2, %v594
      %v596 = vrot.slane %v575, %v595
      %v597 = vlaneseq
      %v598 = vshrl.u32 %v597, 7
      %v599 = vsub.s32 4, %v598
      %v600 = vrot.slane %v575, %v599
      %v604 = vlaneseq
      %v605 = vshrl.u32 %v604, 7
      %v606 = vsub.s32 0, %v605
      %v607 = vrot.slane %v592, %v606
      %v608 = vlaneseq
      %v609 = vshrl.u32 %v608, 7
      %v610 = vsub.s32 0, %v609
      %v611 = vrot.slane %v596, %v610
      %v612 = vlaneseq
      %v613 = vshrl.u32 %v612, 7
      %v614 = vsub.s32 0, %v613
      %v615 = vrot.slane %v600, %v614
      %v616 = vmul.f32 %v581, %v607
      %v617 = vmul.f32 %v581, %v611
      %v618 = vmul.f32 %v581, %v615
      %v619 = vmul.f32 %v586, %v607
      %v620 = vmul.f32 %v586, %v611
      %v621 = vmul.f32 %v586, %v615
      %622 = vset.pattern.permute.xlu0 12
      %623 = vperm.xlu0 %622, %v576
      %v624 = vpop.permute.xlu0 %623
      %626 = vset.pattern.permute.xlu0 12
      %627 = vperm.xlu0 %626, %v577
      %v628 = vpop.permute.xlu0 %627
      %v630 = vlaneseq
      %v631 = vshrl.u32 %v630, 7
      %v632 = vsub.s32 1, %v631
      %v633 = vrot.slane %v575, %v632
      %v634 = vlaneseq
      %v635 = vshrl.u32 %v634, 7
      %v636 = vsub.s32 3, %v635
      %v637 = vrot.slane %v575, %v636
      %v638 = vlaneseq
      %v639 = vshrl.u32 %v638, 7
      %v640 = vsub.s32 5, %v639
      %v641 = vrot.slane %v575, %v640
      %v645 = vlaneseq
      %v646 = vshrl.u32 %v645, 7
      %v647 = vsub.s32 1, %v646
      %v648 = vrot.slane %v633, %v647
      %v649 = vlaneseq
      %v650 = vshrl.u32 %v649, 7
      %v651 = vsub.s32 1, %v650
      %v652 = vrot.slane %v637, %v651
      %v653 = vlaneseq
      %v654 = vshrl.u32 %v653, 7
      %v655 = vsub.s32 1, %v654
      %v656 = vrot.slane %v641, %v655
      %v657 = vmul.f32 %v624, %v648
      %v658 = vmul.f32 %v624, %v652
      %v659 = vmul.f32 %v624, %v656
      %v660 = vmul.f32 %v628, %v648
      %v661 = vmul.f32 %v628, %v652
      %v662 = vmul.f32 %v628, %v656
      %v663 = vadd.f32 %v616, %v657
      %v664 = vadd.f32 %v617, %v658
      %v665 = vadd.f32 %v618, %v659
      %v666 = vadd.f32 %v619, %v660
      %v667 = vadd.f32 %v620, %v661
      %v668 = vadd.f32 %v621, %v662
      %675 = vrot.lane.b32.xlu0 %v663, 112
      %v676 = vpop.permute.xlu0 %675
      %677 = vrot.lane.b32.xlu0 %v664, 112
      %v678 = vpop.permute.xlu0 %677
      %679 = vrot.lane.b32.xlu0 %v665, 112
      %v680 = vpop.permute.xlu0 %679
      %681 = vrot.lane.b32.xlu0 %v666, 112
      %v682 = vpop.permute.xlu0 %681
      %683 = vrot.lane.b32.xlu0 %v667, 112
      %v684 = vpop.permute.xlu0 %683
      %685 = vrot.lane.b32.xlu0 %v668, 112
      %v686 = vpop.permute.xlu0 %685
      %vm687 = vcmask 916480
      %v688 = vsel %vm687, %v676, %v678
      %v689 = vsel %vm687, %v678, %v680
      %v690 = vsel %vm687, %v682, %v684
      %v691 = vsel %vm687, %v684, %v686
      %v696 = vadd.f32 %v564, %v688
      %v697 = vadd.f32 %v565, %v689
      %v698 = vadd.f32 %v566, %v690
      %v699 = vadd.f32 %v567, %v691
      %v700 = vld [vmem:[%s192] sm:$0x3f]
      %701 = vset.pattern.permute.xlu0 4
      %702 = vperm.xlu0 %701, %v576
      %v703 = vpop.permute.xlu0 %702
      %705 = vset.pattern.permute.xlu0 4
      %706 = vperm.xlu0 %705, %v577
      %v707 = vpop.permute.xlu0 %706
      %v710 = vlaneseq
      %v711 = vshrl.u32 %v710, 7
      %v712 = vsub.s32 0, %v711
      %v713 = vrot.slane %v700, %v712
      %v714 = vlaneseq
      %v715 = vshrl.u32 %v714, 7
      %v716 = vsub.s32 2, %v715
      %v717 = vrot.slane %v700, %v716
      %v718 = vlaneseq
      %v719 = vshrl.u32 %v718, 7
      %v720 = vsub.s32 4, %v719
      %v721 = vrot.slane %v700, %v720
      %v725 = vlaneseq
      %v726 = vshrl.u32 %v725, 7
      %v727 = vsub.s32 0, %v726
      %v728 = vrot.slane %v713, %v727
      %v729 = vlaneseq
      %v730 = vshrl.u32 %v729, 7
      %v731 = vsub.s32 0, %v730
      %v732 = vrot.slane %v717, %v731
      %v733 = vlaneseq
      %v734 = vshrl.u32 %v733, 7
      %v735 = vsub.s32 0, %v734
      %v736 = vrot.slane %v721, %v735
      %v737 = vmul.f32 %v703, %v728
      %v738 = vmul.f32 %v703, %v732
      %v739 = vmul.f32 %v703, %v736
      %v740 = vmul.f32 %v707, %v728
      %v741 = vmul.f32 %v707, %v732
      %v742 = vmul.f32 %v707, %v736
      %743 = vset.pattern.permute.xlu0 13
      %744 = vperm.xlu0 %743, %v576
      %v745 = vpop.permute.xlu0 %744
      %747 = vset.pattern.permute.xlu0 13
      %748 = vperm.xlu0 %747, %v577
      %v749 = vpop.permute.xlu0 %748
      %v751 = vlaneseq
      %v752 = vshrl.u32 %v751, 7
      %v753 = vsub.s32 1, %v752
      %v754 = vrot.slane %v700, %v753
      %v755 = vlaneseq
      %v756 = vshrl.u32 %v755, 7
      %v757 = vsub.s32 3, %v756
      %v758 = vrot.slane %v700, %v757
      %v759 = vlaneseq
      %v760 = vshrl.u32 %v759, 7
      %v761 = vsub.s32 5, %v760
      %v762 = vrot.slane %v700, %v761
      %v766 = vlaneseq
      %v767 = vshrl.u32 %v766, 7
      %v768 = vsub.s32 1, %v767
      %v769 = vrot.slane %v754, %v768
      %v770 = vlaneseq
      %v771 = vshrl.u32 %v770, 7
      %v772 = vsub.s32 1, %v771
      %v773 = vrot.slane %v758, %v772
      %v774 = vlaneseq
      %v775 = vshrl.u32 %v774, 7
      %v776 = vsub.s32 1, %v775
      %v777 = vrot.slane %v762, %v776
      %v778 = vmul.f32 %v745, %v769
      %v779 = vmul.f32 %v745, %v773
      %v780 = vmul.f32 %v745, %v777
      %v781 = vmul.f32 %v749, %v769
      %v782 = vmul.f32 %v749, %v773
      %v783 = vmul.f32 %v749, %v777
      %v784 = vadd.f32 %v737, %v778
      %v785 = vadd.f32 %v738, %v779
      %v786 = vadd.f32 %v739, %v780
      %v787 = vadd.f32 %v740, %v781
      %v788 = vadd.f32 %v741, %v782
      %v789 = vadd.f32 %v742, %v783
      %796 = vrot.lane.b32.xlu0 %v784, 111
      %v797 = vpop.permute.xlu0 %796
      %798 = vrot.lane.b32.xlu0 %v785, 111
      %v799 = vpop.permute.xlu0 %798
      %800 = vrot.lane.b32.xlu0 %v786, 111
      %v801 = vpop.permute.xlu0 %800
      %802 = vrot.lane.b32.xlu0 %v787, 111
      %v803 = vpop.permute.xlu0 %802
      %804 = vrot.lane.b32.xlu0 %v788, 111
      %v805 = vpop.permute.xlu0 %804
      %806 = vrot.lane.b32.xlu0 %v789, 111
      %v807 = vpop.permute.xlu0 %806
      %vm808 = vcmask 908288
      %v809 = vsel %vm808, %v797, %v799
      %v810 = vsel %vm808, %v799, %v801
      %v811 = vsel %vm808, %v803, %v805
      %v812 = vsel %vm808, %v805, %v807
      %v817 = vadd.f32 %v696, %v809
      %v818 = vadd.f32 %v697, %v810
      %v819 = vadd.f32 %v698, %v811
      %v820 = vadd.f32 %v699, %v812
      %821 = vrot.lane.b32.xlu0 %v436, 18
      %v822 = vpop.permute.xlu0 %821
      %v823 = vrot.slane %v822, 6
      %vm824 = vcmask 146432
      %v825 = vsel %vm824, %v823, %v822
      %v827 = vmul.f32 %v700, %v825
      %v828 = vld [vmem:[%s2] sm:$0xff]
      %v829 = vld [vmem:[%s2 + $0x8] sm:$0x3]
      %831 = vset.pattern.permute.xlu0 5
      %832 = vperm.xlu0 %831, %v828
      %v833 = vpop.permute.xlu0 %832
      %836 = vset.pattern.permute.xlu0 5
      %837 = vperm.xlu0 %836, %v829
      %v838 = vpop.permute.xlu0 %837
      %v841 = vlaneseq
      %v842 = vshrl.u32 %v841, 7
      %v843 = vsub.s32 0, %v842
      %v844 = vrot.slane %v827, %v843
      %v845 = vlaneseq
      %v846 = vshrl.u32 %v845, 7
      %v847 = vsub.s32 2, %v846
      %v848 = vrot.slane %v827, %v847
      %v849 = vlaneseq
      %v850 = vshrl.u32 %v849, 7
      %v851 = vsub.s32 4, %v850
      %v852 = vrot.slane %v827, %v851
      %v856 = vlaneseq
      %v857 = vshrl.u32 %v856, 7
      %v858 = vsub.s32 0, %v857
      %v859 = vrot.slane %v844, %v858
      %v860 = vlaneseq
      %v861 = vshrl.u32 %v860, 7
      %v862 = vsub.s32 0, %v861
      %v863 = vrot.slane %v848, %v862
      %v864 = vlaneseq
      %v865 = vshrl.u32 %v864, 7
      %v866 = vsub.s32 0, %v865
      %v867 = vrot.slane %v852, %v866
      %v868 = vmul.f32 %v833, %v859
      %v869 = vmul.f32 %v833, %v863
      %v870 = vmul.f32 %v833, %v867
      %v871 = vmul.f32 %v838, %v859
      %v872 = vmul.f32 %v838, %v863
      %v873 = vmul.f32 %v838, %v867
      %874 = vset.pattern.permute.xlu0 14
      %875 = vperm.xlu0 %874, %v828
      %v876 = vpop.permute.xlu0 %875
      %878 = vset.pattern.permute.xlu0 14
      %879 = vperm.xlu0 %878, %v829
      %v880 = vpop.permute.xlu0 %879
      %v882 = vlaneseq
      %v883 = vshrl.u32 %v882, 7
      %v884 = vsub.s32 1, %v883
      %v885 = vrot.slane %v827, %v884
      %v886 = vlaneseq
      %v887 = vshrl.u32 %v886, 7
      %v888 = vsub.s32 3, %v887
      %v889 = vrot.slane %v827, %v888
      %v890 = vlaneseq
      %v891 = vshrl.u32 %v890, 7
      %v892 = vsub.s32 5, %v891
      %v893 = vrot.slane %v827, %v892
      %v897 = vlaneseq
      %v898 = vshrl.u32 %v897, 7
      %v899 = vsub.s32 1, %v898
      %v900 = vrot.slane %v885, %v899
      %v901 = vlaneseq
      %v902 = vshrl.u32 %v901, 7
      %v903 = vsub.s32 1, %v902
      %v904 = vrot.slane %v889, %v903
      %v905 = vlaneseq
      %v906 = vshrl.u32 %v905, 7
      %v907 = vsub.s32 1, %v906
      %v908 = vrot.slane %v893, %v907
      %v909 = vmul.f32 %v876, %v900
      %v910 = vmul.f32 %v876, %v904
      %v911 = vmul.f32 %v876, %v908
      %v912 = vmul.f32 %v880, %v900
      %v913 = vmul.f32 %v880, %v904
      %v914 = vmul.f32 %v880, %v908
      %v915 = vadd.f32 %v868, %v909
      %v916 = vadd.f32 %v869, %v910
      %v917 = vadd.f32 %v870, %v911
      %v918 = vadd.f32 %v871, %v912
      %v919 = vadd.f32 %v872, %v913
      %v920 = vadd.f32 %v873, %v914
      %927 = vrot.lane.b32.xlu0 %v915, 110
      %v928 = vpop.permute.xlu0 %927
      %929 = vrot.lane.b32.xlu0 %v916, 110
      %v930 = vpop.permute.xlu0 %929
      %931 = vrot.lane.b32.xlu0 %v917, 110
      %v932 = vpop.permute.xlu0 %931
      %933 = vrot.lane.b32.xlu0 %v918, 110
      %v934 = vpop.permute.xlu0 %933
      %935 = vrot.lane.b32.xlu0 %v919, 110
      %v936 = vpop.permute.xlu0 %935
      %937 = vrot.lane.b32.xlu0 %v920, 110
      %v938 = vpop.permute.xlu0 %937
      %vm939 = vcmask 900096
      %v940 = vsel %vm939, %v928, %v930
      %v941 = vsel %vm939, %v930, %v932
      %v942 = vsel %vm939, %v934, %v936
      %v943 = vsel %vm939, %v936, %v938
      %v948 = vadd.f32 %v817, %v940
      %v949 = vadd.f32 %v818, %v941
      %v950 = vadd.f32 %v819, %v942
      %v951 = vadd.f32 %v820, %v943
      %v952 = vld [vmem:[%s192] sm:$0x3f]
      %953 = vrot.lane.b32.xlu0 %v223, 32
      %v954 = vpop.permute.xlu0 %953
      %v955 = vrot.slane %v954, 6
      %vm956 = vcmask 261120
      %v957 = vsel %vm956, %v955, %v954
      %v959 = vmul.f32 %v952, %v957
      %v960 = vld [vmem:[%s2] sm:$0xff]
      %v961 = vld [vmem:[%s2 + $0x8] sm:$0x3]
      %963 = vset.pattern.permute.xlu0 6
      %964 = vperm.xlu0 %963, %v960
      %v965 = vpop.permute.xlu0 %964
      %968 = vset.pattern.permute.xlu0 6
      %969 = vperm.xlu0 %968, %v961
      %v970 = vpop.permute.xlu0 %969
      %v973 = vlaneseq
      %v974 = vshrl.u32 %v973, 7
      %v975 = vsub.s32 0, %v974
      %v976 = vrot.slane %v959, %v975
      %v977 = vlaneseq
      %v978 = vshrl.u32 %v977, 7
      %v979 = vsub.s32 2, %v978
      %v980 = vrot.slane %v959, %v979
      %v981 = vlaneseq
      %v982 = vshrl.u32 %v981, 7
      %v983 = vsub.s32 4, %v982
      %v984 = vrot.slane %v959, %v983
      %v988 = vlaneseq
      %v989 = vshrl.u32 %v988, 7
      %v990 = vsub.s32 0, %v989
      %v991 = vrot.slane %v976, %v990
      %v992 = vlaneseq
      %v993 = vshrl.u32 %v992, 7
      %v994 = vsub.s32 0, %v993
      %v995 = vrot.slane %v980, %v994
      %v996 = vlaneseq
      %v997 = vshrl.u32 %v996, 7
      %v998 = vsub.s32 0, %v997
      %v999 = vrot.slane %v984, %v998
      %v1000 = vmul.f32 %v965, %v991
      %v1001 = vmul.f32 %v965, %v995
      %v1002 = vmul.f32 %v965, %v999
      %v1003 = vmul.f32 %v970, %v991
      %v1004 = vmul.f32 %v970, %v995
      %v1005 = vmul.f32 %v970, %v999
      %1006 = vset.pattern.permute.xlu0 15
      %1007 = vperm.xlu0 %1006, %v960
      %v1008 = vpop.permute.xlu0 %1007
      %1010 = vset.pattern.permute.xlu0 15
      %1011 = vperm.xlu0 %1010, %v961
      %v1012 = vpop.permute.xlu0 %1011
      %v1014 = vlaneseq
      %v1015 = vshrl.u32 %v1014, 7
      %v1016 = vsub.s32 1, %v1015
      %v1017 = vrot.slane %v959, %v1016
      %v1018 = vlaneseq
      %v1019 = vshrl.u32 %v1018, 7
      %v1020 = vsub.s32 3, %v1019
      %v1021 = vrot.slane %v959, %v1020
      %v1022 = vlaneseq
      %v1023 = vshrl.u32 %v1022, 7
      %v1024 = vsub.s32 5, %v1023
      %v1025 = vrot.slane %v959, %v1024
      %v1029 = vlaneseq
      %v1030 = vshrl.u32 %v1029, 7
      %v1031 = vsub.s32 1, %v1030
      %v1032 = vrot.slane %v1017, %v1031
      %v1033 = vlaneseq
      %v1034 = vshrl.u32 %v1033, 7
      %v1035 = vsub.s32 1, %v1034
      %v1036 = vrot.slane %v1021, %v1035
      %v1037 = vlaneseq
      %v1038 = vshrl.u32 %v1037, 7
      %v1039 = vsub.s32 1, %v1038
      %v1040 = vrot.slane %v1025, %v1039
      %v1041 = vmul.f32 %v1008, %v1032
      %v1042 = vmul.f32 %v1008, %v1036
      %v1043 = vmul.f32 %v1008, %v1040
      %v1044 = vmul.f32 %v1012, %v1032
      %v1045 = vmul.f32 %v1012, %v1036
      %v1046 = vmul.f32 %v1012, %v1040
      %v1047 = vadd.f32 %v1000, %v1041
      %v1048 = vadd.f32 %v1001, %v1042
      %v1049 = vadd.f32 %v1002, %v1043
      %v1050 = vadd.f32 %v1003, %v1044
      %v1051 = vadd.f32 %v1004, %v1045
      %v1052 = vadd.f32 %v1005, %v1046
      %1059 = vrot.lane.b32.xlu0 %v1047, 96
      %v1060 = vpop.permute.xlu0 %1059
      %1061 = vrot.lane.b32.xlu0 %v1048, 96
      %v1062 = vpop.permute.xlu0 %1061
      %1063 = vrot.lane.b32.xlu0 %v1049, 96
      %v1064 = vpop.permute.xlu0 %1063
      %1065 = vrot.lane.b32.xlu0 %v1050, 96
      %v1066 = vpop.permute.xlu0 %1065
      %1067 = vrot.lane.b32.xlu0 %v1051, 96
      %v1068 = vpop.permute.xlu0 %1067
      %1069 = vrot.lane.b32.xlu0 %v1052, 96
      %v1070 = vpop.permute.xlu0 %1069
      %vm1071 = vcmask 785408
      %v1072 = vsel %vm1071, %v1060, %v1062
      %v1073 = vsel %vm1071, %v1062, %v1064
      %v1074 = vsel %vm1071, %v1066, %v1068
      %v1075 = vsel %vm1071, %v1068, %v1070
      %v1080 = vadd.f32 %v948, %v1072
      %v1081 = vadd.f32 %v949, %v1073
      %v1082 = vadd.f32 %v950, %v1074
      %v1083 = vadd.f32 %v951, %v1075
      %v1084 = vld [vmem:[%s192] sm:$0x3f]
      %1085 = vset.pattern.permute.xlu0 7
      %1086 = vperm.xlu0 %1085, %v960
      %v1087 = vpop.permute.xlu0 %1086
      %1089 = vset.pattern.permute.xlu0 7
      %1090 = vperm.xlu0 %1089, %v961
      %v1091 = vpop.permute.xlu0 %1090
      %v1094 = vlaneseq
      %v1095 = vshrl.u32 %v1094, 7
      %v1096 = vsub.s32 0, %v1095
      %v1097 = vrot.slane %v1084, %v1096
      %v1098 = vlaneseq
      %v1099 = vshrl.u32 %v1098, 7
      %v1100 = vsub.s32 2, %v1099
      %v1101 = vrot.slane %v1084, %v1100
      %v1102 = vlaneseq
      %v1103 = vshrl.u32 %v1102, 7
      %v1104 = vsub.s32 4, %v1103
      %v1105 = vrot.slane %v1084, %v1104
      %v1109 = vlaneseq
      %v1110 = vshrl.u32 %v1109, 7
      %v1111 = vsub.s32 0, %v1110
      %v1112 = vrot.slane %v1097, %v1111
      %v1113 = vlaneseq
      %v1114 = vshrl.u32 %v1113, 7
      %v1115 = vsub.s32 0, %v1114
      %v1116 = vrot.slane %v1101, %v1115
      %v1117 = vlaneseq
      %v1118 = vshrl.u32 %v1117, 7
      %v1119 = vsub.s32 0, %v1118
      %v1120 = vrot.slane %v1105, %v1119
      %v1121 = vmul.f32 %v1087, %v1112
      %v1122 = vmul.f32 %v1087, %v1116
      %v1123 = vmul.f32 %v1087, %v1120
      %v1124 = vmul.f32 %v1091, %v1112
      %v1125 = vmul.f32 %v1091, %v1116
      %v1126 = vmul.f32 %v1091, %v1120
      %1127 = vset.pattern.permute.xlu0 16
      %1128 = vperm.xlu0 %1127, %v960
      %v1129 = vpop.permute.xlu0 %1128
      %1131 = vset.pattern.permute.xlu0 16
      %1132 = vperm.xlu0 %1131, %v961
      %v1133 = vpop.permute.xlu0 %1132
      %v1135 = vlaneseq
      %v1136 = vshrl.u32 %v1135, 7
      %v1137 = vsub.s32 1, %v1136
      %v1138 = vrot.slane %v1084, %v1137
      %v1139 = vlaneseq
      %v1140 = vshrl.u32 %v1139, 7
      %v1141 = vsub.s32 3, %v1140
      %v1142 = vrot.slane %v1084, %v1141
      %v1143 = vlaneseq
      %v1144 = vshrl.u32 %v1143, 7
      %v1145 = vsub.s32 5, %v1144
      %v1146 = vrot.slane %v1084, %v1145
      %v1150 = vlaneseq
      %v1151 = vshrl.u32 %v1150, 7
      %v1152 = vsub.s32 1, %v1151
      %v1153 = vrot.slane %v1138, %v1152
      %v1154 = vlaneseq
      %v1155 = vshrl.u32 %v1154, 7
      %v1156 = vsub.s32 1, %v1155
      %v1157 = vrot.slane %v1142, %v1156
      %v1158 = vlaneseq
      %v1159 = vshrl.u32 %v1158, 7
      %v1160 = vsub.s32 1, %v1159
      %v1161 = vrot.slane %v1146, %v1160
      %v1162 = vmul.f32 %v1129, %v1153
      %v1163 = vmul.f32 %v1129, %v1157
      %v1164 = vmul.f32 %v1129, %v1161
      %v1165 = vmul.f32 %v1133, %v1153
      %v1166 = vmul.f32 %v1133, %v1157
      %v1167 = vmul.f32 %v1133, %v1161
      %v1168 = vadd.f32 %v1121, %v1162
      %v1169 = vadd.f32 %v1122, %v1163
      %v1170 = vadd.f32 %v1123, %v1164
      %v1171 = vadd.f32 %v1124, %v1165
      %v1172 = vadd.f32 %v1125, %v1166
      %v1173 = vadd.f32 %v1126, %v1167
      %1180 = vrot.lane.b32.xlu0 %v1168, 95
      %v1181 = vpop.permute.xlu0 %1180
      %1182 = vrot.lane.b32.xlu0 %v1169, 95
      %v1183 = vpop.permute.xlu0 %1182
      %1184 = vrot.lane.b32.xlu0 %v1170, 95
      %v1185 = vpop.permute.xlu0 %1184
      %1186 = vrot.lane.b32.xlu0 %v1171, 95
      %v1187 = vpop.permute.xlu0 %1186
      %1188 = vrot.lane.b32.xlu0 %v1172, 95
      %v1189 = vpop.permute.xlu0 %1188
      %1190 = vrot.lane.b32.xlu0 %v1173, 95
      %v1191 = vpop.permute.xlu0 %1190
      %vm1192 = vcmask 777216
      %v1193 = vsel %vm1192, %v1181, %v1183
      %v1194 = vsel %vm1192, %v1183, %v1185
      %v1195 = vsel %vm1192, %v1187, %v1189
      %v1196 = vsel %vm1192, %v1189, %v1191
      %v1201 = vadd.f32 %v1080, %v1193
      %v1202 = vadd.f32 %v1081, %v1194
      %v1203 = vadd.f32 %v1082, %v1195
      %v1204 = vadd.f32 %v1083, %v1196
      %1205 = vrot.lane.b32.xlu0 %v436, 34
      %v1206 = vpop.permute.xlu0 %1205
      %v1207 = vrot.slane %v1206, 6
      %vm1208 = vcmask 277504
      %v1209 = vsel %vm1208, %v1207, %v1206
      %v1211 = vmul.f32 %v1084, %v1209
      %v1212 = vld [vmem:[%s2] sm:$0xff]
      %v1213 = vld [vmem:[%s2 + $0x8] sm:$0x3]
      %1215 = vset.pattern.permute.xlu0 8
      %1216 = vperm.xlu0 %1215, %v1212
      %v1217 = vpop.permute.xlu0 %1216
      %1220 = vset.pattern.permute.xlu0 8
      %1221 = vperm.xlu0 %1220, %v1213
      %v1222 = vpop.permute.xlu0 %1221
      %v1225 = vlaneseq
      %v1226 = vshrl.u32 %v1225, 7
      %v1227 = vsub.s32 0, %v1226
      %v1228 = vrot.slane %v1211, %v1227
      %v1229 = vlaneseq
      %v1230 = vshrl.u32 %v1229, 7
      %v1231 = vsub.s32 2, %v1230
      %v1232 = vrot.slane %v1211, %v1231
      %v1233 = vlaneseq
      %v1234 = vshrl.u32 %v1233, 7
      %v1235 = vsub.s32 4, %v1234
      %v1236 = vrot.slane %v1211, %v1235
      %v1240 = vlaneseq
      %v1241 = vshrl.u32 %v1240, 7
      %v1242 = vsub.s32 0, %v1241
      %v1243 = vrot.slane %v1228, %v1242
      %v1244 = vlaneseq
      %v1245 = vshrl.u32 %v1244, 7
      %v1246 = vsub.s32 0, %v1245
      %v1247 = vrot.slane %v1232, %v1246
      %v1248 = vlaneseq
      %v1249 = vshrl.u32 %v1248, 7
      %v1250 = vsub.s32 0, %v1249
      %v1251 = vrot.slane %v1236, %v1250
      %v1252 = vmul.f32 %v1217, %v1243
      %v1253 = vmul.f32 %v1217, %v1247
      %v1254 = vmul.f32 %v1217, %v1251
      %v1255 = vmul.f32 %v1222, %v1243
      %v1256 = vmul.f32 %v1222, %v1247
      %v1257 = vmul.f32 %v1222, %v1251
      %1258 = vset.pattern.permute.xlu0 17
      %1259 = vperm.xlu0 %1258, %v1212
      %v1260 = vpop.permute.xlu0 %1259
      %1262 = vset.pattern.permute.xlu0 17
      %1263 = vperm.xlu0 %1262, %v1213
      %v1264 = vpop.permute.xlu0 %1263
      %v1266 = vlaneseq
      %v1267 = vshrl.u32 %v1266, 7
      %v1268 = vsub.s32 1, %v1267
      %v1269 = vrot.slane %v1211, %v1268
      %v1270 = vlaneseq
      %v1271 = vshrl.u32 %v1270, 7
      %v1272 = vsub.s32 3, %v1271
      %v1273 = vrot.slane %v1211, %v1272
      %v1274 = vlaneseq
      %v1275 = vshrl.u32 %v1274, 7
      %v1276 = vsub.s32 5, %v1275
      %v1277 = vrot.slane %v1211, %v1276
      %v1281 = vlaneseq
      %v1282 = vshrl.u32 %v1281, 7
      %v1283 = vsub.s32 1, %v1282
      %v1284 = vrot.slane %v1269, %v1283
      %v1285 = vlaneseq
      %v1286 = vshrl.u32 %v1285, 7
      %v1287 = vsub.s32 1, %v1286
      %v1288 = vrot.slane %v1273, %v1287
      %v1289 = vlaneseq
      %v1290 = vshrl.u32 %v1289, 7
      %v1291 = vsub.s32 1, %v1290
      %v1292 = vrot.slane %v1277, %v1291
      %v1293 = vmul.f32 %v1260, %v1284
      %v1294 = vmul.f32 %v1260, %v1288
      %v1295 = vmul.f32 %v1260, %v1292
      %v1296 = vmul.f32 %v1264, %v1284
      %v1297 = vmul.f32 %v1264, %v1288
      %v1298 = vmul.f32 %v1264, %v1292
      %v1299 = vadd.f32 %v1252, %v1293
      %v1300 = vadd.f32 %v1253, %v1294
      %v1301 = vadd.f32 %v1254, %v1295
      %v1302 = vadd.f32 %v1255, %v1296
      %v1303 = vadd.f32 %v1256, %v1297
      %v1304 = vadd.f32 %v1257, %v1298
      %1311 = vrot.lane.b32.xlu0 %v1299, 94
      %v1312 = vpop.permute.xlu0 %1311
      %1313 = vrot.lane.b32.xlu0 %v1300, 94
      %v1314 = vpop.permute.xlu0 %1313
      %1315 = vrot.lane.b32.xlu0 %v1301, 94
      %v1316 = vpop.permute.xlu0 %1315
      %1317 = vrot.lane.b32.xlu0 %v1302, 94
      %v1318 = vpop.permute.xlu0 %1317
      %1319 = vrot.lane.b32.xlu0 %v1303, 94
      %v1320 = vpop.permute.xlu0 %1319
      %1321 = vrot.lane.b32.xlu0 %v1304, 94
      %v1322 = vpop.permute.xlu0 %1321
      %vm1323 = vcmask 769024
      %v1324 = vsel %vm1323, %v1312, %v1314
      %v1325 = vsel %vm1323, %v1314, %v1316
      %v1326 = vsel %vm1323, %v1318, %v1320
      %v1327 = vsel %vm1323, %v1320, %v1322
      %v1332 = vadd.f32 %v1201, %v1324
      %v1333 = vadd.f32 %v1202, %v1325
      %v1334 = vadd.f32 %v1203, %v1326
      %v1335 = vadd.f32 %v1204, %v1327
      %v1336 = vld [vmem:[%s3] sm:$0xff]
      %v1337 = vld [vmem:[%s3 + $0x8] sm:$0x3]
      %1339 = vset.pattern.permute.xlu0 0
      %1340 = vperm.xlu0 %1339, %v1336
      %v1341 = vpop.permute.xlu0 %1340
      %1344 = vset.pattern.permute.xlu0 0
      %1345 = vperm.xlu0 %1344, %v1337
      %v1346 = vpop.permute.xlu0 %1345
      %v1348 = vadd.f32 %v1332, %v1341
      %v1349 = vadd.f32 %v1333, %v1341
      %v1350 = vadd.f32 %v1334, %v1346
      %v1351 = vadd.f32 %v1335, %v1346
      %1352 = vst [vmem:[%s197] sm:$0xff] %v1348
      %1353 = vst [vmem:[%s197 + $0x8] sm:$0xff] %v1349
      %1354 = vst [vmem:[%s197 + $0x10] sm:$0x3] %v1350
      %1355 = vst [vmem:[%s197 + $0x18] sm:$0x3] %v1351
      %p1356 = scmp.lt.s32.totalorder %s15, 1
      %s1357 = scalar_select %p1356, %s15, 1
      %s1358 = smul.addr %s1357, 4
      %s1359 = smul.addr %s1358, 8
      %s1360 = scalar_lea.vmem %s4, %s1359
      // Predicated region
      $region37: #{_lambda_.4} parent=35 // pred_check
        %p1361 = pneg %p122
      $region38: #{_lambda_.4} parent=35 // pred_check_branch
        %1363 = sbr.rel (%p1361) target = $region40
      $region39: #{_lambda_.4} parent=35 // pred_region
        _
      $region40: #{_lambda_.4} parent=35 // pred_fallthru
        _
    $region36: #{_lambda_.4} parent=5 // pred_fallthru
      _
    %p1364 = scmp.le.s32.totalorder 2, %s10
    // Predicated region
    $region41: #{_lambda_.4} parent=5 // pred_check
      %p1365 = pneg %p1364
    $region42: #{_lambda_.4} parent=5 // pred_check_branch
      %1367 = sbr.rel (%p1365) target = $region44
    $region43: #{_lambda_.4} parent=5 // pred_region
      %s1368 = ssub.s32 %s10, 2
      // Predicated region
      $region45: #{_lambda_.4} parent=43 // pred_check
        %p1369 = pneg %p128
      $region46: #{_lambda_.4} parent=43 // pred_check_branch
        %1371 = sbr.rel (%p1369) target = $region48
      $region47: #{_lambda_.4} parent=43 // pred_region
        %p1372 = scmp.lt.s32.totalorder %s16, 1
        %s1373 = scalar_select %p1372, %s16, 1
        %s1374 = smul.addr %s1373, 4
        %s1375 = smul.addr %s1374, 8
        %s1376 = scalar_lea.vmem %s4, %s1375
      $region48: #{_lambda_.4} parent=43 // pred_fallthru
        _
    $region44: #{_lambda_.4} parent=5 // pred_fallthru
      _
  $region6: #{_lambda_.4} parent=0 // loop_footer
    %s14 = sadd.s32 1, %s10
  $region7: #{_lambda_.4} parent=0 // loop_footer_branch
    %9 = sbr.rel target = $region3
  $region8: #{_lambda_.4} parent=0 // loop_exit
    _

// kernel: _lambda_.5
$region0: #{_lambda_.5}
  #allocation0 [shape = 'u32[]', space=smem, size = 0x4, offset = 0x4, fixed_abs, tag = 'smem constant byte address 0x4 - core index']
  #allocation1 [shape = 'u32[144,128]{1,0:T(1,128)}', space=vmem, size = 0x12000, scoped, tag = 'internal scratch']
  %s0 = inlined_call_operand.vmem [shape: f32[2,2,16,16], index: 0, kind: input, shape index: {}]
  %s1 = inlined_call_operand.vmem [shape: f32[2,10,256], index: 1, kind: input, shape index: {}]
  %s2 = inlined_call_operand.vmem [shape: f32[2,4,256], index: 2, kind: input, shape index: {}]
  %s3 = inlined_call_operand.vmem [shape: s32[2,256], index: 3, kind: input, shape index: {}]
  %s4 = inlined_call_operand.vmem [shape: f32[4,10], index: 4, kind: input, shape index: {}]
  %s5 = inlined_call_operand.vmem [shape: f32[4,1], index: 5, kind: input, shape index: {}]
  %s6 = inlined_call_operand.vmem [shape: f32[4,1], index: 6, kind: input, shape index: {}]
  %s7 = inlined_call_operand.vmem [shape: f32[2,4,256], index: 7, kind: output, shape index: {}]
  %s8 = sld [smem:[#allocation0]]
  $region61: #{_lambda_.5} parent=0
    _
  %s10 = ssub.s32 1, %s8
  %s11 = scalar_select 0, %s10, %s8
  loop: start=0, step=1, limit=4
  $region2: #{_lambda_.5} parent=0 // loop_pre_header
    _
  $region3: #{_lambda_.5} parent=0 // loop_header
    %s13 = sphi 0, %s17
    %p14 = scmp.ge.s32.totalorder %s13, 4
    %s20 = sphi 0, %s32
    %s21 = sphi 0, %s28
    %s22 = sphi 0, %s20
    %s23 = sphi 0, %s21
    %s24 = sphi 0, %s22
    %s25 = sphi 0, %s23
    %s35 = sphi 0, %s37
    %s38 = sphi 0, %s35
    %s39 = sphi 0, %s38
    %s55 = sphi 0, %s39
    %s63 = sphi 0, %s65
    %s66 = sphi 0, %s63
    %s67 = sphi 0, %s66
    %s83 = sphi 0, %s67
    %s91 = sphi 0, %s93
    %s94 = sphi 0, %s91
    %s95 = sphi 0, %s94
    %s111 = sphi 0, %s95
    %s117 = sphi 0, %s119
    %s120 = sphi 0, %s117
    %s121 = sphi 0, %s120
    %s137 = sphi 0, %s121
    %s141 = sphi 0, %s141
    %s143 = sphi 0, %s141
    %s144 = sphi 0, %s143
    %s158 = sphi 0, %s144
    %s162 = sphi 0, %s162
    %s164 = sphi 0, %s162
    %s165 = sphi 0, %s164
    %s179 = sphi 0, %s165
    %s183 = sphi 0, %s183
    %s185 = sphi 0, %s183
    %s186 = sphi 0, %s185
    %s200 = sphi 0, %s186
    %s208 = sphi 0, %s210
    %s211 = sphi 0, %s208
    %s212 = sphi 0, %s211
    %s228 = sphi 0, %s212
  $region4: #{_lambda_.5} parent=0 // loop_header_branch
    %16 = sbr.rel (%p14) target = $region8
  $region5: #{_lambda_.5} parent=0 // loop_body
    %s18 = ssub.s32 %s13, 1
    %s19 = ssub.s32 %s13, 2
    %s26 = sadd.s32 1, %s21
    %p27 = scmp.ge.s32.totalorder %s26, 1
    %s28 = scalar_select %p27, 0, %s26
    %s29 = sadd.s32 1, %s20
    %s30 = scalar_select %p27, %s29, %s20
    %p31 = scmp.ge.s32.totalorder %s30, 2
    %s32 = scalar_select %p31, 0, %s30
    %s33 = ssub.s32 %s20, %s32
    %p34 = scmp.eq.s32.totalorder %s33, 0
    %s36 = sadd.s32 %s35, 1
    %s37 = scalar_select %p34, %s35, %s36
    %p40 = pneg %p34
    %p41 = scmp.eq.s32.totalorder %s13, 1
    %p42 = por %p40, %p41
    %p43 = scmp.ne.s32.totalorder %s35, %s38
    %p44 = scmp.eq.s32.totalorder %s13, 0
    %p45 = por %p43, %p44
    %p46 = scmp.ne.s32.totalorder %s35, %s38
    %p47 = scmp.eq.s32.totalorder %s18, 1
    %p48 = por %p46, %p47
    %p49 = scmp.ne.s32.totalorder %s38, %s39
    %p50 = scmp.eq.s32.totalorder %s18, 0
    %p51 = por %p49, %p50
    %p52 = scmp.ne.s32.totalorder %s38, %s39
    %p53 = scmp.eq.s32.totalorder %s19, 1
    %p54 = por %p52, %p53
    %p56 = scmp.ne.s32.totalorder %s39, %s55
    %p57 = scmp.eq.s32.totalorder %s19, 0
    %p58 = por %p56, %p57
    %s59 = ssub.s32 %s20, %s32
    %s60 = ssub.s32 %s21, %s28
    %s61 = sor.u32 %s59, %s60
    %p62 = scmp.eq.s32.totalorder %s61, 0
    %s64 = sadd.s32 %s63, 1
    %s65 = scalar_select %p62, %s63, %s64
    %p68 = pneg %p62
    %p69 = scmp.eq.s32.totalorder %s13, 1
    %p70 = por %p68, %p69
    %p71 = scmp.ne.s32.totalorder %s63, %s66
    %p72 = scmp.eq.s32.totalorder %s13, 0
    %p73 = por %p71, %p72
    %p74 = scmp.ne.s32.totalorder %s63, %s66
    %p75 = scmp.eq.s32.totalorder %s18, 1
    %p76 = por %p74, %p75
    %p77 = scmp.ne.s32.totalorder %s66, %s67
    %p78 = scmp.eq.s32.totalorder %s18, 0
    %p79 = por %p77, %p78
    %p80 = scmp.ne.s32.totalorder %s66, %s67
    %p81 = scmp.eq.s32.totalorder %s19, 1
    %p82 = por %p80, %p81
    %p84 = scmp.ne.s32.totalorder %s67, %s83
    %p85 = scmp.eq.s32.totalorder %s19, 0
    %p86 = por %p84, %p85
    %s87 = ssub.s32 %s20, %s32
    %s88 = ssub.s32 %s21, %s28
    %s89 = sor.u32 %s87, %s88
    %p90 = scmp.eq.s32.totalorder %s89, 0
    %s92 = sadd.s32 %s91, 1
    %s93 = scalar_select %p90, %s91, %s92
    %p96 = pneg %p90
    %p97 = scmp.eq.s32.totalorder %s13, 1
    %p98 = por %p96, %p97
    %p99 = scmp.ne.s32.totalorder %s91, %s94
    %p100 = scmp.eq.s32.totalorder %s13, 0
    %p101 = por %p99, %p100
    %p102 = scmp.ne.s32.totalorder %s91, %s94
    %p103 = scmp.eq.s32.totalorder %s18, 1
    %p104 = por %p102, %p103
    %p105 = scmp.ne.s32.totalorder %s94, %s95
    %p106 = scmp.eq.s32.totalorder %s18, 0
    %p107 = por %p105, %p106
    %p108 = scmp.ne.s32.totalorder %s94, %s95
    %p109 = scmp.eq.s32.totalorder %s19, 1
    %p110 = por %p108, %p109
    %p112 = scmp.ne.s32.totalorder %s95, %s111
    %p113 = scmp.eq.s32.totalorder %s19, 0
    %p114 = por %p112, %p113
    %s115 = ssub.s32 %s21, %s28
    %p116 = scmp.eq.s32.totalorder %s115, 0
    %s118 = sadd.s32 %s117, 1
    %s119 = scalar_select %p116, %s117, %s118
    %p122 = pneg %p116
    %p123 = scmp.eq.s32.totalorder %s13, 1
    %p124 = por %p122, %p123
    %p125 = scmp.ne.s32.totalorder %s117, %s120
    %p126 = scmp.eq.s32.totalorder %s13, 0
    %p127 = por %p125, %p126
    %p128 = scmp.ne.s32.totalorder %s117, %s120
    %p129 = scmp.eq.s32.totalorder %s18, 1
    %p130 = por %p128, %p129
    %p131 = scmp.ne.s32.totalorder %s120, %s121
    %p132 = scmp.eq.s32.totalorder %s18, 0
    %p133 = por %p131, %p132
    %p134 = scmp.ne.s32.totalorder %s120, %s121
    %p135 = scmp.eq.s32.totalorder %s19, 1
    %p136 = por %p134, %p135
    %p138 = scmp.ne.s32.totalorder %s121, %s137
    %p139 = scmp.eq.s32.totalorder %s19, 0
    %p140 = por %p138, %p139
    %s142 = sadd.s32 %s141, 1
    %p145 = scmp.eq.s32.totalorder %s13, 1
    %p146 = scmp.ne.s32.totalorder %s141, %s143
    %p147 = scmp.eq.s32.totalorder %s13, 0
    %p148 = por %p146, %p147
    %p149 = scmp.ne.s32.totalorder %s141, %s143
    %p150 = scmp.eq.s32.totalorder %s18, 1
    %p151 = por %p149, %p150
    %p152 = scmp.ne.s32.totalorder %s143, %s144
    %p153 = scmp.eq.s32.totalorder %s18, 0
    %p154 = por %p152, %p153
    %p155 = scmp.ne.s32.totalorder %s143, %s144
    %p156 = scmp.eq.s32.totalorder %s19, 1
    %p157 = por %p155, %p156
    %p159 = scmp.ne.s32.totalorder %s144, %s158
    %p160 = scmp.eq.s32.totalorder %s19, 0
    %p161 = por %p159, %p160
    %s163 = sadd.s32 %s162, 1
    %p166 = scmp.eq.s32.totalorder %s13, 1
    %p167 = scmp.ne.s32.totalorder %s162, %s164
    %p168 = scmp.eq.s32.totalorder %s13, 0
    %p169 = por %p167, %p168
    %p170 = scmp.ne.s32.totalorder %s162, %s164
    %p171 = scmp.eq.s32.totalorder %s18, 1
    %p172 = por %p170, %p171
    %p173 = scmp.ne.s32.totalorder %s164, %s165
    %p174 = scmp.eq.s32.totalorder %s18, 0
    %p175 = por %p173, %p174
    %p176 = scmp.ne.s32.totalorder %s164, %s165
    %p177 = scmp.eq.s32.totalorder %s19, 1
    %p178 = por %p176, %p177
    %p180 = scmp.ne.s32.totalorder %s165, %s179
    %p181 = scmp.eq.s32.totalorder %s19, 0
    %p182 = por %p180, %p181
    %s184 = sadd.s32 %s183, 1
    %p187 = scmp.eq.s32.totalorder %s13, 1
    %p188 = scmp.ne.s32.totalorder %s183, %s185
    %p189 = scmp.eq.s32.totalorder %s13, 0
    %p190 = por %p188, %p189
    %p191 = scmp.ne.s32.totalorder %s183, %s185
    %p192 = scmp.eq.s32.totalorder %s18, 1
    %p193 = por %p191, %p192
    %p194 = scmp.ne.s32.totalorder %s185, %s186
    %p195 = scmp.eq.s32.totalorder %s18, 0
    %p196 = por %p194, %p195
    %p197 = scmp.ne.s32.totalorder %s185, %s186
    %p198 = scmp.eq.s32.totalorder %s19, 1
    %p199 = por %p197, %p198
    %p201 = scmp.ne.s32.totalorder %s186, %s200
    %p202 = scmp.eq.s32.totalorder %s19, 0
    %p203 = por %p201, %p202
    %s204 = ssub.s32 %s20, %s32
    %s205 = ssub.s32 %s21, %s28
    %s206 = sor.u32 %s204, %s205
    %p207 = scmp.eq.s32.totalorder %s206, 0
    %s209 = sadd.s32 %s208, 1
    %s210 = scalar_select %p207, %s208, %s209
    %p213 = pneg %p207
    %p214 = scmp.eq.s32.totalorder %s13, 1
    %p215 = por %p213, %p214
    %p216 = scmp.ne.s32.totalorder %s208, %s211
    %p217 = scmp.eq.s32.totalorder %s13, 0
    %p218 = por %p216, %p217
    %p219 = scmp.ne.s32.totalorder %s208, %s211
    %p220 = scmp.eq.s32.totalorder %s18, 1
    %p221 = por %p219, %p220
    %p222 = scmp.ne.s32.totalorder %s211, %s212
    %p223 = scmp.eq.s32.totalorder %s18, 0
    %p224 = por %p222, %p223
    %p225 = scmp.ne.s32.totalorder %s211, %s212
    %p226 = scmp.eq.s32.totalorder %s19, 1
    %p227 = por %p225, %p226
    %p229 = scmp.ne.s32.totalorder %s212, %s228
    %p230 = scmp.eq.s32.totalorder %s19, 0
    %p231 = por %p229, %p230
    %p232 = scmp.le.s32.totalorder 1, %s13
    %p233 = scmp.lt.s32.totalorder %s13, 3
    %p234 = pnand %p232, %p233
    %p235 = pneg %p234
    // Predicated region
    $region9: #{_lambda_.5} parent=5 // pred_check
      _
    $region10: #{_lambda_.5} parent=5 // pred_check_branch
      %237 = sbr.rel (%p234) target = $region12
    $region11: #{_lambda_.5} parent=5 // pred_region
      %s238 = ssub.s32 %s13, 1
      // Predicated region
      $region13: #{_lambda_.5} parent=11 // pred_check
        %p239 = pneg %p133
      $region14: #{_lambda_.5} parent=11 // pred_check_branch
        %241 = sbr.rel (%p239) target = $region16
      $region15: #{_lambda_.5} parent=11 // pred_region
        %s242 = smul.u32 2, %s23
        %p243 = scmp.lt.s32.totalorder %s242, 1
        %s244 = scalar_select %p243, %s242, 1
        %s245 = smul.addr %s244, 2
        %s246 = scalar_lea.vmem %s3, %s245
        %s247 = smul.u32 2, %s23
      $region16: #{_lambda_.5} parent=11 // pred_fallthru
        _
      // Predicated region
      $region17: #{_lambda_.5} parent=11 // pred_check
        %p248 = pneg %p154
      $region18: #{_lambda_.5} parent=11 // pred_check_branch
        %250 = sbr.rel (%p248) target = $region20
      $region19: #{_lambda_.5} parent=11 // pred_region
        _
      $region20: #{_lambda_.5} parent=11 // pred_fallthru
        _
      // Predicated region
      $region21: #{_lambda_.5} parent=11 // pred_check
        %p251 = pneg %p175
      $region22: #{_lambda_.5} parent=11 // pred_check_branch
        %253 = sbr.rel (%p251) target = $region24
      $region23: #{_lambda_.5} parent=11 // pred_region
        _
      $region24: #{_lambda_.5} parent=11 // pred_fallthru
        _
      // Predicated region
      $region25: #{_lambda_.5} parent=11 // pred_check
        %p254 = pneg %p196
      $region26: #{_lambda_.5} parent=11 // pred_check_branch
        %256 = sbr.rel (%p254) target = $region28
      $region27: #{_lambda_.5} parent=11 // pred_region
        _
      $region28: #{_lambda_.5} parent=11 // pred_fallthru
        _
    $region12: #{_lambda_.5} parent=5 // pred_fallthru
      _
    %p257 = scmp.lt.s32.totalorder %s13, 2
    // Predicated region
    $region29: #{_lambda_.5} parent=5 // pred_check
      %p258 = pneg %p257
    $region30: #{_lambda_.5} parent=5 // pred_check_branch
      %260 = sbr.rel (%p258) target = $region32
    $region31: #{_lambda_.5} parent=5 // pred_region
      // Predicated region
      $region33: #{_lambda_.5} parent=31 // pred_check
        %p261 = pneg %p45
      $region34: #{_lambda_.5} parent=31 // pred_check_branch
        %263 = sbr.rel (%p261) target = $region36
      $region35: #{_lambda_.5} parent=31 // pred_region
        %p264 = scmp.lt.s32.totalorder %s20, 1
        %s265 = scalar_select %p264, %s20, 1
        %s266 = smul.addr %s265, 4
        %s267 = smul.addr %s266, 8
        %s268 = scalar_lea.vmem %s0, %s267
      $region36: #{_lambda_.5} parent=31 // pred_fallthru
        _
      // Predicated region
      $region37: #{_lambda_.5} parent=31 // pred_check
        %p269 = pneg %p73
      $region38: #{_lambda_.5} parent=31 // pred_check_branch
        %271 = sbr.rel (%p269) target = $region40
      $region39: #{_lambda_.5} parent=31 // pred_region
        %s272 = smul.u32 2, %s21
        %p273 = scmp.lt.s32.totalorder %s20, 1
        %s274 = scalar_select %p273, %s20, 1
        %p275 = scmp.lt.s32.totalorder %s272, 1
        %s276 = scalar_select %p275, %s272, 1
        %s277 = smul.addr %s274, 4
        %s278 = sadd.s32 %s276, %s277
        %s279 = smul.addr %s278, 8
        %s280 = scalar_lea.vmem %s1, %s279
        %s281 = smul.u32 2, %s21
      $region40: #{_lambda_.5} parent=31 // pred_fallthru
        _
      // Predicated region
      $region41: #{_lambda_.5} parent=31 // pred_check
        %p282 = pneg %p101
      $region42: #{_lambda_.5} parent=31 // pred_check_branch
        %284 = sbr.rel (%p282) target = $region44
      $region43: #{_lambda_.5} parent=31 // pred_region
        %s285 = smul.u32 2, %s21
        %p286 = scmp.lt.s32.totalorder %s20, 1
        %s287 = scalar_select %p286, %s20, 1
        %p288 = scmp.lt.s32.totalorder %s285, 1
        %s289 = scalar_select %p288, %s285, 1
        %s290 = smul.addr %s287, 2
        %s291 = sadd.s32 %s289, %s290
        %s292 = smul.addr %s291, 4
        %s293 = scalar_lea.vmem %s2, %s292
        %s294 = smul.u32 2, %s21
      $region44: #{_lambda_.5} parent=31 // pred_fallthru
        _
    $region32: #{_lambda_.5} parent=5 // pred_fallthru
      _
    %p295 = scmp.le.s32.totalorder 1, %s13
    %p296 = scmp.lt.s32.totalorder %s13, 3
    %p297 = pnand %p295, %p296
    %p298 = pneg %p297
    // Predicated region
    $region45: #{_lambda_.5} parent=5 // pred_check
      _
    $region46: #{_lambda_.5} parent=5 // pred_check_branch
      %300 = sbr.rel (%p297) target = $region48
    $region47: #{_lambda_.5} parent=5 // pred_region
      %s301 = ssub.s32 %s13, 1
      %p302 = scmp.lt.s32.totalorder %s22, 1
      %s303 = scalar_select %p302, %s22, 1
      %s304 = smul.addr %s303, 4
      %s305 = smul.addr %s304, 8
      %s306 = scalar_lea.vmem %s0, %s305
      %p307 = pneg %p51
      %p308 = pneg %p48
      %s309 = smul.u32 2, %s23
      %p310 = scmp.lt.s32.totalorder %s22, 1
      %s311 = scalar_select %p310, %s22, 1
      %p312 = scmp.lt.s32.totalorder %s309, 1
      %s313 = scalar_select %p312, %s309, 1
      %s314 = smul.addr %s311, 4
      %s315 = sadd.s32 %s313, %s314
      %s316 = smul.addr %s315, 8
      %s317 = scalar_lea.vmem %s1, %s316
      %p318 = pneg %p79
      %p319 = pneg %p76
      %s320 = smul.u32 2, %s23
      %p321 = scmp.lt.s32.totalorder %s22, 1
      %s322 = scalar_select %p321, %s22, 1
      %p323 = scmp.lt.s32.totalorder %s320, 1
      %s324 = scalar_select %p323, %s320, 1
      %s325 = smul.addr %s322, 2
      %s326 = sadd.s32 %s324, %s325
      %s327 = smul.addr %s326, 4
      %s328 = scalar_lea.vmem %s2, %s327
      %p329 = pneg %p107
      %p330 = pneg %p104
      %s331 = smul.u32 2, %s23
      %p332 = scmp.lt.s32.totalorder %s331, 1
      %s333 = scalar_select %p332, %s331, 1
      %s334 = smul.addr %s333, 2
      %s335 = scalar_lea.vmem %s3, %s334
      %p336 = pneg %p133
      %p337 = pneg %p130
      %p338 = pneg %p154
      %p339 = pneg %p151
      %p340 = pneg %p175
      %p341 = pneg %p172
      %p342 = pneg %p196
      %p343 = pneg %p193
      %p344 = pneg %p224
      %p345 = pneg %p221
      %s346 = smul.u32 2, %s23
      %p347 = scmp.lt.s32.totalorder %s22, 1
      %s348 = scalar_select %p347, %s22, 1
      %p349 = scmp.lt.s32.totalorder %s346, 1
      %s350 = scalar_select %p349, %s346, 1
      %s351 = smul.addr %s348, 2
      %s352 = sadd.s32 %s350, %s351
      %s353 = smul.addr %s352, 4
      %s354 = scalar_lea.vmem %s7, %s353
      %p355 = scmp.lt.s32.totalorder %s22, 1
      %s356 = scalar_select %p355, %s22, 1
      %s357 = smul.addr %s356, 4
      %s358 = smul.addr %s357, 8
      %s359 = scalar_lea.vmem %s0, %s358
      %s360 = smul.u32 2, %s23
      %p361 = scmp.lt.s32.totalorder %s22, 1
      %s362 = scalar_select %p361, %s22, 1
      %p363 = scmp.lt.s32.totalorder %s360, 1
      %s364 = scalar_select %p363, %s360, 1
      %s365 = smul.addr %s362, 4
      %s366 = sadd.s32 %s364, %s365
      %s367 = smul.addr %s366, 8
      %s368 = scalar_lea.vmem %s1, %s367
      %s369 = smul.u32 2, %s23
      %s370 = smul.u32 2, %s23
      %p371 = scmp.lt.s32.totalorder %s22, 1
      %s372 = scalar_select %p371, %s22, 1
      %p373 = scmp.lt.s32.totalorder %s370, 1
      %s374 = scalar_select %p373, %s370, 1
      %s375 = smul.addr %s372, 2
      %s376 = sadd.s32 %s374, %s375
      %s377 = smul.addr %s376, 4
      %s378 = scalar_lea.vmem %s2, %s377
      %s379 = smul.u32 2, %s23
      %s380 = smul.u32 2, %s23
      %p381 = scmp.lt.s32.totalorder %s380, 1
      %s382 = scalar_select %p381, %s380, 1
      %s383 = smul.addr %s382, 2
      %s384 = scalar_lea.vmem %s3, %s383
      %s385 = smul.u32 2, %s23
      %s386 = smul.u32 2, %s23
      %p387 = scmp.lt.s32.totalorder %s22, 1
      %s388 = scalar_select %p387, %s22, 1
      %p389 = scmp.lt.s32.totalorder %s386, 1
      %s390 = scalar_select %p389, %s386, 1
      %s391 = smul.addr %s388, 2
      %s392 = sadd.s32 %s390, %s391
      %s393 = smul.addr %s392, 4
      %s394 = scalar_lea.vmem %s7, %s393
      %s395 = smul.u32 2, %s23
      %v396 = vld [vmem:[%s384] ss:$2 sm:$0x3]
      %v397 = vcvt.s32.f32 %v396
      %s398 = scalar_lea.vmem %s384, 1
      %v399 = vld [vmem:[%s398] ss:$2 sm:$0x3]
      %v400 = vcvt.s32.f32 %v399
      %v401 = vld [vmem:[%s368] sm:$0xff]
      %v402 = vld [vmem:[%s368 + $0x8] sm:$0xff]
      %v403 = vld [vmem:[%s368 + $0x10] sm:$0x3]
      %v404 = vld [vmem:[%s368 + $0x18] sm:$0x3]
      %v405 = vld [vmem:[%s378] sm:$0xff]
      %v406 = vld [vmem:[%s359] sm:$0xff]
      %v407 = vld [vmem:[%s359 + $0x8] sm:$0xff]
      %s408 = scalar_lea.vmem %s359, 16
      %v409 = vld [vmem:[%s408] sm:$0xff]
      %v410 = vld [vmem:[%s408 + $0x8] sm:$0xff]
      %v411 = vlaneseq
      %v412 = vshrl.u32 %v411, 7
      %v413 = vadd.s32 %v412, 8
      %v414 = vadd.f32 %v397, 0.0
      %v417 = vcombine.low %v401, %v402
      %v419 = vunpack.c.l.s4 1966171168
      %v420 = vunpack.c.0.s8 %v419
      %v421 = vlaneseq
      %v422 = vshrl.u32 %v421, 7
      %v423 = vsub.s32 %v420, %v422
      %v424 = vrot.slane %v417, %v423
      %v426 = vunpack.c.l.s4 1966171168
      %v427 = vunpack.c.0.s8 %v426
      %v428 = vlaneseq
      %v429 = vshrl.u32 %v428, 7
      %v430 = vsub.s32 %v427, %v429
      %v431 = vrot.slane %v424, %v430
      %v433 = vadd.f32 %v414, %v431
      %v434 = vadd.f32 %v400, 0.0
      %v435 = vcombine.high %v401, %v402
      %v437 = vunpack.c.l.s4 1966171168
      %v438 = vunpack.c.0.s8 %v437
      %v439 = vlaneseq
      %v440 = vshrl.u32 %v439, 7
      %v441 = vsub.s32 %v438, %v440
      %v442 = vrot.slane %v435, %v441
      %v443 = vcombine.high %v442, %v442
      %v445 = vunpack.c.l.s4 1966171168
      %v446 = vunpack.c.0.s8 %v445
      %v447 = vlaneseq
      %v448 = vshrl.u32 %v447, 7
      %v449 = vsub.s32 %v446, %v448
      %v450 = vrot.slane %v443, %v449
      %v452 = vadd.f32 %v434, %v450
      %v453 = vfloor.f32 %v433
      %v454 = vfloor.f32 %v452
      %v455 = vmax.f32 %v453, 0.0
      %v456 = vmin.f32 %v455, 15.0
      %v457 = vadd.f32 %v453, 1.0
      %v458 = vmax.f32 %v457, 0.0
      %v459 = vmin.f32 %v458, 15.0
      %v460 = vmax.f32 %v454, 0.0
      %v461 = vmin.f32 %v460, 15.0
      %v462 = vadd.f32 %v454, 1.0
      %v463 = vmax.f32 %v462, 0.0
      %v464 = vmin.f32 %v463, 15.0
      %v465 = vmax.f32 %v433, 0.0
      %v466 = vmin.f32 %v465, 15.0
      %v467 = vmax.f32 %v452, 0.0
      %v468 = vmin.f32 %v467, 15.0
      %v469 = vadd.f32 %v456, 1.0
      %v470 = vsub.f32 %v469, %v466
      %v471 = vsub.f32 1.0, %v459
      %v472 = vadd.f32 %v471, %v466
      %v473 = vadd.f32 %v461, 1.0
      %v474 = vsub.f32 %v473, %v468
      %v475 = vsub.f32 1.0, %v464
      %v476 = vadd.f32 %v475, %v468
      %v477 = vcvt.f32.s32.to.zero.pseudo %v456
      %v478 = vlaneseq
      %v479 = vshrl.u32 %v478, 7
      %v480 = vsub.s32 0, %v479
      %v481 = vrot.slane %v477, %v480
      %v482 = vlaneseq
      %v483 = vshrl.u32 %v482, 7
      %v484 = vsub.s32 1, %v483
      %v485 = vrot.slane %v477, %v484
      %vm486 = vcmp.eq.s32.totalorder %v412, %v481
      %vm487 = vcmp.eq.s32.totalorder %v412, %v485
      %vm488 = vcmp.eq.s32.totalorder %v413, %v481
      %vm489 = vcmp.eq.s32.totalorder %v413, %v485
      %v491 = vlaneseq
      %v492 = vshrl.u32 %v491, 7
      %v493 = vsub.s32 0, %v492
      %v494 = vrot.slane %v470, %v493
      %v495 = vlaneseq
      %v496 = vshrl.u32 %v495, 7
      %v497 = vsub.s32 1, %v496
      %v498 = vrot.slane %v470, %v497
      %v501 = vsel %vm486, %v494, 0.0
      %v502 = vsel %vm487, %v498, 0.0
      %v503 = vsel %vm488, %v494, 0.0
      %v504 = vsel %vm489, %v498, 0.0
      %v505 = vcvt.f32.s32.to.zero.pseudo %v459
      %v506 = vlaneseq
      %v507 = vshrl.u32 %v506, 7
      %v508 = vsub.s32 0, %v507
      %v509 = vrot.slane %v505, %v508
      %v510 = vlaneseq
      %v511 = vshrl.u32 %v510, 7
      %v512 = vsub.s32 1, %v511
      %v513 = vrot.slane %v505, %v512
      %vm514 = vcmp.eq.s32.totalorder %v412, %v509
      %vm515 = vcmp.eq.s32.totalorder %v412, %v513
      %vm516 = vcmp.eq.s32.totalorder %v413, %v509
      %vm517 = vcmp.eq.s32.totalorder %v413, %v513
      %v519 = vlaneseq
      %v520 = vshrl.u32 %v519, 7
      %v521 = vsub.s32 0, %v520
      %v522 = vrot.slane %v472, %v521
      %v523 = vlaneseq
      %v524 = vshrl.u32 %v523, 7
      %v525 = vsub.s32 1, %v524
      %v526 = vrot.slane %v472, %v525
      %v529 = vsel %vm514, %v522, 0.0
      %v530 = vsel %vm515, %v526, 0.0
      %v531 = vsel %vm516, %v522, 0.0
      %v532 = vsel %vm517, %v526, 0.0
      %v533 = vadd.f32 %v501, %v529
      %v534 = vadd.f32 %v502, %v530
      %v535 = vadd.f32 %v503, %v531
      %v536 = vadd.f32 %v504, %v532
      %v537 = vcvt.f32.s32.to.zero.pseudo %v461
      %v538 = vlaneseq
      %v539 = vshrl.u32 %v538, 7
      %v540 = vsub.s32 0, %v539
      %v541 = vrot.slane %v537, %v540
      %v542 = vlaneseq
      %v543 = vshrl.u32 %v542, 7
      %v544 = vsub.s32 1, %v543
      %v545 = vrot.slane %v537, %v544
      %vm546 = vcmp.eq.s32.totalorder %v412, %v541
      %vm547 = vcmp.eq.s32.totalorder %v412, %v545
      %vm548 = vcmp.eq.s32.totalorder %v413, %v541
      %vm549 = vcmp.eq.s32.totalorder %v413, %v545
      %v551 = vlaneseq
      %v552 = vshrl.u32 %v551, 7
      %v553 = vsub.s32 0, %v552
      %v554 = vrot.slane %v474, %v553
      %v555 = vlaneseq
      %v556 = vshrl.u32 %v555, 7
      %v557 = vsub.s32 1, %v556
      %v558 = vrot.slane %v474, %v557
      %v561 = vsel %vm546, %v554, 0.0
      %v562 = vsel %vm547, %v558, 0.0
      %v563 = vsel %vm548, %v554, 0.0
      %v564 = vsel %vm549, %v558, 0.0
      %v565 = vcvt.f32.s32.to.zero.pseudo %v464
      %v566 = vlaneseq
      %v567 = vshrl.u32 %v566, 7
      %v568 = vsub.s32 0, %v567
      %v569 = vrot.slane %v565, %v568
      %v570 = vlaneseq
      %v571 = vshrl.u32 %v570, 7
      %v572 = vsub.s32 1, %v571
      %v573 = vrot.slane %v565, %v572
      %vm574 = vcmp.eq.s32.totalorder %v412, %v569
      %vm575 = vcmp.eq.s32.totalorder %v412, %v573
      %vm576 = vcmp.eq.s32.totalorder %v413, %v569
      %vm577 = vcmp.eq.s32.totalorder %v413, %v573
      %v579 = vlaneseq
      %v580 = vshrl.u32 %v579, 7
      %v581 = vsub.s32 0, %v580
      %v582 = vrot.slane %v476, %v581
      %v583 = vlaneseq
      %v584 = vshrl.u32 %v583, 7
      %v585 = vsub.s32 1, %v584
      %v586 = vrot.slane %v476, %v585
      %v589 = vsel %vm574, %v582, 0.0
      %v590 = vsel %vm575, %v586, 0.0
      %v591 = vsel %vm576, %v582, 0.0
      %v592 = vsel %vm577, %v586, 0.0
      %v593 = vadd.f32 %v561, %v589
      %v594 = vadd.f32 %v562, %v590
      %v595 = vadd.f32 %v563, %v591
      %v596 = vadd.f32 %v564, %v592
      %598 = vset.pattern.permute.xlu0 0
      %599 = vperm.xlu0 %598, %v406
      %v600 = vpop.permute.xlu0 %599
      %603 = vset.pattern.permute.xlu0 0
      %604 = vperm.xlu0 %603, %v407
      %v605 = vpop.permute.xlu0 %604
      %v607 = vlaneseq
      %v608 = vshrl.u32 %v607, 7
      %v609 = vsub.s32 0, %v608
      %v610 = vrot.slane %v533, %v609
      %v611 = vlaneseq
      %v612 = vshrl.u32 %v611, 7
      %v613 = vsub.s32 0, %v612
      %v614 = vrot.slane %v534, %v613
      %v615 = vmul.f32 %v600, %v610
      %v616 = vmul.f32 %v600, %v614
      %v617 = vmul.f32 %v605, %v610
      %v618 = vmul.f32 %v605, %v614
      %v619 = vadd.f32 %v615, 0.0
      %v620 = vadd.f32 %v616, 0.0
      %v621 = vadd.f32 %v617, 0.0
      %v622 = vadd.f32 %v618, 0.0
      %623 = vset.pattern.permute.xlu0 1
      %624 = vperm.xlu0 %623, %v406
      %v625 = vpop.permute.xlu0 %624
      %627 = vset.pattern.permute.xlu0 1
      %628 = vperm.xlu0 %627, %v407
      %v629 = vpop.permute.xlu0 %628
      %v631 = vlaneseq
      %v632 = vshrl.u32 %v631, 7
      %v633 = vsub.s32 1, %v632
      %v634 = vrot.slane %v533, %v633
      %v635 = vlaneseq
      %v636 = vshrl.u32 %v635, 7
      %v637 = vsub.s32 1, %v636
      %v638 = vrot.slane %v534, %v637
      %v639 = vmul.f32 %v625, %v634
      %v640 = vmul.f32 %v625, %v638
      %v641 = vmul.f32 %v629, %v634
      %v642 = vmul.f32 %v629, %v638
      %v643 = vadd.f32 %v619, %v639
      %v644 = vadd.f32 %v620, %v640
      %v645 = vadd.f32 %v621, %v641
      %v646 = vadd.f32 %v622, %v642
      %647 = vset.pattern.permute.xlu0 2
      %648 = vperm.xlu0 %647, %v406
      %v649 = vpop.permute.xlu0 %648
      %651 = vset.pattern.permute.xlu0 2
      %652 = vperm.xlu0 %651, %v407
      %v653 = vpop.permute.xlu0 %652
      %v655 = vlaneseq
      %v656 = vshrl.u32 %v655, 7
      %v657 = vsub.s32 2, %v656
      %v658 = vrot.slane %v533, %v657
      %v659 = vlaneseq
      %v660 = vshrl.u32 %v659, 7
      %v661 = vsub.s32 2, %v660
      %v662 = vrot.slane %v534, %v661
      %v663 = vmul.f32 %v649, %v658
      %v664 = vmul.f32 %v649, %v662
      %v665 = vmul.f32 %v653, %v658
      %v666 = vmul.f32 %v653, %v662
      %v667 = vadd.f32 %v643, %v663
      %v668 = vadd.f32 %v644, %v664
      %v669 = vadd.f32 %v645, %v665
      %v670 = vadd.f32 %v646, %v666
      %671 = vset.pattern.permute.xlu0 3
      %672 = vperm.xlu0 %671, %v406
      %v673 = vpop.permute.xlu0 %672
      %675 = vset.pattern.permute.xlu0 3
      %676 = vperm.xlu0 %675, %v407
      %v677 = vpop.permute.xlu0 %676
      %v679 = vlaneseq
      %v680 = vshrl.u32 %v679, 7
      %v681 = vsub.s32 3, %v680
      %v682 = vrot.slane %v533, %v681
      %v683 = vlaneseq
      %v684 = vshrl.u32 %v683, 7
      %v685 = vsub.s32 3, %v684
      %v686 = vrot.slane %v534, %v685
      %v687 = vmul.f32 %v673, %v682
      %v688 = vmul.f32 %v673, %v686
      %v689 = vmul.f32 %v677, %v682
      %v690 = vmul.f32 %v677, %v686
      %v691 = vadd.f32 %v667, %v687
      %v692 = vadd.f32 %v668, %v688
      %v693 = vadd.f32 %v669, %v689
      %v694 = vadd.f32 %v670, %v690
      %695 = vset.pattern.permute.xlu0 4
      %696 = vperm.xlu0 %695, %v406
      %v697 = vpop.permute.xlu0 %696
      %699 = vset.pattern.permute.xlu0 4
      %700 = vperm.xlu0 %699, %v407
      %v701 = vpop.permute.xlu0 %700
      %v703 = vlaneseq
      %v704 = vshrl.u32 %v703, 7
      %v705 = vsub.s32 4, %v704
      %v706 = vrot.slane %v533, %v705
      %v707 = vlaneseq
      %v708 = vshrl.u32 %v707, 7
      %v709 = vsub.s32 4, %v708
      %v710 = vrot.slane %v534, %v709
      %v711 = vmul.f32 %v697, %v706
      %v712 = vmul.f32 %v697, %v710
      %v713 = vmul.f32 %v701, %v706
      %v714 = vmul.f32 %v701, %v710
      %v715 = vadd.f32 %v691, %v711
      %v716 = vadd.f32 %v692, %v712
      %v717 = vadd.f32 %v693, %v713
      %v718 = vadd.f32 %v694, %v714
      %719 = vset.pattern.permute.xlu0 5
      %720 = vperm.xlu0 %719, %v406
      %v721 = vpop.permute.xlu0 %720
      %723 = vset.pattern.permute.xlu0 5
      %724 = vperm.xlu0 %723, %v407
      %v725 = vpop.permute.xlu0 %724
      %v727 = vlaneseq
      %v728 = vshrl.u32 %v727, 7
      %v729 = vsub.s32 5, %v728
      %v730 = vrot.slane %v533, %v729
      %v731 = vlaneseq
      %v732 = vshrl.u32 %v731, 7
      %v733 = vsub.s32 5, %v732
      %v734 = vrot.slane %v534, %v733
      %v735 = vmul.f32 %v721, %v730
      %v736 = vmul.f32 %v721, %v734
      %v737 = vmul.f32 %v725, %v730
      %v738 = vmul.f32 %v725, %v734
      %v739 = vadd.f32 %v715, %v735
      %v740 = vadd.f32 %v716, %v736
      %v741 = vadd.f32 %v717, %v737
      %v742 = vadd.f32 %v718, %v738
      %743 = vset.pattern.permute.xlu0 6
      %744 = vperm.xlu0 %743, %v406
      %v745 = vpop.permute.xlu0 %744
      %747 = vset.pattern.permute.xlu0 6
      %748 = vperm.xlu0 %747, %v407
      %v749 = vpop.permute.xlu0 %748
      %v751 = vlaneseq
      %v752 = vshrl.u32 %v751, 7
      %v753 = vsub.s32 6, %v752
      %v754 = vrot.slane %v533, %v753
      %v755 = vlaneseq
      %v756 = vshrl.u32 %v755, 7
      %v757 = vsub.s32 6, %v756
      %v758 = vrot.slane %v534, %v757
      %v759 = vmul.f32 %v745, %v754
      %v760 = vmul.f32 %v745, %v758
      %v761 = vmul.f32 %v749, %v754
      %v762 = vmul.f32 %v749, %v758
      %v763 = vadd.f32 %v739, %v759
      %v764 = vadd.f32 %v740, %v760
      %v765 = vadd.f32 %v741, %v761
      %v766 = vadd.f32 %v742, %v762
      %767 = vset.pattern.permute.xlu0 7
      %768 = vperm.xlu0 %767, %v406
      %v769 = vpop.permute.xlu0 %768
      %771 = vset.pattern.permute.xlu0 7
      %772 = vperm.xlu0 %771, %v407
      %v773 = vpop.permute.xlu0 %772
      %v775 = vlaneseq
      %v776 = vshrl.u32 %v775, 7
      %v777 = vsub.s32 7, %v776
      %v778 = vrot.slane %v533, %v777
      %v779 = vlaneseq
      %v780 = vshrl.u32 %v779, 7
      %v781 = vsub.s32 7, %v780
      %v782 = vrot.slane %v534, %v781
      %v783 = vmul.f32 %v769, %v778
      %v784 = vmul.f32 %v769, %v782
      %v785 = vmul.f32 %v773, %v778
      %v786 = vmul.f32 %v773, %v782
      %v787 = vadd.f32 %v763, %v783
      %v788 = vadd.f32 %v764, %v784
      %v789 = vadd.f32 %v765, %v785
      %v790 = vadd.f32 %v766, %v786
      %791 = vset.pattern.permute.xlu0 8
      %792 = vperm.xlu0 %791, %v406
      %v793 = vpop.permute.xlu0 %792
      %795 = vset.pattern.permute.xlu0 8
      %796 = vperm.xlu0 %795, %v407
      %v797 = vpop.permute.xlu0 %796
      %v799 = vlaneseq
      %v800 = vshrl.u32 %v799, 7
      %v801 = vsub.s32 0, %v800
      %v802 = vrot.slane %v535, %v801
      %v803 = vlaneseq
      %v804 = vshrl.u32 %v803, 7
      %v805 = vsub.s32 0, %v804
      %v806 = vrot.slane %v536, %v805
      %v807 = vmul.f32 %v793, %v802
      %v808 = vmul.f32 %v793, %v806
      %v809 = vmul.f32 %v797, %v802
      %v810 = vmul.f32 %v797, %v806
      %v811 = vadd.f32 %v787, %v807
      %v812 = vadd.f32 %v788, %v808
      %v813 = vadd.f32 %v789, %v809
      %v814 = vadd.f32 %v790, %v810
      %815 = vset.pattern.permute.xlu0 9
      %816 = vperm.xlu0 %815, %v406
      %v817 = vpop.permute.xlu0 %816
      %819 = vset.pattern.permute.xlu0 9
      %820 = vperm.xlu0 %819, %v407
      %v821 = vpop.permute.xlu0 %820
      %v823 = vlaneseq
      %v824 = vshrl.u32 %v823, 7
      %v825 = vsub.s32 1, %v824
      %v826 = vrot.slane %v535, %v825
      %v827 = vlaneseq
      %v828 = vshrl.u32 %v827, 7
      %v829 = vsub.s32 1, %v828
      %v830 = vrot.slane %v536, %v829
      %v831 = vmul.f32 %v817, %v826
      %v832 = vmul.f32 %v817, %v830
      %v833 = vmul.f32 %v821, %v826
      %v834 = vmul.f32 %v821, %v830
      %v835 = vadd.f32 %v811, %v831
      %v836 = vadd.f32 %v812, %v832
      %v837 = vadd.f32 %v813, %v833
      %v838 = vadd.f32 %v814, %v834
      %839 = vset.pattern.permute.xlu0 10
      %840 = vperm.xlu0 %839, %v406
      %v841 = vpop.permute.xlu0 %840
      %843 = vset.pattern.permute.xlu0 10
      %844 = vperm.xlu0 %843, %v407
      %v845 = vpop.permute.xlu0 %844
      %v847 = vlaneseq
      %v848 = vshrl.u32 %v847, 7
      %v849 = vsub.s32 2, %v848
      %v850 = vrot.slane %v535, %v849
      %v851 = vlaneseq
      %v852 = vshrl.u32 %v851, 7
      %v853 = vsub.s32 2, %v852
      %v854 = vrot.slane %v536, %v853
      %v855 = vmul.f32 %v841, %v850
      %v856 = vmul.f32 %v841, %v854
      %v857 = vmul.f32 %v845, %v850
      %v858 = vmul.f32 %v845, %v854
      %v859 = vadd.f32 %v835, %v855
      %v860 = vadd.f32 %v836, %v856
      %v861 = vadd.f32 %v837, %v857
      %v862 = vadd.f32 %v838, %v858
      %863 = vset.pattern.permute.xlu0 11
      %864 = vperm.xlu0 %863, %v406
      %v865 = vpop.permute.xlu0 %864
      %867 = vset.pattern.permute.xlu0 11
      %868 = vperm.xlu0 %867, %v407
      %v869 = vpop.permute.xlu0 %868
      %v871 = vlaneseq
      %v872 = vshrl.u32 %v871, 7
      %v873 = vsub.s32 3, %v872
      %v874 = vrot.slane %v535, %v873
      %v875 = vlaneseq
      %v876 = vshrl.u32 %v875, 7
      %v877 = vsub.s32 3, %v876
      %v878 = vrot.slane %v536, %v877
      %v879 = vmul.f32 %v865, %v874
      %v880 = vmul.f32 %v865, %v878
      %v881 = vmul.f32 %v869, %v874
      %v882 = vmul.f32 %v869, %v878
      %v883 = vadd.f32 %v859, %v879
      %v884 = vadd.f32 %v860, %v880
      %v885 = vadd.f32 %v861, %v881
      %v886 = vadd.f32 %v862, %v882
      %887 = vset.pattern.permute.xlu0 12
      %888 = vperm.xlu0 %887, %v406
      %v889 = vpop.permute.xlu0 %888
      %891 = vset.pattern.permute.xlu0 12
      %892 = vperm.xlu0 %891, %v407
      %v893 = vpop.permute.xlu0 %892
      %v895 = vlaneseq
      %v896 = vshrl.u32 %v895, 7
      %v897 = vsub.s32 4, %v896
      %v898 = vrot.slane %v535, %v897
      %v899 = vlaneseq
      %v900 = vshrl.u32 %v899, 7
      %v901 = vsub.s32 4, %v900
      %v902 = vrot.slane %v536, %v901
      %v903 = vmul.f32 %v889, %v898
      %v904 = vmul.f32 %v889, %v902
      %v905 = vmul.f32 %v893, %v898
      %v906 = vmul.f32 %v893, %v902
      %v907 = vadd.f32 %v883, %v903
      %v908 = vadd.f32 %v884, %v904
      %v909 = vadd.f32 %v885, %v905
      %v910 = vadd.f32 %v886, %v906
      %911 = vset.pattern.permute.xlu0 13
      %912 = vperm.xlu0 %911, %v406
      %v913 = vpop.permute.xlu0 %912
      %915 = vset.pattern.permute.xlu0 13
      %916 = vperm.xlu0 %915, %v407
      %v917 = vpop.permute.xlu0 %916
      %v919 = vlaneseq
      %v920 = vshrl.u32 %v919, 7
      %v921 = vsub.s32 5, %v920
      %v922 = vrot.slane %v535, %v921
      %v923 = vlaneseq
      %v924 = vshrl.u32 %v923, 7
      %v925 = vsub.s32 5, %v924
      %v926 = vrot.slane %v536, %v925
      %v927 = vmul.f32 %v913, %v922
      %v928 = vmul.f32 %v913, %v926
      %v929 = vmul.f32 %v917, %v922
      %v930 = vmul.f32 %v917, %v926
      %v931 = vadd.f32 %v907, %v927
      %v932 = vadd.f32 %v908, %v928
      %v933 = vadd.f32 %v909, %v929
      %v934 = vadd.f32 %v910, %v930
      %935 = vset.pattern.permute.xlu0 14
      %936 = vperm.xlu0 %935, %v406
      %v937 = vpop.permute.xlu0 %936
      %939 = vset.pattern.permute.xlu0 14
      %940 = vperm.xlu0 %939, %v407
      %v941 = vpop.permute.xlu0 %940
      %v943 = vlaneseq
      %v944 = vshrl.u32 %v943, 7
      %v945 = vsub.s32 6, %v944
      %v946 = vrot.slane %v535, %v945
      %v947 = vlaneseq
      %v948 = vshrl.u32 %v947, 7
      %v949 = vsub.s32 6, %v948
      %v950 = vrot.slane %v536, %v949
      %v951 = vmul.f32 %v937, %v946
      %v952 = vmul.f32 %v937, %v950
      %v953 = vmul.f32 %v941, %v946
      %v954 = vmul.f32 %v941, %v950
      %v955 = vadd.f32 %v931, %v951
      %v956 = vadd.f32 %v932, %v952
      %v957 = vadd.f32 %v933, %v953
      %v958 = vadd.f32 %v934, %v954
      %959 = vset.pattern.permute.xlu0 15
      %960 = vperm.xlu0 %959, %v406
      %v961 = vpop.permute.xlu0 %960
      %963 = vset.pattern.permute.xlu0 15
      %964 = vperm.xlu0 %963, %v407
      %v965 = vpop.permute.xlu0 %964
      %v967 = vlaneseq
      %v968 = vshrl.u32 %v967, 7
      %v969 = vsub.s32 7, %v968
      %v970 = vrot.slane %v535, %v969
      %v971 = vlaneseq
      %v972 = vshrl.u32 %v971, 7
      %v973 = vsub.s32 7, %v972
      %v974 = vrot.slane %v536, %v973
      %v975 = vmul.f32 %v961, %v970
      %v976 = vmul.f32 %v961, %v974
      %v977 = vmul.f32 %v965, %v970
      %v978 = vmul.f32 %v965, %v974
      %v979 = vadd.f32 %v955, %v975
      %v980 = vadd.f32 %v956, %v976
      %v981 = vadd.f32 %v957, %v977
      %v982 = vadd.f32 %v958, %v978
      %v983 = vmul.f32 %v593, %v979
      %v984 = vmul.f32 %v594, %v980
      %v985 = vmul.f32 %v595, %v981
      %v986 = vmul.f32 %v596, %v982
      %v987 = vadd.f32 %v983, %v985
      %v988 = vrot.slane %v987, 4
      %v989 = vadd.f32 %v987, %v988
      %v990 = vrot.slane %v989, 2
      %v991 = vadd.f32 %v989, %v990
      %v992 = vrot.slane %v991, 1
      %v993 = vadd.f32 %v991, %v992
      %v994 = vadd.f32 %v984, %v986
      %v995 = vrot.slane %v994, 4
      %v996 = vadd.f32 %v994, %v995
      %v997 = vrot.slane %v996, 2
      %v998 = vadd.f32 %v996, %v997
      %v999 = vrot.slane %v998, 1
      %v1000 = vadd.f32 %v998, %v999
      %v1001 = vld [vmem:[%s4] sm:$0xf]
      %1003 = vset.pattern.permute.xlu0 0
      %1004 = vperm.xlu0 %1003, %v1001
      %v1005 = vpop.permute.xlu0 %1004
      %v1007 = vmul.f32 %v1005, %v993
      %v1008 = vmul.f32 %v1005, %v1000
      %v1009 = vadd.f32 %v1007, 0.0
      %v1010 = vadd.f32 %v1008, 0.0
      %1012 = vset.pattern.permute.xlu0 0
      %1013 = vperm.xlu0 %1012, %v409
      %v1014 = vpop.permute.xlu0 %1013
      %1017 = vset.pattern.permute.xlu0 0
      %1018 = vperm.xlu0 %1017, %v410
      %v1019 = vpop.permute.xlu0 %1018
      %v1021 = vmul.f32 %v1014, %v610
      %v1022 = vmul.f32 %v1014, %v614
      %v1023 = vmul.f32 %v1019, %v610
      %v1024 = vmul.f32 %v1019, %v614
      %v1025 = vadd.f32 %v1021, 0.0
      %v1026 = vadd.f32 %v1022, 0.0
      %v1027 = vadd.f32 %v1023, 0.0
      %v1028 = vadd.f32 %v1024, 0.0
      %1029 = vset.pattern.permute.xlu0 1
      %1030 = vperm.xlu0 %1029, %v409
      %v1031 = vpop.permute.xlu0 %1030
      %1033 = vset.pattern.permute.xlu0 1
      %1034 = vperm.xlu0 %1033, %v410
      %v1035 = vpop.permute.xlu0 %1034
      %v1037 = vmul.f32 %v1031, %v634
      %v1038 = vmul.f32 %v1031, %v638
      %v1039 = vmul.f32 %v1035, %v634
      %v1040 = vmul.f32 %v1035, %v638
      %v1041 = vadd.f32 %v1025, %v1037
      %v1042 = vadd.f32 %v1026, %v1038
      %v1043 = vadd.f32 %v1027, %v1039
      %v1044 = vadd.f32 %v1028, %v1040
      %1045 = vset.pattern.permute.xlu0 2
      %1046 = vperm.xlu0 %1045, %v409
      %v1047 = vpop.permute.xlu0 %1046
      %1049 = vset.pattern.permute.xlu0 2
      %1050 = vperm.xlu0 %1049, %v410
      %v1051 = vpop.permute.xlu0 %1050
      %v1053 = vmul.f32 %v1047, %v658
      %v1054 = vmul.f32 %v1047, %v662
      %v1055 = vmul.f32 %v1051, %v658
      %v1056 = vmul.f32 %v1051, %v662
      %v1057 = vadd.f32 %v1041, %v1053
      %v1058 = vadd.f32 %v1042, %v1054
      %v1059 = vadd.f32 %v1043, %v1055
      %v1060 = vadd.f32 %v1044, %v1056
      %1061 = vset.pattern.permute.xlu0 3
      %1062 = vperm.xlu0 %1061, %v409
      %v1063 = vpop.permute.xlu0 %1062
      %1065 = vset.pattern.permute.xlu0 3
      %1066 = vperm.xlu0 %1065, %v410
      %v1067 = vpop.permute.xlu0 %1066
      %v1069 = vmul.f32 %v1063, %v682
      %v1070 = vmul.f32 %v1063, %v686
      %v1071 = vmul.f32 %v1067, %v682
      %v1072 = vmul.f32 %v1067, %v686
      %v1073 = vadd.f32 %v1057, %v1069
      %v1074 = vadd.f32 %v1058, %v1070
      %v1075 = vadd.f32 %v1059, %v1071
      %v1076 = vadd.f32 %v1060, %v1072
      %1077 = vset.pattern.permute.xlu0 4
      %1078 = vperm.xlu0 %1077, %v409
      %v1079 = vpop.permute.xlu0 %1078
      %1081 = vset.pattern.permute.xlu0 4
      %1082 = vperm.xlu0 %1081, %v410
      %v1083 = vpop.permute.xlu0 %1082
      %v1085 = vmul.f32 %v1079, %v706
      %v1086 = vmul.f32 %v1079, %v710
      %v1087 = vmul.f32 %v1083, %v706
      %v1088 = vmul.f32 %v1083, %v710
      %v1089 = vadd.f32 %v1073, %v1085
      %v1090 = vadd.f32 %v1074, %v1086
      %v1091 = vadd.f32 %v1075, %v1087
      %v1092 = vadd.f32 %v1076, %v1088
      %1093 = vset.pattern.permute.xlu0 5
      %1094 = vperm.xlu0 %1093, %v409
      %v1095 = vpop.permute.xlu0 %1094
      %1097 = vset.pattern.permute.xlu0 5
      %1098 = vperm.xlu0 %1097, %v410
      %v1099 = vpop.permute.xlu0 %1098
      %v1101 = vmul.f32 %v1095, %v730
      %v1102 = vmul.f32 %v1095, %v734
      %v1103 = vmul.f32 %v1099, %v730
      %v1104 = vmul.f32 %v1099, %v734
      %v1105 = vadd.f32 %v1089, %v1101
      %v1106 = vadd.f32 %v1090, %v1102
      %v1107 = vadd.f32 %v1091, %v1103
      %v1108 = vadd.f32 %v1092, %v1104
      %1109 = vset.pattern.permute.xlu0 6
      %1110 = vperm.xlu0 %1109, %v409
      %v1111 = vpop.permute.xlu0 %1110
      %1113 = vset.pattern.permute.xlu0 6
      %1114 = vperm.xlu0 %1113, %v410
      %v1115 = vpop.permute.xlu0 %1114
      %v1117 = vmul.f32 %v1111, %v754
      %v1118 = vmul.f32 %v1111, %v758
      %v1119 = vmul.f32 %v1115, %v754
      %v1120 = vmul.f32 %v1115, %v758
      %v1121 = vadd.f32 %v1105, %v1117
      %v1122 = vadd.f32 %v1106, %v1118
      %v1123 = vadd.f32 %v1107, %v1119
      %v1124 = vadd.f32 %v1108, %v1120
      %1125 = vset.pattern.permute.xlu0 7
      %1126 = vperm.xlu0 %1125, %v409
      %v1127 = vpop.permute.xlu0 %1126
      %1129 = vset.pattern.permute.xlu0 7
      %1130 = vperm.xlu0 %1129, %v410
      %v1131 = vpop.permute.xlu0 %1130
      %v1133 = vmul.f32 %v1127, %v778
      %v1134 = vmul.f32 %v1127, %v782
      %v1135 = vmul.f32 %v1131, %v778
      %v1136 = vmul.f32 %v1131, %v782
      %v1137 = vadd.f32 %v1121, %v1133
      %v1138 = vadd.f32 %v1122, %v1134
      %v1139 = vadd.f32 %v1123, %v1135
      %v1140 = vadd.f32 %v1124, %v1136
      %1141 = vset.pattern.permute.xlu0 8
      %1142 = vperm.xlu0 %1141, %v409
      %v1143 = vpop.permute.xlu0 %1142
      %1145 = vset.pattern.permute.xlu0 8
      %1146 = vperm.xlu0 %1145, %v410
      %v1147 = vpop.permute.xlu0 %1146
      %v1149 = vmul.f32 %v1143, %v802
      %v1150 = vmul.f32 %v1143, %v806
      %v1151 = vmul.f32 %v1147, %v802
      %v1152 = vmul.f32 %v1147, %v806
      %v1153 = vadd.f32 %v1137, %v1149
      %v1154 = vadd.f32 %v1138, %v1150
      %v1155 = vadd.f32 %v1139, %v1151
      %v1156 = vadd.f32 %v1140, %v1152
      %1157 = vset.pattern.permute.xlu0 9
      %1158 = vperm.xlu0 %1157, %v409
      %v1159 = vpop.permute.xlu0 %1158
      %1161 = vset.pattern.permute.xlu0 9
      %1162 = vperm.xlu0 %1161, %v410
      %v1163 = vpop.permute.xlu0 %1162
      %v1165 = vmul.f32 %v1159, %v826
      %v1166 = vmul.f32 %v1159, %v830
      %v1167 = vmul.f32 %v1163, %v826
      %v1168 = vmul.f32 %v1163, %v830
      %v1169 = vadd.f32 %v1153, %v1165
      %v1170 = vadd.f32 %v1154, %v1166
      %v1171 = vadd.f32 %v1155, %v1167
      %v1172 = vadd.f32 %v1156, %v1168
      %1173 = vset.pattern.permute.xlu0 10
      %1174 = vperm.xlu0 %1173, %v409
      %v1175 = vpop.permute.xlu0 %1174
      %1177 = vset.pattern.permute.xlu0 10
      %1178 = vperm.xlu0 %1177, %v410
      %v1179 = vpop.permute.xlu0 %1178
      %v1181 = vmul.f32 %v1175, %v850
      %v1182 = vmul.f32 %v1175, %v854
      %v1183 = vmul.f32 %v1179, %v850
      %v1184 = vmul.f32 %v1179, %v854
      %v1185 = vadd.f32 %v1169, %v1181
      %v1186 = vadd.f32 %v1170, %v1182
      %v1187 = vadd.f32 %v1171, %v1183
      %v1188 = vadd.f32 %v1172, %v1184
      %1189 = vset.pattern.permute.xlu0 11
      %1190 = vperm.xlu0 %1189, %v409
      %v1191 = vpop.permute.xlu0 %1190
      %1193 = vset.pattern.permute.xlu0 11
      %1194 = vperm.xlu0 %1193, %v410
      %v1195 = vpop.permute.xlu0 %1194
      %v1197 = vmul.f32 %v1191, %v874
      %v1198 = vmul.f32 %v1191, %v878
      %v1199 = vmul.f32 %v1195, %v874
      %v1200 = vmul.f32 %v1195, %v878
      %v1201 = vadd.f32 %v1185, %v1197
      %v1202 = vadd.f32 %v1186, %v1198
      %v1203 = vadd.f32 %v1187, %v1199
      %v1204 = vadd.f32 %v1188, %v1200
      %1205 = vset.pattern.permute.xlu0 12
      %1206 = vperm.xlu0 %1205, %v409
      %v1207 = vpop.permute.xlu0 %1206
      %1209 = vset.pattern.permute.xlu0 12
      %1210 = vperm.xlu0 %1209, %v410
      %v1211 = vpop.permute.xlu0 %1210
      %v1213 = vmul.f32 %v1207, %v898
      %v1214 = vmul.f32 %v1207, %v902
      %v1215 = vmul.f32 %v1211, %v898
      %v1216 = vmul.f32 %v1211, %v902
      %v1217 = vadd.f32 %v1201, %v1213
      %v1218 = vadd.f32 %v1202, %v1214
      %v1219 = vadd.f32 %v1203, %v1215
      %v1220 = vadd.f32 %v1204, %v1216
      %1221 = vset.pattern.permute.xlu0 13
      %1222 = vperm.xlu0 %1221, %v409
      %v1223 = vpop.permute.xlu0 %1222
      %1225 = vset.pattern.permute.xlu0 13
      %1226 = vperm.xlu0 %1225, %v410
      %v1227 = vpop.permute.xlu0 %1226
      %v1229 = vmul.f32 %v1223, %v922
      %v1230 = vmul.f32 %v1223, %v926
      %v1231 = vmul.f32 %v1227, %v922
      %v1232 = vmul.f32 %v1227, %v926
      %v1233 = vadd.f32 %v1217, %v1229
      %v1234 = vadd.f32 %v1218, %v1230
      %v1235 = vadd.f32 %v1219, %v1231
      %v1236 = vadd.f32 %v1220, %v1232
      %1237 = vset.pattern.permute.xlu0 14
      %1238 = vperm.xlu0 %1237, %v409
      %v1239 = vpop.permute.xlu0 %1238
      %1241 = vset.pattern.permute.xlu0 14
      %1242 = vperm.xlu0 %1241, %v410
      %v1243 = vpop.permute.xlu0 %1242
      %v1245 = vmul.f32 %v1239, %v946
      %v1246 = vmul.f32 %v1239, %v950
      %v1247 = vmul.f32 %v1243, %v946
      %v1248 = vmul.f32 %v1243, %v950
      %v1249 = vadd.f32 %v1233, %v1245
      %v1250 = vadd.f32 %v1234, %v1246
      %v1251 = vadd.f32 %v1235, %v1247
      %v1252 = vadd.f32 %v1236, %v1248
      %1253 = vset.pattern.permute.xlu0 15
      %1254 = vperm.xlu0 %1253, %v409
      %v1255 = vpop.permute.xlu0 %1254
      %1257 = vset.pattern.permute.xlu0 15
      %1258 = vperm.xlu0 %1257, %v410
      %v1259 = vpop.permute.xlu0 %1258
      %v1261 = vmul.f32 %v1255, %v970
      %v1262 = vmul.f32 %v1255, %v974
      %v1263 = vmul.f32 %v1259, %v970
      %v1264 = vmul.f32 %v1259, %v974
      %v1265 = vadd.f32 %v1249, %v1261
      %v1266 = vadd.f32 %v1250, %v1262
      %v1267 = vadd.f32 %v1251, %v1263
      %v1268 = vadd.f32 %v1252, %v1264
      %v1269 = vmul.f32 %v593, %v1265
      %v1270 = vmul.f32 %v594, %v1266
      %v1271 = vmul.f32 %v595, %v1267
      %v1272 = vmul.f32 %v596, %v1268
      %v1273 = vadd.f32 %v1269, %v1271
      %v1274 = vrot.slane %v1273, 4
      %v1275 = vadd.f32 %v1273, %v1274
      %v1276 = vrot.slane %v1275, 2
      %v1277 = vadd.f32 %v1275, %v1276
      %v1278 = vrot.slane %v1277, 1
      %v1279 = vadd.f32 %v1277, %v1278
      %v1280 = vadd.f32 %v1270, %v1272
      %v1281 = vrot.slane %v1280, 4
      %v1282 = vadd.f32 %v1280, %v1281
      %v1283 = vrot.slane %v1282, 2
      %v1284 = vadd.f32 %v1282, %v1283
      %v1285 = vrot.slane %v1284, 1
      %v1286 = vadd.f32 %v1284, %v1285
      %1287 = vset.pattern.permute.xlu0 5
      %1288 = vperm.xlu0 %1287, %v1001
      %v1289 = vpop.permute.xlu0 %1288
      %v1291 = vmul.f32 %v1289, %v1279
      %v1292 = vmul.f32 %v1289, %v1286
      %v1293 = vadd.f32 %v1009, %v1291
      %v1294 = vadd.f32 %v1010, %v1292
      %v1295 = vcombine.high %v424, %v424
      %v1297 = vunpack.c.l.s4 1966171168
      %v1298 = vunpack.c.0.s8 %v1297
      %v1299 = vlaneseq
      %v1300 = vshrl.u32 %v1299, 7
      %v1301 = vsub.s32 %v1298, %v1300
      %v1302 = vrot.slane %v1295, %v1301
      %v1304 = vadd.f32 %v414, %v1302
      %v1305 = vadd.f32 %v400, 1.0
      %v1307 = vunpack.c.l.s4 1966171168
      %v1308 = vunpack.c.0.s8 %v1307
      %v1309 = vlaneseq
      %v1310 = vshrl.u32 %v1309, 7
      %v1311 = vsub.s32 %v1308, %v1310
      %v1312 = vrot.slane %v442, %v1311
      %v1313 = vcombine.high %v1312, %v1312
      %v1315 = vadd.f32 %v1305, %v1313
      %v1316 = vfloor.f32 %v1304
      %v1317 = vfloor.f32 %v1315
      %v1318 = vmax.f32 %v1316, 0.0
      %v1319 = vmin.f32 %v1318, 15.0
      %v1320 = vadd.f32 %v1316, 1.0
      %v1321 = vmax.f32 %v1320, 0.0
      %v1322 = vmin.f32 %v1321, 15.0
      %v1323 = vmax.f32 %v1317, 0.0
      %v1324 = vmin.f32 %v1323, 15.0
      %v1325 = vadd.f32 %v1317, 1.0
      %v1326 = vmax.f32 %v1325, 0.0
      %v1327 = vmin.f32 %v1326, 15.0
      %v1328 = vmax.f32 %v1304, 0.0
      %v1329 = vmin.f32 %v1328, 15.0
      %v1330 = vmax.f32 %v1315, 0.0
      %v1331 = vmin.f32 %v1330, 15.0
      %v1332 = vadd.f32 %v1319, 1.0
      %v1333 = vsub.f32 %v1332, %v1329
      %v1334 = vsub.f32 1.0, %v1322
      %v1335 = vadd.f32 %v1334, %v1329
      %v1336 = vadd.f32 %v1324, 1.0
      %v1337 = vsub.f32 %v1336, %v1331
      %v1338 = vsub.f32 1.0, %v1327
      %v1339 = vadd.f32 %v1338, %v1331
      %v1340 = vcvt.f32.s32.to.zero.pseudo %v1319
      %v1341 = vlaneseq
      %v1342 = vshrl.u32 %v1341, 7
      %v1343 = vsub.s32 0, %v1342
      %v1344 = vrot.slane %v1340, %v1343
      %v1345 = vlaneseq
      %v1346 = vshrl.u32 %v1345, 7
      %v1347 = vsub.s32 1, %v1346
      %v1348 = vrot.slane %v1340, %v1347
      %vm1349 = vcmp.eq.s32.totalorder %v412, %v1344
      %vm1350 = vcmp.eq.s32.totalorder %v412, %v1348
      %vm1351 = vcmp.eq.s32.totalorder %v413, %v1344
      %vm1352 = vcmp.eq.s32.totalorder %v413, %v1348
      %v1354 = vlaneseq
      %v1355 = vshrl.u32 %v1354, 7
      %v1356 = vsub.s32 0, %v1355
      %v1357 = vrot.slane %v1333, %v1356
      %v1358 = vlaneseq
      %v1359 = vshrl.u32 %v1358, 7
      %v1360 = vsub.s32 1, %v1359
      %v1361 = vrot.slane %v1333, %v1360
      %v1364 = vsel %vm1349, %v1357, 0.0
      %v1365 = vsel %vm1350, %v1361, 0.0
      %v1366 = vsel %vm1351, %v1357, 0.0
      %v1367 = vsel %vm1352, %v1361, 0.0
      %v1368 = vcvt.f32.s32.to.zero.pseudo %v1322
      %v1369 = vlaneseq
      %v1370 = vshrl.u32 %v1369, 7
      %v1371 = vsub.s32 0, %v1370
      %v1372 = vrot.slane %v1368, %v1371
      %v1373 = vlaneseq
      %v1374 = vshrl.u32 %v1373, 7
      %v1375 = vsub.s32 1, %v1374
      %v1376 = vrot.slane %v1368, %v1375
      %vm1377 = vcmp.eq.s32.totalorder %v412, %v1372
      %vm1378 = vcmp.eq.s32.totalorder %v412, %v1376
      %vm1379 = vcmp.eq.s32.totalorder %v413, %v1372
      %vm1380 = vcmp.eq.s32.totalorder %v413, %v1376
      %v1382 = vlaneseq
      %v1383 = vshrl.u32 %v1382, 7
      %v1384 = vsub.s32 0, %v1383
      %v1385 = vrot.slane %v1335, %v1384
      %v1386 = vlaneseq
      %v1387 = vshrl.u32 %v1386, 7
      %v1388 = vsub.s32 1, %v1387
      %v1389 = vrot.slane %v1335, %v1388
      %v1392 = vsel %vm1377, %v1385, 0.0
      %v1393 = vsel %vm1378, %v1389, 0.0
      %v1394 = vsel %vm1379, %v1385, 0.0
      %v1395 = vsel %vm1380, %v1389, 0.0
      %v1396 = vadd.f32 %v1364, %v1392
      %v1397 = vadd.f32 %v1365, %v1393
      %v1398 = vadd.f32 %v1366, %v1394
      %v1399 = vadd.f32 %v1367, %v1395
      %v1400 = vcvt.f32.s32.to.zero.pseudo %v1324
      %v1401 = vlaneseq
      %v1402 = vshrl.u32 %v1401, 7
      %v1403 = vsub.s32 0, %v1402
      %v1404 = vrot.slane %v1400, %v1403
      %v1405 = vlaneseq
      %v1406 = vshrl.u32 %v1405, 7
      %v1407 = vsub.s32 1, %v1406
      %v1408 = vrot.slane %v1400, %v1407
      %vm1409 = vcmp.eq.s32.totalorder %v412, %v1404
      %vm1410 = vcmp.eq.s32.totalorder %v412, %v1408
      %vm1411 = vcmp.eq.s32.totalorder %v413, %v1404
      %vm1412 = vcmp.eq.s32.totalorder %v413, %v1408
      %v1414 = vlaneseq
      %v1415 = vshrl.u32 %v1414, 7
      %v1416 = vsub.s32 0, %v1415
      %v1417 = vrot.slane %v1337, %v1416
      %v1418 = vlaneseq
      %v1419 = vshrl.u32 %v1418, 7
      %v1420 = vsub.s32 1, %v1419
      %v1421 = vrot.slane %v1337, %v1420
      %v1424 = vsel %vm1409, %v1417, 0.0
      %v1425 = vsel %vm1410, %v1421, 0.0
      %v1426 = vsel %vm1411, %v1417, 0.0
      %v1427 = vsel %vm1412, %v1421, 0.0
      %v1428 = vcvt.f32.s32.to.zero.pseudo %v1327
      %v1429 = vlaneseq
      %v1430 = vshrl.u32 %v1429, 7
      %v1431 = vsub.s32 0, %v1430
      %v1432 = vrot.slane %v1428, %v1431
      %v1433 = vlaneseq
      %v1434 = vshrl.u32 %v1433, 7
      %v1435 = vsub.s32 1, %v1434
      %v1436 = vrot.slane %v1428, %v1435
      %vm1437 = vcmp.eq.s32.totalorder %v412, %v1432
      %vm1438 = vcmp.eq.s32.totalorder %v412, %v1436
      %vm1439 = vcmp.eq.s32.totalorder %v413, %v1432
      %vm1440 = vcmp.eq.s32.totalorder %v413, %v1436
      %v1442 = vlaneseq
      %v1443 = vshrl.u32 %v1442, 7
      %v1444 = vsub.s32 0, %v1443
      %v1445 = vrot.slane %v1339, %v1444
      %v1446 = vlaneseq
      %v1447 = vshrl.u32 %v1446, 7
      %v1448 = vsub.s32 1, %v1447
      %v1449 = vrot.slane %v1339, %v1448
      %v1452 = vsel %vm1437, %v1445, 0.0
      %v1453 = vsel %vm1438, %v1449, 0.0
      %v1454 = vsel %vm1439, %v1445, 0.0
      %v1455 = vsel %vm1440, %v1449, 0.0
      %v1456 = vadd.f32 %v1424, %v1452
      %v1457 = vadd.f32 %v1425, %v1453
      %v1458 = vadd.f32 %v1426, %v1454
      %v1459 = vadd.f32 %v1427, %v1455
      %v1460 = vlaneseq
      %v1461 = vshrl.u32 %v1460, 7
      %v1462 = vsub.s32 0, %v1461
      %v1463 = vrot.slane %v1396, %v1462
      %v1464 = vlaneseq
      %v1465 = vshrl.u32 %v1464, 7
      %v1466 = vsub.s32 0, %v1465
      %v1467 = vrot.slane %v1397, %v1466
      %v1468 = vmul.f32 %v600, %v1463
      %v1469 = vmul.f32 %v600, %v1467
      %v1470 = vmul.f32 %v605, %v1463
      %v1471 = vmul.f32 %v605, %v1467
      %v1472 = vadd.f32 %v1468, 0.0
      %v1473 = vadd.f32 %v1469, 0.0
      %v1474 = vadd.f32 %v1470, 0.0
      %v1475 = vadd.f32 %v1471, 0.0
      %v1476 = vlaneseq
      %v1477 = vshrl.u32 %v1476, 7
      %v1478 = vsub.s32 1, %v1477
      %v1479 = vrot.slane %v1396, %v1478
      %v1480 = vlaneseq
      %v1481 = vshrl.u32 %v1480, 7
      %v1482 = vsub.s32 1, %v1481
      %v1483 = vrot.slane %v1397, %v1482
      %v1484 = vmul.f32 %v625, %v1479
      %v1485 = vmul.f32 %v625, %v1483
      %v1486 = vmul.f32 %v629, %v1479
      %v1487 = vmul.f32 %v629, %v1483
      %v1488 = vadd.f32 %v1472, %v1484
      %v1489 = vadd.f32 %v1473, %v1485
      %v1490 = vadd.f32 %v1474, %v1486
      %v1491 = vadd.f32 %v1475, %v1487
      %v1492 = vlaneseq
      %v1493 = vshrl.u32 %v1492, 7
      %v1494 = vsub.s32 2, %v1493
      %v1495 = vrot.slane %v1396, %v1494
      %v1496 = vlaneseq
      %v1497 = vshrl.u32 %v1496, 7
      %v1498 = vsub.s32 2, %v1497
      %v1499 = vrot.slane %v1397, %v1498
      %v1500 = vmul.f32 %v649, %v1495
      %v1501 = vmul.f32 %v649, %v1499
      %v1502 = vmul.f32 %v653, %v1495
      %v1503 = vmul.f32 %v653, %v1499
      %v1504 = vadd.f32 %v1488, %v1500
      %v1505 = vadd.f32 %v1489, %v1501
      %v1506 = vadd.f32 %v1490, %v1502
      %v1507 = vadd.f32 %v1491, %v1503
      %v1508 = vlaneseq
      %v1509 = vshrl.u32 %v1508, 7
      %v1510 = vsub.s32 3, %v1509
      %v1511 = vrot.slane %v1396, %v1510
      %v1512 = vlaneseq
      %v1513 = vshrl.u32 %v1512, 7
      %v1514 = vsub.s32 3, %v1513
      %v1515 = vrot.slane %v1397, %v1514
      %v1516 = vmul.f32 %v673, %v1511
      %v1517 = vmul.f32 %v673, %v1515
      %v1518 = vmul.f32 %v677, %v1511
      %v1519 = vmul.f32 %v677, %v1515
      %v1520 = vadd.f32 %v1504, %v1516
      %v1521 = vadd.f32 %v1505, %v1517
      %v1522 = vadd.f32 %v1506, %v1518
      %v1523 = vadd.f32 %v1507, %v1519
      %v1524 = vlaneseq
      %v1525 = vshrl.u32 %v1524, 7
      %v1526 = vsub.s32 4, %v1525
      %v1527 = vrot.slane %v1396, %v1526
      %v1528 = vlaneseq
      %v1529 = vshrl.u32 %v1528, 7
      %v1530 = vsub.s32 4, %v1529
      %v1531 = vrot.slane %v1397, %v1530
      %v1532 = vmul.f32 %v697, %v1527
      %v1533 = vmul.f32 %v697, %v1531
      %v1534 = vmul.f32 %v701, %v1527
      %v1535 = vmul.f32 %v701, %v1531
      %v1536 = vadd.f32 %v1520, %v1532
      %v1537 = vadd.f32 %v1521, %v1533
      %v1538 = vadd.f32 %v1522, %v1534
      %v1539 = vadd.f32 %v1523, %v1535
      %v1540 = vlaneseq
      %v1541 = vshrl.u32 %v1540, 7
      %v1542 = vsub.s32 5, %v1541
      %v1543 = vrot.slane %v1396, %v1542
      %v1544 = vlaneseq
      %v1545 = vshrl.u32 %v1544, 7
      %v1546 = vsub.s32 5, %v1545
      %v1547 = vrot.slane %v1397, %v1546
      %v1548 = vmul.f32 %v721, %v1543
      %v1549 = vmul.f32 %v721, %v1547
      %v1550 = vmul.f32 %v725, %v1543
      %v1551 = vmul.f32 %v725, %v1547
      %v1552 = vadd.f32 %v1536, %v1548
      %v1553 = vadd.f32 %v1537, %v1549
      %v1554 = vadd.f32 %v1538, %v1550
      %v1555 = vadd.f32 %v1539, %v1551
      %v1556 = vlaneseq
      %v1557 = vshrl.u32 %v1556, 7
      %v1558 = vsub.s32 6, %v1557
      %v1559 = vrot.slane %v1396, %v1558
      %v1560 = vlaneseq
      %v1561 = vshrl.u32 %v1560, 7
      %v1562 = vsub.s32 6, %v1561
      %v1563 = vrot.slane %v1397, %v1562
      %v1564 = vmul.f32 %v745, %v1559
      %v1565 = vmul.f32 %v745, %v1563
      %v1566 = vmul.f32 %v749, %v1559
      %v1567 = vmul.f32 %v749, %v1563
      %v1568 = vadd.f32 %v1552, %v1564
      %v1569 = vadd.f32 %v1553, %v1565
      %v1570 = vadd.f32 %v1554, %v1566
      %v1571 = vadd.f32 %v1555, %v1567
      %v1572 = vlaneseq
      %v1573 = vshrl.u32 %v1572, 7
      %v1574 = vsub.s32 7, %v1573
      %v1575 = vrot.slane %v1396, %v1574
      %v1576 = vlaneseq
      %v1577 = vshrl.u32 %v1576, 7
      %v1578 = vsub.s32 7, %v1577
      %v1579 = vrot.slane %v1397, %v1578
      %v1580 = vmul.f32 %v769, %v1575
      %v1581 = vmul.f32 %v769, %v1579
      %v1582 = vmul.f32 %v773, %v1575
      %v1583 = vmul.f32 %v773, %v1579
      %v1584 = vadd.f32 %v1568, %v1580
      %v1585 = vadd.f32 %v1569, %v1581
      %v1586 = vadd.f32 %v1570, %v1582
      %v1587 = vadd.f32 %v1571, %v1583
      %v1588 = vlaneseq
      %v1589 = vshrl.u32 %v1588, 7
      %v1590 = vsub.s32 0, %v1589
      %v1591 = vrot.slane %v1398, %v1590
      %v1592 = vlaneseq
      %v1593 = vshrl.u32 %v1592, 7
      %v1594 = vsub.s32 0, %v1593
      %v1595 = vrot.slane %v1399, %v1594
      %v1596 = vmul.f32 %v793, %v1591
      %v1597 = vmul.f32 %v793, %v1595
      %v1598 = vmul.f32 %v797, %v1591
      %v1599 = vmul.f32 %v797, %v1595
      %v1600 = vadd.f32 %v1584, %v1596
      %v1601 = vadd.f32 %v1585, %v1597
      %v1602 = vadd.f32 %v1586, %v1598
      %v1603 = vadd.f32 %v1587, %v1599
      %v1604 = vlaneseq
      %v1605 = vshrl.u32 %v1604, 7
      %v1606 = vsub.s32 1, %v1605
      %v1607 = vrot.slane %v1398, %v1606
      %v1608 = vlaneseq
      %v1609 = vshrl.u32 %v1608, 7
      %v1610 = vsub.s32 1, %v1609
      %v1611 = vrot.slane %v1399, %v1610
      %v1612 = vmul.f32 %v817, %v1607
      %v1613 = vmul.f32 %v817, %v1611
      %v1614 = vmul.f32 %v821, %v1607
      %v1615 = vmul.f32 %v821, %v1611
      %v1616 = vadd.f32 %v1600, %v1612
      %v1617 = vadd.f32 %v1601, %v1613
      %v1618 = vadd.f32 %v1602, %v1614
      %v1619 = vadd.f32 %v1603, %v1615
      %v1620 = vlaneseq
      %v1621 = vshrl.u32 %v1620, 7
      %v1622 = vsub.s32 2, %v1621
      %v1623 = vrot.slane %v1398, %v1622
      %v1624 = vlaneseq
      %v1625 = vshrl.u32 %v1624, 7
      %v1626 = vsub.s32 2, %v1625
      %v1627 = vrot.slane %v1399, %v1626
      %v1628 = vmul.f32 %v841, %v1623
      %v1629 = vmul.f32 %v841, %v1627
      %v1630 = vmul.f32 %v845, %v1623
      %v1631 = vmul.f32 %v845, %v1627
      %v1632 = vadd.f32 %v1616, %v1628
      %v1633 = vadd.f32 %v1617, %v1629
      %v1634 = vadd.f32 %v1618, %v1630
      %v1635 = vadd.f32 %v1619, %v1631
      %v1636 = vlaneseq
      %v1637 = vshrl.u32 %v1636, 7
      %v1638 = vsub.s32 3, %v1637
      %v1639 = vrot.slane %v1398, %v1638
      %v1640 = vlaneseq
      %v1641 = vshrl.u32 %v1640, 7
      %v1642 = vsub.s32 3, %v1641
      %v1643 = vrot.slane %v1399, %v1642
      %v1644 = vmul.f32 %v865, %v1639
      %v1645 = vmul.f32 %v865, %v1643
      %v1646 = vmul.f32 %v869, %v1639
      %v1647 = vmul.f32 %v869, %v1643
      %v1648 = vadd.f32 %v1632, %v1644
      %v1649 = vadd.f32 %v1633, %v1645
      %v1650 = vadd.f32 %v1634, %v1646
      %v1651 = vadd.f32 %v1635, %v1647
      %v1652 = vlaneseq
      %v1653 = vshrl.u32 %v1652, 7
      %v1654 = vsub.s32 4, %v1653
      %v1655 = vrot.slane %v1398, %v1654
      %v1656 = vlaneseq
      %v1657 = vshrl.u32 %v1656, 7
      %v1658 = vsub.s32 4, %v1657
      %v1659 = vrot.slane %v1399, %v1658
      %v1660 = vmul.f32 %v889, %v1655
      %v1661 = vmul.f32 %v889, %v1659
      %v1662 = vmul.f32 %v893, %v1655
      %v1663 = vmul.f32 %v893, %v1659
      %v1664 = vadd.f32 %v1648, %v1660
      %v1665 = vadd.f32 %v1649, %v1661
      %v1666 = vadd.f32 %v1650, %v1662
      %v1667 = vadd.f32 %v1651, %v1663
      %v1668 = vlaneseq
      %v1669 = vshrl.u32 %v1668, 7
      %v1670 = vsub.s32 5, %v1669
      %v1671 = vrot.slane %v1398, %v1670
      %v1672 = vlaneseq
      %v1673 = vshrl.u32 %v1672, 7
      %v1674 = vsub.s32 5, %v1673
      %v1675 = vrot.slane %v1399, %v1674
      %v1676 = vmul.f32 %v913, %v1671
      %v1677 = vmul.f32 %v913, %v1675
      %v1678 = vmul.f32 %v917, %v1671
      %v1679 = vmul.f32 %v917, %v1675
      %v1680 = vadd.f32 %v1664, %v1676
      %v1681 = vadd.f32 %v1665, %v1677
      %v1682 = vadd.f32 %v1666, %v1678
      %v1683 = vadd.f32 %v1667, %v1679
      %v1684 = vlaneseq
      %v1685 = vshrl.u32 %v1684, 7
      %v1686 = vsub.s32 6, %v1685
      %v1687 = vrot.slane %v1398, %v1686
      %v1688 = vlaneseq
      %v1689 = vshrl.u32 %v1688, 7
      %v1690 = vsub.s32 6, %v1689
      %v1691 = vrot.slane %v1399, %v1690
      %v1692 = vmul.f32 %v937, %v1687
      %v1693 = vmul.f32 %v937, %v1691
      %v1694 = vmul.f32 %v941, %v1687
      %v1695 = vmul.f32 %v941, %v1691
      %v1696 = vadd.f32 %v1680, %v1692
      %v1697 = vadd.f32 %v1681, %v1693
      %v1698 = vadd.f32 %v1682, %v1694
      %v1699 = vadd.f32 %v1683, %v1695
      %v1700 = vlaneseq
      %v1701 = vshrl.u32 %v1700, 7
      %v1702 = vsub.s32 7, %v1701
      %v1703 = vrot.slane %v1398, %v1702
      %v1704 = vlaneseq
      %v1705 = vshrl.u32 %v1704, 7
      %v1706 = vsub.s32 7, %v1705
      %v1707 = vrot.slane %v1399, %v1706
      %v1708 = vmul.f32 %v961, %v1703
      %v1709 = vmul.f32 %v961, %v1707
      %v1710 = vmul.f32 %v965, %v1703
      %v1711 = vmul.f32 %v965, %v1707
      %v1712 = vadd.f32 %v1696, %v1708
      %v1713 = vadd.f32 %v1697, %v1709
      %v1714 = vadd.f32 %v1698, %v1710
      %v1715 = vadd.f32 %v1699, %v1711
      %v1716 = vmul.f32 %v1456, %v1712
      %v1717 = vmul.f32 %v1457, %v1713
      %v1718 = vmul.f32 %v1458, %v1714
      %v1719 = vmul.f32 %v1459, %v1715
      %v1720 = vadd.f32 %v1716, %v1718
      %v1721 = vrot.slane %v1720, 4
      %v1722 = vadd.f32 %v1720, %v1721
      %v1723 = vrot.slane %v1722, 2
      %v1724 = vadd.f32 %v1722, %v1723
      %v1725 = vrot.slane %v1724, 1
      %v1726 = vadd.f32 %v1724, %v1725
      %v1727 = vadd.f32 %v1717, %v1719
      %v1728 = vrot.slane %v1727, 4
      %v1729 = vadd.f32 %v1727, %v1728
      %v1730 = vrot.slane %v1729, 2
      %v1731 = vadd.f32 %v1729, %v1730
      %v1732 = vrot.slane %v1731, 1
      %v1733 = vadd.f32 %v1731, %v1732
      %v1734 = vld [vmem:[%s4] sm:$0xf]
      %1736 = vset.pattern.permute.xlu0 1
      %1737 = vperm.xlu0 %1736, %v1734
      %v1738 = vpop.permute.xlu0 %1737
      %v1740 = vmul.f32 %v1738, %v1726
      %v1741 = vmul.f32 %v1738, %v1733
      %v1742 = vadd.f32 %v1293, %v1740
      %v1743 = vadd.f32 %v1294, %v1741
      %v1744 = vmul.f32 %v1014, %v1463
      %v1745 = vmul.f32 %v1014, %v1467
      %v1746 = vmul.f32 %v1019, %v1463
      %v1747 = vmul.f32 %v1019, %v1467
      %v1748 = vadd.f32 %v1744, 0.0
      %v1749 = vadd.f32 %v1745, 0.0
      %v1750 = vadd.f32 %v1746, 0.0
      %v1751 = vadd.f32 %v1747, 0.0
      %v1752 = vmul.f32 %v1031, %v1479
      %v1753 = vmul.f32 %v1031, %v1483
      %v1754 = vmul.f32 %v1035, %v1479
      %v1755 = vmul.f32 %v1035, %v1483
      %v1756 = vadd.f32 %v1748, %v1752
      %v1757 = vadd.f32 %v1749, %v1753
      %v1758 = vadd.f32 %v1750, %v1754
      %v1759 = vadd.f32 %v1751, %v1755
      %v1760 = vmul.f32 %v1047, %v1495
      %v1761 = vmul.f32 %v1047, %v1499
      %v1762 = vmul.f32 %v1051, %v1495
      %v1763 = vmul.f32 %v1051, %v1499
      %v1764 = vadd.f32 %v1756, %v1760
      %v1765 = vadd.f32 %v1757, %v1761
      %v1766 = vadd.f32 %v1758, %v1762
      %v1767 = vadd.f32 %v1759, %v1763
      %v1768 = vmul.f32 %v1063, %v1511
      %v1769 = vmul.f32 %v1063, %v1515
      %v1770 = vmul.f32 %v1067, %v1511
      %v1771 = vmul.f32 %v1067, %v1515
      %v1772 = vadd.f32 %v1764, %v1768
      %v1773 = vadd.f32 %v1765, %v1769
      %v1774 = vadd.f32 %v1766, %v1770
      %v1775 = vadd.f32 %v1767, %v1771
      %v1776 = vmul.f32 %v1079, %v1527
      %v1777 = vmul.f32 %v1079, %v1531
      %v1778 = vmul.f32 %v1083, %v1527
      %v1779 = vmul.f32 %v1083, %v1531
      %v1780 = vadd.f32 %v1772, %v1776
      %v1781 = vadd.f32 %v1773, %v1777
      %v1782 = vadd.f32 %v1774, %v1778
      %v1783 = vadd.f32 %v1775, %v1779
      %v1784 = vmul.f32 %v1095, %v1543
      %v1785 = vmul.f32 %v1095, %v1547
      %v1786 = vmul.f32 %v1099, %v1543
      %v1787 = vmul.f32 %v1099, %v1547
      %v1788 = vadd.f32 %v1780, %v1784
      %v1789 = vadd.f32 %v1781, %v1785
      %v1790 = vadd.f32 %v1782, %v1786
      %v1791 = vadd.f32 %v1783, %v1787
      %v1792 = vmul.f32 %v1111, %v1559
      %v1793 = vmul.f32 %v1111, %v1563
      %v1794 = vmul.f32 %v1115, %v1559
      %v1795 = vmul.f32 %v1115, %v1563
      %v1796 = vadd.f32 %v1788, %v1792
      %v1797 = vadd.f32 %v1789, %v1793
      %v1798 = vadd.f32 %v1790, %v1794
      %v1799 = vadd.f32 %v1791, %v1795
      %v1800 = vmul.f32 %v1127, %v1575
      %v1801 = vmul.f32 %v1127, %v1579
      %v1802 = vmul.f32 %v1131, %v1575
      %v1803 = vmul.f32 %v1131, %v1579
      %v1804 = vadd.f32 %v1796, %v1800
      %v1805 = vadd.f32 %v1797, %v1801
      %v1806 = vadd.f32 %v1798, %v1802
      %v1807 = vadd.f32 %v1799, %v1803
      %v1808 = vmul.f32 %v1143, %v1591
      %v1809 = vmul.f32 %v1143, %v1595
      %v1810 = vmul.f32 %v1147, %v1591
      %v1811 = vmul.f32 %v1147, %v1595
      %v1812 = vadd.f32 %v1804, %v1808
      %v1813 = vadd.f32 %v1805, %v1809
      %v1814 = vadd.f32 %v1806, %v1810
      %v1815 = vadd.f32 %v1807, %v1811
      %v1816 = vmul.f32 %v1159, %v1607
      %v1817 = vmul.f32 %v1159, %v1611
      %v1818 = vmul.f32 %v1163, %v1607
      %v1819 = vmul.f32 %v1163, %v1611
      %v1820 = vadd.f32 %v1812, %v1816
      %v1821 = vadd.f32 %v1813, %v1817
      %v1822 = vadd.f32 %v1814, %v1818
      %v1823 = vadd.f32 %v1815, %v1819
      %v1824 = vmul.f32 %v1175, %v1623
      %v1825 = vmul.f32 %v1175, %v1627
      %v1826 = vmul.f32 %v1179, %v1623
      %v1827 = vmul.f32 %v1179, %v1627
      %v1828 = vadd.f32 %v1820, %v1824
      %v1829 = vadd.f32 %v1821, %v1825
      %v1830 = vadd.f32 %v1822, %v1826
      %v1831 = vadd.f32 %v1823, %v1827
      %v1832 = vmul.f32 %v1191, %v1639
      %v1833 = vmul.f32 %v1191, %v1643
      %v1834 = vmul.f32 %v1195, %v1639
      %v1835 = vmul.f32 %v1195, %v1643
      %v1836 = vadd.f32 %v1828, %v1832
      %v1837 = vadd.f32 %v1829, %v1833
      %v1838 = vadd.f32 %v1830, %v1834
      %v1839 = vadd.f32 %v1831, %v1835
      %v1840 = vmul.f32 %v1207, %v1655
      %v1841 = vmul.f32 %v1207, %v1659
      %v1842 = vmul.f32 %v1211, %v1655
      %v1843 = vmul.f32 %v1211, %v1659
      %v1844 = vadd.f32 %v1836, %v1840
      %v1845 = vadd.f32 %v1837, %v1841
      %v1846 = vadd.f32 %v1838, %v1842
      %v1847 = vadd.f32 %v1839, %v1843
      %v1848 = vmul.f32 %v1223, %v1671
      %v1849 = vmul.f32 %v1223, %v1675
      %v1850 = vmul.f32 %v1227, %v1671
      %v1851 = vmul.f32 %v1227, %v1675
      %v1852 = vadd.f32 %v1844, %v1848
      %v1853 = vadd.f32 %v1845, %v1849
      %v1854 = vadd.f32 %v1846, %v1850
      %v1855 = vadd.f32 %v1847, %v1851
      %v1856 = vmul.f32 %v1239, %v1687
      %v1857 = vmul.f32 %v1239, %v1691
      %v1858 = vmul.f32 %v1243, %v1687
      %v1859 = vmul.f32 %v1243, %v1691
      %v1860 = vadd.f32 %v1852, %v1856
      %v1861 = vadd.f32 %v1853, %v1857
      %v1862 = vadd.f32 %v1854, %v1858
      %v1863 = vadd.f32 %v1855, %v1859
      %v1864 = vmul.f32 %v1255, %v1703
      %v1865 = vmul.f32 %v1255, %v1707
      %v1866 = vmul.f32 %v1259, %v1703
      %v1867 = vmul.f32 %v1259, %v1707
      %v1868 = vadd.f32 %v1860, %v1864
      %v1869 = vadd.f32 %v1861, %v1865
      %v1870 = vadd.f32 %v1862, %v1866
      %v1871 = vadd.f32 %v1863, %v1867
      %v1872 = vmul.f32 %v1456, %v1868
      %v1873 = vmul.f32 %v1457, %v1869
      %v1874 = vmul.f32 %v1458, %v1870
      %v1875 = vmul.f32 %v1459, %v1871
      %v1876 = vadd.f32 %v1872, %v1874
      %v1877 = vrot.slane %v1876, 4
      %v1878 = vadd.f32 %v1876, %v1877
      %v1879 = vrot.slane %v1878, 2
      %v1880 = vadd.f32 %v1878, %v1879
      %v1881 = vrot.slane %v1880, 1
      %v1882 = vadd.f32 %v1880, %v1881
      %v1883 = vadd.f32 %v1873, %v1875
      %v1884 = vrot.slane %v1883, 4
      %v1885 = vadd.f32 %v1883, %v1884
      %v1886 = vrot.slane %v1885, 2
      %v1887 = vadd.f32 %v1885, %v1886
      %v1888 = vrot.slane %v1887, 1
      %v1889 = vadd.f32 %v1887, %v1888
      %1890 = vset.pattern.permute.xlu0 6
      %1891 = vperm.xlu0 %1890, %v1734
      %v1892 = vpop.permute.xlu0 %1891
      %v1894 = vmul.f32 %v1892, %v1882
      %v1895 = vmul.f32 %v1892, %v1889
      %v1896 = vadd.f32 %v1742, %v1894
      %v1897 = vadd.f32 %v1743, %v1895
      %v1898 = vadd.f32 %v397, 1.0
      %v1899 = vcombine.high %v431, %v431
      %v1901 = vadd.f32 %v1898, %v1899
      %v1902 = vcombine.high %v450, %v450
      %v1904 = vadd.f32 %v434, %v1902
      %v1905 = vfloor.f32 %v1901
      %v1906 = vfloor.f32 %v1904
      %v1907 = vmax.f32 %v1905, 0.0
      %v1908 = vmin.f32 %v1907, 15.0
      %v1909 = vadd.f32 %v1905, 1.0
      %v1910 = vmax.f32 %v1909, 0.0
      %v1911 = vmin.f32 %v1910, 15.0
      %v1912 = vmax.f32 %v1906, 0.0
      %v1913 = vmin.f32 %v1912, 15.0
      %v1914 = vadd.f32 %v1906, 1.0
      %v1915 = vmax.f32 %v1914, 0.0
      %v1916 = vmin.f32 %v1915, 15.0
      %v1917 = vmax.f32 %v1901, 0.0
      %v1918 = vmin.f32 %v1917, 15.0
      %v1919 = vmax.f32 %v1904, 0.0
      %v1920 = vmin.f32 %v1919, 15.0
      %v1921 = vadd.f32 %v1908, 1.0
      %v1922 = vsub.f32 %v1921, %v1918
      %v1923 = vsub.f32 1.0, %v1911
      %v1924 = vadd.f32 %v1923, %v1918
      %v1925 = vadd.f32 %v1913, 1.0
      %v1926 = vsub.f32 %v1925, %v1920
      %v1927 = vsub.f32 1.0, %v1916
      %v1928 = vadd.f32 %v1927, %v1920
      %v1929 = vcvt.f32.s32.to.zero.pseudo %v1908
      %v1930 = vlaneseq
      %v1931 = vshrl.u32 %v1930, 7
      %v1932 = vsub.s32 0, %v1931
      %v1933 = vrot.slane %v1929, %v1932
      %v1934 = vlaneseq
      %v1935 = vshrl.u32 %v1934, 7
      %v1936 = vsub.s32 1, %v1935
      %v1937 = vrot.slane %v1929, %v1936
      %vm1938 = vcmp.eq.s32.totalorder %v412, %v1933
      %vm1939 = vcmp.eq.s32.totalorder %v412, %v1937
      %vm1940 = vcmp.eq.s32.totalorder %v413, %v1933
      %vm1941 = vcmp.eq.s32.totalorder %v413, %v1937
      %v1943 = vlaneseq
      %v1944 = vshrl.u32 %v1943, 7
      %v1945 = vsub.s32 0, %v1944
      %v1946 = vrot.slane %v1922, %v1945
      %v1947 = vlaneseq
      %v1948 = vshrl.u32 %v1947, 7
      %v1949 = vsub.s32 1, %v1948
      %v1950 = vrot.slane %v1922, %v1949
      %v1953 = vsel %vm1938, %v1946, 0.0
      %v1954 = vsel %vm1939, %v1950, 0.0
      %v1955 = vsel %vm1940, %v1946, 0.0
      %v1956 = vsel %vm1941, %v1950, 0.0
      %v1957 = vcvt.f32.s32.to.zero.pseudo %v1911
      %v1958 = vlaneseq
      %v1959 = vshrl.u32 %v1958, 7
      %v1960 = vsub.s32 0, %v1959
      %v1961 = vrot.slane %v1957, %v1960
      %v1962 = vlaneseq
      %v1963 = vshrl.u32 %v1962, 7
      %v1964 = vsub.s32 1, %v1963
      %v1965 = vrot.slane %v1957, %v1964
      %vm1966 = vcmp.eq.s32.totalorder %v412, %v1961
      %vm1967 = vcmp.eq.s32.totalorder %v412, %v1965
      %vm1968 = vcmp.eq.s32.totalorder %v413, %v1961
      %vm1969 = vcmp.eq.s32.totalorder %v413, %v1965
      %v1971 = vlaneseq
      %v1972 = vshrl.u32 %v1971, 7
      %v1973 = vsub.s32 0, %v1972
      %v1974 = vrot.slane %v1924, %v1973
      %v1975 = vlaneseq
      %v1976 = vshrl.u32 %v1975, 7
      %v1977 = vsub.s32 1, %v1976
      %v1978 = vrot.slane %v1924, %v1977
      %v1981 = vsel %vm1966, %v1974, 0.0
      %v1982 = vsel %vm1967, %v1978, 0.0
      %v1983 = vsel %vm1968, %v1974, 0.0
      %v1984 = vsel %vm1969, %v1978, 0.0
      %v1985 = vadd.f32 %v1953, %v1981
      %v1986 = vadd.f32 %v1954, %v1982
      %v1987 = vadd.f32 %v1955, %v1983
      %v1988 = vadd.f32 %v1956, %v1984
      %v1989 = vcvt.f32.s32.to.zero.pseudo %v1913
      %v1990 = vlaneseq
      %v1991 = vshrl.u32 %v1990, 7
      %v1992 = vsub.s32 0, %v1991
      %v1993 = vrot.slane %v1989, %v1992
      %v1994 = vlaneseq
      %v1995 = vshrl.u32 %v1994, 7
      %v1996 = vsub.s32 1, %v1995
      %v1997 = vrot.slane %v1989, %v1996
      %vm1998 = vcmp.eq.s32.totalorder %v412, %v1993
      %vm1999 = vcmp.eq.s32.totalorder %v412, %v1997
      %vm2000 = vcmp.eq.s32.totalorder %v413, %v1993
      %vm2001 = vcmp.eq.s32.totalorder %v413, %v1997
      %v2003 = vlaneseq
      %v2004 = vshrl.u32 %v2003, 7
      %v2005 = vsub.s32 0, %v2004
      %v2006 = vrot.slane %v1926, %v2005
      %v2007 = vlaneseq
      %v2008 = vshrl.u32 %v2007, 7
      %v2009 = vsub.s32 1, %v2008
      %v2010 = vrot.slane %v1926, %v2009
      %v2013 = vsel %vm1998, %v2006, 0.0
      %v2014 = vsel %vm1999, %v2010, 0.0
      %v2015 = vsel %vm2000, %v2006, 0.0
      %v2016 = vsel %vm2001, %v2010, 0.0
      %v2017 = vcvt.f32.s32.to.zero.pseudo %v1916
      %v2018 = vlaneseq
      %v2019 = vshrl.u32 %v2018, 7
      %v2020 = vsub.s32 0, %v2019
      %v2021 = vrot.slane %v2017, %v2020
      %v2022 = vlaneseq
      %v2023 = vshrl.u32 %v2022, 7
      %v2024 = vsub.s32 1, %v2023
      %v2025 = vrot.slane %v2017, %v2024
      %vm2026 = vcmp.eq.s32.totalorder %v412, %v2021
      %vm2027 = vcmp.eq.s32.totalorder %v412, %v2025
      %vm2028 = vcmp.eq.s32.totalorder %v413, %v2021
      %vm2029 = vcmp.eq.s32.totalorder %v413, %v2025
      %v2031 = vlaneseq
      %v2032 = vshrl.u32 %v2031, 7
      %v2033 = vsub.s32 0, %v2032
      %v2034 = vrot.slane %v1928, %v2033
      %v2035 = vlaneseq
      %v2036 = vshrl.u32 %v2035, 7
      %v2037 = vsub.s32 1, %v2036
      %v2038 = vrot.slane %v1928, %v2037
      %v2041 = vsel %vm2026, %v2034, 0.0
      %v2042 = vsel %vm2027, %v2038, 0.0
      %v2043 = vsel %vm2028, %v2034, 0.0
      %v2044 = vsel %vm2029, %v2038, 0.0
      %v2045 = vadd.f32 %v2013, %v2041
      %v2046 = vadd.f32 %v2014, %v2042
      %v2047 = vadd.f32 %v2015, %v2043
      %v2048 = vadd.f32 %v2016, %v2044
      %v2049 = vlaneseq
      %v2050 = vshrl.u32 %v2049, 7
      %v2051 = vsub.s32 0, %v2050
      %v2052 = vrot.slane %v1985, %v2051
      %v2053 = vlaneseq
      %v2054 = vshrl.u32 %v2053, 7
      %v2055 = vsub.s32 0, %v2054
      %v2056 = vrot.slane %v1986, %v2055
      %v2057 = vmul.f32 %v600, %v2052
      %v2058 = vmul.f32 %v600, %v2056
      %v2059 = vmul.f32 %v605, %v2052
      %v2060 = vmul.f32 %v605, %v2056
      %v2061 = vadd.f32 %v2057, 0.0
      %v2062 = vadd.f32 %v2058, 0.0
      %v2063 = vadd.f32 %v2059, 0.0
      %v2064 = vadd.f32 %v2060, 0.0
      %v2065 = vlaneseq
      %v2066 = vshrl.u32 %v2065, 7
      %v2067 = vsub.s32 1, %v2066
      %v2068 = vrot.slane %v1985, %v2067
      %v2069 = vlaneseq
      %v2070 = vshrl.u32 %v2069, 7
      %v2071 = vsub.s32 1, %v2070
      %v2072 = vrot.slane %v1986, %v2071
      %v2073 = vmul.f32 %v625, %v2068
      %v2074 = vmul.f32 %v625, %v2072
      %v2075 = vmul.f32 %v629, %v2068
      %v2076 = vmul.f32 %v629, %v2072
      %v2077 = vadd.f32 %v2061, %v2073
      %v2078 = vadd.f32 %v2062, %v2074
      %v2079 = vadd.f32 %v2063, %v2075
      %v2080 = vadd.f32 %v2064, %v2076
      %v2081 = vlaneseq
      %v2082 = vshrl.u32 %v2081, 7
      %v2083 = vsub.s32 2, %v2082
      %v2084 = vrot.slane %v1985, %v2083
      %v2085 = vlaneseq
      %v2086 = vshrl.u32 %v2085, 7
      %v2087 = vsub.s32 2, %v2086
      %v2088 = vrot.slane %v1986, %v2087
      %v2089 = vmul.f32 %v649, %v2084
      %v2090 = vmul.f32 %v649, %v2088
      %v2091 = vmul.f32 %v653, %v2084
      %v2092 = vmul.f32 %v653, %v2088
      %v2093 = vadd.f32 %v2077, %v2089
      %v2094 = vadd.f32 %v2078, %v2090
      %v2095 = vadd.f32 %v2079, %v2091
      %v2096 = vadd.f32 %v2080, %v2092
      %v2097 = vlaneseq
      %v2098 = vshrl.u32 %v2097, 7
      %v2099 = vsub.s32 3, %v2098
      %v2100 = vrot.slane %v1985, %v2099
      %v2101 = vlaneseq
      %v2102 = vshrl.u32 %v2101, 7
      %v2103 = vsub.s32 3, %v2102
      %v2104 = vrot.slane %v1986, %v2103
      %v2105 = vmul.f32 %v673, %v2100
      %v2106 = vmul.f32 %v673, %v2104
      %v2107 = vmul.f32 %v677, %v2100
      %v2108 = vmul.f32 %v677, %v2104
      %v2109 = vadd.f32 %v2093, %v2105
      %v2110 = vadd.f32 %v2094, %v2106
      %v2111 = vadd.f32 %v2095, %v2107
      %v2112 = vadd.f32 %v2096, %v2108
      %v2113 = vlaneseq
      %v2114 = vshrl.u32 %v2113, 7
      %v2115 = vsub.s32 4, %v2114
      %v2116 = vrot.slane %v1985, %v2115
      %v2117 = vlaneseq
      %v2118 = vshrl.u32 %v2117, 7
      %v2119 = vsub.s32 4, %v2118
      %v2120 = vrot.slane %v1986, %v2119
      %v2121 = vmul.f32 %v697, %v2116
      %v2122 = vmul.f32 %v697, %v2120
      %v2123 = vmul.f32 %v701, %v2116
      %v2124 = vmul.f32 %v701, %v2120
      %v2125 = vadd.f32 %v2109, %v2121
      %v2126 = vadd.f32 %v2110, %v2122
      %v2127 = vadd.f32 %v2111, %v2123
      %v2128 = vadd.f32 %v2112, %v2124
      %v2129 = vlaneseq
      %v2130 = vshrl.u32 %v2129, 7
      %v2131 = vsub.s32 5, %v2130
      %v2132 = vrot.slane %v1985, %v2131
      %v2133 = vlaneseq
      %v2134 = vshrl.u32 %v2133, 7
      %v2135 = vsub.s32 5, %v2134
      %v2136 = vrot.slane %v1986, %v2135
      %v2137 = vmul.f32 %v721, %v2132
      %v2138 = vmul.f32 %v721, %v2136
      %v2139 = vmul.f32 %v725, %v2132
      %v2140 = vmul.f32 %v725, %v2136
      %v2141 = vadd.f32 %v2125, %v2137
      %v2142 = vadd.f32 %v2126, %v2138
      %v2143 = vadd.f32 %v2127, %v2139
      %v2144 = vadd.f32 %v2128, %v2140
      %v2145 = vlaneseq
      %v2146 = vshrl.u32 %v2145, 7
      %v2147 = vsub.s32 6, %v2146
      %v2148 = vrot.slane %v1985, %v2147
      %v2149 = vlaneseq
      %v2150 = vshrl.u32 %v2149, 7
      %v2151 = vsub.s32 6, %v2150
      %v2152 = vrot.slane %v1986, %v2151
      %v2153 = vmul.f32 %v745, %v2148
      %v2154 = vmul.f32 %v745, %v2152
      %v2155 = vmul.f32 %v749, %v2148
      %v2156 = vmul.f32 %v749, %v2152
      %v2157 = vadd.f32 %v2141, %v2153
      %v2158 = vadd.f32 %v2142, %v2154
      %v2159 = vadd.f32 %v2143, %v2155
      %v2160 = vadd.f32 %v2144, %v2156
      %v2161 = vlaneseq
      %v2162 = vshrl.u32 %v2161, 7
      %v2163 = vsub.s32 7, %v2162
      %v2164 = vrot.slane %v1985, %v2163
      %v2165 = vlaneseq
      %v2166 = vshrl.u32 %v2165, 7
      %v2167 = vsub.s32 7, %v2166
      %v2168 = vrot.slane %v1986, %v2167
      %v2169 = vmul.f32 %v769, %v2164
      %v2170 = vmul.f32 %v769, %v2168
      %v2171 = vmul.f32 %v773, %v2164
      %v2172 = vmul.f32 %v773, %v2168
      %v2173 = vadd.f32 %v2157, %v2169
      %v2174 = vadd.f32 %v2158, %v2170
      %v2175 = vadd.f32 %v2159, %v2171
      %v2176 = vadd.f32 %v2160, %v2172
      %v2177 = vlaneseq
      %v2178 = vshrl.u32 %v2177, 7
      %v2179 = vsub.s32 0, %v2178
      %v2180 = vrot.slane %v1987, %v2179
      %v2181 = vlaneseq
      %v2182 = vshrl.u32 %v2181, 7
      %v2183 = vsub.s32 0, %v2182
      %v2184 = vrot.slane %v1988, %v2183
      %v2185 = vmul.f32 %v793, %v2180
      %v2186 = vmul.f32 %v793, %v2184
      %v2187 = vmul.f32 %v797, %v2180
      %v2188 = vmul.f32 %v797, %v2184
      %v2189 = vadd.f32 %v2173, %v2185
      %v2190 = vadd.f32 %v2174, %v2186
      %v2191 = vadd.f32 %v2175, %v2187
      %v2192 = vadd.f32 %v2176, %v2188
      %v2193 = vlaneseq
      %v2194 = vshrl.u32 %v2193, 7
      %v2195 = vsub.s32 1, %v2194
      %v2196 = vrot.slane %v1987, %v2195
      %v2197 = vlaneseq
      %v2198 = vshrl.u32 %v2197, 7
      %v2199 = vsub.s32 1, %v2198
      %v2200 = vrot.slane %v1988, %v2199
      %v2201 = vmul.f32 %v817, %v2196
      %v2202 = vmul.f32 %v817, %v2200
      %v2203 = vmul.f32 %v821, %v2196
      %v2204 = vmul.f32 %v821, %v2200
      %v2205 = vadd.f32 %v2189, %v2201
      %v2206 = vadd.f32 %v2190, %v2202
      %v2207 = vadd.f32 %v2191, %v2203
      %v2208 = vadd.f32 %v2192, %v2204
      %v2209 = vlaneseq
      %v2210 = vshrl.u32 %v2209, 7
      %v2211 = vsub.s32 2, %v2210
      %v2212 = vrot.slane %v1987, %v2211
      %v2213 = vlaneseq
      %v2214 = vshrl.u32 %v2213, 7
      %v2215 = vsub.s32 2, %v2214
      %v2216 = vrot.slane %v1988, %v2215
      %v2217 = vmul.f32 %v841, %v2212
      %v2218 = vmul.f32 %v841, %v2216
      %v2219 = vmul.f32 %v845, %v2212
      %v2220 = vmul.f32 %v845, %v2216
      %v2221 = vadd.f32 %v2205, %v2217
      %v2222 = vadd.f32 %v2206, %v2218
      %v2223 = vadd.f32 %v2207, %v2219
      %v2224 = vadd.f32 %v2208, %v2220
      %v2225 = vlaneseq
      %v2226 = vshrl.u32 %v2225, 7
      %v2227 = vsub.s32 3, %v2226
      %v2228 = vrot.slane %v1987, %v2227
      %v2229 = vlaneseq
      %v2230 = vshrl.u32 %v2229, 7
      %v2231 = vsub.s32 3, %v2230
      %v2232 = vrot.slane %v1988, %v2231
      %v2233 = vmul.f32 %v865, %v2228
      %v2234 = vmul.f32 %v865, %v2232
      %v2235 = vmul.f32 %v869, %v2228
      %v2236 = vmul.f32 %v869, %v2232
      %v2237 = vadd.f32 %v2221, %v2233
      %v2238 = vadd.f32 %v2222, %v2234
      %v2239 = vadd.f32 %v2223, %v2235
      %v2240 = vadd.f32 %v2224, %v2236
      %v2241 = vlaneseq
      %v2242 = vshrl.u32 %v2241, 7
      %v2243 = vsub.s32 4, %v2242
      %v2244 = vrot.slane %v1987, %v2243
      %v2245 = vlaneseq
      %v2246 = vshrl.u32 %v2245, 7
      %v2247 = vsub.s32 4, %v2246
      %v2248 = vrot.slane %v1988, %v2247
      %v2249 = vmul.f32 %v889, %v2244
      %v2250 = vmul.f32 %v889, %v2248
      %v2251 = vmul.f32 %v893, %v2244
      %v2252 = vmul.f32 %v893, %v2248
      %v2253 = vadd.f32 %v2237, %v2249
      %v2254 = vadd.f32 %v2238, %v2250
      %v2255 = vadd.f32 %v2239, %v2251
      %v2256 = vadd.f32 %v2240, %v2252
      %v2257 = vlaneseq
      %v2258 = vshrl.u32 %v2257, 7
      %v2259 = vsub.s32 5, %v2258
      %v2260 = vrot.slane %v1987, %v2259
      %v2261 = vlaneseq
      %v2262 = vshrl.u32 %v2261, 7
      %v2263 = vsub.s32 5, %v2262
      %v2264 = vrot.slane %v1988, %v2263
      %v2265 = vmul.f32 %v913, %v2260
      %v2266 = vmul.f32 %v913, %v2264
      %v2267 = vmul.f32 %v917, %v2260
      %v2268 = vmul.f32 %v917, %v2264
      %v2269 = vadd.f32 %v2253, %v2265
      %v2270 = vadd.f32 %v2254, %v2266
      %v2271 = vadd.f32 %v2255, %v2267
      %v2272 = vadd.f32 %v2256, %v2268
      %v2273 = vlaneseq
      %v2274 = vshrl.u32 %v2273, 7
      %v2275 = vsub.s32 6, %v2274
      %v2276 = vrot.slane %v1987, %v2275
      %v2277 = vlaneseq
      %v2278 = vshrl.u32 %v2277, 7
      %v2279 = vsub.s32 6, %v2278
      %v2280 = vrot.slane %v1988, %v2279
      %v2281 = vmul.f32 %v937, %v2276
      %v2282 = vmul.f32 %v937, %v2280
      %v2283 = vmul.f32 %v941, %v2276
      %v2284 = vmul.f32 %v941, %v2280
      %v2285 = vadd.f32 %v2269, %v2281
      %v2286 = vadd.f32 %v2270, %v2282
      %v2287 = vadd.f32 %v2271, %v2283
      %v2288 = vadd.f32 %v2272, %v2284
      %v2289 = vlaneseq
      %v2290 = vshrl.u32 %v2289, 7
      %v2291 = vsub.s32 7, %v2290
      %v2292 = vrot.slane %v1987, %v2291
      %v2293 = vlaneseq
      %v2294 = vshrl.u32 %v2293, 7
      %v2295 = vsub.s32 7, %v2294
      %v2296 = vrot.slane %v1988, %v2295
      %v2297 = vmul.f32 %v961, %v2292
      %v2298 = vmul.f32 %v961, %v2296
      %v2299 = vmul.f32 %v965, %v2292
      %v2300 = vmul.f32 %v965, %v2296
      %v2301 = vadd.f32 %v2285, %v2297
      %v2302 = vadd.f32 %v2286, %v2298
      %v2303 = vadd.f32 %v2287, %v2299
      %v2304 = vadd.f32 %v2288, %v2300
      %v2305 = vmul.f32 %v2045, %v2301
      %v2306 = vmul.f32 %v2046, %v2302
      %v2307 = vmul.f32 %v2047, %v2303
      %v2308 = vmul.f32 %v2048, %v2304
      %v2309 = vadd.f32 %v2305, %v2307
      %v2310 = vrot.slane %v2309, 4
      %v2311 = vadd.f32 %v2309, %v2310
      %v2312 = vrot.slane %v2311, 2
      %v2313 = vadd.f32 %v2311, %v2312
      %v2314 = vrot.slane %v2313, 1
      %v2315 = vadd.f32 %v2313, %v2314
      %v2316 = vadd.f32 %v2306, %v2308
      %v2317 = vrot.slane %v2316, 4
      %v2318 = vadd.f32 %v2316, %v2317
      %v2319 = vrot.slane %v2318, 2
      %v2320 = vadd.f32 %v2318, %v2319
      %v2321 = vrot.slane %v2320, 1
      %v2322 = vadd.f32 %v2320, %v2321
      %v2323 = vld [vmem:[%s4] sm:$0xf]
      %2325 = vset.pattern.permute.xlu0 2
      %2326 = vperm.xlu0 %2325, %v2323
      %v2327 = vpop.permute.xlu0 %2326
      %v2329 = vmul.f32 %v2327, %v2315
      %v2330 = vmul.f32 %v2327, %v2322
      %v2331 = vadd.f32 %v1896, %v2329
      %v2332 = vadd.f32 %v1897, %v2330
      %v2333 = vmul.f32 %v1014, %v2052
      %v2334 = vmul.f32 %v1014, %v2056
      %v2335 = vmul.f32 %v1019, %v2052
      %v2336 = vmul.f32 %v1019, %v2056
      %v2337 = vadd.f32 %v2333, 0.0
      %v2338 = vadd.f32 %v2334, 0.0
      %v2339 = vadd.f32 %v2335, 0.0
      %v2340 = vadd.f32 %v2336, 0.0
      %v2341 = vmul.f32 %v1031, %v2068
      %v2342 = vmul.f32 %v1031, %v2072
      %v2343 = vmul.f32 %v1035, %v2068
      %v2344 = vmul.f32 %v1035, %v2072
      %v2345 = vadd.f32 %v2337, %v2341
      %v2346 = vadd.f32 %v2338, %v2342
      %v2347 = vadd.f32 %v2339, %v2343
      %v2348 = vadd.f32 %v2340, %v2344
      %v2349 = vmul.f32 %v1047, %v2084
      %v2350 = vmul.f32 %v1047, %v2088
      %v2351 = vmul.f32 %v1051, %v2084
      %v2352 = vmul.f32 %v1051, %v2088
      %v2353 = vadd.f32 %v2345, %v2349
      %v2354 = vadd.f32 %v2346, %v2350
      %v2355 = vadd.f32 %v2347, %v2351
      %v2356 = vadd.f32 %v2348, %v2352
      %v2357 = vmul.f32 %v1063, %v2100
      %v2358 = vmul.f32 %v1063, %v2104
      %v2359 = vmul.f32 %v1067, %v2100
      %v2360 = vmul.f32 %v1067, %v2104
      %v2361 = vadd.f32 %v2353, %v2357
      %v2362 = vadd.f32 %v2354, %v2358
      %v2363 = vadd.f32 %v2355, %v2359
      %v2364 = vadd.f32 %v2356, %v2360
      %v2365 = vmul.f32 %v1079, %v2116
      %v2366 = vmul.f32 %v1079, %v2120
      %v2367 = vmul.f32 %v1083, %v2116
      %v2368 = vmul.f32 %v1083, %v2120
      %v2369 = vadd.f32 %v2361, %v2365
      %v2370 = vadd.f32 %v2362, %v2366
      %v2371 = vadd.f32 %v2363, %v2367
      %v2372 = vadd.f32 %v2364, %v2368
      %v2373 = vmul.f32 %v1095, %v2132
      %v2374 = vmul.f32 %v1095, %v2136
      %v2375 = vmul.f32 %v1099, %v2132
      %v2376 = vmul.f32 %v1099, %v2136
      %v2377 = vadd.f32 %v2369, %v2373
      %v2378 = vadd.f32 %v2370, %v2374
      %v2379 = vadd.f32 %v2371, %v2375
      %v2380 = vadd.f32 %v2372, %v2376
      %v2381 = vmul.f32 %v1111, %v2148
      %v2382 = vmul.f32 %v1111, %v2152
      %v2383 = vmul.f32 %v1115, %v2148
      %v2384 = vmul.f32 %v1115, %v2152
      %v2385 = vadd.f32 %v2377, %v2381
      %v2386 = vadd.f32 %v2378, %v2382
      %v2387 = vadd.f32 %v2379, %v2383
      %v2388 = vadd.f32 %v2380, %v2384
      %v2389 = vmul.f32 %v1127, %v2164
      %v2390 = vmul.f32 %v1127, %v2168
      %v2391 = vmul.f32 %v1131, %v2164
      %v2392 = vmul.f32 %v1131, %v2168
      %v2393 = vadd.f32 %v2385, %v2389
      %v2394 = vadd.f32 %v2386, %v2390
      %v2395 = vadd.f32 %v2387, %v2391
      %v2396 = vadd.f32 %v2388, %v2392
      %v2397 = vmul.f32 %v1143, %v2180
      %v2398 = vmul.f32 %v1143, %v2184
      %v2399 = vmul.f32 %v1147, %v2180
      %v2400 = vmul.f32 %v1147, %v2184
      %v2401 = vadd.f32 %v2393, %v2397
      %v2402 = vadd.f32 %v2394, %v2398
      %v2403 = vadd.f32 %v2395, %v2399
      %v2404 = vadd.f32 %v2396, %v2400
      %v2405 = vmul.f32 %v1159, %v2196
      %v2406 = vmul.f32 %v1159, %v2200
      %v2407 = vmul.f32 %v1163, %v2196
      %v2408 = vmul.f32 %v1163, %v2200
      %v2409 = vadd.f32 %v2401, %v2405
      %v2410 = vadd.f32 %v2402, %v2406
      %v2411 = vadd.f32 %v2403, %v2407
      %v2412 = vadd.f32 %v2404, %v2408
      %v2413 = vmul.f32 %v1175, %v2212
      %v2414 = vmul.f32 %v1175, %v2216
      %v2415 = vmul.f32 %v1179, %v2212
      %v2416 = vmul.f32 %v1179, %v2216
      %v2417 = vadd.f32 %v2409, %v2413
      %v2418 = vadd.f32 %v2410, %v2414
      %v2419 = vadd.f32 %v2411, %v2415
      %v2420 = vadd.f32 %v2412, %v2416
      %v2421 = vmul.f32 %v1191, %v2228
      %v2422 = vmul.f32 %v1191, %v2232
      %v2423 = vmul.f32 %v1195, %v2228
      %v2424 = vmul.f32 %v1195, %v2232
      %v2425 = vadd.f32 %v2417, %v2421
      %v2426 = vadd.f32 %v2418, %v2422
      %v2427 = vadd.f32 %v2419, %v2423
      %v2428 = vadd.f32 %v2420, %v2424
      %v2429 = vmul.f32 %v1207, %v2244
      %v2430 = vmul.f32 %v1207, %v2248
      %v2431 = vmul.f32 %v1211, %v2244
      %v2432 = vmul.f32 %v1211, %v2248
      %v2433 = vadd.f32 %v2425, %v2429
      %v2434 = vadd.f32 %v2426, %v2430
      %v2435 = vadd.f32 %v2427, %v2431
      %v2436 = vadd.f32 %v2428, %v2432
      %v2437 = vmul.f32 %v1223, %v2260
      %v2438 = vmul.f32 %v1223, %v2264
      %v2439 = vmul.f32 %v1227, %v2260
      %v2440 = vmul.f32 %v1227, %v2264
      %v2441 = vadd.f32 %v2433, %v2437
      %v2442 = vadd.f32 %v2434, %v2438
      %v2443 = vadd.f32 %v2435, %v2439
      %v2444 = vadd.f32 %v2436, %v2440
      %v2445 = vmul.f32 %v1239, %v2276
      %v2446 = vmul.f32 %v1239, %v2280
      %v2447 = vmul.f32 %v1243, %v2276
      %v2448 = vmul.f32 %v1243, %v2280
      %v2449 = vadd.f32 %v2441, %v2445
      %v2450 = vadd.f32 %v2442, %v2446
      %v2451 = vadd.f32 %v2443, %v2447
      %v2452 = vadd.f32 %v2444, %v2448
      %v2453 = vmul.f32 %v1255, %v2292
      %v2454 = vmul.f32 %v1255, %v2296
      %v2455 = vmul.f32 %v1259, %v2292
      %v2456 = vmul.f32 %v1259, %v2296
      %v2457 = vadd.f32 %v2449, %v2453
      %v2458 = vadd.f32 %v2450, %v2454
      %v2459 = vadd.f32 %v2451, %v2455
      %v2460 = vadd.f32 %v2452, %v2456
      %v2461 = vmul.f32 %v2045, %v2457
      %v2462 = vmul.f32 %v2046, %v2458
      %v2463 = vmul.f32 %v2047, %v2459
      %v2464 = vmul.f32 %v2048, %v2460
      %v2465 = vadd.f32 %v2461, %v2463
      %v2466 = vrot.slane %v2465, 4
      %v2467 = vadd.f32 %v2465, %v2466
      %v2468 = vrot.slane %v2467, 2
      %v2469 = vadd.f32 %v2467, %v2468
      %v2470 = vrot.slane %v2469, 1
      %v2471 = vadd.f32 %v2469, %v2470
      %v2472 = vadd.f32 %v2462, %v2464
      %v2473 = vrot.slane %v2472, 4
      %v2474 = vadd.f32 %v2472, %v2473
      %v2475 = vrot.slane %v2474, 2
      %v2476 = vadd.f32 %v2474, %v2475
      %v2477 = vrot.slane %v2476, 1
      %v2478 = vadd.f32 %v2476, %v2477
      %2479 = vset.pattern.permute.xlu0 7
      %2480 = vperm.xlu0 %2479, %v2323
      %v2481 = vpop.permute.xlu0 %2480
      %v2483 = vmul.f32 %v2481, %v2471
      %v2484 = vmul.f32 %v2481, %v2478
      %v2485 = vadd.f32 %v2331, %v2483
      %v2486 = vadd.f32 %v2332, %v2484
      %v2487 = vcombine.high %v1302, %v1302
      %v2489 = vadd.f32 %v1898, %v2487
      %v2492 = vcombine.low %v403, %v404
      %v2494 = vunpack.c.l.s4 1966171168
      %v2495 = vunpack.c.0.s8 %v2494
      %v2496 = vlaneseq
      %v2497 = vshrl.u32 %v2496, 7
      %v2498 = vsub.s32 %v2495, %v2497
      %v2499 = vrot.slane %v2492, %v2498
      %v2501 = vunpack.c.l.s4 1966171168
      %v2502 = vunpack.c.0.s8 %v2501
      %v2503 = vlaneseq
      %v2504 = vshrl.u32 %v2503, 7
      %v2505 = vsub.s32 %v2502, %v2504
      %v2506 = vrot.slane %v2499, %v2505
      %v2508 = vadd.f32 %v1305, %v2506
      %v2509 = vfloor.f32 %v2489
      %v2510 = vfloor.f32 %v2508
      %v2511 = vmax.f32 %v2509, 0.0
      %v2512 = vmin.f32 %v2511, 15.0
      %v2513 = vadd.f32 %v2509, 1.0
      %v2514 = vmax.f32 %v2513, 0.0
      %v2515 = vmin.f32 %v2514, 15.0
      %v2516 = vmax.f32 %v2510, 0.0
      %v2517 = vmin.f32 %v2516, 15.0
      %v2518 = vadd.f32 %v2510, 1.0
      %v2519 = vmax.f32 %v2518, 0.0
      %v2520 = vmin.f32 %v2519, 15.0
      %v2521 = vmax.f32 %v2489, 0.0
      %v2522 = vmin.f32 %v2521, 15.0
      %v2523 = vmax.f32 %v2508, 0.0
      %v2524 = vmin.f32 %v2523, 15.0
      %v2525 = vadd.f32 %v2512, 1.0
      %v2526 = vsub.f32 %v2525, %v2522
      %v2527 = vsub.f32 1.0, %v2515
      %v2528 = vadd.f32 %v2527, %v2522
      %v2529 = vadd.f32 %v2517, 1.0
      %v2530 = vsub.f32 %v2529, %v2524
      %v2531 = vsub.f32 1.0, %v2520
      %v2532 = vadd.f32 %v2531, %v2524
      %v2533 = vcvt.f32.s32.to.zero.pseudo %v2512
      %v2534 = vlaneseq
      %v2535 = vshrl.u32 %v2534, 7
      %v2536 = vsub.s32 0, %v2535
      %v2537 = vrot.slane %v2533, %v2536
      %v2538 = vlaneseq
      %v2539 = vshrl.u32 %v2538, 7
      %v2540 = vsub.s32 1, %v2539
      %v2541 = vrot.slane %v2533, %v2540
      %vm2542 = vcmp.eq.s32.totalorder %v412, %v2537
      %vm2543 = vcmp.eq.s32.totalorder %v412, %v2541
      %vm2544 = vcmp.eq.s32.totalorder %v413, %v2537
      %vm2545 = vcmp.eq.s32.totalorder %v413, %v2541
      %v2547 = vlaneseq
      %v2548 = vshrl.u32 %v2547, 7
      %v2549 = vsub.s32 0, %v2548
      %v2550 = vrot.slane %v2526, %v2549
      %v2551 = vlaneseq
      %v2552 = vshrl.u32 %v2551, 7
      %v2553 = vsub.s32 1, %v2552
      %v2554 = vrot.slane %v2526, %v2553
      %v2557 = vsel %vm2542, %v2550, 0.0
      %v2558 = vsel %vm2543, %v2554, 0.0
      %v2559 = vsel %vm2544, %v2550, 0.0
      %v2560 = vsel %vm2545, %v2554, 0.0
      %v2561 = vcvt.f32.s32.to.zero.pseudo %v2515
      %v2562 = vlaneseq
      %v2563 = vshrl.u32 %v2562, 7
      %v2564 = vsub.s32 0, %v2563
      %v2565 = vrot.slane %v2561, %v2564
      %v2566 = vlaneseq
      %v2567 = vshrl.u32 %v2566, 7
      %v2568 = vsub.s32 1, %v2567
      %v2569 = vrot.slane %v2561, %v2568
      %vm2570 = vcmp.eq.s32.totalorder %v412, %v2565
      %vm2571 = vcmp.eq.s32.totalorder %v412, %v2569
      %vm2572 = vcmp.eq.s32.totalorder %v413, %v2565
      %vm2573 = vcmp.eq.s32.totalorder %v413, %v2569
      %v2575 = vlaneseq
      %v2576 = vshrl.u32 %v2575, 7
      %v2577 = vsub.s32 0, %v2576
      %v2578 = vrot.slane %v2528, %v2577
      %v2579 = vlaneseq
      %v2580 = vshrl.u32 %v2579, 7
      %v2581 = vsub.s32 1, %v2580
      %v2582 = vrot.slane %v2528, %v2581
      %v2585 = vsel %vm2570, %v2578, 0.0
      %v2586 = vsel %vm2571, %v2582, 0.0
      %v2587 = vsel %vm2572, %v2578, 0.0
      %v2588 = vsel %vm2573, %v2582, 0.0
      %v2589 = vadd.f32 %v2557, %v2585
      %v2590 = vadd.f32 %v2558, %v2586
      %v2591 = vadd.f32 %v2559, %v2587
      %v2592 = vadd.f32 %v2560, %v2588
      %v2593 = vcvt.f32.s32.to.zero.pseudo %v2517
      %v2594 = vlaneseq
      %v2595 = vshrl.u32 %v2594, 7
      %v2596 = vsub.s32 0, %v2595
      %v2597 = vrot.slane %v2593, %v2596
      %v2598 = vlaneseq
      %v2599 = vshrl.u32 %v2598, 7
      %v2600 = vsub.s32 1, %v2599
      %v2601 = vrot.slane %v2593, %v2600
      %vm2602 = vcmp.eq.s32.totalorder %v412, %v2597
      %vm2603 = vcmp.eq.s32.totalorder %v412, %v2601
      %vm2604 = vcmp.eq.s32.totalorder %v413, %v2597
      %vm2605 = vcmp.eq.s32.totalorder %v413, %v2601
      %v2607 = vlaneseq
      %v2608 = vshrl.u32 %v2607, 7
      %v2609 = vsub.s32 0, %v2608
      %v2610 = vrot.slane %v2530, %v2609
      %v2611 = vlaneseq
      %v2612 = vshrl.u32 %v2611, 7
      %v2613 = vsub.s32 1, %v2612
      %v2614 = vrot.slane %v2530, %v2613
      %v2617 = vsel %vm2602, %v2610, 0.0
      %v2618 = vsel %vm2603, %v2614, 0.0
      %v2619 = vsel %vm2604, %v2610, 0.0
      %v2620 = vsel %vm2605, %v2614, 0.0
      %v2621 = vcvt.f32.s32.to.zero.pseudo %v2520
      %v2622 = vlaneseq
      %v2623 = vshrl.u32 %v2622, 7
      %v2624 = vsub.s32 0, %v2623
      %v2625 = vrot.slane %v2621, %v2624
      %v2626 = vlaneseq
      %v2627 = vshrl.u32 %v2626, 7
      %v2628 = vsub.s32 1, %v2627
      %v2629 = vrot.slane %v2621, %v2628
      %vm2630 = vcmp.eq.s32.totalorder %v412, %v2625
      %vm2631 = vcmp.eq.s32.totalorder %v412, %v2629
      %vm2632 = vcmp.eq.s32.totalorder %v413, %v2625
      %vm2633 = vcmp.eq.s32.totalorder %v413, %v2629
      %v2635 = vlaneseq
      %v2636 = vshrl.u32 %v2635, 7
      %v2637 = vsub.s32 0, %v2636
      %v2638 = vrot.slane %v2532, %v2637
      %v2639 = vlaneseq
      %v2640 = vshrl.u32 %v2639, 7
      %v2641 = vsub.s32 1, %v2640
      %v2642 = vrot.slane %v2532, %v2641
      %v2645 = vsel %vm2630, %v2638, 0.0
      %v2646 = vsel %vm2631, %v2642, 0.0
      %v2647 = vsel %vm2632, %v2638, 0.0
      %v2648 = vsel %vm2633, %v2642, 0.0
      %v2649 = vadd.f32 %v2617, %v2645
      %v2650 = vadd.f32 %v2618, %v2646
      %v2651 = vadd.f32 %v2619, %v2647
      %v2652 = vadd.f32 %v2620, %v2648
      %v2653 = vlaneseq
      %v2654 = vshrl.u32 %v2653, 7
      %v2655 = vsub.s32 0, %v2654
      %v2656 = vrot.slane %v2589, %v2655
      %v2657 = vlaneseq
      %v2658 = vshrl.u32 %v2657, 7
      %v2659 = vsub.s32 0, %v2658
      %v2660 = vrot.slane %v2590, %v2659
      %v2661 = vmul.f32 %v600, %v2656
      %v2662 = vmul.f32 %v600, %v2660
      %v2663 = vmul.f32 %v605, %v2656
      %v2664 = vmul.f32 %v605, %v2660
      %v2665 = vadd.f32 %v2661, 0.0
      %v2666 = vadd.f32 %v2662, 0.0
      %v2667 = vadd.f32 %v2663, 0.0
      %v2668 = vadd.f32 %v2664, 0.0
      %v2669 = vlaneseq
      %v2670 = vshrl.u32 %v2669, 7
      %v2671 = vsub.s32 1, %v2670
      %v2672 = vrot.slane %v2589, %v2671
      %v2673 = vlaneseq
      %v2674 = vshrl.u32 %v2673, 7
      %v2675 = vsub.s32 1, %v2674
      %v2676 = vrot.slane %v2590, %v2675
      %v2677 = vmul.f32 %v625, %v2672
      %v2678 = vmul.f32 %v625, %v2676
      %v2679 = vmul.f32 %v629, %v2672
      %v2680 = vmul.f32 %v629, %v2676
      %v2681 = vadd.f32 %v2665, %v2677
      %v2682 = vadd.f32 %v2666, %v2678
      %v2683 = vadd.f32 %v2667, %v2679
      %v2684 = vadd.f32 %v2668, %v2680
      %v2685 = vlaneseq
      %v2686 = vshrl.u32 %v2685, 7
      %v2687 = vsub.s32 2, %v2686
      %v2688 = vrot.slane %v2589, %v2687
      %v2689 = vlaneseq
      %v2690 = vshrl.u32 %v2689, 7
      %v2691 = vsub.s32 2, %v2690
      %v2692 = vrot.slane %v2590, %v2691
      %v2693 = vmul.f32 %v649, %v2688
      %v2694 = vmul.f32 %v649, %v2692
      %v2695 = vmul.f32 %v653, %v2688
      %v2696 = vmul.f32 %v653, %v2692
      %v2697 = vadd.f32 %v2681, %v2693
      %v2698 = vadd.f32 %v2682, %v2694
      %v2699 = vadd.f32 %v2683, %v2695
      %v2700 = vadd.f32 %v2684, %v2696
      %v2701 = vlaneseq
      %v2702 = vshrl.u32 %v2701, 7
      %v2703 = vsub.s32 3, %v2702
      %v2704 = vrot.slane %v2589, %v2703
      %v2705 = vlaneseq
      %v2706 = vshrl.u32 %v2705, 7
      %v2707 = vsub.s32 3, %v2706
      %v2708 = vrot.slane %v2590, %v2707
      %v2709 = vmul.f32 %v673, %v2704
      %v2710 = vmul.f32 %v673, %v2708
      %v2711 = vmul.f32 %v677, %v2704
      %v2712 = vmul.f32 %v677, %v2708
      %v2713 = vadd.f32 %v2697, %v2709
      %v2714 = vadd.f32 %v2698, %v2710
      %v2715 = vadd.f32 %v2699, %v2711
      %v2716 = vadd.f32 %v2700, %v2712
      %v2717 = vlaneseq
      %v2718 = vshrl.u32 %v2717, 7
      %v2719 = vsub.s32 4, %v2718
      %v2720 = vrot.slane %v2589, %v2719
      %v2721 = vlaneseq
      %v2722 = vshrl.u32 %v2721, 7
      %v2723 = vsub.s32 4, %v2722
      %v2724 = vrot.slane %v2590, %v2723
      %v2725 = vmul.f32 %v697, %v2720
      %v2726 = vmul.f32 %v697, %v2724
      %v2727 = vmul.f32 %v701, %v2720
      %v2728 = vmul.f32 %v701, %v2724
      %v2729 = vadd.f32 %v2713, %v2725
      %v2730 = vadd.f32 %v2714, %v2726
      %v2731 = vadd.f32 %v2715, %v2727
      %v2732 = vadd.f32 %v2716, %v2728
      %v2733 = vlaneseq
      %v2734 = vshrl.u32 %v2733, 7
      %v2735 = vsub.s32 5, %v2734
      %v2736 = vrot.slane %v2589, %v2735
      %v2737 = vlaneseq
      %v2738 = vshrl.u32 %v2737, 7
      %v2739 = vsub.s32 5, %v2738
      %v2740 = vrot.slane %v2590, %v2739
      %v2741 = vmul.f32 %v721, %v2736
      %v2742 = vmul.f32 %v721, %v2740
      %v2743 = vmul.f32 %v725, %v2736
      %v2744 = vmul.f32 %v725, %v2740
      %v2745 = vadd.f32 %v2729, %v2741
      %v2746 = vadd.f32 %v2730, %v2742
      %v2747 = vadd.f32 %v2731, %v2743
      %v2748 = vadd.f32 %v2732, %v2744
      %v2749 = vlaneseq
      %v2750 = vshrl.u32 %v2749, 7
      %v2751 = vsub.s32 6, %v2750
      %v2752 = vrot.slane %v2589, %v2751
      %v2753 = vlaneseq
      %v2754 = vshrl.u32 %v2753, 7
      %v2755 = vsub.s32 6, %v2754
      %v2756 = vrot.slane %v2590, %v2755
      %v2757 = vmul.f32 %v745, %v2752
      %v2758 = vmul.f32 %v745, %v2756
      %v2759 = vmul.f32 %v749, %v2752
      %v2760 = vmul.f32 %v749, %v2756
      %v2761 = vadd.f32 %v2745, %v2757
      %v2762 = vadd.f32 %v2746, %v2758
      %v2763 = vadd.f32 %v2747, %v2759
      %v2764 = vadd.f32 %v2748, %v2760
      %v2765 = vlaneseq
      %v2766 = vshrl.u32 %v2765, 7
      %v2767 = vsub.s32 7, %v2766
      %v2768 = vrot.slane %v2589, %v2767
      %v2769 = vlaneseq
      %v2770 = vshrl.u32 %v2769, 7
      %v2771 = vsub.s32 7, %v2770
      %v2772 = vrot.slane %v2590, %v2771
      %v2773 = vmul.f32 %v769, %v2768
      %v2774 = vmul.f32 %v769, %v2772
      %v2775 = vmul.f32 %v773, %v2768
      %v2776 = vmul.f32 %v773, %v2772
      %v2777 = vadd.f32 %v2761, %v2773
      %v2778 = vadd.f32 %v2762, %v2774
      %v2779 = vadd.f32 %v2763, %v2775
      %v2780 = vadd.f32 %v2764, %v2776
      %v2781 = vlaneseq
      %v2782 = vshrl.u32 %v2781, 7
      %v2783 = vsub.s32 0, %v2782
      %v2784 = vrot.slane %v2591, %v2783
      %v2785 = vlaneseq
      %v2786 = vshrl.u32 %v2785, 7
      %v2787 = vsub.s32 0, %v2786
      %v2788 = vrot.slane %v2592, %v2787
      %v2789 = vmul.f32 %v793, %v2784
      %v2790 = vmul.f32 %v793, %v2788
      %v2791 = vmul.f32 %v797, %v2784
      %v2792 = vmul.f32 %v797, %v2788
      %v2793 = vadd.f32 %v2777, %v2789
      %v2794 = vadd.f32 %v2778, %v2790
      %v2795 = vadd.f32 %v2779, %v2791
      %v2796 = vadd.f32 %v2780, %v2792
      %v2797 = vlaneseq
      %v2798 = vshrl.u32 %v2797, 7
      %v2799 = vsub.s32 1, %v2798
      %v2800 = vrot.slane %v2591, %v2799
      %v2801 = vlaneseq
      %v2802 = vshrl.u32 %v2801, 7
      %v2803 = vsub.s32 1, %v2802
      %v2804 = vrot.slane %v2592, %v2803
      %v2805 = vmul.f32 %v817, %v2800
      %v2806 = vmul.f32 %v817, %v2804
      %v2807 = vmul.f32 %v821, %v2800
      %v2808 = vmul.f32 %v821, %v2804
      %v2809 = vadd.f32 %v2793, %v2805
      %v2810 = vadd.f32 %v2794, %v2806
      %v2811 = vadd.f32 %v2795, %v2807
      %v2812 = vadd.f32 %v2796, %v2808
      %v2813 = vlaneseq
      %v2814 = vshrl.u32 %v2813, 7
      %v2815 = vsub.s32 2, %v2814
      %v2816 = vrot.slane %v2591, %v2815
      %v2817 = vlaneseq
      %v2818 = vshrl.u32 %v2817, 7
      %v2819 = vsub.s32 2, %v2818
      %v2820 = vrot.slane %v2592, %v2819
      %v2821 = vmul.f32 %v841, %v2816
      %v2822 = vmul.f32 %v841, %v2820
      %v2823 = vmul.f32 %v845, %v2816
      %v2824 = vmul.f32 %v845, %v2820
      %v2825 = vadd.f32 %v2809, %v2821
      %v2826 = vadd.f32 %v2810, %v2822
      %v2827 = vadd.f32 %v2811, %v2823
      %v2828 = vadd.f32 %v2812, %v2824
      %v2829 = vlaneseq
      %v2830 = vshrl.u32 %v2829, 7
      %v2831 = vsub.s32 3, %v2830
      %v2832 = vrot.slane %v2591, %v2831
      %v2833 = vlaneseq
      %v2834 = vshrl.u32 %v2833, 7
      %v2835 = vsub.s32 3, %v2834
      %v2836 = vrot.slane %v2592, %v2835
      %v2837 = vmul.f32 %v865, %v2832
      %v2838 = vmul.f32 %v865, %v2836
      %v2839 = vmul.f32 %v869, %v2832
      %v2840 = vmul.f32 %v869, %v2836
      %v2841 = vadd.f32 %v2825, %v2837
      %v2842 = vadd.f32 %v2826, %v2838
      %v2843 = vadd.f32 %v2827, %v2839
      %v2844 = vadd.f32 %v2828, %v2840
      %v2845 = vlaneseq
      %v2846 = vshrl.u32 %v2845, 7
      %v2847 = vsub.s32 4, %v2846
      %v2848 = vrot.slane %v2591, %v2847
      %v2849 = vlaneseq
      %v2850 = vshrl.u32 %v2849, 7
      %v2851 = vsub.s32 4, %v2850
      %v2852 = vrot.slane %v2592, %v2851
      %v2853 = vmul.f32 %v889, %v2848
      %v2854 = vmul.f32 %v889, %v2852
      %v2855 = vmul.f32 %v893, %v2848
      %v2856 = vmul.f32 %v893, %v2852
      %v2857 = vadd.f32 %v2841, %v2853
      %v2858 = vadd.f32 %v2842, %v2854
      %v2859 = vadd.f32 %v2843, %v2855
      %v2860 = vadd.f32 %v2844, %v2856
      %v2861 = vlaneseq
      %v2862 = vshrl.u32 %v2861, 7
      %v2863 = vsub.s32 5, %v2862
      %v2864 = vrot.slane %v2591, %v2863
      %v2865 = vlaneseq
      %v2866 = vshrl.u32 %v2865, 7
      %v2867 = vsub.s32 5, %v2866
      %v2868 = vrot.slane %v2592, %v2867
      %v2869 = vmul.f32 %v913, %v2864
      %v2870 = vmul.f32 %v913, %v2868
      %v2871 = vmul.f32 %v917, %v2864
      %v2872 = vmul.f32 %v917, %v2868
      %v2873 = vadd.f32 %v2857, %v2869
      %v2874 = vadd.f32 %v2858, %v2870
      %v2875 = vadd.f32 %v2859, %v2871
      %v2876 = vadd.f32 %v2860, %v2872
      %v2877 = vlaneseq
      %v2878 = vshrl.u32 %v2877, 7
      %v2879 = vsub.s32 6, %v2878
      %v2880 = vrot.slane %v2591, %v2879
      %v2881 = vlaneseq
      %v2882 = vshrl.u32 %v2881, 7
      %v2883 = vsub.s32 6, %v2882
      %v2884 = vrot.slane %v2592, %v2883
      %v2885 = vmul.f32 %v937, %v2880
      %v2886 = vmul.f32 %v937, %v2884
      %v2887 = vmul.f32 %v941, %v2880
      %v2888 = vmul.f32 %v941, %v2884
      %v2889 = vadd.f32 %v2873, %v2885
      %v2890 = vadd.f32 %v2874, %v2886
      %v2891 = vadd.f32 %v2875, %v2887
      %v2892 = vadd.f32 %v2876, %v2888
      %v2893 = vlaneseq
      %v2894 = vshrl.u32 %v2893, 7
      %v2895 = vsub.s32 7, %v2894
      %v2896 = vrot.slane %v2591, %v2895
      %v2897 = vlaneseq
      %v2898 = vshrl.u32 %v2897, 7
      %v2899 = vsub.s32 7, %v2898
      %v2900 = vrot.slane %v2592, %v2899
      %v2901 = vmul.f32 %v961, %v2896
      %v2902 = vmul.f32 %v961, %v2900
      %v2903 = vmul.f32 %v965, %v2896
      %v2904 = vmul.f32 %v965, %v2900
      %v2905 = vadd.f32 %v2889, %v2901
      %v2906 = vadd.f32 %v2890, %v2902
      %v2907 = vadd.f32 %v2891, %v2903
      %v2908 = vadd.f32 %v2892, %v2904
      %v2909 = vmul.f32 %v2649, %v2905
      %v2910 = vmul.f32 %v2650, %v2906
      %v2911 = vmul.f32 %v2651, %v2907
      %v2912 = vmul.f32 %v2652, %v2908
      %v2913 = vadd.f32 %v2909, %v2911
      %v2914 = vrot.slane %v2913, 4
      %v2915 = vadd.f32 %v2913, %v2914
      %v2916 = vrot.slane %v2915, 2
      %v2917 = vadd.f32 %v2915, %v2916
      %v2918 = vrot.slane %v2917, 1
      %v2919 = vadd.f32 %v2917, %v2918
      %v2920 = vadd.f32 %v2910, %v2912
      %v2921 = vrot.slane %v2920, 4
      %v2922 = vadd.f32 %v2920, %v2921
      %v2923 = vrot.slane %v2922, 2
      %v2924 = vadd.f32 %v2922, %v2923
      %v2925 = vrot.slane %v2924, 1
      %v2926 = vadd.f32 %v2924, %v2925
      %v2927 = vld [vmem:[%s4] sm:$0xf]
      %2929 = vset.pattern.permute.xlu0 3
      %2930 = vperm.xlu0 %2929, %v2927
      %v2931 = vpop.permute.xlu0 %2930
      %v2933 = vmul.f32 %v2931, %v2919
      %v2934 = vmul.f32 %v2931, %v2926
      %v2935 = vadd.f32 %v2485, %v2933
      %v2936 = vadd.f32 %v2486, %v2934
      %v2937 = vmul.f32 %v1014, %v2656
      %v2938 = vmul.f32 %v1014, %v2660
      %v2939 = vmul.f32 %v1019, %v2656
      %v2940 = vmul.f32 %v1019, %v2660
      %v2941 = vadd.f32 %v2937, 0.0
      %v2942 = vadd.f32 %v2938, 0.0
      %v2943 = vadd.f32 %v2939, 0.0
      %v2944 = vadd.f32 %v2940, 0.0
      %v2945 = vmul.f32 %v1031, %v2672
      %v2946 = vmul.f32 %v1031, %v2676
      %v2947 = vmul.f32 %v1035, %v2672
      %v2948 = vmul.f32 %v1035, %v2676
      %v2949 = vadd.f32 %v2941, %v2945
      %v2950 = vadd.f32 %v2942, %v2946
      %v2951 = vadd.f32 %v2943, %v2947
      %v2952 = vadd.f32 %v2944, %v2948
      %v2953 = vmul.f32 %v1047, %v2688
      %v2954 = vmul.f32 %v1047, %v2692
      %v2955 = vmul.f32 %v1051, %v2688
      %v2956 = vmul.f32 %v1051, %v2692
      %v2957 = vadd.f32 %v2949, %v2953
      %v2958 = vadd.f32 %v2950, %v2954
      %v2959 = vadd.f32 %v2951, %v2955
      %v2960 = vadd.f32 %v2952, %v2956
      %v2961 = vmul.f32 %v1063, %v2704
      %v2962 = vmul.f32 %v1063, %v2708
      %v2963 = vmul.f32 %v1067, %v2704
      %v2964 = vmul.f32 %v1067, %v2708
      %v2965 = vadd.f32 %v2957, %v2961
      %v2966 = vadd.f32 %v2958, %v2962
      %v2967 = vadd.f32 %v2959, %v2963
      %v2968 = vadd.f32 %v2960, %v2964
      %v2969 = vmul.f32 %v1079, %v2720
      %v2970 = vmul.f32 %v1079, %v2724
      %v2971 = vmul.f32 %v1083, %v2720
      %v2972 = vmul.f32 %v1083, %v2724
      %v2973 = vadd.f32 %v2965, %v2969
      %v2974 = vadd.f32 %v2966, %v2970
      %v2975 = vadd.f32 %v2967, %v2971
      %v2976 = vadd.f32 %v2968, %v2972
      %v2977 = vmul.f32 %v1095, %v2736
      %v2978 = vmul.f32 %v1095, %v2740
      %v2979 = vmul.f32 %v1099, %v2736
      %v2980 = vmul.f32 %v1099, %v2740
      %v2981 = vadd.f32 %v2973, %v2977
      %v2982 = vadd.f32 %v2974, %v2978
      %v2983 = vadd.f32 %v2975, %v2979
      %v2984 = vadd.f32 %v2976, %v2980
      %v2985 = vmul.f32 %v1111, %v2752
      %v2986 = vmul.f32 %v1111, %v2756
      %v2987 = vmul.f32 %v1115, %v2752
      %v2988 = vmul.f32 %v1115, %v2756
      %v2989 = vadd.f32 %v2981, %v2985
      %v2990 = vadd.f32 %v2982, %v2986
      %v2991 = vadd.f32 %v2983, %v2987
      %v2992 = vadd.f32 %v2984, %v2988
      %v2993 = vmul.f32 %v1127, %v2768
      %v2994 = vmul.f32 %v1127, %v2772
      %v2995 = vmul.f32 %v1131, %v2768
      %v2996 = vmul.f32 %v1131, %v2772
      %v2997 = vadd.f32 %v2989, %v2993
      %v2998 = vadd.f32 %v2990, %v2994
      %v2999 = vadd.f32 %v2991, %v2995
      %v3000 = vadd.f32 %v2992, %v2996
      %v3001 = vmul.f32 %v1143, %v2784
      %v3002 = vmul.f32 %v1143, %v2788
      %v3003 = vmul.f32 %v1147, %v2784
      %v3004 = vmul.f32 %v1147, %v2788
      %v3005 = vadd.f32 %v2997, %v3001
      %v3006 = vadd.f32 %v2998, %v3002
      %v3007 = vadd.f32 %v2999, %v3003
      %v3008 = vadd.f32 %v3000, %v3004
      %v3009 = vmul.f32 %v1159, %v2800
      %v3010 = vmul.f32 %v1159, %v2804
      %v3011 = vmul.f32 %v1163, %v2800
      %v3012 = vmul.f32 %v1163, %v2804
      %v3013 = vadd.f32 %v3005, %v3009
      %v3014 = vadd.f32 %v3006, %v3010
      %v3015 = vadd.f32 %v3007, %v3011
      %v3016 = vadd.f32 %v3008, %v3012
      %v3017 = vmul.f32 %v1175, %v2816
      %v3018 = vmul.f32 %v1175, %v2820
      %v3019 = vmul.f32 %v1179, %v2816
      %v3020 = vmul.f32 %v1179, %v2820
      %v3021 = vadd.f32 %v3013, %v3017
      %v3022 = vadd.f32 %v3014, %v3018
      %v3023 = vadd.f32 %v3015, %v3019
      %v3024 = vadd.f32 %v3016, %v3020
      %v3025 = vmul.f32 %v1191, %v2832
      %v3026 = vmul.f32 %v1191, %v2836
      %v3027 = vmul.f32 %v1195, %v2832
      %v3028 = vmul.f32 %v1195, %v2836
      %v3029 = vadd.f32 %v3021, %v3025
      %v3030 = vadd.f32 %v3022, %v3026
      %v3031 = vadd.f32 %v3023, %v3027
      %v3032 = vadd.f32 %v3024, %v3028
      %v3033 = vmul.f32 %v1207, %v2848
      %v3034 = vmul.f32 %v1207, %v2852
      %v3035 = vmul.f32 %v1211, %v2848
      %v3036 = vmul.f32 %v1211, %v2852
      %v3037 = vadd.f32 %v3029, %v3033
      %v3038 = vadd.f32 %v3030, %v3034
      %v3039 = vadd.f32 %v3031, %v3035
      %v3040 = vadd.f32 %v3032, %v3036
      %v3041 = vmul.f32 %v1223, %v2864
      %v3042 = vmul.f32 %v1223, %v2868
      %v3043 = vmul.f32 %v1227, %v2864
      %v3044 = vmul.f32 %v1227, %v2868
      %v3045 = vadd.f32 %v3037, %v3041
      %v3046 = vadd.f32 %v3038, %v3042
      %v3047 = vadd.f32 %v3039, %v3043
      %v3048 = vadd.f32 %v3040, %v3044
      %v3049 = vmul.f32 %v1239, %v2880
      %v3050 = vmul.f32 %v1239, %v2884
      %v3051 = vmul.f32 %v1243, %v2880
      %v3052 = vmul.f32 %v1243, %v2884
      %v3053 = vadd.f32 %v3045, %v3049
      %v3054 = vadd.f32 %v3046, %v3050
      %v3055 = vadd.f32 %v3047, %v3051
      %v3056 = vadd.f32 %v3048, %v3052
      %v3057 = vmul.f32 %v1255, %v2896
      %v3058 = vmul.f32 %v1255, %v2900
      %v3059 = vmul.f32 %v1259, %v2896
      %v3060 = vmul.f32 %v1259, %v2900
      %v3061 = vadd.f32 %v3053, %v3057
      %v3062 = vadd.f32 %v3054, %v3058
      %v3063 = vadd.f32 %v3055, %v3059
      %v3064 = vadd.f32 %v3056, %v3060
      %v3065 = vmul.f32 %v2649, %v3061
      %v3066 = vmul.f32 %v2650, %v3062
      %v3067 = vmul.f32 %v2651, %v3063
      %v3068 = vmul.f32 %v2652, %v3064
      %v3069 = vadd.f32 %v3065, %v3067
      %v3070 = vrot.slane %v3069, 4
      %v3071 = vadd.f32 %v3069, %v3070
      %v3072 = vrot.slane %v3071, 2
      %v3073 = vadd.f32 %v3071, %v3072
      %v3074 = vrot.slane %v3073, 1
      %v3075 = vadd.f32 %v3073, %v3074
      %v3076 = vadd.f32 %v3066, %v3068
      %v3077 = vrot.slane %v3076, 4
      %v3078 = vadd.f32 %v3076, %v3077
      %v3079 = vrot.slane %v3078, 2
      %v3080 = vadd.f32 %v3078, %v3079
      %v3081 = vrot.slane %v3080, 1
      %v3082 = vadd.f32 %v3080, %v3081
      %3083 = vset.pattern.permute.xlu0 8
      %3084 = vperm.xlu0 %3083, %v2927
      %v3085 = vpop.permute.xlu0 %3084
      %v3087 = vmul.f32 %v3085, %v3075
      %v3088 = vmul.f32 %v3085, %v3082
      %v3089 = vadd.f32 %v2935, %v3087
      %v3090 = vadd.f32 %v2936, %v3088
      %v3091 = vadd.f32 %v397, 2.0
      %v3093 = vadd.f32 %v3091, %v1312
      %v3094 = vcombine.high %v2499, %v2499
      %v3096 = vunpack.c.l.s4 1966171168
      %v3097 = vunpack.c.0.s8 %v3096
      %v3098 = vlaneseq
      %v3099 = vshrl.u32 %v3098, 7
      %v3100 = vsub.s32 %v3097, %v3099
      %v3101 = vrot.slane %v3094, %v3100
      %v3103 = vadd.f32 %v434, %v3101
      %v3104 = vfloor.f32 %v3093
      %v3105 = vfloor.f32 %v3103
      %v3106 = vmax.f32 %v3104, 0.0
      %v3107 = vmin.f32 %v3106, 15.0
      %v3108 = vadd.f32 %v3104, 1.0
      %v3109 = vmax.f32 %v3108, 0.0
      %v3110 = vmin.f32 %v3109, 15.0
      %v3111 = vmax.f32 %v3105, 0.0
      %v3112 = vmin.f32 %v3111, 15.0
      %v3113 = vadd.f32 %v3105, 1.0
      %v3114 = vmax.f32 %v3113, 0.0
      %v3115 = vmin.f32 %v3114, 15.0
      %v3116 = vmax.f32 %v3093, 0.0
      %v3117 = vmin.f32 %v3116, 15.0
      %v3118 = vmax.f32 %v3103, 0.0
      %v3119 = vmin.f32 %v3118, 15.0
      %v3120 = vadd.f32 %v3107, 1.0
      %v3121 = vsub.f32 %v3120, %v3117
      %v3122 = vsub.f32 1.0, %v3110
      %v3123 = vadd.f32 %v3122, %v3117
      %v3124 = vadd.f32 %v3112, 1.0
      %v3125 = vsub.f32 %v3124, %v3119
      %v3126 = vsub.f32 1.0, %v3115
      %v3127 = vadd.f32 %v3126, %v3119
      %v3128 = vcvt.f32.s32.to.zero.pseudo %v3107
      %v3129 = vlaneseq
      %v3130 = vshrl.u32 %v3129, 7
      %v3131 = vsub.s32 0, %v3130
      %v3132 = vrot.slane %v3128, %v3131
      %v3133 = vlaneseq
      %v3134 = vshrl.u32 %v3133, 7
      %v3135 = vsub.s32 1, %v3134
      %v3136 = vrot.slane %v3128, %v3135
      %vm3137 = vcmp.eq.s32.totalorder %v412, %v3132
      %vm3138 = vcmp.eq.s32.totalorder %v412, %v3136
      %vm3139 = vcmp.eq.s32.totalorder %v413, %v3132
      %vm3140 = vcmp.eq.s32.totalorder %v413, %v3136
      %v3142 = vlaneseq
      %v3143 = vshrl.u32 %v3142, 7
      %v3144 = vsub.s32 0, %v3143
      %v3145 = vrot.slane %v3121, %v3144
      %v3146 = vlaneseq
      %v3147 = vshrl.u32 %v3146, 7
      %v3148 = vsub.s32 1, %v3147
      %v3149 = vrot.slane %v3121, %v3148
      %v3152 = vsel %vm3137, %v3145, 0.0
      %v3153 = vsel %vm3138, %v3149, 0.0
      %v3154 = vsel %vm3139, %v3145, 0.0
      %v3155 = vsel %vm3140, %v3149, 0.0
      %v3156 = vcvt.f32.s32.to.zero.pseudo %v3110
      %v3157 = vlaneseq
      %v3158 = vshrl.u32 %v3157, 7
      %v3159 = vsub.s32 0, %v3158
      %v3160 = vrot.slane %v3156, %v3159
      %v3161 = vlaneseq
      %v3162 = vshrl.u32 %v3161, 7
      %v3163 = vsub.s32 1, %v3162
      %v3164 = vrot.slane %v3156, %v3163
      %vm3165 = vcmp.eq.s32.totalorder %v412, %v3160
      %vm3166 = vcmp.eq.s32.totalorder %v412, %v3164
      %vm3167 = vcmp.eq.s32.totalorder %v413, %v3160
      %vm3168 = vcmp.eq.s32.totalorder %v413, %v3164
      %v3170 = vlaneseq
      %v3171 = vshrl.u32 %v3170, 7
      %v3172 = vsub.s32 0, %v3171
      %v3173 = vrot.slane %v3123, %v3172
      %v3174 = vlaneseq
      %v3175 = vshrl.u32 %v3174, 7
      %v3176 = vsub.s32 1, %v3175
      %v3177 = vrot.slane %v3123, %v3176
      %v3180 = vsel %vm3165, %v3173, 0.0
      %v3181 = vsel %vm3166, %v3177, 0.0
      %v3182 = vsel %vm3167, %v3173, 0.0
      %v3183 = vsel %vm3168, %v3177, 0.0
      %v3184 = vadd.f32 %v3152, %v3180
      %v3185 = vadd.f32 %v3153, %v3181
      %v3186 = vadd.f32 %v3154, %v3182
      %v3187 = vadd.f32 %v3155, %v3183
      %v3188 = vcvt.f32.s32.to.zero.pseudo %v3112
      %v3189 = vlaneseq
      %v3190 = vshrl.u32 %v3189, 7
      %v3191 = vsub.s32 0, %v3190
      %v3192 = vrot.slane %v3188, %v3191
      %v3193 = vlaneseq
      %v3194 = vshrl.u32 %v3193, 7
      %v3195 = vsub.s32 1, %v3194
      %v3196 = vrot.slane %v3188, %v3195
      %vm3197 = vcmp.eq.s32.totalorder %v412, %v3192
      %vm3198 = vcmp.eq.s32.totalorder %v412, %v3196
      %vm3199 = vcmp.eq.s32.totalorder %v413, %v3192
      %vm3200 = vcmp.eq.s32.totalorder %v413, %v3196
      %v3202 = vlaneseq
      %v3203 = vshrl.u32 %v3202, 7
      %v3204 = vsub.s32 0, %v3203
      %v3205 = vrot.slane %v3125, %v3204
      %v3206 = vlaneseq
      %v3207 = vshrl.u32 %v3206, 7
      %v3208 = vsub.s32 1, %v3207
      %v3209 = vrot.slane %v3125, %v3208
      %v3212 = vsel %vm3197, %v3205, 0.0
      %v3213 = vsel %vm3198, %v3209, 0.0
      %v3214 = vsel %vm3199, %v3205, 0.0
      %v3215 = vsel %vm3200, %v3209, 0.0
      %v3216 = vcvt.f32.s32.to.zero.pseudo %v3115
      %v3217 = vlaneseq
      %v3218 = vshrl.u32 %v3217, 7
      %v3219 = vsub.s32 0, %v3218
      %v3220 = vrot.slane %v3216, %v3219
      %v3221 = vlaneseq
      %v3222 = vshrl.u32 %v3221, 7
      %v3223 = vsub.s32 1, %v3222
      %v3224 = vrot.slane %v3216, %v3223
      %vm3225 = vcmp.eq.s32.totalorder %v412, %v3220
      %vm3226 = vcmp.eq.s32.totalorder %v412, %v3224
      %vm3227 = vcmp.eq.s32.totalorder %v413, %v3220
      %vm3228 = vcmp.eq.s32.totalorder %v413, %v3224
      %v3230 = vlaneseq
      %v3231 = vshrl.u32 %v3230, 7
      %v3232 = vsub.s32 0, %v3231
      %v3233 = vrot.slane %v3127, %v3232
      %v3234 = vlaneseq
      %v3235 = vshrl.u32 %v3234, 7
      %v3236 = vsub.s32 1, %v3235
      %v3237 = vrot.slane %v3127, %v3236
      %v3240 = vsel %vm3225, %v3233, 0.0
      %v3241 = vsel %vm3226, %v3237, 0.0
      %v3242 = vsel %vm3227, %v3233, 0.0
      %v3243 = vsel %vm3228, %v3237, 0.0
      %v3244 = vadd.f32 %v3212, %v3240
      %v3245 = vadd.f32 %v3213, %v3241
      %v3246 = vadd.f32 %v3214, %v3242
      %v3247 = vadd.f32 %v3215, %v3243
      %v3248 = vlaneseq
      %v3249 = vshrl.u32 %v3248, 7
      %v3250 = vsub.s32 0, %v3249
      %v3251 = vrot.slane %v3184, %v3250
      %v3252 = vlaneseq
      %v3253 = vshrl.u32 %v3252, 7
      %v3254 = vsub.s32 0, %v3253
      %v3255 = vrot.slane %v3185, %v3254
      %v3256 = vmul.f32 %v600, %v3251
      %v3257 = vmul.f32 %v600, %v3255
      %v3258 = vmul.f32 %v605, %v3251
      %v3259 = vmul.f32 %v605, %v3255
      %v3260 = vadd.f32 %v3256, 0.0
      %v3261 = vadd.f32 %v3257, 0.0
      %v3262 = vadd.f32 %v3258, 0.0
      %v3263 = vadd.f32 %v3259, 0.0
      %v3264 = vlaneseq
      %v3265 = vshrl.u32 %v3264, 7
      %v3266 = vsub.s32 1, %v3265
      %v3267 = vrot.slane %v3184, %v3266
      %v3268 = vlaneseq
      %v3269 = vshrl.u32 %v3268, 7
      %v3270 = vsub.s32 1, %v3269
      %v3271 = vrot.slane %v3185, %v3270
      %v3272 = vmul.f32 %v625, %v3267
      %v3273 = vmul.f32 %v625, %v3271
      %v3274 = vmul.f32 %v629, %v3267
      %v3275 = vmul.f32 %v629, %v3271
      %v3276 = vadd.f32 %v3260, %v3272
      %v3277 = vadd.f32 %v3261, %v3273
      %v3278 = vadd.f32 %v3262, %v3274
      %v3279 = vadd.f32 %v3263, %v3275
      %v3280 = vlaneseq
      %v3281 = vshrl.u32 %v3280, 7
      %v3282 = vsub.s32 2, %v3281
      %v3283 = vrot.slane %v3184, %v3282
      %v3284 = vlaneseq
      %v3285 = vshrl.u32 %v3284, 7
      %v3286 = vsub.s32 2, %v3285
      %v3287 = vrot.slane %v3185, %v3286
      %v3288 = vmul.f32 %v649, %v3283
      %v3289 = vmul.f32 %v649, %v3287
      %v3290 = vmul.f32 %v653, %v3283
      %v3291 = vmul.f32 %v653, %v3287
      %v3292 = vadd.f32 %v3276, %v3288
      %v3293 = vadd.f32 %v3277, %v3289
      %v3294 = vadd.f32 %v3278, %v3290
      %v3295 = vadd.f32 %v3279, %v3291
      %v3296 = vlaneseq
      %v3297 = vshrl.u32 %v3296, 7
      %v3298 = vsub.s32 3, %v3297
      %v3299 = vrot.slane %v3184, %v3298
      %v3300 = vlaneseq
      %v3301 = vshrl.u32 %v3300, 7
      %v3302 = vsub.s32 3, %v3301
      %v3303 = vrot.slane %v3185, %v3302
      %v3304 = vmul.f32 %v673, %v3299
      %v3305 = vmul.f32 %v673, %v3303
      %v3306 = vmul.f32 %v677, %v3299
      %v3307 = vmul.f32 %v677, %v3303
      %v3308 = vadd.f32 %v3292, %v3304
      %v3309 = vadd.f32 %v3293, %v3305
      %v3310 = vadd.f32 %v3294, %v3306
      %v3311 = vadd.f32 %v3295, %v3307
      %v3312 = vlaneseq
      %v3313 = vshrl.u32 %v3312, 7
      %v3314 = vsub.s32 4, %v3313
      %v3315 = vrot.slane %v3184, %v3314
      %v3316 = vlaneseq
      %v3317 = vshrl.u32 %v3316, 7
      %v3318 = vsub.s32 4, %v3317
      %v3319 = vrot.slane %v3185, %v3318
      %v3320 = vmul.f32 %v697, %v3315
      %v3321 = vmul.f32 %v697, %v3319
      %v3322 = vmul.f32 %v701, %v3315
      %v3323 = vmul.f32 %v701, %v3319
      %v3324 = vadd.f32 %v3308, %v3320
      %v3325 = vadd.f32 %v3309, %v3321
      %v3326 = vadd.f32 %v3310, %v3322
      %v3327 = vadd.f32 %v3311, %v3323
      %v3328 = vlaneseq
      %v3329 = vshrl.u32 %v3328, 7
      %v3330 = vsub.s32 5, %v3329
      %v3331 = vrot.slane %v3184, %v3330
      %v3332 = vlaneseq
      %v3333 = vshrl.u32 %v3332, 7
      %v3334 = vsub.s32 5, %v3333
      %v3335 = vrot.slane %v3185, %v3334
      %v3336 = vmul.f32 %v721, %v3331
      %v3337 = vmul.f32 %v721, %v3335
      %v3338 = vmul.f32 %v725, %v3331
      %v3339 = vmul.f32 %v725, %v3335
      %v3340 = vadd.f32 %v3324, %v3336
      %v3341 = vadd.f32 %v3325, %v3337
      %v3342 = vadd.f32 %v3326, %v3338
      %v3343 = vadd.f32 %v3327, %v3339
      %v3344 = vlaneseq
      %v3345 = vshrl.u32 %v3344, 7
      %v3346 = vsub.s32 6, %v3345
      %v3347 = vrot.slane %v3184, %v3346
      %v3348 = vlaneseq
      %v3349 = vshrl.u32 %v3348, 7
      %v3350 = vsub.s32 6, %v3349
      %v3351 = vrot.slane %v3185, %v3350
      %v3352 = vmul.f32 %v745, %v3347
      %v3353 = vmul.f32 %v745, %v3351
      %v3354 = vmul.f32 %v749, %v3347
      %v3355 = vmul.f32 %v749, %v3351
      %v3356 = vadd.f32 %v3340, %v3352
      %v3357 = vadd.f32 %v3341, %v3353
      %v3358 = vadd.f32 %v3342, %v3354
      %v3359 = vadd.f32 %v3343, %v3355
      %v3360 = vlaneseq
      %v3361 = vshrl.u32 %v3360, 7
      %v3362 = vsub.s32 7, %v3361
      %v3363 = vrot.slane %v3184, %v3362
      %v3364 = vlaneseq
      %v3365 = vshrl.u32 %v3364, 7
      %v3366 = vsub.s32 7, %v3365
      %v3367 = vrot.slane %v3185, %v3366
      %v3368 = vmul.f32 %v769, %v3363
      %v3369 = vmul.f32 %v769, %v3367
      %v3370 = vmul.f32 %v773, %v3363
      %v3371 = vmul.f32 %v773, %v3367
      %v3372 = vadd.f32 %v3356, %v3368
      %v3373 = vadd.f32 %v3357, %v3369
      %v3374 = vadd.f32 %v3358, %v3370
      %v3375 = vadd.f32 %v3359, %v3371
      %v3376 = vlaneseq
      %v3377 = vshrl.u32 %v3376, 7
      %v3378 = vsub.s32 0, %v3377
      %v3379 = vrot.slane %v3186, %v3378
      %v3380 = vlaneseq
      %v3381 = vshrl.u32 %v3380, 7
      %v3382 = vsub.s32 0, %v3381
      %v3383 = vrot.slane %v3187, %v3382
      %v3384 = vmul.f32 %v793, %v3379
      %v3385 = vmul.f32 %v793, %v3383
      %v3386 = vmul.f32 %v797, %v3379
      %v3387 = vmul.f32 %v797, %v3383
      %v3388 = vadd.f32 %v3372, %v3384
      %v3389 = vadd.f32 %v3373, %v3385
      %v3390 = vadd.f32 %v3374, %v3386
      %v3391 = vadd.f32 %v3375, %v3387
      %v3392 = vlaneseq
      %v3393 = vshrl.u32 %v3392, 7
      %v3394 = vsub.s32 1, %v3393
      %v3395 = vrot.slane %v3186, %v3394
      %v3396 = vlaneseq
      %v3397 = vshrl.u32 %v3396, 7
      %v3398 = vsub.s32 1, %v3397
      %v3399 = vrot.slane %v3187, %v3398
      %v3400 = vmul.f32 %v817, %v3395
      %v3401 = vmul.f32 %v817, %v3399
      %v3402 = vmul.f32 %v821, %v3395
      %v3403 = vmul.f32 %v821, %v3399
      %v3404 = vadd.f32 %v3388, %v3400
      %v3405 = vadd.f32 %v3389, %v3401
      %v3406 = vadd.f32 %v3390, %v3402
      %v3407 = vadd.f32 %v3391, %v3403
      %v3408 = vlaneseq
      %v3409 = vshrl.u32 %v3408, 7
      %v3410 = vsub.s32 2, %v3409
      %v3411 = vrot.slane %v3186, %v3410
      %v3412 = vlaneseq
      %v3413 = vshrl.u32 %v3412, 7
      %v3414 = vsub.s32 2, %v3413
      %v3415 = vrot.slane %v3187, %v3414
      %v3416 = vmul.f32 %v841, %v3411
      %v3417 = vmul.f32 %v841, %v3415
      %v3418 = vmul.f32 %v845, %v3411
      %v3419 = vmul.f32 %v845, %v3415
      %v3420 = vadd.f32 %v3404, %v3416
      %v3421 = vadd.f32 %v3405, %v3417
      %v3422 = vadd.f32 %v3406, %v3418
      %v3423 = vadd.f32 %v3407, %v3419
      %v3424 = vlaneseq
      %v3425 = vshrl.u32 %v3424, 7
      %v3426 = vsub.s32 3, %v3425
      %v3427 = vrot.slane %v3186, %v3426
      %v3428 = vlaneseq
      %v3429 = vshrl.u32 %v3428, 7
      %v3430 = vsub.s32 3, %v3429
      %v3431 = vrot.slane %v3187, %v3430
      %v3432 = vmul.f32 %v865, %v3427
      %v3433 = vmul.f32 %v865, %v3431
      %v3434 = vmul.f32 %v869, %v3427
      %v3435 = vmul.f32 %v869, %v3431
      %v3436 = vadd.f32 %v3420, %v3432
      %v3437 = vadd.f32 %v3421, %v3433
      %v3438 = vadd.f32 %v3422, %v3434
      %v3439 = vadd.f32 %v3423, %v3435
      %v3440 = vlaneseq
      %v3441 = vshrl.u32 %v3440, 7
      %v3442 = vsub.s32 4, %v3441
      %v3443 = vrot.slane %v3186, %v3442
      %v3444 = vlaneseq
      %v3445 = vshrl.u32 %v3444, 7
      %v3446 = vsub.s32 4, %v3445
      %v3447 = vrot.slane %v3187, %v3446
      %v3448 = vmul.f32 %v889, %v3443
      %v3449 = vmul.f32 %v889, %v3447
      %v3450 = vmul.f32 %v893, %v3443
      %v3451 = vmul.f32 %v893, %v3447
      %v3452 = vadd.f32 %v3436, %v3448
      %v3453 = vadd.f32 %v3437, %v3449
      %v3454 = vadd.f32 %v3438, %v3450
      %v3455 = vadd.f32 %v3439, %v3451
      %v3456 = vlaneseq
      %v3457 = vshrl.u32 %v3456, 7
      %v3458 = vsub.s32 5, %v3457
      %v3459 = vrot.slane %v3186, %v3458
      %v3460 = vlaneseq
      %v3461 = vshrl.u32 %v3460, 7
      %v3462 = vsub.s32 5, %v3461
      %v3463 = vrot.slane %v3187, %v3462
      %v3464 = vmul.f32 %v913, %v3459
      %v3465 = vmul.f32 %v913, %v3463
      %v3466 = vmul.f32 %v917, %v3459
      %v3467 = vmul.f32 %v917, %v3463
      %v3468 = vadd.f32 %v3452, %v3464
      %v3469 = vadd.f32 %v3453, %v3465
      %v3470 = vadd.f32 %v3454, %v3466
      %v3471 = vadd.f32 %v3455, %v3467
      %v3472 = vlaneseq
      %v3473 = vshrl.u32 %v3472, 7
      %v3474 = vsub.s32 6, %v3473
      %v3475 = vrot.slane %v3186, %v3474
      %v3476 = vlaneseq
      %v3477 = vshrl.u32 %v3476, 7
      %v3478 = vsub.s32 6, %v3477
      %v3479 = vrot.slane %v3187, %v3478
      %v3480 = vmul.f32 %v937, %v3475
      %v3481 = vmul.f32 %v937, %v3479
      %v3482 = vmul.f32 %v941, %v3475
      %v3483 = vmul.f32 %v941, %v3479
      %v3484 = vadd.f32 %v3468, %v3480
      %v3485 = vadd.f32 %v3469, %v3481
      %v3486 = vadd.f32 %v3470, %v3482
      %v3487 = vadd.f32 %v3471, %v3483
      %v3488 = vlaneseq
      %v3489 = vshrl.u32 %v3488, 7
      %v3490 = vsub.s32 7, %v3489
      %v3491 = vrot.slane %v3186, %v3490
      %v3492 = vlaneseq
      %v3493 = vshrl.u32 %v3492, 7
      %v3494 = vsub.s32 7, %v3493
      %v3495 = vrot.slane %v3187, %v3494
      %v3496 = vmul.f32 %v961, %v3491
      %v3497 = vmul.f32 %v961, %v3495
      %v3498 = vmul.f32 %v965, %v3491
      %v3499 = vmul.f32 %v965, %v3495
      %v3500 = vadd.f32 %v3484, %v3496
      %v3501 = vadd.f32 %v3485, %v3497
      %v3502 = vadd.f32 %v3486, %v3498
      %v3503 = vadd.f32 %v3487, %v3499
      %v3504 = vmul.f32 %v3244, %v3500
      %v3505 = vmul.f32 %v3245, %v3501
      %v3506 = vmul.f32 %v3246, %v3502
      %v3507 = vmul.f32 %v3247, %v3503
      %v3508 = vadd.f32 %v3504, %v3506
      %v3509 = vrot.slane %v3508, 4
      %v3510 = vadd.f32 %v3508, %v3509
      %v3511 = vrot.slane %v3510, 2
      %v3512 = vadd.f32 %v3510, %v3511
      %v3513 = vrot.slane %v3512, 1
      %v3514 = vadd.f32 %v3512, %v3513
      %v3515 = vadd.f32 %v3505, %v3507
      %v3516 = vrot.slane %v3515, 4
      %v3517 = vadd.f32 %v3515, %v3516
      %v3518 = vrot.slane %v3517, 2
      %v3519 = vadd.f32 %v3517, %v3518
      %v3520 = vrot.slane %v3519, 1
      %v3521 = vadd.f32 %v3519, %v3520
      %v3522 = vld [vmem:[%s4] sm:$0xf]
      %3524 = vset.pattern.permute.xlu0 4
      %3525 = vperm.xlu0 %3524, %v3522
      %v3526 = vpop.permute.xlu0 %3525
      %v3528 = vmul.f32 %v3526, %v3514
      %v3529 = vmul.f32 %v3526, %v3521
      %v3530 = vadd.f32 %v3089, %v3528
      %v3531 = vadd.f32 %v3090, %v3529
      %v3532 = vmul.f32 %v1014, %v3251
      %v3533 = vmul.f32 %v1014, %v3255
      %v3534 = vmul.f32 %v1019, %v3251
      %v3535 = vmul.f32 %v1019, %v3255
      %v3536 = vadd.f32 %v3532, 0.0
      %v3537 = vadd.f32 %v3533, 0.0
      %v3538 = vadd.f32 %v3534, 0.0
      %v3539 = vadd.f32 %v3535, 0.0
      %v3540 = vmul.f32 %v1031, %v3267
      %v3541 = vmul.f32 %v1031, %v3271
      %v3542 = vmul.f32 %v1035, %v3267
      %v3543 = vmul.f32 %v1035, %v3271
      %v3544 = vadd.f32 %v3536, %v3540
      %v3545 = vadd.f32 %v3537, %v3541
      %v3546 = vadd.f32 %v3538, %v3542
      %v3547 = vadd.f32 %v3539, %v3543
      %v3548 = vmul.f32 %v1047, %v3283
      %v3549 = vmul.f32 %v1047, %v3287
      %v3550 = vmul.f32 %v1051, %v3283
      %v3551 = vmul.f32 %v1051, %v3287
      %v3552 = vadd.f32 %v3544, %v3548
      %v3553 = vadd.f32 %v3545, %v3549
      %v3554 = vadd.f32 %v3546, %v3550
      %v3555 = vadd.f32 %v3547, %v3551
      %v3556 = vmul.f32 %v1063, %v3299
      %v3557 = vmul.f32 %v1063, %v3303
      %v3558 = vmul.f32 %v1067, %v3299
      %v3559 = vmul.f32 %v1067, %v3303
      %v3560 = vadd.f32 %v3552, %v3556
      %v3561 = vadd.f32 %v3553, %v3557
      %v3562 = vadd.f32 %v3554, %v3558
      %v3563 = vadd.f32 %v3555, %v3559
      %v3564 = vmul.f32 %v1079, %v3315
      %v3565 = vmul.f32 %v1079, %v3319
      %v3566 = vmul.f32 %v1083, %v3315
      %v3567 = vmul.f32 %v1083, %v3319
      %v3568 = vadd.f32 %v3560, %v3564
      %v3569 = vadd.f32 %v3561, %v3565
      %v3570 = vadd.f32 %v3562, %v3566
      %v3571 = vadd.f32 %v3563, %v3567
      %v3572 = vmul.f32 %v1095, %v3331
      %v3573 = vmul.f32 %v1095, %v3335
      %v3574 = vmul.f32 %v1099, %v3331
      %v3575 = vmul.f32 %v1099, %v3335
      %v3576 = vadd.f32 %v3568, %v3572
      %v3577 = vadd.f32 %v3569, %v3573
      %v3578 = vadd.f32 %v3570, %v3574
      %v3579 = vadd.f32 %v3571, %v3575
      %v3580 = vmul.f32 %v1111, %v3347
      %v3581 = vmul.f32 %v1111, %v3351
      %v3582 = vmul.f32 %v1115, %v3347
      %v3583 = vmul.f32 %v1115, %v3351
      %v3584 = vadd.f32 %v3576, %v3580
      %v3585 = vadd.f32 %v3577, %v3581
      %v3586 = vadd.f32 %v3578, %v3582
      %v3587 = vadd.f32 %v3579, %v3583
      %v3588 = vmul.f32 %v1127, %v3363
      %v3589 = vmul.f32 %v1127, %v3367
      %v3590 = vmul.f32 %v1131, %v3363
      %v3591 = vmul.f32 %v1131, %v3367
      %v3592 = vadd.f32 %v3584, %v3588
      %v3593 = vadd.f32 %v3585, %v3589
      %v3594 = vadd.f32 %v3586, %v3590
      %v3595 = vadd.f32 %v3587, %v3591
      %v3596 = vmul.f32 %v1143, %v3379
      %v3597 = vmul.f32 %v1143, %v3383
      %v3598 = vmul.f32 %v1147, %v3379
      %v3599 = vmul.f32 %v1147, %v3383
      %v3600 = vadd.f32 %v3592, %v3596
      %v3601 = vadd.f32 %v3593, %v3597
      %v3602 = vadd.f32 %v3594, %v3598
      %v3603 = vadd.f32 %v3595, %v3599
      %v3604 = vmul.f32 %v1159, %v3395
      %v3605 = vmul.f32 %v1159, %v3399
      %v3606 = vmul.f32 %v1163, %v3395
      %v3607 = vmul.f32 %v1163, %v3399
      %v3608 = vadd.f32 %v3600, %v3604
      %v3609 = vadd.f32 %v3601, %v3605
      %v3610 = vadd.f32 %v3602, %v3606
      %v3611 = vadd.f32 %v3603, %v3607
      %v3612 = vmul.f32 %v1175, %v3411
      %v3613 = vmul.f32 %v1175, %v3415
      %v3614 = vmul.f32 %v1179, %v3411
      %v3615 = vmul.f32 %v1179, %v3415
      %v3616 = vadd.f32 %v3608, %v3612
      %v3617 = vadd.f32 %v3609, %v3613
      %v3618 = vadd.f32 %v3610, %v3614
      %v3619 = vadd.f32 %v3611, %v3615
      %v3620 = vmul.f32 %v1191, %v3427
      %v3621 = vmul.f32 %v1191, %v3431
      %v3622 = vmul.f32 %v1195, %v3427
      %v3623 = vmul.f32 %v1195, %v3431
      %v3624 = vadd.f32 %v3616, %v3620
      %v3625 = vadd.f32 %v3617, %v3621
      %v3626 = vadd.f32 %v3618, %v3622
      %v3627 = vadd.f32 %v3619, %v3623
      %v3628 = vmul.f32 %v1207, %v3443
      %v3629 = vmul.f32 %v1207, %v3447
      %v3630 = vmul.f32 %v1211, %v3443
      %v3631 = vmul.f32 %v1211, %v3447
      %v3632 = vadd.f32 %v3624, %v3628
      %v3633 = vadd.f32 %v3625, %v3629
      %v3634 = vadd.f32 %v3626, %v3630
      %v3635 = vadd.f32 %v3627, %v3631
      %v3636 = vmul.f32 %v1223, %v3459
      %v3637 = vmul.f32 %v1223, %v3463
      %v3638 = vmul.f32 %v1227, %v3459
      %v3639 = vmul.f32 %v1227, %v3463
      %v3640 = vadd.f32 %v3632, %v3636
      %v3641 = vadd.f32 %v3633, %v3637
      %v3642 = vadd.f32 %v3634, %v3638
      %v3643 = vadd.f32 %v3635, %v3639
      %v3644 = vmul.f32 %v1239, %v3475
      %v3645 = vmul.f32 %v1239, %v3479
      %v3646 = vmul.f32 %v1243, %v3475
      %v3647 = vmul.f32 %v1243, %v3479
      %v3648 = vadd.f32 %v3640, %v3644
      %v3649 = vadd.f32 %v3641, %v3645
      %v3650 = vadd.f32 %v3642, %v3646
      %v3651 = vadd.f32 %v3643, %v3647
      %v3652 = vmul.f32 %v1255, %v3491
      %v3653 = vmul.f32 %v1255, %v3495
      %v3654 = vmul.f32 %v1259, %v3491
      %v3655 = vmul.f32 %v1259, %v3495
      %v3656 = vadd.f32 %v3648, %v3652
      %v3657 = vadd.f32 %v3649, %v3653
      %v3658 = vadd.f32 %v3650, %v3654
      %v3659 = vadd.f32 %v3651, %v3655
      %v3660 = vmul.f32 %v3244, %v3656
      %v3661 = vmul.f32 %v3245, %v3657
      %v3662 = vmul.f32 %v3246, %v3658
      %v3663 = vmul.f32 %v3247, %v3659
      %v3664 = vadd.f32 %v3660, %v3662
      %v3665 = vrot.slane %v3664, 4
      %v3666 = vadd.f32 %v3664, %v3665
      %v3667 = vrot.slane %v3666, 2
      %v3668 = vadd.f32 %v3666, %v3667
      %v3669 = vrot.slane %v3668, 1
      %v3670 = vadd.f32 %v3668, %v3669
      %v3671 = vadd.f32 %v3661, %v3663
      %v3672 = vrot.slane %v3671, 4
      %v3673 = vadd.f32 %v3671, %v3672
      %v3674 = vrot.slane %v3673, 2
      %v3675 = vadd.f32 %v3673, %v3674
      %v3676 = vrot.slane %v3675, 1
      %v3677 = vadd.f32 %v3675, %v3676
      %3678 = vset.pattern.permute.xlu0 9
      %3679 = vperm.xlu0 %3678, %v3522
      %v3680 = vpop.permute.xlu0 %3679
      %v3682 = vmul.f32 %v3680, %v3670
      %v3683 = vmul.f32 %v3680, %v3677
      %v3684 = vadd.f32 %v3530, %v3682
      %v3685 = vadd.f32 %v3531, %v3683
      %v3686 = vld [vmem:[%s5] sm:$0xf]
      %3688 = vset.pattern.permute.xlu0 0
      %3689 = vperm.xlu0 %3688, %v3686
      %v3690 = vpop.permute.xlu0 %3689
      %v3692 = vmul.f32 %v3684, %v3690
      %v3693 = vmul.f32 %v3685, %v3690
      %v3694 = vld [vmem:[%s6] sm:$0xf]
      %3696 = vset.pattern.permute.xlu0 0
      %3697 = vperm.xlu0 %3696, %v3694
      %v3698 = vpop.permute.xlu0 %3697
      %v3700 = vadd.f32 %v3692, %v3698
      %v3701 = vadd.f32 %v3693, %v3698
      %v3702 = vxor.u32 %v3700, 2147483648
      %v3703 = vxor.u32 %v3701, 2147483648
      %v3704 = vmul.f32 %v3702, 1.442695
      %v3705 = vpow.pop %v3704
      %v3706 = vmul.f32 %v3703, 1.442695
      %v3707 = vpow.pop %v3706
      %v3708 = vadd.f32 %v3705, 1.0
      %v3709 = vadd.f32 %v3707, 1.0
      %v3710 = vrcp.pop %v3708
      %v3711 = vmul.f32 1.0, %v3710
      %v3712 = vrcp.pop %v3709
      %v3713 = vmul.f32 1.0, %v3712
      %v3714 = vmul.f32 %v3700, %v3711
      %v3715 = vmul.f32 %v3701, %v3713
      %v3716 = vxor.u32 %v3714, 2147483648
      %v3717 = vxor.u32 %v3715, 2147483648
      %v3718 = vmul.f32 %v3716, 1.442695
      %v3719 = vpow.pop %v3718
      %v3720 = vmul.f32 %v3717, 1.442695
      %v3721 = vpow.pop %v3720
      %v3722 = vadd.f32 %v3719, 1.0
      %v3723 = vadd.f32 %v3721, 1.0
      %v3724 = vrcp.pop %v3722
      %v3725 = vmul.f32 1.0, %v3724
      %v3726 = vrcp.pop %v3723
      %v3727 = vmul.f32 1.0, %v3726
      %v3729 = vcombine.high %v405, %v405
      %v3731 = vmul.f32 %v3725, %v405
      %v3732 = vmul.f32 %v3727, %v3729
      %v3733 = vadd.f32 %v3731, %v405
      %v3734 = vadd.f32 %v3732, %v3729
      %v3737 = vcombine.low %v3733, %v3734
      %3739 = vst [vmem:[%s394] sm:$0xff] %v3737
      %s3740 = smul.u32 2, %s23
      %p3741 = scmp.lt.s32.totalorder %s22, 1
      %s3742 = scalar_select %p3741, %s22, 1
      %p3743 = scmp.lt.s32.totalorder %s3740, 1
      %s3744 = scalar_select %p3743, %s3740, 1
      %s3745 = smul.addr %s3742, 2
      %s3746 = sadd.s32 %s3744, %s3745
      %s3747 = smul.addr %s3746, 4
      %s3748 = scalar_lea.vmem %s7, %s3747
      // Predicated region
      $region49: #{_lambda_.5} parent=47 // pred_check
        %p3749 = pneg %p221
      $region50: #{_lambda_.5} parent=47 // pred_check_branch
        %3751 = sbr.rel (%p3749) target = $region52
      $region51: #{_lambda_.5} parent=47 // pred_region
        %s3752 = smul.u32 2, %s23
      $region52: #{_lambda_.5} parent=47 // pred_fallthru
        _
    $region48: #{_lambda_.5} parent=5 // pred_fallthru
      _
    %p3753 = scmp.le.s32.totalorder 2, %s13
    // Predicated region
    $region53: #{_lambda_.5} parent=5 // pred_check
      %p3754 = pneg %p3753
    $region54: #{_lambda_.5} parent=5 // pred_check_branch
      %3756 = sbr.rel (%p3754) target = $region56
    $region55: #{_lambda_.5} parent=5 // pred_region
      %s3757 = ssub.s32 %s13, 2
      // Predicated region
      $region57: #{_lambda_.5} parent=55 // pred_check
        %p3758 = pneg %p227
      $region58: #{_lambda_.5} parent=55 // pred_check_branch
        %3760 = sbr.rel (%p3758) target = $region60
      $region59: #{_lambda_.5} parent=55 // pred_region
        %s3761 = smul.u32 2, %s25
        %p3762 = scmp.lt.s32.totalorder %s24, 1
        %s3763 = scalar_select %p3762, %s24, 1
        %p3764 = scmp.lt.s32.totalorder %s3761, 1
        %s3765 = scalar_select %p3764, %s3761, 1
        %s3766 = smul.addr %s3763, 2
        %s3767 = sadd.s32 %s3765, %s3766
        %s3768 = smul.addr %s3767, 4
        %s3769 = scalar_lea.vmem %s7, %s3768
      $region60: #{_lambda_.5} parent=55 // pred_fallthru
        _
    $region56: #{_lambda_.5} parent=5 // pred_fallthru
      _
  $region6: #{_lambda_.5} parent=0 // loop_footer
    %s17 = sadd.s32 1, %s13
  $region7: #{_lambda_.5} parent=0 // loop_footer_branch
    %12 = sbr.rel target = $region3
  $region8: #{_lambda_.5} parent=0 // loop_exit
    _

</llo_original>
